<compile_context>
chip_gen: v7x
topology: tpu7x:2x2x1
jax: 0.10.0
libtpu: 0.0.40
codegen_flags: <defaults>
</compile_context>

<pallas_src>
import jax
import jax.numpy as jnp
from jax.experimental import pallas as pl
from jax.experimental.pallas import tpu as pltpu

# ---- problem sizes (from the PyTorch module) --------------------------------
N, CIN, H, W = 1, 40, 28, 28
CMID = 120
K = 5
PAD = 2
EPS = 1e-5

# ---- kernel layout constants -------------------------------------------------
CPAD = 128                      # channels padded to a full lane width
WP = W + 2 * PAD                # padded width  = 32 (sublane stride of one image row)
HP = H + 2 * PAD                # padded height = 32
EXTRA = 1                       # one extra padded image row keeps shift sources in-bounds
PF = (HP + EXTRA) * WP          # 1056 flat padded rows
SR = 4                          # output rows per depthwise strip (28 % 4 == 0)
STRIP = SR * WP                 # 128 flat rows per strip  -> [128, 128] f32 accumulator
NSTRIPS = H // SR               # 7 strips
KK = K * K                      # 25 depthwise taps
KK_PAD = 32                     # taps padded to 32 rows for the weight input
SHIFT_LEN = (NSTRIPS - 1) * STRIP + (K - 1) * WP + STRIP   # 1024 rows per shifted copy


# ---- fused Pallas kernel -----------------------------------------------------
def _fused_kernel(x_ref, w1_ref, gamma_ref, beta_ref, wdw_ref, o_ref,
                  pad_ref, shift_ref, wbr_ref):
    # x_ref:     [PF, CIN]            zero-padded input image, flat (row*32+col), channels last
    # w1_ref:    [CIN, CPAD]          1x1 conv weights (lane-padded)
    # gamma_ref: [1, CPAD]            BN scale (lane-padded with zeros)
    # beta_ref:  [1, CPAD]            BN shift (lane-padded with zeros)
    # wdw_ref:   [KK_PAD, CPAD]       depthwise 5x5 weights, row kh*5+kw (lane-padded)
    # o_ref:     [STRIP, CPAD]        one output strip block (padded-flat indexing)
    # pad_ref:   VMEM [PF, CPAD]      ReLU(BN(conv1x1)) with zero halo
    # shift_ref: VMEM [4*SHIFT_LEN, CPAD]  kw-shifted copies (kw = 1..4), 8-sublane aligned reads
    # wbr_ref:   VMEM [KK*STRIP, CPAD]     depthwise weight rows pre-broadcast to strip planes
    step = pl.program_id(0)

    # ---------------- step 0: 1x1 conv + BN + ReLU, fill all scratch -----------------
    @pl.when(step == 0)
    def _():
        # 1x1 conv == one MXU matmul, directly in padded-flat layout (halo rows stay 0).
        y = jnp.dot(x_ref[...], w1_ref[...], preferred_element_type=jnp.float32)  # [PF, CPAD]

        # Training-mode batch stats over the 784 valid pixels, via fused sum / sum-of-squares
        # (halo rows of y are exactly zero, so both sums are already exact -> no mask pass).
        inv_n = 1.0 / float(H * W)
        sumy = jnp.sum(y, axis=0, keepdims=True)
        sumyy = jnp.sum(y * y, axis=0, keepdims=True)
        mean = sumy * inv_n
        var = sumyy * inv_n - mean * mean
        a = gamma_ref[...] * jax.lax.rsqrt(var + EPS)        # [1, CPAD]
        b = beta_ref[...] - mean * a                         # [1, CPAD]

        # Validity mask of the padded-flat rows (interior of the zero halo).
        idx = jax.lax.broadcasted_iota(jnp.int32, (PF, 1), 0)
        r = idx >> 5                  # padded image row (WP == 32)
        c = idx & (WP - 1)            # padded image col
        valid = (r >= PAD) & (r < PAD + H) & (c >= PAD) & (c < PAD + W)

        # BN + ReLU + halo masking fused into one pass filling the padded scratch.
        pad_ref[...] = jnp.where(valid, jnp.maximum(y * a + b, 0.0), 0.0)

        # 4 kw-shifted copies (kw = 1..4): 4 one-time passes so every depthwise tap load
        # in the hot loop below is an 8-sublane-aligned slice.
        for kw in range(1, K):
            dst = (kw - 1) * SHIFT_LEN
            shift_ref[dst:dst + SHIFT_LEN, :] = pad_ref[kw:kw + SHIFT_LEN, :]

        # Hoist the depthwise weight broadcasts: each of the 25 rows is broadcast to a
        # full [STRIP, CPAD] plane exactly once (JAX does not CSE broadcast_in_dim).
        w_all = wdw_ref[...]                                  # [KK_PAD, CPAD]
        for t in range(KK):
            wbr_ref[t * STRIP:(t + 1) * STRIP, :] = jnp.broadcast_to(
                w_all[t:t + 1, :], (STRIP, CPAD))

    # ---------------- steps 1..NSTRIPS: one depthwise 5x5 output strip each ----------
    @pl.when(step > 0)
    def _():
        base = pl.multiple_of((step - 1) * STRIP, STRIP)      # strip start, multiple of 128
        acc = jnp.zeros((STRIP, CPAD), jnp.float32)
        for kh in range(K):
            off = pl.multiple_of(base + kh * WP, WP)          # aligned (multiple of 32)
            for kw in range(K):
                t = kh * K + kw
                if kw == 0:
                    tap = pad_ref[pl.ds(off, STRIP), :]                        # aligned
                else:
                    tap = shift_ref[pl.ds((kw - 1) * SHIFT_LEN + off, STRIP), :]  # aligned
                acc = acc + tap * wbr_ref[t * STRIP:(t + 1) * STRIP, :]
        o_ref[...] = acc                                      # strip block; writeback overlaps


def fused_forward(x_nchw, w1_oihw, gamma, beta, wdw_oihw):
    """x_nchw: [1, 40, 28, 28] f32 -> [1, 120, 28, 28] f32."""
    # NCHW -> padded-flat HWC (zero halo of 2 on each side, +1 extra bottom row).
    x_hwc = jnp.transpose(x_nchw[0], (1, 2, 0))                          # (28, 28, 40)
    x_pad = jnp.pad(x_hwc, ((PAD, PAD + EXTRA), (PAD, PAD), (0, 0)))     # (33, 32, 40)
    x_flat = x_pad.reshape(PF, CIN)                                      # (1056, 40)

    # 1x1 conv weight (120, 40, 1, 1) -> (40, 128), lane-padded with zeros.
    w1 = jnp.transpose(w1_oihw[:, :, 0, 0], (1, 0))                      # (40, 120)
    w1 = jnp.pad(w1, ((0, 0), (0, CPAD - CMID)))                         # (40, 128)

    gamma_p = jnp.pad(gamma, (0, CPAD - CMID)).reshape(1, CPAD)
    beta_p = jnp.pad(beta, (0, CPAD - CMID)).reshape(1, CPAD)

    # Depthwise weight (120, 1, 5, 5) -> (25, 120) -> (32, 128), zero-padded.
    wdw = jnp.transpose(wdw_oihw[:, 0, :, :], (1, 2, 0)).reshape(KK, CMID)
    wdw = jnp.pad(wdw, ((0, KK_PAD - KK), (0, CPAD - CMID)))             # (32, 128)

    out_flat = pl.pallas_call(
        _fused_kernel,
        out_shape=jax.ShapeDtypeStruct((H * WP, CPAD), jnp.float32),
        grid=(1 + NSTRIPS,),
        in_specs=[
            pl.BlockSpec((PF, CIN), lambda i: (0, 0)),
            pl.BlockSpec((CIN, CPAD), lambda i: (0, 0)),
            pl.BlockSpec((1, CPAD), lambda i: (0, 0)),
            pl.BlockSpec((1, CPAD), lambda i: (0, 0)),
            pl.BlockSpec((KK_PAD, CPAD), lambda i: (0, 0)),
        ],
        # step 0 maps to block 0 (not written, then fully overwritten at step 1);
        # step i>=1 maps to strip i-1, so writeback of strip i-1 overlaps strip i compute.
        out_specs=pl.BlockSpec((STRIP, CPAD), lambda i: (jnp.maximum(i - 1, 0), 0)),
        scratch_shapes=[
            pltpu.VMEM((PF, CPAD), jnp.float32),                 # pad_ref   (~0.5 MB)
            pltpu.VMEM(((K - 1) * SHIFT_LEN, CPAD), jnp.float32),  # shift_ref (~2.0 MB)
            pltpu.VMEM((KK * STRIP, CPAD), jnp.float32),         # wbr_ref   (~1.6 MB)
        ],
        compiler_params=pltpu.CompilerParams(
            dimension_semantics=("arbitrary",)),
    )(x_flat, w1, gamma_p, beta_p, wdw)

    # (H*WP, CPAD) -> NCHW, dropping the junk padded columns/lanes.
    out = out_flat.reshape(H, WP, CPAD)[:, :W, :CMID]                    # (28, 28, 120)
    return jnp.transpose(out, (2, 0, 1))[None]


# ---- pure-JAX reference for sanity check ------------------------------------
def ref_forward(x_nchw, w1_oihw, gamma, beta, wdw_oihw):
    y = jax.lax.conv_general_dilated(
        x_nchw, w1_oihw, (1, 1), "VALID",
        dimension_numbers=("NCHW", "OIHW", "NCHW"))
    mean = y.mean(axis=(0, 2, 3), keepdims=True)
    var = ((y - mean) ** 2).mean(axis=(0, 2, 3), keepdims=True)
    y = (y - mean) * jax.lax.rsqrt(var + EPS)
    y = y * gamma.reshape(1, CMID, 1, 1) + beta.reshape(1, CMID, 1, 1)
    y = jnp.maximum(y, 0.0)
    out = jax.lax.conv_general_dilated(
        y, wdw_oihw, (1, 1), ((PAD, PAD), (PAD, PAD)),
        dimension_numbers=("NCHW", "OIHW", "NCHW"),
        feature_group_count=CMID)
    return out


if __name__ == "__main__":
    key = jax.random.PRNGKey(0)
    k_x, k_w1, k_g, k_b, k_dw = jax.random.split(key, 5)

    # deterministic synthetic parameters (shapes per the PyTorch module __init__)
    x = jax.random.normal(k_x, (N, CIN, H, W), dtype=jnp.float32)
    w1 = jax.random.normal(k_w1, (CMID, CIN, 1, 1), dtype=jnp.float32) * 0.1
    gamma = 1.0 + 0.1 * jax.random.normal(k_g, (CMID,), dtype=jnp.float32)
    beta = 0.1 * jax.random.normal(k_b, (CMID,), dtype=jnp.float32)
    wdw = jax.random.normal(k_dw, (CMID, 1, K, K), dtype=jnp.float32) * 0.1

    out = jax.block_until_ready(jax.jit(fused_forward)(x, w1, gamma, beta, wdw))
    ref = jax.block_until_ready(jax.jit(ref_forward)(x, w1, gamma, beta, wdw))

    assert out.shape == (N, CMID, H, W), out.shape
    assert jnp.allclose(out, ref, rtol=2e-3, atol=2e-3), float(
        jnp.max(jnp.abs(out - ref)))
    print("KERNEL_OK")
</pallas_src>

<mosaic_0001>
module attributes {stable_mosaic.version = 11 : i64} {
  func.func @_fused_kernel(%arg0: i32, %arg1: memref<1056x40xf32, #tpu.memory_space<vmem>>, %arg2: memref<40x128xf32, #tpu.memory_space<vmem>>, %arg3: memref<1x128xf32, #tpu.memory_space<vmem>>, %arg4: memref<1x128xf32, #tpu.memory_space<vmem>>, %arg5: memref<32x128xf32, #tpu.memory_space<vmem>>, %arg6: memref<128x128xf32, #tpu.memory_space<vmem>>, %arg7: memref<1056x128xf32, #tpu.memory_space<vmem>>, %arg8: memref<4096x128xf32, #tpu.memory_space<vmem>>, %arg9: memref<3200x128xf32, #tpu.memory_space<vmem>>) attributes {dimension_semantics = [#tpu.dimension_semantics<arbitrary>], iteration_bounds = array<i64: 8>, scalar_prefetch = 0 : i64, scratch_operands = 3 : i64, tpu.core_type = #tpu.core_type<tc>, window_params = [{pipeline_mode = #tpu.pipeline_mode<synchronous>, transform_indices = @transform_0, window_bounds = array<i64: 1056, 40>}, {pipeline_mode = #tpu.pipeline_mode<synchronous>, transform_indices = @transform_1, window_bounds = array<i64: 40, 128>}, {pipeline_mode = #tpu.pipeline_mode<synchronous>, transform_indices = @transform_2, window_bounds = array<i64: 1, 128>}, {pipeline_mode = #tpu.pipeline_mode<synchronous>, transform_indices = @transform_3, window_bounds = array<i64: 1, 128>}, {pipeline_mode = #tpu.pipeline_mode<synchronous>, transform_indices = @transform_4, window_bounds = array<i64: 32, 128>}, {transform_indices = @transform_5, window_bounds = array<i64: 128, 128>}]} {
    %c0_i32 = arith.constant 0 : i32
    %0 = arith.cmpi eq, %arg0, %c0_i32 : i32
    %1 = arith.extui %0 : i1 to i32
    %c0_i32_0 = arith.constant 0 : i32
    %2 = arith.cmpi ne, %1, %c0_i32_0 : i32
    scf.if %2 {
      %c0 = arith.constant 0 : index
      %c0_3 = arith.constant 0 : index
      %6 = vector.load %arg1[%c0, %c0_3] : memref<1056x40xf32, #tpu.memory_space<vmem>>, vector<1056x40xf32>
      %c0_4 = arith.constant 0 : index
      %c0_5 = arith.constant 0 : index
      %7 = vector.load %arg2[%c0_4, %c0_5] : memref<40x128xf32, #tpu.memory_space<vmem>>, vector<40x128xf32>
      %cst = arith.constant dense<0.000000e+00> : vector<1056x128xf32>
      %8 = tpu.matmul %6, %7, %cst {dimension_numbers = #tpu.dot_dimension_numbers<[1], [0], [0], [1], [0, 0, 1, 1], [], []>} : vector<1056x40xf32>, vector<40x128xf32>, vector<1056x128xf32> -> vector<1056x128xf32>
      %cst_6 = arith.constant dense<0.000000e+00> : vector<128xf32>
      %9 = vector.multi_reduction <add>, %8, %cst_6 [0] : vector<1056x128xf32> to vector<128xf32>
      %10 = vector.shape_cast %9 : vector<128xf32> to vector<1x128xf32>
      %11 = arith.mulf %8, %8 : vector<1056x128xf32>
      %cst_7 = arith.constant dense<0.000000e+00> : vector<128xf32>
      %12 = vector.multi_reduction <add>, %11, %cst_7 [0] : vector<1056x128xf32> to vector<128xf32>
      %13 = vector.shape_cast %12 : vector<128xf32> to vector<1x128xf32>
      %cst_8 = arith.constant 0.00127551018 : f32
      %14 = vector.broadcast %cst_8 : f32 to vector<1x128xf32>
      %15 = arith.mulf %10, %14 : vector<1x128xf32>
      %cst_9 = arith.constant 0.00127551018 : f32
      %16 = vector.broadcast %cst_9 : f32 to vector<1x128xf32>
      %17 = arith.mulf %13, %16 : vector<1x128xf32>
      %18 = arith.mulf %15, %15 : vector<1x128xf32>
      %19 = arith.subf %17, %18 : vector<1x128xf32>
      %c0_10 = arith.constant 0 : index
      %c0_11 = arith.constant 0 : index
      %20 = vector.load %arg3[%c0_10, %c0_11] : memref<1x128xf32, #tpu.memory_space<vmem>>, vector<1x128xf32>
      %cst_12 = arith.constant 9.99999974E-6 : f32
      %21 = vector.broadcast %cst_12 : f32 to vector<1x128xf32>
      %22 = arith.addf %19, %21 : vector<1x128xf32>
      %23 = math.rsqrt %22 : vector<1x128xf32>
      %24 = arith.mulf %20, %23 : vector<1x128xf32>
      %c0_13 = arith.constant 0 : index
      %c0_14 = arith.constant 0 : index
      %25 = vector.load %arg4[%c0_13, %c0_14] : memref<1x128xf32, #tpu.memory_space<vmem>>, vector<1x128xf32>
      %26 = arith.mulf %15, %24 : vector<1x128xf32>
      %27 = arith.subf %25, %26 : vector<1x128xf32>
      %28 = tpu.iota {dimensions = array<i32: 0>} : vector<1056x1xi32>
      %c5_i32 = arith.constant 5 : i32
      %29 = vector.broadcast %c5_i32 : i32 to vector<1056x1xi32>
      %30 = arith.shrsi %28, %29 : vector<1056x1xi32>
      %c31_i32 = arith.constant 31 : i32
      %31 = vector.broadcast %c31_i32 : i32 to vector<1056x1xi32>
      %32 = arith.andi %28, %31 : vector<1056x1xi32>
      %c2_i32 = arith.constant 2 : i32
      %33 = vector.broadcast %c2_i32 : i32 to vector<1056x1xi32>
      %34 = arith.cmpi sge, %30, %33 : vector<1056x1xi32>
      %c30_i32 = arith.constant 30 : i32
      %35 = vector.broadcast %c30_i32 : i32 to vector<1056x1xi32>
      %36 = arith.cmpi slt, %30, %35 : vector<1056x1xi32>
      %37 = arith.andi %34, %36 : vector<1056x1xi1>
      %c2_i32_15 = arith.constant 2 : i32
      %38 = vector.broadcast %c2_i32_15 : i32 to vector<1056x1xi32>
      %39 = arith.cmpi sge, %32, %38 : vector<1056x1xi32>
      %40 = arith.andi %37, %39 : vector<1056x1xi1>
      %c30_i32_16 = arith.constant 30 : i32
      %41 = vector.broadcast %c30_i32_16 : i32 to vector<1056x1xi32>
      %42 = arith.cmpi slt, %32, %41 : vector<1056x1xi32>
      %43 = arith.andi %40, %42 : vector<1056x1xi1>
      %44 = vector.broadcast %24 : vector<1x128xf32> to vector<1056x128xf32>
      %45 = arith.mulf %8, %44 : vector<1056x128xf32>
      %46 = vector.broadcast %27 : vector<1x128xf32> to vector<1056x128xf32>
      %47 = arith.addf %45, %46 : vector<1056x128xf32>
      %cst_17 = arith.constant 0.000000e+00 : f32
      %48 = vector.broadcast %cst_17 : f32 to vector<1056x128xf32>
      %49 = arith.maximumf %47, %48 : vector<1056x128xf32>
      %cst_18 = arith.constant 0.000000e+00 : f32
      %50 = vector.shape_cast %43 : vector<1056x1xi1> to vector<1056x1xi1>
      %51 = vector.broadcast %50 : vector<1056x1xi1> to vector<1056x128xi1>
      %52 = vector.broadcast %cst_18 : f32 to vector<1056x128xf32>
      %53 = arith.select %51, %49, %52 : vector<1056x128xi1>, vector<1056x128xf32>
      %c0_19 = arith.constant 0 : index
      %c0_20 = arith.constant 0 : index
      %54 = vector.load %arg7[%c0_19, %c0_20] : memref<1056x128xf32, #tpu.memory_space<vmem>>, vector<1056x128xf32>
      tpu.vector_store %arg7[%c0_19, %c0_20], %53 {strides = array<i32>} : memref<1056x128xf32, #tpu.memory_space<vmem>>, vector<1056x128xf32>,
      %c1 = arith.constant 1 : index
      %c0_21 = arith.constant 0 : index
      %55 = vector.load %arg7[%c1, %c0_21] : memref<1056x128xf32, #tpu.memory_space<vmem>>, vector<1024x128xf32>
      %c0_22 = arith.constant 0 : index
      %c0_23 = arith.constant 0 : index
      %56 = vector.load %arg8[%c0_22, %c0_23] : memref<4096x128xf32, #tpu.memory_space<vmem>>, vector<1024x128xf32>
      tpu.vector_store %arg8[%c0_22, %c0_23], %55 {strides = array<i32>} : memref<4096x128xf32, #tpu.memory_space<vmem>>, vector<1024x128xf32>,
      %c2 = arith.constant 2 : index
      %c0_24 = arith.constant 0 : index
      %57 = vector.load %arg7[%c2, %c0_24] : memref<1056x128xf32, #tpu.memory_space<vmem>>, vector<1024x128xf32>
      %c1024 = arith.constant 1024 : index
      %c0_25 = arith.constant 0 : index
      %58 = vector.load %arg8[%c1024, %c0_25] : memref<4096x128xf32, #tpu.memory_space<vmem>>, vector<1024x128xf32>
      tpu.vector_store %arg8[%c1024, %c0_25], %57 {strides = array<i32>} : memref<4096x128xf32, #tpu.memory_space<vmem>>, vector<1024x128xf32>,
      %c3 = arith.constant 3 : index
      %c0_26 = arith.constant 0 : index
      %59 = vector.load %arg7[%c3, %c0_26] : memref<1056x128xf32, #tpu.memory_space<vmem>>, vector<1024x128xf32>
      %c2048 = arith.constant 2048 : index
      %c0_27 = arith.constant 0 : index
      %60 = vector.load %arg8[%c2048, %c0_27] : memref<4096x128xf32, #tpu.memory_space<vmem>>, vector<1024x128xf32>
      tpu.vector_store %arg8[%c2048, %c0_27], %59 {strides = array<i32>} : memref<4096x128xf32, #tpu.memory_space<vmem>>, vector<1024x128xf32>,
      %c4 = arith.constant 4 : index
      %c0_28 = arith.constant 0 : index
      %61 = vector.load %arg7[%c4, %c0_28] : memref<1056x128xf32, #tpu.memory_space<vmem>>, vector<1024x128xf32>
      %c3072 = arith.constant 3072 : index
      %c0_29 = arith.constant 0 : index
      %62 = vector.load %arg8[%c3072, %c0_29] : memref<4096x128xf32, #tpu.memory_space<vmem>>, vector<1024x128xf32>
      tpu.vector_store %arg8[%c3072, %c0_29], %61 {strides = array<i32>} : memref<4096x128xf32, #tpu.memory_space<vmem>>, vector<1024x128xf32>,
      %c0_30 = arith.constant 0 : index
      %c0_31 = arith.constant 0 : index
      %63 = vector.load %arg5[%c0_30, %c0_31] : memref<32x128xf32, #tpu.memory_space<vmem>>, vector<32x128xf32>
      %64 = vector.extract_strided_slice %63 {offsets = [0, 0], sizes = [1, 128], strides = [1, 1]} : vector<32x128xf32> to vector<1x128xf32>
      %65 = vector.shape_cast %64 : vector<1x128xf32> to vector<1x128xf32>
      %66 = vector.broadcast %65 : vector<1x128xf32> to vector<128x128xf32>
      %c0_32 = arith.constant 0 : index
      %c0_33 = arith.constant 0 : index
      %67 = vector.load %arg9[%c0_32, %c0_33] : memref<3200x128xf32, #tpu.memory_space<vmem>>, vector<128x128xf32>
      tpu.vector_store %arg9[%c0_32, %c0_33], %66 {strides = array<i32>} : memref<3200x128xf32, #tpu.memory_space<vmem>>, vector<128x128xf32>,
      %68 = vector.extract_strided_slice %63 {offsets = [1, 0], sizes = [1, 128], strides = [1, 1]} : vector<32x128xf32> to vector<1x128xf32>
      %69 = vector.shape_cast %68 : vector<1x128xf32> to vector<1x128xf32>
      %70 = vector.broadcast %69 : vector<1x128xf32> to vector<128x128xf32>
      %c128 = arith.constant 128 : index
      %c0_34 = arith.constant 0 : index
      %71 = vector.load %arg9[%c128, %c0_34] : memref<3200x128xf32, #tpu.memory_space<vmem>>, vector<128x128xf32>
      tpu.vector_store %arg9[%c128, %c0_34], %70 {strides = array<i32>} : memref<3200x128xf32, #tpu.memory_space<vmem>>, vector<128x128xf32>,
      %72 = vector.extract_strided_slice %63 {offsets = [2, 0], sizes = [1, 128], strides = [1, 1]} : vector<32x128xf32> to vector<1x128xf32>
      %73 = vector.shape_cast %72 : vector<1x128xf32> to vector<1x128xf32>
      %74 = vector.broadcast %73 : vector<1x128xf32> to vector<128x128xf32>
      %c256 = arith.constant 256 : index
      %c0_35 = arith.constant 0 : index
      %75 = vector.load %arg9[%c256, %c0_35] : memref<3200x128xf32, #tpu.memory_space<vmem>>, vector<128x128xf32>
      tpu.vector_store %arg9[%c256, %c0_35], %74 {strides = array<i32>} : memref<3200x128xf32, #tpu.memory_space<vmem>>, vector<128x128xf32>,
      %76 = vector.extract_strided_slice %63 {offsets = [3, 0], sizes = [1, 128], strides = [1, 1]} : vector<32x128xf32> to vector<1x128xf32>
      %77 = vector.shape_cast %76 : vector<1x128xf32> to vector<1x128xf32>
      %78 = vector.broadcast %77 : vector<1x128xf32> to vector<128x128xf32>
      %c384 = arith.constant 384 : index
      %c0_36 = arith.constant 0 : index
      %79 = vector.load %arg9[%c384, %c0_36] : memref<3200x128xf32, #tpu.memory_space<vmem>>, vector<128x128xf32>
      tpu.vector_store %arg9[%c384, %c0_36], %78 {strides = array<i32>} : memref<3200x128xf32, #tpu.memory_space<vmem>>, vector<128x128xf32>,
      %80 = vector.extract_strided_slice %63 {offsets = [4, 0], sizes = [1, 128], strides = [1, 1]} : vector<32x128xf32> to vector<1x128xf32>
      %81 = vector.shape_cast %80 : vector<1x128xf32> to vector<1x128xf32>
      %82 = vector.broadcast %81 : vector<1x128xf32> to vector<128x128xf32>
      %c512 = arith.constant 512 : index
      %c0_37 = arith.constant 0 : index
      %83 = vector.load %arg9[%c512, %c0_37] : memref<3200x128xf32, #tpu.memory_space<vmem>>, vector<128x128xf32>
      tpu.vector_store %arg9[%c512, %c0_37], %82 {strides = array<i32>} : memref<3200x128xf32, #tpu.memory_space<vmem>>, vector<128x128xf32>,
      %84 = vector.extract_strided_slice %63 {offsets = [5, 0], sizes = [1, 128], strides = [1, 1]} : vector<32x128xf32> to vector<1x128xf32>
      %85 = vector.shape_cast %84 : vector<1x128xf32> to vector<1x128xf32>
      %86 = vector.broadcast %85 : vector<1x128xf32> to vector<128x128xf32>
      %c640 = arith.constant 640 : index
      %c0_38 = arith.constant 0 : index
      %87 = vector.load %arg9[%c640, %c0_38] : memref<3200x128xf32, #tpu.memory_space<vmem>>, vector<128x128xf32>
      tpu.vector_store %arg9[%c640, %c0_38], %86 {strides = array<i32>} : memref<3200x128xf32, #tpu.memory_space<vmem>>, vector<128x128xf32>,
      %88 = vector.extract_strided_slice %63 {offsets = [6, 0], sizes = [1, 128], strides = [1, 1]} : vector<32x128xf32> to vector<1x128xf32>
      %89 = vector.shape_cast %88 : vector<1x128xf32> to vector<1x128xf32>
      %90 = vector.broadcast %89 : vector<1x128xf32> to vector<128x128xf32>
      %c768 = arith.constant 768 : index
      %c0_39 = arith.constant 0 : index
      %91 = vector.load %arg9[%c768, %c0_39] : memref<3200x128xf32, #tpu.memory_space<vmem>>, vector<128x128xf32>
      tpu.vector_store %arg9[%c768, %c0_39], %90 {strides = array<i32>} : memref<3200x128xf32, #tpu.memory_space<vmem>>, vector<128x128xf32>,
      %92 = vector.extract_strided_slice %63 {offsets = [7, 0], sizes = [1, 128], strides = [1, 1]} : vector<32x128xf32> to vector<1x128xf32>
      %93 = vector.shape_cast %92 : vector<1x128xf32> to vector<1x128xf32>
      %94 = vector.broadcast %93 : vector<1x128xf32> to vector<128x128xf32>
      %c896 = arith.constant 896 : index
      %c0_40 = arith.constant 0 : index
      %95 = vector.load %arg9[%c896, %c0_40] : memref<3200x128xf32, #tpu.memory_space<vmem>>, vector<128x128xf32>
      tpu.vector_store %arg9[%c896, %c0_40], %94 {strides = array<i32>} : memref<3200x128xf32, #tpu.memory_space<vmem>>, vector<128x128xf32>,
      %96 = vector.extract_strided_slice %63 {offsets = [8, 0], sizes = [1, 128], strides = [1, 1]} : vector<32x128xf32> to vector<1x128xf32>
      %97 = vector.shape_cast %96 : vector<1x128xf32> to vector<1x128xf32>
      %98 = vector.broadcast %97 : vector<1x128xf32> to vector<128x128xf32>
      %c1024_41 = arith.constant 1024 : index
      %c0_42 = arith.constant 0 : index
      %99 = vector.load %arg9[%c1024_41, %c0_42] : memref<3200x128xf32, #tpu.memory_space<vmem>>, vector<128x128xf32>
      tpu.vector_store %arg9[%c1024_41, %c0_42], %98 {strides = array<i32>} : memref<3200x128xf32, #tpu.memory_space<vmem>>, vector<128x128xf32>,
      %100 = vector.extract_strided_slice %63 {offsets = [9, 0], sizes = [1, 128], strides = [1, 1]} : vector<32x128xf32> to vector<1x128xf32>
      %101 = vector.shape_cast %100 : vector<1x128xf32> to vector<1x128xf32>
      %102 = vector.broadcast %101 : vector<1x128xf32> to vector<128x128xf32>
      %c1152 = arith.constant 1152 : index
      %c0_43 = arith.constant 0 : index
      %103 = vector.load %arg9[%c1152, %c0_43] : memref<3200x128xf32, #tpu.memory_space<vmem>>, vector<128x128xf32>
      tpu.vector_store %arg9[%c1152, %c0_43], %102 {strides = array<i32>} : memref<3200x128xf32, #tpu.memory_space<vmem>>, vector<128x128xf32>,
      %104 = vector.extract_strided_slice %63 {offsets = [10, 0], sizes = [1, 128], strides = [1, 1]} : vector<32x128xf32> to vector<1x128xf32>
      %105 = vector.shape_cast %104 : vector<1x128xf32> to vector<1x128xf32>
      %106 = vector.broadcast %105 : vector<1x128xf32> to vector<128x128xf32>
      %c1280 = arith.constant 1280 : index
      %c0_44 = arith.constant 0 : index
      %107 = vector.load %arg9[%c1280, %c0_44] : memref<3200x128xf32, #tpu.memory_space<vmem>>, vector<128x128xf32>
      tpu.vector_store %arg9[%c1280, %c0_44], %106 {strides = array<i32>} : memref<3200x128xf32, #tpu.memory_space<vmem>>, vector<128x128xf32>,
      %108 = vector.extract_strided_slice %63 {offsets = [11, 0], sizes = [1, 128], strides = [1, 1]} : vector<32x128xf32> to vector<1x128xf32>
      %109 = vector.shape_cast %108 : vector<1x128xf32> to vector<1x128xf32>
      %110 = vector.broadcast %109 : vector<1x128xf32> to vector<128x128xf32>
      %c1408 = arith.constant 1408 : index
      %c0_45 = arith.constant 0 : index
      %111 = vector.load %arg9[%c1408, %c0_45] : memref<3200x128xf32, #tpu.memory_space<vmem>>, vector<128x128xf32>
      tpu.vector_store %arg9[%c1408, %c0_45], %110 {strides = array<i32>} : memref<3200x128xf32, #tpu.memory_space<vmem>>, vector<128x128xf32>,
      %112 = vector.extract_strided_slice %63 {offsets = [12, 0], sizes = [1, 128], strides = [1, 1]} : vector<32x128xf32> to vector<1x128xf32>
      %113 = vector.shape_cast %112 : vector<1x128xf32> to vector<1x128xf32>
      %114 = vector.broadcast %113 : vector<1x128xf32> to vector<128x128xf32>
      %c1536 = arith.constant 1536 : index
      %c0_46 = arith.constant 0 : index
      %115 = vector.load %arg9[%c1536, %c0_46] : memref<3200x128xf32, #tpu.memory_space<vmem>>, vector<128x128xf32>
      tpu.vector_store %arg9[%c1536, %c0_46], %114 {strides = array<i32>} : memref<3200x128xf32, #tpu.memory_space<vmem>>, vector<128x128xf32>,
      %116 = vector.extract_strided_slice %63 {offsets = [13, 0], sizes = [1, 128], strides = [1, 1]} : vector<32x128xf32> to vector<1x128xf32>
      %117 = vector.shape_cast %116 : vector<1x128xf32> to vector<1x128xf32>
      %118 = vector.broadcast %117 : vector<1x128xf32> to vector<128x128xf32>
      %c1664 = arith.constant 1664 : index
      %c0_47 = arith.constant 0 : index
      %119 = vector.load %arg9[%c1664, %c0_47] : memref<3200x128xf32, #tpu.memory_space<vmem>>, vector<128x128xf32>
      tpu.vector_store %arg9[%c1664, %c0_47], %118 {strides = array<i32>} : memref<3200x128xf32, #tpu.memory_space<vmem>>, vector<128x128xf32>,
      %120 = vector.extract_strided_slice %63 {offsets = [14, 0], sizes = [1, 128], strides = [1, 1]} : vector<32x128xf32> to vector<1x128xf32>
      %121 = vector.shape_cast %120 : vector<1x128xf32> to vector<1x128xf32>
      %122 = vector.broadcast %121 : vector<1x128xf32> to vector<128x128xf32>
      %c1792 = arith.constant 1792 : index
      %c0_48 = arith.constant 0 : index
      %123 = vector.load %arg9[%c1792, %c0_48] : memref<3200x128xf32, #tpu.memory_space<vmem>>, vector<128x128xf32>
      tpu.vector_store %arg9[%c1792, %c0_48], %122 {strides = array<i32>} : memref<3200x128xf32, #tpu.memory_space<vmem>>, vector<128x128xf32>,
      %124 = vector.extract_strided_slice %63 {offsets = [15, 0], sizes = [1, 128], strides = [1, 1]} : vector<32x128xf32> to vector<1x128xf32>
      %125 = vector.shape_cast %124 : vector<1x128xf32> to vector<1x128xf32>
      %126 = vector.broadcast %125 : vector<1x128xf32> to vector<128x128xf32>
      %c1920 = arith.constant 1920 : index
      %c0_49 = arith.constant 0 : index
      %127 = vector.load %arg9[%c1920, %c0_49] : memref<3200x128xf32, #tpu.memory_space<vmem>>, vector<128x128xf32>
      tpu.vector_store %arg9[%c1920, %c0_49], %126 {strides = array<i32>} : memref<3200x128xf32, #tpu.memory_space<vmem>>, vector<128x128xf32>,
      %128 = vector.extract_strided_slice %63 {offsets = [16, 0], sizes = [1, 128], strides = [1, 1]} : vector<32x128xf32> to vector<1x128xf32>
      %129 = vector.shape_cast %128 : vector<1x128xf32> to vector<1x128xf32>
      %130 = vector.broadcast %129 : vector<1x128xf32> to vector<128x128xf32>
      %c2048_50 = arith.constant 2048 : index
      %c0_51 = arith.constant 0 : index
      %131 = vector.load %arg9[%c2048_50, %c0_51] : memref<3200x128xf32, #tpu.memory_space<vmem>>, vector<128x128xf32>
      tpu.vector_store %arg9[%c2048_50, %c0_51], %130 {strides = array<i32>} : memref<3200x128xf32, #tpu.memory_space<vmem>>, vector<128x128xf32>,
      %132 = vector.extract_strided_slice %63 {offsets = [17, 0], sizes = [1, 128], strides = [1, 1]} : vector<32x128xf32> to vector<1x128xf32>
      %133 = vector.shape_cast %132 : vector<1x128xf32> to vector<1x128xf32>
      %134 = vector.broadcast %133 : vector<1x128xf32> to vector<128x128xf32>
      %c2176 = arith.constant 2176 : index
      %c0_52 = arith.constant 0 : index
      %135 = vector.load %arg9[%c2176, %c0_52] : memref<3200x128xf32, #tpu.memory_space<vmem>>, vector<128x128xf32>
      tpu.vector_store %arg9[%c2176, %c0_52], %134 {strides = array<i32>} : memref<3200x128xf32, #tpu.memory_space<vmem>>, vector<128x128xf32>,
      %136 = vector.extract_strided_slice %63 {offsets = [18, 0], sizes = [1, 128], strides = [1, 1]} : vector<32x128xf32> to vector<1x128xf32>
      %137 = vector.shape_cast %136 : vector<1x128xf32> to vector<1x128xf32>
      %138 = vector.broadcast %137 : vector<1x128xf32> to vector<128x128xf32>
      %c2304 = arith.constant 2304 : index
      %c0_53 = arith.constant 0 : index
      %139 = vector.load %arg9[%c2304, %c0_53] : memref<3200x128xf32, #tpu.memory_space<vmem>>, vector<128x128xf32>
      tpu.vector_store %arg9[%c2304, %c0_53], %138 {strides = array<i32>} : memref<3200x128xf32, #tpu.memory_space<vmem>>, vector<128x128xf32>,
      %140 = vector.extract_strided_slice %63 {offsets = [19, 0], sizes = [1, 128], strides = [1, 1]} : vector<32x128xf32> to vector<1x128xf32>
      %141 = vector.shape_cast %140 : vector<1x128xf32> to vector<1x128xf32>
      %142 = vector.broadcast %141 : vector<1x128xf32> to vector<128x128xf32>
      %c2432 = arith.constant 2432 : index
      %c0_54 = arith.constant 0 : index
      %143 = vector.load %arg9[%c2432, %c0_54] : memref<3200x128xf32, #tpu.memory_space<vmem>>, vector<128x128xf32>
      tpu.vector_store %arg9[%c2432, %c0_54], %142 {strides = array<i32>} : memref<3200x128xf32, #tpu.memory_space<vmem>>, vector<128x128xf32>,
      %144 = vector.extract_strided_slice %63 {offsets = [20, 0], sizes = [1, 128], strides = [1, 1]} : vector<32x128xf32> to vector<1x128xf32>
      %145 = vector.shape_cast %144 : vector<1x128xf32> to vector<1x128xf32>
      %146 = vector.broadcast %145 : vector<1x128xf32> to vector<128x128xf32>
      %c2560 = arith.constant 2560 : index
      %c0_55 = arith.constant 0 : index
      %147 = vector.load %arg9[%c2560, %c0_55] : memref<3200x128xf32, #tpu.memory_space<vmem>>, vector<128x128xf32>
      tpu.vector_store %arg9[%c2560, %c0_55], %146 {strides = array<i32>} : memref<3200x128xf32, #tpu.memory_space<vmem>>, vector<128x128xf32>,
      %148 = vector.extract_strided_slice %63 {offsets = [21, 0], sizes = [1, 128], strides = [1, 1]} : vector<32x128xf32> to vector<1x128xf32>
      %149 = vector.shape_cast %148 : vector<1x128xf32> to vector<1x128xf32>
      %150 = vector.broadcast %149 : vector<1x128xf32> to vector<128x128xf32>
      %c2688 = arith.constant 2688 : index
      %c0_56 = arith.constant 0 : index
      %151 = vector.load %arg9[%c2688, %c0_56] : memref<3200x128xf32, #tpu.memory_space<vmem>>, vector<128x128xf32>
      tpu.vector_store %arg9[%c2688, %c0_56], %150 {strides = array<i32>} : memref<3200x128xf32, #tpu.memory_space<vmem>>, vector<128x128xf32>,
      %152 = vector.extract_strided_slice %63 {offsets = [22, 0], sizes = [1, 128], strides = [1, 1]} : vector<32x128xf32> to vector<1x128xf32>
      %153 = vector.shape_cast %152 : vector<1x128xf32> to vector<1x128xf32>
      %154 = vector.broadcast %153 : vector<1x128xf32> to vector<128x128xf32>
      %c2816 = arith.constant 2816 : index
      %c0_57 = arith.constant 0 : index
      %155 = vector.load %arg9[%c2816, %c0_57] : memref<3200x128xf32, #tpu.memory_space<vmem>>, vector<128x128xf32>
      tpu.vector_store %arg9[%c2816, %c0_57], %154 {strides = array<i32>} : memref<3200x128xf32, #tpu.memory_space<vmem>>, vector<128x128xf32>,
      %156 = vector.extract_strided_slice %63 {offsets = [23, 0], sizes = [1, 128], strides = [1, 1]} : vector<32x128xf32> to vector<1x128xf32>
      %157 = vector.shape_cast %156 : vector<1x128xf32> to vector<1x128xf32>
      %158 = vector.broadcast %157 : vector<1x128xf32> to vector<128x128xf32>
      %c2944 = arith.constant 2944 : index
      %c0_58 = arith.constant 0 : index
      %159 = vector.load %arg9[%c2944, %c0_58] : memref<3200x128xf32, #tpu.memory_space<vmem>>, vector<128x128xf32>
      tpu.vector_store %arg9[%c2944, %c0_58], %158 {strides = array<i32>} : memref<3200x128xf32, #tpu.memory_space<vmem>>, vector<128x128xf32>,
      %160 = vector.extract_strided_slice %63 {offsets = [24, 0], sizes = [1, 128], strides = [1, 1]} : vector<32x128xf32> to vector<1x128xf32>
      %161 = vector.shape_cast %160 : vector<1x128xf32> to vector<1x128xf32>
      %162 = vector.broadcast %161 : vector<1x128xf32> to vector<128x128xf32>
      %c3072_59 = arith.constant 3072 : index
      %c0_60 = arith.constant 0 : index
      %163 = vector.load %arg9[%c3072_59, %c0_60] : memref<3200x128xf32, #tpu.memory_space<vmem>>, vector<128x128xf32>
      tpu.vector_store %arg9[%c3072_59, %c0_60], %162 {strides = array<i32>} : memref<3200x128xf32, #tpu.memory_space<vmem>>, vector<128x128xf32>,
    } else {
    }
    %c0_i32_1 = arith.constant 0 : i32
    %3 = arith.cmpi sgt, %arg0, %c0_i32_1 : i32
    %4 = arith.extui %3 : i1 to i32
    %c0_i32_2 = arith.constant 0 : i32
    %5 = arith.cmpi ne, %4, %c0_i32_2 : i32
    scf.if %5 {
      %c1_i32 = arith.constant 1 : i32
      %6 = arith.subi %arg0, %c1_i32 : i32
      %c128_i32 = arith.constant 128 : i32
      %7 = arith.muli %6, %c128_i32 : i32
      %8 = tpu.assume_multiple %7, 128 : i32
      %cst = arith.constant 0.000000e+00 : f32
      %9 = vector.broadcast %cst : f32 to vector<128x128xf32>
      %c0_i32_3 = arith.constant 0 : i32
      %10 = arith.addi %8, %c0_i32_3 : i32
      %11 = tpu.assume_multiple %10, 32 : i32
      %12 = arith.index_cast %11 : i32 to index
      %c0 = arith.constant 0 : index
      %13 = vector.load %arg7[%12, %c0] : memref<1056x128xf32, #tpu.memory_space<vmem>>, vector<128x128xf32>
      %c0_4 = arith.constant 0 : index
      %c0_5 = arith.constant 0 : index
      %14 = vector.load %arg9[%c0_4, %c0_5] : memref<3200x128xf32, #tpu.memory_space<vmem>>, vector<128x128xf32>
      %15 = arith.mulf %13, %14 : vector<128x128xf32>
      %16 = arith.addf %9, %15 : vector<128x128xf32>
      %c0_i32_6 = arith.constant 0 : i32
      %17 = arith.addi %c0_i32_6, %11 : i32
      %18 = arith.index_cast %17 : i32 to index
      %c0_7 = arith.constant 0 : index
      %19 = vector.load %arg8[%18, %c0_7] : memref<4096x128xf32, #tpu.memory_space<vmem>>, vector<128x128xf32>
      %c128 = arith.constant 128 : index
      %c0_8 = arith.constant 0 : index
      %20 = vector.load %arg9[%c128, %c0_8] : memref<3200x128xf32, #tpu.memory_space<vmem>>, vector<128x128xf32>
      %21 = arith.mulf %19, %20 : vector<128x128xf32>
      %22 = arith.addf %16, %21 : vector<128x128xf32>
      %c1024_i32 = arith.constant 1024 : i32
      %23 = arith.addi %c1024_i32, %11 : i32
      %24 = arith.index_cast %23 : i32 to index
      %c0_9 = arith.constant 0 : index
      %25 = vector.load %arg8[%24, %c0_9] : memref<4096x128xf32, #tpu.memory_space<vmem>>, vector<128x128xf32>
      %c256 = arith.constant 256 : index
      %c0_10 = arith.constant 0 : index
      %26 = vector.load %arg9[%c256, %c0_10] : memref<3200x128xf32, #tpu.memory_space<vmem>>, vector<128x128xf32>
      %27 = arith.mulf %25, %26 : vector<128x128xf32>
      %28 = arith.addf %22, %27 : vector<128x128xf32>
      %c2048_i32 = arith.constant 2048 : i32
      %29 = arith.addi %c2048_i32, %11 : i32
      %30 = arith.index_cast %29 : i32 to index
      %c0_11 = arith.constant 0 : index
      %31 = vector.load %arg8[%30, %c0_11] : memref<4096x128xf32, #tpu.memory_space<vmem>>, vector<128x128xf32>
      %c384 = arith.constant 384 : index
      %c0_12 = arith.constant 0 : index
      %32 = vector.load %arg9[%c384, %c0_12] : memref<3200x128xf32, #tpu.memory_space<vmem>>, vector<128x128xf32>
      %33 = arith.mulf %31, %32 : vector<128x128xf32>
      %34 = arith.addf %28, %33 : vector<128x128xf32>
      %c3072_i32 = arith.constant 3072 : i32
      %35 = arith.addi %c3072_i32, %11 : i32
      %36 = arith.index_cast %35 : i32 to index
      %c0_13 = arith.constant 0 : index
      %37 = vector.load %arg8[%36, %c0_13] : memref<4096x128xf32, #tpu.memory_space<vmem>>, vector<128x128xf32>
      %c512 = arith.constant 512 : index
      %c0_14 = arith.constant 0 : index
      %38 = vector.load %arg9[%c512, %c0_14] : memref<3200x128xf32, #tpu.memory_space<vmem>>, vector<128x128xf32>
      %39 = arith.mulf %37, %38 : vector<128x128xf32>
      %40 = arith.addf %34, %39 : vector<128x128xf32>
      %c32_i32 = arith.constant 32 : i32
      %41 = arith.addi %8, %c32_i32 : i32
      %42 = tpu.assume_multiple %41, 32 : i32
      %43 = arith.index_cast %42 : i32 to index
      %c0_15 = arith.constant 0 : index
      %44 = vector.load %arg7[%43, %c0_15] : memref<1056x128xf32, #tpu.memory_space<vmem>>, vector<128x128xf32>
      %c640 = arith.constant 640 : index
      %c0_16 = arith.constant 0 : index
      %45 = vector.load %arg9[%c640, %c0_16] : memref<3200x128xf32, #tpu.memory_space<vmem>>, vector<128x128xf32>
      %46 = arith.mulf %44, %45 : vector<128x128xf32>
      %47 = arith.addf %40, %46 : vector<128x128xf32>
      %c0_i32_17 = arith.constant 0 : i32
      %48 = arith.addi %c0_i32_17, %42 : i32
      %49 = arith.index_cast %48 : i32 to index
      %c0_18 = arith.constant 0 : index
      %50 = vector.load %arg8[%49, %c0_18] : memref<4096x128xf32, #tpu.memory_space<vmem>>, vector<128x128xf32>
      %c768 = arith.constant 768 : index
      %c0_19 = arith.constant 0 : index
      %51 = vector.load %arg9[%c768, %c0_19] : memref<3200x128xf32, #tpu.memory_space<vmem>>, vector<128x128xf32>
      %52 = arith.mulf %50, %51 : vector<128x128xf32>
      %53 = arith.addf %47, %52 : vector<128x128xf32>
      %c1024_i32_20 = arith.constant 1024 : i32
      %54 = arith.addi %c1024_i32_20, %42 : i32
      %55 = arith.index_cast %54 : i32 to index
      %c0_21 = arith.constant 0 : index
      %56 = vector.load %arg8[%55, %c0_21] : memref<4096x128xf32, #tpu.memory_space<vmem>>, vector<128x128xf32>
      %c896 = arith.constant 896 : index
      %c0_22 = arith.constant 0 : index
      %57 = vector.load %arg9[%c896, %c0_22] : memref<3200x128xf32, #tpu.memory_space<vmem>>, vector<128x128xf32>
      %58 = arith.mulf %56, %57 : vector<128x128xf32>
      %59 = arith.addf %53, %58 : vector<128x128xf32>
      %c2048_i32_23 = arith.constant 2048 : i32
      %60 = arith.addi %c2048_i32_23, %42 : i32
      %61 = arith.index_cast %60 : i32 to index
      %c0_24 = arith.constant 0 : index
      %62 = vector.load %arg8[%61, %c0_24] : memref<4096x128xf32, #tpu.memory_space<vmem>>, vector<128x128xf32>
      %c1024 = arith.constant 1024 : index
      %c0_25 = arith.constant 0 : index
      %63 = vector.load %arg9[%c1024, %c0_25] : memref<3200x128xf32, #tpu.memory_space<vmem>>, vector<128x128xf32>
      %64 = arith.mulf %62, %63 : vector<128x128xf32>
      %65 = arith.addf %59, %64 : vector<128x128xf32>
      %c3072_i32_26 = arith.constant 3072 : i32
      %66 = arith.addi %c3072_i32_26, %42 : i32
      %67 = arith.index_cast %66 : i32 to index
      %c0_27 = arith.constant 0 : index
      %68 = vector.load %arg8[%67, %c0_27] : memref<4096x128xf32, #tpu.memory_space<vmem>>, vector<128x128xf32>
      %c1152 = arith.constant 1152 : index
      %c0_28 = arith.constant 0 : index
      %69 = vector.load %arg9[%c1152, %c0_28] : memref<3200x128xf32, #tpu.memory_space<vmem>>, vector<128x128xf32>
      %70 = arith.mulf %68, %69 : vector<128x128xf32>
      %71 = arith.addf %65, %70 : vector<128x128xf32>
      %c64_i32 = arith.constant 64 : i32
      %72 = arith.addi %8, %c64_i32 : i32
      %73 = tpu.assume_multiple %72, 32 : i32
      %74 = arith.index_cast %73 : i32 to index
      %c0_29 = arith.constant 0 : index
      %75 = vector.load %arg7[%74, %c0_29] : memref<1056x128xf32, #tpu.memory_space<vmem>>, vector<128x128xf32>
      %c1280 = arith.constant 1280 : index
      %c0_30 = arith.constant 0 : index
      %76 = vector.load %arg9[%c1280, %c0_30] : memref<3200x128xf32, #tpu.memory_space<vmem>>, vector<128x128xf32>
      %77 = arith.mulf %75, %76 : vector<128x128xf32>
      %78 = arith.addf %71, %77 : vector<128x128xf32>
      %c0_i32_31 = arith.constant 0 : i32
      %79 = arith.addi %c0_i32_31, %73 : i32
      %80 = arith.index_cast %79 : i32 to index
      %c0_32 = arith.constant 0 : index
      %81 = vector.load %arg8[%80, %c0_32] : memref<4096x128xf32, #tpu.memory_space<vmem>>, vector<128x128xf32>
      %c1408 = arith.constant 1408 : index
      %c0_33 = arith.constant 0 : index
      %82 = vector.load %arg9[%c1408, %c0_33] : memref<3200x128xf32, #tpu.memory_space<vmem>>, vector<128x128xf32>
      %83 = arith.mulf %81, %82 : vector<128x128xf32>
      %84 = arith.addf %78, %83 : vector<128x128xf32>
      %c1024_i32_34 = arith.constant 1024 : i32
      %85 = arith.addi %c1024_i32_34, %73 : i32
      %86 = arith.index_cast %85 : i32 to index
      %c0_35 = arith.constant 0 : index
      %87 = vector.load %arg8[%86, %c0_35] : memref<4096x128xf32, #tpu.memory_space<vmem>>, vector<128x128xf32>
      %c1536 = arith.constant 1536 : index
      %c0_36 = arith.constant 0 : index
      %88 = vector.load %arg9[%c1536, %c0_36] : memref<3200x128xf32, #tpu.memory_space<vmem>>, vector<128x128xf32>
      %89 = arith.mulf %87, %88 : vector<128x128xf32>
      %90 = arith.addf %84, %89 : vector<128x128xf32>
      %c2048_i32_37 = arith.constant 2048 : i32
      %91 = arith.addi %c2048_i32_37, %73 : i32
      %92 = arith.index_cast %91 : i32 to index
      %c0_38 = arith.constant 0 : index
      %93 = vector.load %arg8[%92, %c0_38] : memref<4096x128xf32, #tpu.memory_space<vmem>>, vector<128x128xf32>
      %c1664 = arith.constant 1664 : index
      %c0_39 = arith.constant 0 : index
      %94 = vector.load %arg9[%c1664, %c0_39] : memref<3200x128xf32, #tpu.memory_space<vmem>>, vector<128x128xf32>
      %95 = arith.mulf %93, %94 : vector<128x128xf32>
      %96 = arith.addf %90, %95 : vector<128x128xf32>
      %c3072_i32_40 = arith.constant 3072 : i32
      %97 = arith.addi %c3072_i32_40, %73 : i32
      %98 = arith.index_cast %97 : i32 to index
      %c0_41 = arith.constant 0 : index
      %99 = vector.load %arg8[%98, %c0_41] : memref<4096x128xf32, #tpu.memory_space<vmem>>, vector<128x128xf32>
      %c1792 = arith.constant 1792 : index
      %c0_42 = arith.constant 0 : index
      %100 = vector.load %arg9[%c1792, %c0_42] : memref<3200x128xf32, #tpu.memory_space<vmem>>, vector<128x128xf32>
      %101 = arith.mulf %99, %100 : vector<128x128xf32>
      %102 = arith.addf %96, %101 : vector<128x128xf32>
      %c96_i32 = arith.constant 96 : i32
      %103 = arith.addi %8, %c96_i32 : i32
      %104 = tpu.assume_multiple %103, 32 : i32
      %105 = arith.index_cast %104 : i32 to index
      %c0_43 = arith.constant 0 : index
      %106 = vector.load %arg7[%105, %c0_43] : memref<1056x128xf32, #tpu.memory_space<vmem>>, vector<128x128xf32>
      %c1920 = arith.constant 1920 : index
      %c0_44 = arith.constant 0 : index
      %107 = vector.load %arg9[%c1920, %c0_44] : memref<3200x128xf32, #tpu.memory_space<vmem>>, vector<128x128xf32>
      %108 = arith.mulf %106, %107 : vector<128x128xf32>
      %109 = arith.addf %102, %108 : vector<128x128xf32>
      %c0_i32_45 = arith.constant 0 : i32
      %110 = arith.addi %c0_i32_45, %104 : i32
      %111 = arith.index_cast %110 : i32 to index
      %c0_46 = arith.constant 0 : index
      %112 = vector.load %arg8[%111, %c0_46] : memref<4096x128xf32, #tpu.memory_space<vmem>>, vector<128x128xf32>
      %c2048 = arith.constant 2048 : index
      %c0_47 = arith.constant 0 : index
      %113 = vector.load %arg9[%c2048, %c0_47] : memref<3200x128xf32, #tpu.memory_space<vmem>>, vector<128x128xf32>
      %114 = arith.mulf %112, %113 : vector<128x128xf32>
      %115 = arith.addf %109, %114 : vector<128x128xf32>
      %c1024_i32_48 = arith.constant 1024 : i32
      %116 = arith.addi %c1024_i32_48, %104 : i32
      %117 = arith.index_cast %116 : i32 to index
      %c0_49 = arith.constant 0 : index
      %118 = vector.load %arg8[%117, %c0_49] : memref<4096x128xf32, #tpu.memory_space<vmem>>, vector<128x128xf32>
      %c2176 = arith.constant 2176 : index
      %c0_50 = arith.constant 0 : index
      %119 = vector.load %arg9[%c2176, %c0_50] : memref<3200x128xf32, #tpu.memory_space<vmem>>, vector<128x128xf32>
      %120 = arith.mulf %118, %119 : vector<128x128xf32>
      %121 = arith.addf %115, %120 : vector<128x128xf32>
      %c2048_i32_51 = arith.constant 2048 : i32
      %122 = arith.addi %c2048_i32_51, %104 : i32
      %123 = arith.index_cast %122 : i32 to index
      %c0_52 = arith.constant 0 : index
      %124 = vector.load %arg8[%123, %c0_52] : memref<4096x128xf32, #tpu.memory_space<vmem>>, vector<128x128xf32>
      %c2304 = arith.constant 2304 : index
      %c0_53 = arith.constant 0 : index
      %125 = vector.load %arg9[%c2304, %c0_53] : memref<3200x128xf32, #tpu.memory_space<vmem>>, vector<128x128xf32>
      %126 = arith.mulf %124, %125 : vector<128x128xf32>
      %127 = arith.addf %121, %126 : vector<128x128xf32>
      %c3072_i32_54 = arith.constant 3072 : i32
      %128 = arith.addi %c3072_i32_54, %104 : i32
      %129 = arith.index_cast %128 : i32 to index
      %c0_55 = arith.constant 0 : index
      %130 = vector.load %arg8[%129, %c0_55] : memref<4096x128xf32, #tpu.memory_space<vmem>>, vector<128x128xf32>
      %c2432 = arith.constant 2432 : index
      %c0_56 = arith.constant 0 : index
      %131 = vector.load %arg9[%c2432, %c0_56] : memref<3200x128xf32, #tpu.memory_space<vmem>>, vector<128x128xf32>
      %132 = arith.mulf %130, %131 : vector<128x128xf32>
      %133 = arith.addf %127, %132 : vector<128x128xf32>
      %c128_i32_57 = arith.constant 128 : i32
      %134 = arith.addi %8, %c128_i32_57 : i32
      %135 = tpu.assume_multiple %134, 32 : i32
      %136 = arith.index_cast %135 : i32 to index
      %c0_58 = arith.constant 0 : index
      %137 = vector.load %arg7[%136, %c0_58] : memref<1056x128xf32, #tpu.memory_space<vmem>>, vector<128x128xf32>
      %c2560 = arith.constant 2560 : index
      %c0_59 = arith.constant 0 : index
      %138 = vector.load %arg9[%c2560, %c0_59] : memref<3200x128xf32, #tpu.memory_space<vmem>>, vector<128x128xf32>
      %139 = arith.mulf %137, %138 : vector<128x128xf32>
      %140 = arith.addf %133, %139 : vector<128x128xf32>
      %c0_i32_60 = arith.constant 0 : i32
      %141 = arith.addi %c0_i32_60, %135 : i32
      %142 = arith.index_cast %141 : i32 to index
      %c0_61 = arith.constant 0 : index
      %143 = vector.load %arg8[%142, %c0_61] : memref<4096x128xf32, #tpu.memory_space<vmem>>, vector<128x128xf32>
      %c2688 = arith.constant 2688 : index
      %c0_62 = arith.constant 0 : index
      %144 = vector.load %arg9[%c2688, %c0_62] : memref<3200x128xf32, #tpu.memory_space<vmem>>, vector<128x128xf32>
      %145 = arith.mulf %143, %144 : vector<128x128xf32>
      %146 = arith.addf %140, %145 : vector<128x128xf32>
      %c1024_i32_63 = arith.constant 1024 : i32
      %147 = arith.addi %c1024_i32_63, %135 : i32
      %148 = arith.index_cast %147 : i32 to index
      %c0_64 = arith.constant 0 : index
      %149 = vector.load %arg8[%148, %c0_64] : memref<4096x128xf32, #tpu.memory_space<vmem>>, vector<128x128xf32>
      %c2816 = arith.constant 2816 : index
      %c0_65 = arith.constant 0 : index
      %150 = vector.load %arg9[%c2816, %c0_65] : memref<3200x128xf32, #tpu.memory_space<vmem>>, vector<128x128xf32>
      %151 = arith.mulf %149, %150 : vector<128x128xf32>
      %152 = arith.addf %146, %151 : vector<128x128xf32>
      %c2048_i32_66 = arith.constant 2048 : i32
      %153 = arith.addi %c2048_i32_66, %135 : i32
      %154 = arith.index_cast %153 : i32 to index
      %c0_67 = arith.constant 0 : index
      %155 = vector.load %arg8[%154, %c0_67] : memref<4096x128xf32, #tpu.memory_space<vmem>>, vector<128x128xf32>
      %c2944 = arith.constant 2944 : index
      %c0_68 = arith.constant 0 : index
      %156 = vector.load %arg9[%c2944, %c0_68] : memref<3200x128xf32, #tpu.memory_space<vmem>>, vector<128x128xf32>
      %157 = arith.mulf %155, %156 : vector<128x128xf32>
      %158 = arith.addf %152, %157 : vector<128x128xf32>
      %c3072_i32_69 = arith.constant 3072 : i32
      %159 = arith.addi %c3072_i32_69, %135 : i32
      %160 = arith.index_cast %159 : i32 to index
      %c0_70 = arith.constant 0 : index
      %161 = vector.load %arg8[%160, %c0_70] : memref<4096x128xf32, #tpu.memory_space<vmem>>, vector<128x128xf32>
      %c3072 = arith.constant 3072 : index
      %c0_71 = arith.constant 0 : index
      %162 = vector.load %arg9[%c3072, %c0_71] : memref<3200x128xf32, #tpu.memory_space<vmem>>, vector<128x128xf32>
      %163 = arith.mulf %161, %162 : vector<128x128xf32>
      %164 = arith.addf %158, %163 : vector<128x128xf32>
      %c0_72 = arith.constant 0 : index
      %c0_73 = arith.constant 0 : index
      %165 = vector.load %arg6[%c0_72, %c0_73] : memref<128x128xf32, #tpu.memory_space<vmem>>, vector<128x128xf32>
      tpu.vector_store %arg6[%c0_72, %c0_73], %164 {strides = array<i32>} : memref<128x128xf32, #tpu.memory_space<vmem>>, vector<128x128xf32>,
    } else {
    }
    return
  }
  func.func @transform_0(%arg0: i32) -> (i32, i32) {
    %c0_i32 = arith.constant 0 : i32
    %c0_i32_0 = arith.constant 0 : i32
    %c0_i32_1 = arith.constant 0 : i32
    return %c0_i32, %c0_i32_0 : i32, i32
  }
  func.func @transform_1(%arg0: i32) -> (i32, i32) {
    %c0_i32 = arith.constant 0 : i32
    %c0_i32_0 = arith.constant 0 : i32
    %c0_i32_1 = arith.constant 0 : i32
    return %c0_i32, %c0_i32_0 : i32, i32
  }
  func.func @transform_2(%arg0: i32) -> (i32, i32) {
    %c0_i32 = arith.constant 0 : i32
    %c0_i32_0 = arith.constant 0 : i32
    %c0_i32_1 = arith.constant 0 : i32
    return %c0_i32, %c0_i32_0 : i32, i32
  }
  func.func @transform_3(%arg0: i32) -> (i32, i32) {
    %c0_i32 = arith.constant 0 : i32
    %c0_i32_0 = arith.constant 0 : i32
    %c0_i32_1 = arith.constant 0 : i32
    return %c0_i32, %c0_i32_0 : i32, i32
  }
  func.func @transform_4(%arg0: i32) -> (i32, i32) {
    %c0_i32 = arith.constant 0 : i32
    %c0_i32_0 = arith.constant 0 : i32
    %c0_i32_1 = arith.constant 0 : i32
    return %c0_i32, %c0_i32_0 : i32, i32
  }
  func.func @transform_5(%arg0: i32) -> (i32, i32) {
    %c1_i32 = arith.constant 1 : i32
    %0 = arith.subi %arg0, %c1_i32 : i32
    %c0_i32 = arith.constant 0 : i32
    %1 = arith.maxsi %0, %c0_i32 : i32
    %c0_i32_0 = arith.constant 0 : i32
    %c0_i32_1 = arith.constant 0 : i32
    return %1, %c0_i32_0 : i32, i32
  }
}

</mosaic_0001>

<llo_original>
// kernel: fused_forward.1
$region0: #{fused_forward.1}
  #allocation0 [shape = 'u32[]', space=smem, size = 0x4, offset = 0x4, fixed_abs, tag = 'smem constant byte address 0x4 - core index']
  #allocation1 [shape = 'u32[144,128]{1,0:T(1,128)}', space=vmem, size = 0x12000, scoped, tag = 'internal scratch']
  #allocation2 [shape = 'f32[1056,128]{1,0:T(8,128)}', space=vmem, size = 0x84000, scoped, tag = 'scratch operand']
  #allocation3 [shape = 'f32[4096,128]{1,0:T(8,128)}', space=vmem, size = 0x200000, scoped, tag = 'scratch operand']
  #allocation4 [shape = 'f32[3200,128]{1,0:T(8,128)}', space=vmem, size = 0x190000, scoped, tag = 'scratch operand']
  %s0 = inlined_call_operand.vmem [shape: f32[1056,40], index: 0, kind: input, shape index: {}]
  %s1 = inlined_call_operand.vmem [shape: f32[40,128], index: 1, kind: input, shape index: {}]
  %s2 = inlined_call_operand.vmem [shape: f32[1,128], index: 2, kind: input, shape index: {}]
  %s3 = inlined_call_operand.vmem [shape: f32[1,128], index: 3, kind: input, shape index: {}]
  %s4 = inlined_call_operand.vmem [shape: f32[32,128], index: 4, kind: input, shape index: {}]
  %s5 = inlined_call_operand.vmem [shape: f32[896,128], index: 5, kind: output, shape index: {}]
  %s6 = sld [smem:[#allocation0]]
  $region61: #{fused_forward.1} parent=0
    _
  %s8 = ssub.s32 1, %s6
  %s9 = scalar_select 0, %s8, %s6
  loop: start=0, step=1, limit=10
  $region2: #{fused_forward.1} parent=0 // loop_pre_header
    _
  $region3: #{fused_forward.1} parent=0 // loop_header
    %s11 = sphi 0, %s15
    %p12 = scmp.ge.s32.totalorder %s11, 10
    %s19 = sphi 0, %s19
    %s21 = sphi 0, %s19
    %s22 = sphi 0, %s21
    %s36 = sphi 0, %s22
    %s40 = sphi 0, %s40
    %s42 = sphi 0, %s40
    %s43 = sphi 0, %s42
    %s57 = sphi 0, %s43
    %s61 = sphi 0, %s61
    %s63 = sphi 0, %s61
    %s64 = sphi 0, %s63
    %s78 = sphi 0, %s64
    %s82 = sphi 0, %s82
    %s84 = sphi 0, %s82
    %s85 = sphi 0, %s84
    %s99 = sphi 0, %s85
    %s103 = sphi 0, %s103
    %s105 = sphi 0, %s103
    %s106 = sphi 0, %s105
    %s120 = sphi 0, %s106
    %s132 = sphi 0, %s134
    %s135 = sphi 0, %s132
    %s136 = sphi 0, %s135
    %s152 = sphi 0, %s136
  $region4: #{fused_forward.1} parent=0 // loop_header_branch
    %14 = sbr.rel (%p12) target = $region8
  $region5: #{fused_forward.1} parent=0 // loop_body
    %s16 = ssub.s32 %s11, 1
    %s17 = ssub.s32 %s11, 2
    %s18 = sadd.s32 %s11, 1
    %s20 = sadd.s32 %s19, 1
    %p23 = scmp.eq.s32.totalorder %s11, 7
    %p24 = scmp.ne.s32.totalorder %s19, %s21
    %p25 = scmp.eq.s32.totalorder %s11, 0
    %p26 = por %p24, %p25
    %p27 = scmp.ne.s32.totalorder %s19, %s21
    %p28 = scmp.eq.s32.totalorder %s16, 7
    %p29 = por %p27, %p28
    %p30 = scmp.ne.s32.totalorder %s21, %s22
    %p31 = scmp.eq.s32.totalorder %s16, 0
    %p32 = por %p30, %p31
    %p33 = scmp.ne.s32.totalorder %s21, %s22
    %p34 = scmp.eq.s32.totalorder %s17, 7
    %p35 = por %p33, %p34
    %p37 = scmp.ne.s32.totalorder %s22, %s36
    %p38 = scmp.eq.s32.totalorder %s17, 0
    %p39 = por %p37, %p38
    %s41 = sadd.s32 %s40, 1
    %p44 = scmp.eq.s32.totalorder %s11, 7
    %p45 = scmp.ne.s32.totalorder %s40, %s42
    %p46 = scmp.eq.s32.totalorder %s11, 0
    %p47 = por %p45, %p46
    %p48 = scmp.ne.s32.totalorder %s40, %s42
    %p49 = scmp.eq.s32.totalorder %s16, 7
    %p50 = por %p48, %p49
    %p51 = scmp.ne.s32.totalorder %s42, %s43
    %p52 = scmp.eq.s32.totalorder %s16, 0
    %p53 = por %p51, %p52
    %p54 = scmp.ne.s32.totalorder %s42, %s43
    %p55 = scmp.eq.s32.totalorder %s17, 7
    %p56 = por %p54, %p55
    %p58 = scmp.ne.s32.totalorder %s43, %s57
    %p59 = scmp.eq.s32.totalorder %s17, 0
    %p60 = por %p58, %p59
    %s62 = sadd.s32 %s61, 1
    %p65 = scmp.eq.s32.totalorder %s11, 7
    %p66 = scmp.ne.s32.totalorder %s61, %s63
    %p67 = scmp.eq.s32.totalorder %s11, 0
    %p68 = por %p66, %p67
    %p69 = scmp.ne.s32.totalorder %s61, %s63
    %p70 = scmp.eq.s32.totalorder %s16, 7
    %p71 = por %p69, %p70
    %p72 = scmp.ne.s32.totalorder %s63, %s64
    %p73 = scmp.eq.s32.totalorder %s16, 0
    %p74 = por %p72, %p73
    %p75 = scmp.ne.s32.totalorder %s63, %s64
    %p76 = scmp.eq.s32.totalorder %s17, 7
    %p77 = por %p75, %p76
    %p79 = scmp.ne.s32.totalorder %s64, %s78
    %p80 = scmp.eq.s32.totalorder %s17, 0
    %p81 = por %p79, %p80
    %s83 = sadd.s32 %s82, 1
    %p86 = scmp.eq.s32.totalorder %s11, 7
    %p87 = scmp.ne.s32.totalorder %s82, %s84
    %p88 = scmp.eq.s32.totalorder %s11, 0
    %p89 = por %p87, %p88
    %p90 = scmp.ne.s32.totalorder %s82, %s84
    %p91 = scmp.eq.s32.totalorder %s16, 7
    %p92 = por %p90, %p91
    %p93 = scmp.ne.s32.totalorder %s84, %s85
    %p94 = scmp.eq.s32.totalorder %s16, 0
    %p95 = por %p93, %p94
    %p96 = scmp.ne.s32.totalorder %s84, %s85
    %p97 = scmp.eq.s32.totalorder %s17, 7
    %p98 = por %p96, %p97
    %p100 = scmp.ne.s32.totalorder %s85, %s99
    %p101 = scmp.eq.s32.totalorder %s17, 0
    %p102 = por %p100, %p101
    %s104 = sadd.s32 %s103, 1
    %p107 = scmp.eq.s32.totalorder %s11, 7
    %p108 = scmp.ne.s32.totalorder %s103, %s105
    %p109 = scmp.eq.s32.totalorder %s11, 0
    %p110 = por %p108, %p109
    %p111 = scmp.ne.s32.totalorder %s103, %s105
    %p112 = scmp.eq.s32.totalorder %s16, 7
    %p113 = por %p111, %p112
    %p114 = scmp.ne.s32.totalorder %s105, %s106
    %p115 = scmp.eq.s32.totalorder %s16, 0
    %p116 = por %p114, %p115
    %p117 = scmp.ne.s32.totalorder %s105, %s106
    %p118 = scmp.eq.s32.totalorder %s17, 7
    %p119 = por %p117, %p118
    %p121 = scmp.ne.s32.totalorder %s106, %s120
    %p122 = scmp.eq.s32.totalorder %s17, 0
    %p123 = por %p121, %p122
    %s124 = ssub.s32 %s11, 1
    %p125 = scmp.gt.s32.totalorder %s124, 0
    %s126 = scalar_select %p125, %s124, 0
    %s127 = ssub.s32 %s18, 1
    %p128 = scmp.gt.s32.totalorder %s127, 0
    %s129 = scalar_select %p128, %s127, 0
    %s130 = ssub.s32 %s126, %s129
    %p131 = scmp.eq.s32.totalorder %s130, 0
    %s133 = sadd.s32 %s132, 1
    %s134 = scalar_select %p131, %s132, %s133
    %p137 = pneg %p131
    %p138 = scmp.eq.s32.totalorder %s11, 7
    %p139 = por %p137, %p138
    %p140 = scmp.ne.s32.totalorder %s132, %s135
    %p141 = scmp.eq.s32.totalorder %s11, 0
    %p142 = por %p140, %p141
    %p143 = scmp.ne.s32.totalorder %s132, %s135
    %p144 = scmp.eq.s32.totalorder %s16, 7
    %p145 = por %p143, %p144
    %p146 = scmp.ne.s32.totalorder %s135, %s136
    %p147 = scmp.eq.s32.totalorder %s16, 0
    %p148 = por %p146, %p147
    %p149 = scmp.ne.s32.totalorder %s135, %s136
    %p150 = scmp.eq.s32.totalorder %s17, 7
    %p151 = por %p149, %p150
    %p153 = scmp.ne.s32.totalorder %s136, %s152
    %p154 = scmp.eq.s32.totalorder %s17, 0
    %p155 = por %p153, %p154
    %p156 = scmp.le.s32.totalorder 1, %s11
    %p157 = scmp.lt.s32.totalorder %s11, 9
    %p158 = pnand %p156, %p157
    %p159 = pneg %p158
    // Predicated region
    $region9: #{fused_forward.1} parent=5 // pred_check
      _
    $region10: #{fused_forward.1} parent=5 // pred_check_branch
      %161 = sbr.rel (%p158) target = $region12
    $region11: #{fused_forward.1} parent=5 // pred_region
      %s162 = ssub.s32 %s11, 1
      // Predicated region
      $region13: #{fused_forward.1} parent=11 // pred_check
        %p163 = pneg %p32
      $region14: #{fused_forward.1} parent=11 // pred_check_branch
        %165 = sbr.rel (%p163) target = $region16
      $region15: #{fused_forward.1} parent=11 // pred_region
        _
      $region16: #{fused_forward.1} parent=11 // pred_fallthru
        _
      // Predicated region
      $region17: #{fused_forward.1} parent=11 // pred_check
        %p166 = pneg %p53
      $region18: #{fused_forward.1} parent=11 // pred_check_branch
        %168 = sbr.rel (%p166) target = $region20
      $region19: #{fused_forward.1} parent=11 // pred_region
        _
      $region20: #{fused_forward.1} parent=11 // pred_fallthru
        _
      // Predicated region
      $region21: #{fused_forward.1} parent=11 // pred_check
        %p169 = pneg %p74
      $region22: #{fused_forward.1} parent=11 // pred_check_branch
        %171 = sbr.rel (%p169) target = $region24
      $region23: #{fused_forward.1} parent=11 // pred_region
        _
      $region24: #{fused_forward.1} parent=11 // pred_fallthru
        _
      // Predicated region
      $region25: #{fused_forward.1} parent=11 // pred_check
        %p172 = pneg %p95
      $region26: #{fused_forward.1} parent=11 // pred_check_branch
        %174 = sbr.rel (%p172) target = $region28
      $region27: #{fused_forward.1} parent=11 // pred_region
        _
      $region28: #{fused_forward.1} parent=11 // pred_fallthru
        _
      // Predicated region
      $region29: #{fused_forward.1} parent=11 // pred_check
        %p175 = pneg %p116
      $region30: #{fused_forward.1} parent=11 // pred_check_branch
        %177 = sbr.rel (%p175) target = $region32
      $region31: #{fused_forward.1} parent=11 // pred_region
        _
      $region32: #{fused_forward.1} parent=11 // pred_fallthru
        _
    $region12: #{fused_forward.1} parent=5 // pred_fallthru
      _
    %p178 = scmp.lt.s32.totalorder %s11, 8
    // Predicated region
    $region33: #{fused_forward.1} parent=5 // pred_check
      %p179 = pneg %p178
    $region34: #{fused_forward.1} parent=5 // pred_check_branch
      %181 = sbr.rel (%p179) target = $region36
    $region35: #{fused_forward.1} parent=5 // pred_region
      _
    $region36: #{fused_forward.1} parent=5 // pred_fallthru
      _
    %p182 = scmp.le.s32.totalorder 1, %s11
    %p183 = scmp.lt.s32.totalorder %s11, 9
    %p184 = pnand %p182, %p183
    %p185 = pneg %p184
    // Predicated region
    $region37: #{fused_forward.1} parent=5 // pred_check
      _
    $region38: #{fused_forward.1} parent=5 // pred_check_branch
      %187 = sbr.rel (%p184) target = $region40
    $region39: #{fused_forward.1} parent=5 // pred_region
      %s188 = ssub.s32 %s11, 1
      %p189 = pneg %p32
      %p190 = pneg %p29
      %p191 = pneg %p53
      %p192 = pneg %p50
      %p193 = pneg %p74
      %p194 = pneg %p71
      %p195 = pneg %p95
      %p196 = pneg %p92
      %p197 = pneg %p116
      %p198 = pneg %p113
      %p199 = pneg %p148
      %p200 = pneg %p145
      %s201 = ssub.s32 %s16, 1
      %p202 = scmp.gt.s32.totalorder %s201, 0
      %s203 = scalar_select %p202, %s201, 0
      %s204 = smul.u32 16, %s203
      %p205 = scmp.lt.s32.totalorder %s204, 111
      %s206 = scalar_select %p205, %s204, 111
      %s207 = smul.addr %s206, 8
      %s208 = scalar_lea.vmem %s5, %s207
      %s209 = ssub.s32 %s16, 1
      %p210 = scmp.gt.s32.totalorder %s209, 0
      %s211 = scalar_select %p210, %s209, 0
      %s212 = smul.u32 16, %s211
      %p213 = scmp.lt.s32.totalorder %s212, 111
      %s214 = scalar_select %p213, %s212, 111
      %s215 = smul.addr %s214, 8
      %s216 = scalar_lea.vmem %s5, %s215
      %s217 = ssub.s32 %s16, 1
      %p218 = scmp.gt.s32.totalorder %s217, 0
      %s219 = scalar_select %p218, %s217, 0
      %s220 = smul.u32 16, %s219
      %p221 = scmp.eq.s32.totalorder %s16, 0
      // Predicated region
      $region41: #{fused_forward.1} parent=39 // pred_check
        %p222 = pneg %p221
      $region42: #{fused_forward.1} parent=39 // pred_check_branch
        %224 = sbr.rel (%p222) target = $region44
      $region43: #{fused_forward.1} parent=39 // pred_region
        %v225 = vld [vmem:[%s0] sm:$0xff]
        %v226 = vld [vmem:[%s0 + $0x8] sm:$0xff]
        %v227 = vld [vmem:[%s0 + $0x10] sm:$0xff]
        %v228 = vld [vmem:[%s0 + $0x18] sm:$0xff]
        %v229 = vld [vmem:[%s0 + $0x20] sm:$0xff]
        %v230 = vld [vmem:[%s0 + $0x28] sm:$0xff]
        %v231 = vld [vmem:[%s0 + $0x30] sm:$0xff]
        %v232 = vld [vmem:[%s0 + $0x38] sm:$0xff]
        %v233 = vld [vmem:[%s0 + $0x40] sm:$0xff]
        %v234 = vld [vmem:[%s0 + $0x48] sm:$0xff]
        %v235 = vld [vmem:[%s0 + $0x50] sm:$0xff]
        %v236 = vld [vmem:[%s0 + $0x58] sm:$0xff]
        %v237 = vld [vmem:[%s0 + $0x60] sm:$0xff]
        %v238 = vld [vmem:[%s0 + $0x68] sm:$0xff]
        %v239 = vld [vmem:[%s0 + $0x70] sm:$0xff]
        %v240 = vld [vmem:[%s0 + $0x78] sm:$0xff]
        %v241 = vld [vmem:[%s0 + $0x80] sm:$0xff]
        %v242 = vld [vmem:[%s0 + $0x88] sm:$0xff]
        %v243 = vld [vmem:[%s0 + $0x90] sm:$0xff]
        %v244 = vld [vmem:[%s0 + $0x98] sm:$0xff]
        %v245 = vld [vmem:[%s0 + $0xa0] sm:$0xff]
        %v246 = vld [vmem:[%s0 + $0xa8] sm:$0xff]
        %v247 = vld [vmem:[%s0 + $0xb0] sm:$0xff]
        %v248 = vld [vmem:[%s0 + $0xb8] sm:$0xff]
        %v249 = vld [vmem:[%s0 + $0xc0] sm:$0xff]
        %v250 = vld [vmem:[%s0 + $0xc8] sm:$0xff]
        %v251 = vld [vmem:[%s0 + $0xd0] sm:$0xff]
        %v252 = vld [vmem:[%s0 + $0xd8] sm:$0xff]
        %v253 = vld [vmem:[%s0 + $0xe0] sm:$0xff]
        %v254 = vld [vmem:[%s0 + $0xe8] sm:$0xff]
        %v255 = vld [vmem:[%s0 + $0xf0] sm:$0xff]
        %v256 = vld [vmem:[%s0 + $0xf8] sm:$0xff]
        %v257 = vld [vmem:[%s0 + $0x100] sm:$0xff]
        %v258 = vld [vmem:[%s0 + $0x108] sm:$0xff]
        %v259 = vld [vmem:[%s0 + $0x110] sm:$0xff]
        %v260 = vld [vmem:[%s0 + $0x118] sm:$0xff]
        %v261 = vld [vmem:[%s0 + $0x120] sm:$0xff]
        %v262 = vld [vmem:[%s0 + $0x128] sm:$0xff]
        %v263 = vld [vmem:[%s0 + $0x130] sm:$0xff]
        %v264 = vld [vmem:[%s0 + $0x138] sm:$0xff]
        %v265 = vld [vmem:[%s0 + $0x140] sm:$0xff]
        %v266 = vld [vmem:[%s0 + $0x148] sm:$0xff]
        %v267 = vld [vmem:[%s0 + $0x150] sm:$0xff]
        %v268 = vld [vmem:[%s0 + $0x158] sm:$0xff]
        %v269 = vld [vmem:[%s0 + $0x160] sm:$0xff]
        %v270 = vld [vmem:[%s0 + $0x168] sm:$0xff]
        %v271 = vld [vmem:[%s0 + $0x170] sm:$0xff]
        %v272 = vld [vmem:[%s0 + $0x178] sm:$0xff]
        %v273 = vld [vmem:[%s0 + $0x180] sm:$0xff]
        %v274 = vld [vmem:[%s0 + $0x188] sm:$0xff]
        %v275 = vld [vmem:[%s0 + $0x190] sm:$0xff]
        %v276 = vld [vmem:[%s0 + $0x198] sm:$0xff]
        %v277 = vld [vmem:[%s0 + $0x1a0] sm:$0xff]
        %v278 = vld [vmem:[%s0 + $0x1a8] sm:$0xff]
        %v279 = vld [vmem:[%s0 + $0x1b0] sm:$0xff]
        %v280 = vld [vmem:[%s0 + $0x1b8] sm:$0xff]
        %v281 = vld [vmem:[%s0 + $0x1c0] sm:$0xff]
        %v282 = vld [vmem:[%s0 + $0x1c8] sm:$0xff]
        %v283 = vld [vmem:[%s0 + $0x1d0] sm:$0xff]
        %v284 = vld [vmem:[%s0 + $0x1d8] sm:$0xff]
        %v285 = vld [vmem:[%s0 + $0x1e0] sm:$0xff]
        %v286 = vld [vmem:[%s0 + $0x1e8] sm:$0xff]
        %v287 = vld [vmem:[%s0 + $0x1f0] sm:$0xff]
        %v288 = vld [vmem:[%s0 + $0x1f8] sm:$0xff]
        %v289 = vld [vmem:[%s0 + $0x200] sm:$0xff]
        %v290 = vld [vmem:[%s0 + $0x208] sm:$0xff]
        %v291 = vld [vmem:[%s0 + $0x210] sm:$0xff]
        %v292 = vld [vmem:[%s0 + $0x218] sm:$0xff]
        %v293 = vld [vmem:[%s0 + $0x220] sm:$0xff]
        %v294 = vld [vmem:[%s0 + $0x228] sm:$0xff]
        %v295 = vld [vmem:[%s0 + $0x230] sm:$0xff]
        %v296 = vld [vmem:[%s0 + $0x238] sm:$0xff]
        %v297 = vld [vmem:[%s0 + $0x240] sm:$0xff]
        %v298 = vld [vmem:[%s0 + $0x248] sm:$0xff]
        %v299 = vld [vmem:[%s0 + $0x250] sm:$0xff]
        %v300 = vld [vmem:[%s0 + $0x258] sm:$0xff]
        %v301 = vld [vmem:[%s0 + $0x260] sm:$0xff]
        %v302 = vld [vmem:[%s0 + $0x268] sm:$0xff]
        %v303 = vld [vmem:[%s0 + $0x270] sm:$0xff]
        %v304 = vld [vmem:[%s0 + $0x278] sm:$0xff]
        %v305 = vld [vmem:[%s0 + $0x280] sm:$0xff]
        %v306 = vld [vmem:[%s0 + $0x288] sm:$0xff]
        %v307 = vld [vmem:[%s0 + $0x290] sm:$0xff]
        %v308 = vld [vmem:[%s0 + $0x298] sm:$0xff]
        %v309 = vld [vmem:[%s0 + $0x2a0] sm:$0xff]
        %v310 = vld [vmem:[%s0 + $0x2a8] sm:$0xff]
        %v311 = vld [vmem:[%s0 + $0x2b0] sm:$0xff]
        %v312 = vld [vmem:[%s0 + $0x2b8] sm:$0xff]
        %v313 = vld [vmem:[%s0 + $0x2c0] sm:$0xff]
        %v314 = vld [vmem:[%s0 + $0x2c8] sm:$0xff]
        %v315 = vld [vmem:[%s0 + $0x2d0] sm:$0xff]
        %v316 = vld [vmem:[%s0 + $0x2d8] sm:$0xff]
        %v317 = vld [vmem:[%s0 + $0x2e0] sm:$0xff]
        %v318 = vld [vmem:[%s0 + $0x2e8] sm:$0xff]
        %v319 = vld [vmem:[%s0 + $0x2f0] sm:$0xff]
        %v320 = vld [vmem:[%s0 + $0x2f8] sm:$0xff]
        %v321 = vld [vmem:[%s0 + $0x300] sm:$0xff]
        %v322 = vld [vmem:[%s0 + $0x308] sm:$0xff]
        %v323 = vld [vmem:[%s0 + $0x310] sm:$0xff]
        %v324 = vld [vmem:[%s0 + $0x318] sm:$0xff]
        %v325 = vld [vmem:[%s0 + $0x320] sm:$0xff]
        %v326 = vld [vmem:[%s0 + $0x328] sm:$0xff]
        %v327 = vld [vmem:[%s0 + $0x330] sm:$0xff]
        %v328 = vld [vmem:[%s0 + $0x338] sm:$0xff]
        %v329 = vld [vmem:[%s0 + $0x340] sm:$0xff]
        %v330 = vld [vmem:[%s0 + $0x348] sm:$0xff]
        %v331 = vld [vmem:[%s0 + $0x350] sm:$0xff]
        %v332 = vld [vmem:[%s0 + $0x358] sm:$0xff]
        %v333 = vld [vmem:[%s0 + $0x360] sm:$0xff]
        %v334 = vld [vmem:[%s0 + $0x368] sm:$0xff]
        %v335 = vld [vmem:[%s0 + $0x370] sm:$0xff]
        %v336 = vld [vmem:[%s0 + $0x378] sm:$0xff]
        %v337 = vld [vmem:[%s0 + $0x380] sm:$0xff]
        %v338 = vld [vmem:[%s0 + $0x388] sm:$0xff]
        %v339 = vld [vmem:[%s0 + $0x390] sm:$0xff]
        %v340 = vld [vmem:[%s0 + $0x398] sm:$0xff]
        %v341 = vld [vmem:[%s0 + $0x3a0] sm:$0xff]
        %v342 = vld [vmem:[%s0 + $0x3a8] sm:$0xff]
        %v343 = vld [vmem:[%s0 + $0x3b0] sm:$0xff]
        %v344 = vld [vmem:[%s0 + $0x3b8] sm:$0xff]
        %v345 = vld [vmem:[%s0 + $0x3c0] sm:$0xff]
        %v346 = vld [vmem:[%s0 + $0x3c8] sm:$0xff]
        %v347 = vld [vmem:[%s0 + $0x3d0] sm:$0xff]
        %v348 = vld [vmem:[%s0 + $0x3d8] sm:$0xff]
        %v349 = vld [vmem:[%s0 + $0x3e0] sm:$0xff]
        %v350 = vld [vmem:[%s0 + $0x3e8] sm:$0xff]
        %v351 = vld [vmem:[%s0 + $0x3f0] sm:$0xff]
        %v352 = vld [vmem:[%s0 + $0x3f8] sm:$0xff]
        %v353 = vld [vmem:[%s0 + $0x400] sm:$0xff]
        %v354 = vld [vmem:[%s0 + $0x408] sm:$0xff]
        %v355 = vld [vmem:[%s0 + $0x410] sm:$0xff]
        %v356 = vld [vmem:[%s0 + $0x418] sm:$0xff]
        %v357 = vld [vmem:[%s1] sm:$0xff]
        %v358 = vld [vmem:[%s1 + $0x8] sm:$0xff]
        %v359 = vld [vmem:[%s1 + $0x10] sm:$0xff]
        %v360 = vld [vmem:[%s1 + $0x18] sm:$0xff]
        %v361 = vld [vmem:[%s1 + $0x20] sm:$0xff]
        %vm362 = vcmask 326656
        %v364 = vsel %vm362, %v225, 0
        %v367 = vsel %vm362, %v226, 0
        %v370 = vsel %vm362, %v227, 0
        %v373 = vsel %vm362, %v228, 0
        %v376 = vsel %vm362, %v229, 0
        %v379 = vsel %vm362, %v230, 0
        %v382 = vsel %vm362, %v231, 0
        %v385 = vsel %vm362, %v232, 0
        %v388 = vsel %vm362, %v233, 0
        %v391 = vsel %vm362, %v234, 0
        %v394 = vsel %vm362, %v235, 0
        %v397 = vsel %vm362, %v236, 0
        %v400 = vsel %vm362, %v237, 0
        %v403 = vsel %vm362, %v238, 0
        %v406 = vsel %vm362, %v239, 0
        %v409 = vsel %vm362, %v240, 0
        %v412 = vsel %vm362, %v241, 0
        %v415 = vsel %vm362, %v242, 0
        %v418 = vsel %vm362, %v243, 0
        %v421 = vsel %vm362, %v244, 0
        %v424 = vsel %vm362, %v245, 0
        %v427 = vsel %vm362, %v246, 0
        %v430 = vsel %vm362, %v247, 0
        %v433 = vsel %vm362, %v248, 0
        %v436 = vsel %vm362, %v249, 0
        %v439 = vsel %vm362, %v250, 0
        %v442 = vsel %vm362, %v251, 0
        %v445 = vsel %vm362, %v252, 0
        %v448 = vsel %vm362, %v253, 0
        %v451 = vsel %vm362, %v254, 0
        %v454 = vsel %vm362, %v255, 0
        %v457 = vsel %vm362, %v256, 0
        %v460 = vsel %vm362, %v257, 0
        %v463 = vsel %vm362, %v258, 0
        %v466 = vsel %vm362, %v259, 0
        %v469 = vsel %vm362, %v260, 0
        %v472 = vsel %vm362, %v261, 0
        %v475 = vsel %vm362, %v262, 0
        %v478 = vsel %vm362, %v263, 0
        %v481 = vsel %vm362, %v264, 0
        %v484 = vsel %vm362, %v265, 0
        %v487 = vsel %vm362, %v266, 0
        %v490 = vsel %vm362, %v267, 0
        %v493 = vsel %vm362, %v268, 0
        %v496 = vsel %vm362, %v269, 0
        %v499 = vsel %vm362, %v270, 0
        %v502 = vsel %vm362, %v271, 0
        %v505 = vsel %vm362, %v272, 0
        %v508 = vsel %vm362, %v273, 0
        %v511 = vsel %vm362, %v274, 0
        %v514 = vsel %vm362, %v275, 0
        %v517 = vsel %vm362, %v276, 0
        %v520 = vsel %vm362, %v277, 0
        %v523 = vsel %vm362, %v278, 0
        %v526 = vsel %vm362, %v279, 0
        %v529 = vsel %vm362, %v280, 0
        %v532 = vsel %vm362, %v281, 0
        %v535 = vsel %vm362, %v282, 0
        %v538 = vsel %vm362, %v283, 0
        %v541 = vsel %vm362, %v284, 0
        %v544 = vsel %vm362, %v285, 0
        %v547 = vsel %vm362, %v286, 0
        %v550 = vsel %vm362, %v287, 0
        %v553 = vsel %vm362, %v288, 0
        %v556 = vsel %vm362, %v289, 0
        %v559 = vsel %vm362, %v290, 0
        %v562 = vsel %vm362, %v291, 0
        %v565 = vsel %vm362, %v292, 0
        %v568 = vsel %vm362, %v293, 0
        %v571 = vsel %vm362, %v294, 0
        %v574 = vsel %vm362, %v295, 0
        %v577 = vsel %vm362, %v296, 0
        %v580 = vsel %vm362, %v297, 0
        %v583 = vsel %vm362, %v298, 0
        %v586 = vsel %vm362, %v299, 0
        %v589 = vsel %vm362, %v300, 0
        %v592 = vsel %vm362, %v301, 0
        %v595 = vsel %vm362, %v302, 0
        %v598 = vsel %vm362, %v303, 0
        %v601 = vsel %vm362, %v304, 0
        %v604 = vsel %vm362, %v305, 0
        %v607 = vsel %vm362, %v306, 0
        %v610 = vsel %vm362, %v307, 0
        %v613 = vsel %vm362, %v308, 0
        %v616 = vsel %vm362, %v309, 0
        %v619 = vsel %vm362, %v310, 0
        %v622 = vsel %vm362, %v311, 0
        %v625 = vsel %vm362, %v312, 0
        %v628 = vsel %vm362, %v313, 0
        %v631 = vsel %vm362, %v314, 0
        %v634 = vsel %vm362, %v315, 0
        %v637 = vsel %vm362, %v316, 0
        %v640 = vsel %vm362, %v317, 0
        %v643 = vsel %vm362, %v318, 0
        %v646 = vsel %vm362, %v319, 0
        %v649 = vsel %vm362, %v320, 0
        %v652 = vsel %vm362, %v321, 0
        %v655 = vsel %vm362, %v322, 0
        %v658 = vsel %vm362, %v323, 0
        %v661 = vsel %vm362, %v324, 0
        %v664 = vsel %vm362, %v325, 0
        %v667 = vsel %vm362, %v326, 0
        %v670 = vsel %vm362, %v327, 0
        %v673 = vsel %vm362, %v328, 0
        %v676 = vsel %vm362, %v329, 0
        %v679 = vsel %vm362, %v330, 0
        %v682 = vsel %vm362, %v331, 0
        %v685 = vsel %vm362, %v332, 0
        %v688 = vsel %vm362, %v333, 0
        %v691 = vsel %vm362, %v334, 0
        %v694 = vsel %vm362, %v335, 0
        %v697 = vsel %vm362, %v336, 0
        %v700 = vsel %vm362, %v337, 0
        %v703 = vsel %vm362, %v338, 0
        %v706 = vsel %vm362, %v339, 0
        %v709 = vsel %vm362, %v340, 0
        %v712 = vsel %vm362, %v341, 0
        %v715 = vsel %vm362, %v342, 0
        %v718 = vsel %vm362, %v343, 0
        %v721 = vsel %vm362, %v344, 0
        %v724 = vsel %vm362, %v345, 0
        %v727 = vsel %vm362, %v346, 0
        %v730 = vsel %vm362, %v347, 0
        %v733 = vsel %vm362, %v348, 0
        %v736 = vsel %vm362, %v349, 0
        %v739 = vsel %vm362, %v350, 0
        %v742 = vsel %vm362, %v351, 0
        %v745 = vsel %vm362, %v352, 0
        %v748 = vsel %vm362, %v353, 0
        %v751 = vsel %vm362, %v354, 0
        %v754 = vsel %vm362, %v355, 0
        %v757 = vsel %vm362, %v356, 0
        %759 = vmatprep.subr.mxu0 0.0
        %760 = vmatpush1.msra.mxu0 %v357
        %761 = vmatprep.subr.mxu0 0.0
        %762 = vmatpush1.msra.mxu0 %v358
        %763 = vmatprep.subr.mxu0 0.0
        %764 = vmatpush1.msra.mxu0 %v359
        %765 = vmatprep.subr.mxu0 0.0
        %766 = vmatpush1.msra.mxu0 %v360
        %767 = vmatprep.subr.mxu0 0.0
        %768 = vmatpush1.msra.mxu0 %v361
        %769 = vmatprep.subr.mxu0 0.0
        %770 = vmatpush1.msra.mxu0 0.0
        %771 = vmatprep.subr.mxu0 0.0
        %772 = vmatpush1.msra.mxu0 0.0
        %773 = vmatprep.subr.mxu0 0.0
        %774 = vmatpush1.msra.mxu0 0.0
        %775 = vmatprep.subr.mxu0 0.0
        %776 = vmatpush1.msra.mxu0 0.0
        %777 = vmatprep.subr.mxu0 0.0
        %778 = vmatpush1.msra.mxu0 0.0
        %779 = vmatprep.subr.mxu0 0.0
        %780 = vmatpush1.msra.mxu0 0.0
        %781 = vmatprep.subr.mxu0 0.0
        %782 = vmatpush1.msra.mxu0 0.0
        %783 = vmatprep.subr.mxu0 0.0
        %784 = vmatpush1.msra.mxu0 0.0
        %785 = vmatprep.subr.mxu0 0.0
        %786 = vmatpush1.msra.mxu0 0.0
        %787 = vmatprep.subr.mxu0 0.0
        %788 = vmatpush1.msra.mxu0 0.0
        %789 = vmatprep.subr.mxu0 0.0
        %790 = vmatpush1.msra.mxu0 0.0
        %791 = vmatprep.subr.mxu0 0.0
        %792 = vmatpush1.msra.mxu0 0.0
        %793 = vmatprep.subr.mxu0 0.0
        %794 = vmatpush1.msra.mxu0 0.0
        %795 = vmatprep.subr.mxu0 0.0
        %796 = vmatpush1.msra.mxu0 0.0
        %797 = vmatprep.subr.mxu0 0.0
        %798 = vmatpush1.msra.mxu0 0.0
        %799 = vmatprep.subr.mxu0 0.0
        %800 = vmatpush1.msra.mxu0 0.0
        %801 = vmatprep.subr.mxu0 0.0
        %802 = vmatpush1.msra.mxu0 0.0
        %803 = vmatprep.subr.mxu0 0.0
        %804 = vmatpush1.msra.mxu0 0.0
        %805 = vmatprep.subr.mxu0 0.0
        %806 = vmatpush1.msra.mxu0 0.0
        %807 = vmatprep.subr.mxu0 0.0
        %808 = vmatpush1.msra.mxu0 0.0
        %809 = vmatprep.subr.mxu0 0.0
        %810 = vmatpush1.msra.mxu0 0.0
        %811 = vmatprep.subr.mxu0 0.0
        %812 = vmatpush1.msra.mxu0 0.0
        %813 = vmatprep.subr.mxu0 0.0
        %814 = vmatpush1.msra.mxu0 0.0
        %815 = vmatprep.subr.mxu0 0.0
        %816 = vmatpush1.msra.mxu0 0.0
        %817 = vmatprep.subr.mxu0 0.0
        %818 = vmatpush1.msra.mxu0 0.0
        %819 = vmatprep.subr.mxu0 0.0
        %820 = vmatpush1.msra.mxu0 0.0
        %821 = vmatprep.subr.mxu0 0.0
        %822 = vmatpush1.msra.mxu0 0.0
        %823 = vmatprep.mubr.f32.mxu0 0.0
        %824 = vmatmul.mubr.f32.gmra.mrb[0].mxu0 %v364
        %v825 = vpop.f32.mrb[0].mxu0
        %v826 = vadd.f32 0.0, %v825
        %v827 = vpop.f32.mrb[0].mxu0
        %828 = vmatprep.mubr.f32.mxu0 0.0
        %829 = vmatmul.mubr.f32.gmra.mrb[0].mxu0 %v367
        %v830 = vpop.f32.mrb[0].mxu0
        %v831 = vadd.f32 0.0, %v830
        %v832 = vpop.f32.mrb[0].mxu0
        %833 = vmatprep.mubr.f32.mxu0 0.0
        %834 = vmatmul.mubr.f32.gmra.mrb[0].mxu0 %v370
        %v835 = vpop.f32.mrb[0].mxu0
        %v836 = vadd.f32 0.0, %v835
        %v837 = vpop.f32.mrb[0].mxu0
        %838 = vmatprep.mubr.f32.mxu0 0.0
        %839 = vmatmul.mubr.f32.gmra.mrb[0].mxu0 %v373
        %v840 = vpop.f32.mrb[0].mxu0
        %v841 = vadd.f32 0.0, %v840
        %v842 = vpop.f32.mrb[0].mxu0
        %843 = vmatprep.mubr.f32.mxu0 0.0
        %844 = vmatmul.mubr.f32.gmra.mrb[0].mxu0 %v376
        %v845 = vpop.f32.mrb[0].mxu0
        %v846 = vadd.f32 0.0, %v845
        %v847 = vpop.f32.mrb[0].mxu0
        %848 = vmatprep.mubr.f32.mxu0 0.0
        %849 = vmatmul.mubr.f32.gmra.mrb[0].mxu0 %v379
        %v850 = vpop.f32.mrb[0].mxu0
        %v851 = vadd.f32 0.0, %v850
        %v852 = vpop.f32.mrb[0].mxu0
        %853 = vmatprep.mubr.f32.mxu0 0.0
        %854 = vmatmul.mubr.f32.gmra.mrb[0].mxu0 %v382
        %v855 = vpop.f32.mrb[0].mxu0
        %v856 = vadd.f32 0.0, %v855
        %v857 = vpop.f32.mrb[0].mxu0
        %858 = vmatprep.mubr.f32.mxu0 0.0
        %859 = vmatmul.mubr.f32.gmra.mrb[0].mxu0 %v385
        %v860 = vpop.f32.mrb[0].mxu0
        %v861 = vadd.f32 0.0, %v860
        %v862 = vpop.f32.mrb[0].mxu0
        %863 = vmatprep.mubr.f32.mxu0 0.0
        %864 = vmatmul.mubr.f32.gmra.mrb[0].mxu0 %v388
        %v865 = vpop.f32.mrb[0].mxu0
        %v866 = vadd.f32 0.0, %v865
        %v867 = vpop.f32.mrb[0].mxu0
        %868 = vmatprep.mubr.f32.mxu0 0.0
        %869 = vmatmul.mubr.f32.gmra.mrb[0].mxu0 %v391
        %v870 = vpop.f32.mrb[0].mxu0
        %v871 = vadd.f32 0.0, %v870
        %v872 = vpop.f32.mrb[0].mxu0
        %873 = vmatprep.mubr.f32.mxu0 0.0
        %874 = vmatmul.mubr.f32.gmra.mrb[0].mxu0 %v394
        %v875 = vpop.f32.mrb[0].mxu0
        %v876 = vadd.f32 0.0, %v875
        %v877 = vpop.f32.mrb[0].mxu0
        %878 = vmatprep.mubr.f32.mxu0 0.0
        %879 = vmatmul.mubr.f32.gmra.mrb[0].mxu0 %v397
        %v880 = vpop.f32.mrb[0].mxu0
        %v881 = vadd.f32 0.0, %v880
        %v882 = vpop.f32.mrb[0].mxu0
        %883 = vmatprep.mubr.f32.mxu0 0.0
        %884 = vmatmul.mubr.f32.gmra.mrb[0].mxu0 %v400
        %v885 = vpop.f32.mrb[0].mxu0
        %v886 = vadd.f32 0.0, %v885
        %v887 = vpop.f32.mrb[0].mxu0
        %888 = vmatprep.mubr.f32.mxu0 0.0
        %889 = vmatmul.mubr.f32.gmra.mrb[0].mxu0 %v403
        %v890 = vpop.f32.mrb[0].mxu0
        %v891 = vadd.f32 0.0, %v890
        %v892 = vpop.f32.mrb[0].mxu0
        %893 = vmatprep.mubr.f32.mxu0 0.0
        %894 = vmatmul.mubr.f32.gmra.mrb[0].mxu0 %v406
        %v895 = vpop.f32.mrb[0].mxu0
        %v896 = vadd.f32 0.0, %v895
        %v897 = vpop.f32.mrb[0].mxu0
        %898 = vmatprep.mubr.f32.mxu0 0.0
        %899 = vmatmul.mubr.f32.gmra.mrb[0].mxu0 %v409
        %v900 = vpop.f32.mrb[0].mxu0
        %v901 = vadd.f32 0.0, %v900
        %v902 = vpop.f32.mrb[0].mxu0
        %903 = vmatprep.mubr.f32.mxu0 0.0
        %904 = vmatmul.mubr.f32.gmra.mrb[0].mxu0 %v412
        %v905 = vpop.f32.mrb[0].mxu0
        %v906 = vadd.f32 0.0, %v905
        %v907 = vpop.f32.mrb[0].mxu0
        %908 = vmatprep.mubr.f32.mxu0 0.0
        %909 = vmatmul.mubr.f32.gmra.mrb[0].mxu0 %v415
        %v910 = vpop.f32.mrb[0].mxu0
        %v911 = vadd.f32 0.0, %v910
        %v912 = vpop.f32.mrb[0].mxu0
        %913 = vmatprep.mubr.f32.mxu0 0.0
        %914 = vmatmul.mubr.f32.gmra.mrb[0].mxu0 %v418
        %v915 = vpop.f32.mrb[0].mxu0
        %v916 = vadd.f32 0.0, %v915
        %v917 = vpop.f32.mrb[0].mxu0
        %918 = vmatprep.mubr.f32.mxu0 0.0
        %919 = vmatmul.mubr.f32.gmra.mrb[0].mxu0 %v421
        %v920 = vpop.f32.mrb[0].mxu0
        %v921 = vadd.f32 0.0, %v920
        %v922 = vpop.f32.mrb[0].mxu0
        %923 = vmatprep.mubr.f32.mxu0 0.0
        %924 = vmatmul.mubr.f32.gmra.mrb[0].mxu0 %v424
        %v925 = vpop.f32.mrb[0].mxu0
        %v926 = vadd.f32 0.0, %v925
        %v927 = vpop.f32.mrb[0].mxu0
        %928 = vmatprep.mubr.f32.mxu0 0.0
        %929 = vmatmul.mubr.f32.gmra.mrb[0].mxu0 %v427
        %v930 = vpop.f32.mrb[0].mxu0
        %v931 = vadd.f32 0.0, %v930
        %v932 = vpop.f32.mrb[0].mxu0
        %933 = vmatprep.mubr.f32.mxu0 0.0
        %934 = vmatmul.mubr.f32.gmra.mrb[0].mxu0 %v430
        %v935 = vpop.f32.mrb[0].mxu0
        %v936 = vadd.f32 0.0, %v935
        %v937 = vpop.f32.mrb[0].mxu0
        %938 = vmatprep.mubr.f32.mxu0 0.0
        %939 = vmatmul.mubr.f32.gmra.mrb[0].mxu0 %v433
        %v940 = vpop.f32.mrb[0].mxu0
        %v941 = vadd.f32 0.0, %v940
        %v942 = vpop.f32.mrb[0].mxu0
        %943 = vmatprep.mubr.f32.mxu0 0.0
        %944 = vmatmul.mubr.f32.gmra.mrb[0].mxu0 %v436
        %v945 = vpop.f32.mrb[0].mxu0
        %v946 = vadd.f32 0.0, %v945
        %v947 = vpop.f32.mrb[0].mxu0
        %948 = vmatprep.mubr.f32.mxu0 0.0
        %949 = vmatmul.mubr.f32.gmra.mrb[0].mxu0 %v439
        %v950 = vpop.f32.mrb[0].mxu0
        %v951 = vadd.f32 0.0, %v950
        %v952 = vpop.f32.mrb[0].mxu0
        %953 = vmatprep.mubr.f32.mxu0 0.0
        %954 = vmatmul.mubr.f32.gmra.mrb[0].mxu0 %v442
        %v955 = vpop.f32.mrb[0].mxu0
        %v956 = vadd.f32 0.0, %v955
        %v957 = vpop.f32.mrb[0].mxu0
        %958 = vmatprep.mubr.f32.mxu0 0.0
        %959 = vmatmul.mubr.f32.gmra.mrb[0].mxu0 %v445
        %v960 = vpop.f32.mrb[0].mxu0
        %v961 = vadd.f32 0.0, %v960
        %v962 = vpop.f32.mrb[0].mxu0
        %963 = vmatprep.mubr.f32.mxu0 0.0
        %964 = vmatmul.mubr.f32.gmra.mrb[0].mxu0 %v448
        %v965 = vpop.f32.mrb[0].mxu0
        %v966 = vadd.f32 0.0, %v965
        %v967 = vpop.f32.mrb[0].mxu0
        %968 = vmatprep.mubr.f32.mxu0 0.0
        %969 = vmatmul.mubr.f32.gmra.mrb[0].mxu0 %v451
        %v970 = vpop.f32.mrb[0].mxu0
        %v971 = vadd.f32 0.0, %v970
        %v972 = vpop.f32.mrb[0].mxu0
        %973 = vmatprep.mubr.f32.mxu0 0.0
        %974 = vmatmul.mubr.f32.gmra.mrb[0].mxu0 %v454
        %v975 = vpop.f32.mrb[0].mxu0
        %v976 = vadd.f32 0.0, %v975
        %v977 = vpop.f32.mrb[0].mxu0
        %978 = vmatprep.mubr.f32.mxu0 0.0
        %979 = vmatmul.mubr.f32.gmra.mrb[0].mxu0 %v457
        %v980 = vpop.f32.mrb[0].mxu0
        %v981 = vadd.f32 0.0, %v980
        %v982 = vpop.f32.mrb[0].mxu0
        %983 = vmatprep.mubr.f32.mxu0 0.0
        %984 = vmatmul.mubr.f32.gmra.mrb[0].mxu0 %v460
        %v985 = vpop.f32.mrb[0].mxu0
        %v986 = vadd.f32 0.0, %v985
        %v987 = vpop.f32.mrb[0].mxu0
        %988 = vmatprep.mubr.f32.mxu0 0.0
        %989 = vmatmul.mubr.f32.gmra.mrb[0].mxu0 %v463
        %v990 = vpop.f32.mrb[0].mxu0
        %v991 = vadd.f32 0.0, %v990
        %v992 = vpop.f32.mrb[0].mxu0
        %993 = vmatprep.mubr.f32.mxu0 0.0
        %994 = vmatmul.mubr.f32.gmra.mrb[0].mxu0 %v466
        %v995 = vpop.f32.mrb[0].mxu0
        %v996 = vadd.f32 0.0, %v995
        %v997 = vpop.f32.mrb[0].mxu0
        %998 = vmatprep.mubr.f32.mxu0 0.0
        %999 = vmatmul.mubr.f32.gmra.mrb[0].mxu0 %v469
        %v1000 = vpop.f32.mrb[0].mxu0
        %v1001 = vadd.f32 0.0, %v1000
        %v1002 = vpop.f32.mrb[0].mxu0
        %1003 = vmatprep.mubr.f32.mxu0 0.0
        %1004 = vmatmul.mubr.f32.gmra.mrb[0].mxu0 %v472
        %v1005 = vpop.f32.mrb[0].mxu0
        %v1006 = vadd.f32 0.0, %v1005
        %v1007 = vpop.f32.mrb[0].mxu0
        %1008 = vmatprep.mubr.f32.mxu0 0.0
        %1009 = vmatmul.mubr.f32.gmra.mrb[0].mxu0 %v475
        %v1010 = vpop.f32.mrb[0].mxu0
        %v1011 = vadd.f32 0.0, %v1010
        %v1012 = vpop.f32.mrb[0].mxu0
        %1013 = vmatprep.mubr.f32.mxu0 0.0
        %1014 = vmatmul.mubr.f32.gmra.mrb[0].mxu0 %v478
        %v1015 = vpop.f32.mrb[0].mxu0
        %v1016 = vadd.f32 0.0, %v1015
        %v1017 = vpop.f32.mrb[0].mxu0
        %1018 = vmatprep.mubr.f32.mxu0 0.0
        %1019 = vmatmul.mubr.f32.gmra.mrb[0].mxu0 %v481
        %v1020 = vpop.f32.mrb[0].mxu0
        %v1021 = vadd.f32 0.0, %v1020
        %v1022 = vpop.f32.mrb[0].mxu0
        %1023 = vmatprep.mubr.f32.mxu0 0.0
        %1024 = vmatmul.mubr.f32.gmra.mrb[0].mxu0 %v484
        %v1025 = vpop.f32.mrb[0].mxu0
        %v1026 = vadd.f32 0.0, %v1025
        %v1027 = vpop.f32.mrb[0].mxu0
        %1028 = vmatprep.mubr.f32.mxu0 0.0
        %1029 = vmatmul.mubr.f32.gmra.mrb[0].mxu0 %v487
        %v1030 = vpop.f32.mrb[0].mxu0
        %v1031 = vadd.f32 0.0, %v1030
        %v1032 = vpop.f32.mrb[0].mxu0
        %1033 = vmatprep.mubr.f32.mxu0 0.0
        %1034 = vmatmul.mubr.f32.gmra.mrb[0].mxu0 %v490
        %v1035 = vpop.f32.mrb[0].mxu0
        %v1036 = vadd.f32 0.0, %v1035
        %v1037 = vpop.f32.mrb[0].mxu0
        %1038 = vmatprep.mubr.f32.mxu0 0.0
        %1039 = vmatmul.mubr.f32.gmra.mrb[0].mxu0 %v493
        %v1040 = vpop.f32.mrb[0].mxu0
        %v1041 = vadd.f32 0.0, %v1040
        %v1042 = vpop.f32.mrb[0].mxu0
        %1043 = vmatprep.mubr.f32.mxu0 0.0
        %1044 = vmatmul.mubr.f32.gmra.mrb[0].mxu0 %v496
        %v1045 = vpop.f32.mrb[0].mxu0
        %v1046 = vadd.f32 0.0, %v1045
        %v1047 = vpop.f32.mrb[0].mxu0
        %1048 = vmatprep.mubr.f32.mxu0 0.0
        %1049 = vmatmul.mubr.f32.gmra.mrb[0].mxu0 %v499
        %v1050 = vpop.f32.mrb[0].mxu0
        %v1051 = vadd.f32 0.0, %v1050
        %v1052 = vpop.f32.mrb[0].mxu0
        %1053 = vmatprep.mubr.f32.mxu0 0.0
        %1054 = vmatmul.mubr.f32.gmra.mrb[0].mxu0 %v502
        %v1055 = vpop.f32.mrb[0].mxu0
        %v1056 = vadd.f32 0.0, %v1055
        %v1057 = vpop.f32.mrb[0].mxu0
        %1058 = vmatprep.mubr.f32.mxu0 0.0
        %1059 = vmatmul.mubr.f32.gmra.mrb[0].mxu0 %v505
        %v1060 = vpop.f32.mrb[0].mxu0
        %v1061 = vadd.f32 0.0, %v1060
        %v1062 = vpop.f32.mrb[0].mxu0
        %1063 = vmatprep.mubr.f32.mxu0 0.0
        %1064 = vmatmul.mubr.f32.gmra.mrb[0].mxu0 %v508
        %v1065 = vpop.f32.mrb[0].mxu0
        %v1066 = vadd.f32 0.0, %v1065
        %v1067 = vpop.f32.mrb[0].mxu0
        %1068 = vmatprep.mubr.f32.mxu0 0.0
        %1069 = vmatmul.mubr.f32.gmra.mrb[0].mxu0 %v511
        %v1070 = vpop.f32.mrb[0].mxu0
        %v1071 = vadd.f32 0.0, %v1070
        %v1072 = vpop.f32.mrb[0].mxu0
        %1073 = vmatprep.mubr.f32.mxu0 0.0
        %1074 = vmatmul.mubr.f32.gmra.mrb[0].mxu0 %v514
        %v1075 = vpop.f32.mrb[0].mxu0
        %v1076 = vadd.f32 0.0, %v1075
        %v1077 = vpop.f32.mrb[0].mxu0
        %1078 = vmatprep.mubr.f32.mxu0 0.0
        %1079 = vmatmul.mubr.f32.gmra.mrb[0].mxu0 %v517
        %v1080 = vpop.f32.mrb[0].mxu0
        %v1081 = vadd.f32 0.0, %v1080
        %v1082 = vpop.f32.mrb[0].mxu0
        %1083 = vmatprep.mubr.f32.mxu0 0.0
        %1084 = vmatmul.mubr.f32.gmra.mrb[0].mxu0 %v520
        %v1085 = vpop.f32.mrb[0].mxu0
        %v1086 = vadd.f32 0.0, %v1085
        %v1087 = vpop.f32.mrb[0].mxu0
        %1088 = vmatprep.mubr.f32.mxu0 0.0
        %1089 = vmatmul.mubr.f32.gmra.mrb[0].mxu0 %v523
        %v1090 = vpop.f32.mrb[0].mxu0
        %v1091 = vadd.f32 0.0, %v1090
        %v1092 = vpop.f32.mrb[0].mxu0
        %1093 = vmatprep.mubr.f32.mxu0 0.0
        %1094 = vmatmul.mubr.f32.gmra.mrb[0].mxu0 %v526
        %v1095 = vpop.f32.mrb[0].mxu0
        %v1096 = vadd.f32 0.0, %v1095
        %v1097 = vpop.f32.mrb[0].mxu0
        %1098 = vmatprep.mubr.f32.mxu0 0.0
        %1099 = vmatmul.mubr.f32.gmra.mrb[0].mxu0 %v529
        %v1100 = vpop.f32.mrb[0].mxu0
        %v1101 = vadd.f32 0.0, %v1100
        %v1102 = vpop.f32.mrb[0].mxu0
        %1103 = vmatprep.mubr.f32.mxu0 0.0
        %1104 = vmatmul.mubr.f32.gmra.mrb[0].mxu0 %v532
        %v1105 = vpop.f32.mrb[0].mxu0
        %v1106 = vadd.f32 0.0, %v1105
        %v1107 = vpop.f32.mrb[0].mxu0
        %1108 = vmatprep.mubr.f32.mxu0 0.0
        %1109 = vmatmul.mubr.f32.gmra.mrb[0].mxu0 %v535
        %v1110 = vpop.f32.mrb[0].mxu0
        %v1111 = vadd.f32 0.0, %v1110
        %v1112 = vpop.f32.mrb[0].mxu0
        %1113 = vmatprep.mubr.f32.mxu0 0.0
        %1114 = vmatmul.mubr.f32.gmra.mrb[0].mxu0 %v538
        %v1115 = vpop.f32.mrb[0].mxu0
        %v1116 = vadd.f32 0.0, %v1115
        %v1117 = vpop.f32.mrb[0].mxu0
        %1118 = vmatprep.mubr.f32.mxu0 0.0
        %1119 = vmatmul.mubr.f32.gmra.mrb[0].mxu0 %v541
        %v1120 = vpop.f32.mrb[0].mxu0
        %v1121 = vadd.f32 0.0, %v1120
        %v1122 = vpop.f32.mrb[0].mxu0
        %1123 = vmatprep.mubr.f32.mxu0 0.0
        %1124 = vmatmul.mubr.f32.gmra.mrb[0].mxu0 %v544
        %v1125 = vpop.f32.mrb[0].mxu0
        %v1126 = vadd.f32 0.0, %v1125
        %v1127 = vpop.f32.mrb[0].mxu0
        %1128 = vmatprep.mubr.f32.mxu0 0.0
        %1129 = vmatmul.mubr.f32.gmra.mrb[0].mxu0 %v547
        %v1130 = vpop.f32.mrb[0].mxu0
        %v1131 = vadd.f32 0.0, %v1130
        %v1132 = vpop.f32.mrb[0].mxu0
        %1133 = vmatprep.mubr.f32.mxu0 0.0
        %1134 = vmatmul.mubr.f32.gmra.mrb[0].mxu0 %v550
        %v1135 = vpop.f32.mrb[0].mxu0
        %v1136 = vadd.f32 0.0, %v1135
        %v1137 = vpop.f32.mrb[0].mxu0
        %1138 = vmatprep.mubr.f32.mxu0 0.0
        %1139 = vmatmul.mubr.f32.gmra.mrb[0].mxu0 %v553
        %v1140 = vpop.f32.mrb[0].mxu0
        %v1141 = vadd.f32 0.0, %v1140
        %v1142 = vpop.f32.mrb[0].mxu0
        %1143 = vmatprep.mubr.f32.mxu0 0.0
        %1144 = vmatmul.mubr.f32.gmra.mrb[0].mxu0 %v556
        %v1145 = vpop.f32.mrb[0].mxu0
        %v1146 = vadd.f32 0.0, %v1145
        %v1147 = vpop.f32.mrb[0].mxu0
        %1148 = vmatprep.mubr.f32.mxu0 0.0
        %1149 = vmatmul.mubr.f32.gmra.mrb[0].mxu0 %v559
        %v1150 = vpop.f32.mrb[0].mxu0
        %v1151 = vadd.f32 0.0, %v1150
        %v1152 = vpop.f32.mrb[0].mxu0
        %1153 = vmatprep.mubr.f32.mxu0 0.0
        %1154 = vmatmul.mubr.f32.gmra.mrb[0].mxu0 %v562
        %v1155 = vpop.f32.mrb[0].mxu0
        %v1156 = vadd.f32 0.0, %v1155
        %v1157 = vpop.f32.mrb[0].mxu0
        %1158 = vmatprep.mubr.f32.mxu0 0.0
        %1159 = vmatmul.mubr.f32.gmra.mrb[0].mxu0 %v565
        %v1160 = vpop.f32.mrb[0].mxu0
        %v1161 = vadd.f32 0.0, %v1160
        %v1162 = vpop.f32.mrb[0].mxu0
        %1163 = vmatprep.mubr.f32.mxu0 0.0
        %1164 = vmatmul.mubr.f32.gmra.mrb[0].mxu0 %v568
        %v1165 = vpop.f32.mrb[0].mxu0
        %v1166 = vadd.f32 0.0, %v1165
        %v1167 = vpop.f32.mrb[0].mxu0
        %1168 = vmatprep.mubr.f32.mxu0 0.0
        %1169 = vmatmul.mubr.f32.gmra.mrb[0].mxu0 %v571
        %v1170 = vpop.f32.mrb[0].mxu0
        %v1171 = vadd.f32 0.0, %v1170
        %v1172 = vpop.f32.mrb[0].mxu0
        %1173 = vmatprep.mubr.f32.mxu0 0.0
        %1174 = vmatmul.mubr.f32.gmra.mrb[0].mxu0 %v574
        %v1175 = vpop.f32.mrb[0].mxu0
        %v1176 = vadd.f32 0.0, %v1175
        %v1177 = vpop.f32.mrb[0].mxu0
        %1178 = vmatprep.mubr.f32.mxu0 0.0
        %1179 = vmatmul.mubr.f32.gmra.mrb[0].mxu0 %v577
        %v1180 = vpop.f32.mrb[0].mxu0
        %v1181 = vadd.f32 0.0, %v1180
        %v1182 = vpop.f32.mrb[0].mxu0
        %1183 = vmatprep.mubr.f32.mxu0 0.0
        %1184 = vmatmul.mubr.f32.gmra.mrb[0].mxu0 %v580
        %v1185 = vpop.f32.mrb[0].mxu0
        %v1186 = vadd.f32 0.0, %v1185
        %v1187 = vpop.f32.mrb[0].mxu0
        %1188 = vmatprep.mubr.f32.mxu0 0.0
        %1189 = vmatmul.mubr.f32.gmra.mrb[0].mxu0 %v583
        %v1190 = vpop.f32.mrb[0].mxu0
        %v1191 = vadd.f32 0.0, %v1190
        %v1192 = vpop.f32.mrb[0].mxu0
        %1193 = vmatprep.mubr.f32.mxu0 0.0
        %1194 = vmatmul.mubr.f32.gmra.mrb[0].mxu0 %v586
        %v1195 = vpop.f32.mrb[0].mxu0
        %v1196 = vadd.f32 0.0, %v1195
        %v1197 = vpop.f32.mrb[0].mxu0
        %1198 = vmatprep.mubr.f32.mxu0 0.0
        %1199 = vmatmul.mubr.f32.gmra.mrb[0].mxu0 %v589
        %v1200 = vpop.f32.mrb[0].mxu0
        %v1201 = vadd.f32 0.0, %v1200
        %v1202 = vpop.f32.mrb[0].mxu0
        %1203 = vmatprep.mubr.f32.mxu0 0.0
        %1204 = vmatmul.mubr.f32.gmra.mrb[0].mxu0 %v592
        %v1205 = vpop.f32.mrb[0].mxu0
        %v1206 = vadd.f32 0.0, %v1205
        %v1207 = vpop.f32.mrb[0].mxu0
        %1208 = vmatprep.mubr.f32.mxu0 0.0
        %1209 = vmatmul.mubr.f32.gmra.mrb[0].mxu0 %v595
        %v1210 = vpop.f32.mrb[0].mxu0
        %v1211 = vadd.f32 0.0, %v1210
        %v1212 = vpop.f32.mrb[0].mxu0
        %1213 = vmatprep.mubr.f32.mxu0 0.0
        %1214 = vmatmul.mubr.f32.gmra.mrb[0].mxu0 %v598
        %v1215 = vpop.f32.mrb[0].mxu0
        %v1216 = vadd.f32 0.0, %v1215
        %v1217 = vpop.f32.mrb[0].mxu0
        %1218 = vmatprep.mubr.f32.mxu0 0.0
        %1219 = vmatmul.mubr.f32.gmra.mrb[0].mxu0 %v601
        %v1220 = vpop.f32.mrb[0].mxu0
        %v1221 = vadd.f32 0.0, %v1220
        %v1222 = vpop.f32.mrb[0].mxu0
        %1223 = vmatprep.mubr.f32.mxu0 0.0
        %1224 = vmatmul.mubr.f32.gmra.mrb[0].mxu0 %v604
        %v1225 = vpop.f32.mrb[0].mxu0
        %v1226 = vadd.f32 0.0, %v1225
        %v1227 = vpop.f32.mrb[0].mxu0
        %1228 = vmatprep.mubr.f32.mxu0 0.0
        %1229 = vmatmul.mubr.f32.gmra.mrb[0].mxu0 %v607
        %v1230 = vpop.f32.mrb[0].mxu0
        %v1231 = vadd.f32 0.0, %v1230
        %v1232 = vpop.f32.mrb[0].mxu0
        %1233 = vmatprep.mubr.f32.mxu0 0.0
        %1234 = vmatmul.mubr.f32.gmra.mrb[0].mxu0 %v610
        %v1235 = vpop.f32.mrb[0].mxu0
        %v1236 = vadd.f32 0.0, %v1235
        %v1237 = vpop.f32.mrb[0].mxu0
        %1238 = vmatprep.mubr.f32.mxu0 0.0
        %1239 = vmatmul.mubr.f32.gmra.mrb[0].mxu0 %v613
        %v1240 = vpop.f32.mrb[0].mxu0
        %v1241 = vadd.f32 0.0, %v1240
        %v1242 = vpop.f32.mrb[0].mxu0
        %1243 = vmatprep.mubr.f32.mxu0 0.0
        %1244 = vmatmul.mubr.f32.gmra.mrb[0].mxu0 %v616
        %v1245 = vpop.f32.mrb[0].mxu0
        %v1246 = vadd.f32 0.0, %v1245
        %v1247 = vpop.f32.mrb[0].mxu0
        %1248 = vmatprep.mubr.f32.mxu0 0.0
        %1249 = vmatmul.mubr.f32.gmra.mrb[0].mxu0 %v619
        %v1250 = vpop.f32.mrb[0].mxu0
        %v1251 = vadd.f32 0.0, %v1250
        %v1252 = vpop.f32.mrb[0].mxu0
        %1253 = vmatprep.mubr.f32.mxu0 0.0
        %1254 = vmatmul.mubr.f32.gmra.mrb[0].mxu0 %v622
        %v1255 = vpop.f32.mrb[0].mxu0
        %v1256 = vadd.f32 0.0, %v1255
        %v1257 = vpop.f32.mrb[0].mxu0
        %1258 = vmatprep.mubr.f32.mxu0 0.0
        %1259 = vmatmul.mubr.f32.gmra.mrb[0].mxu0 %v625
        %v1260 = vpop.f32.mrb[0].mxu0
        %v1261 = vadd.f32 0.0, %v1260
        %v1262 = vpop.f32.mrb[0].mxu0
        %1263 = vmatprep.mubr.f32.mxu0 0.0
        %1264 = vmatmul.mubr.f32.gmra.mrb[0].mxu0 %v628
        %v1265 = vpop.f32.mrb[0].mxu0
        %v1266 = vadd.f32 0.0, %v1265
        %v1267 = vpop.f32.mrb[0].mxu0
        %1268 = vmatprep.mubr.f32.mxu0 0.0
        %1269 = vmatmul.mubr.f32.gmra.mrb[0].mxu0 %v631
        %v1270 = vpop.f32.mrb[0].mxu0
        %v1271 = vadd.f32 0.0, %v1270
        %v1272 = vpop.f32.mrb[0].mxu0
        %1273 = vmatprep.mubr.f32.mxu0 0.0
        %1274 = vmatmul.mubr.f32.gmra.mrb[0].mxu0 %v634
        %v1275 = vpop.f32.mrb[0].mxu0
        %v1276 = vadd.f32 0.0, %v1275
        %v1277 = vpop.f32.mrb[0].mxu0
        %1278 = vmatprep.mubr.f32.mxu0 0.0
        %1279 = vmatmul.mubr.f32.gmra.mrb[0].mxu0 %v637
        %v1280 = vpop.f32.mrb[0].mxu0
        %v1281 = vadd.f32 0.0, %v1280
        %v1282 = vpop.f32.mrb[0].mxu0
        %1283 = vmatprep.mubr.f32.mxu0 0.0
        %1284 = vmatmul.mubr.f32.gmra.mrb[0].mxu0 %v640
        %v1285 = vpop.f32.mrb[0].mxu0
        %v1286 = vadd.f32 0.0, %v1285
        %v1287 = vpop.f32.mrb[0].mxu0
        %1288 = vmatprep.mubr.f32.mxu0 0.0
        %1289 = vmatmul.mubr.f32.gmra.mrb[0].mxu0 %v643
        %v1290 = vpop.f32.mrb[0].mxu0
        %v1291 = vadd.f32 0.0, %v1290
        %v1292 = vpop.f32.mrb[0].mxu0
        %1293 = vmatprep.mubr.f32.mxu0 0.0
        %1294 = vmatmul.mubr.f32.gmra.mrb[0].mxu0 %v646
        %v1295 = vpop.f32.mrb[0].mxu0
        %v1296 = vadd.f32 0.0, %v1295
        %v1297 = vpop.f32.mrb[0].mxu0
        %1298 = vmatprep.mubr.f32.mxu0 0.0
        %1299 = vmatmul.mubr.f32.gmra.mrb[0].mxu0 %v649
        %v1300 = vpop.f32.mrb[0].mxu0
        %v1301 = vadd.f32 0.0, %v1300
        %v1302 = vpop.f32.mrb[0].mxu0
        %1303 = vmatprep.mubr.f32.mxu0 0.0
        %1304 = vmatmul.mubr.f32.gmra.mrb[0].mxu0 %v652
        %v1305 = vpop.f32.mrb[0].mxu0
        %v1306 = vadd.f32 0.0, %v1305
        %v1307 = vpop.f32.mrb[0].mxu0
        %1308 = vmatprep.mubr.f32.mxu0 0.0
        %1309 = vmatmul.mubr.f32.gmra.mrb[0].mxu0 %v655
        %v1310 = vpop.f32.mrb[0].mxu0
        %v1311 = vadd.f32 0.0, %v1310
        %v1312 = vpop.f32.mrb[0].mxu0
        %1313 = vmatprep.mubr.f32.mxu0 0.0
        %1314 = vmatmul.mubr.f32.gmra.mrb[0].mxu0 %v658
        %v1315 = vpop.f32.mrb[0].mxu0
        %v1316 = vadd.f32 0.0, %v1315
        %v1317 = vpop.f32.mrb[0].mxu0
        %1318 = vmatprep.mubr.f32.mxu0 0.0
        %1319 = vmatmul.mubr.f32.gmra.mrb[0].mxu0 %v661
        %v1320 = vpop.f32.mrb[0].mxu0
        %v1321 = vadd.f32 0.0, %v1320
        %v1322 = vpop.f32.mrb[0].mxu0
        %1323 = vmatprep.mubr.f32.mxu0 0.0
        %1324 = vmatmul.mubr.f32.gmra.mrb[0].mxu0 %v664
        %v1325 = vpop.f32.mrb[0].mxu0
        %v1326 = vadd.f32 0.0, %v1325
        %v1327 = vpop.f32.mrb[0].mxu0
        %1328 = vmatprep.mubr.f32.mxu0 0.0
        %1329 = vmatmul.mubr.f32.gmra.mrb[0].mxu0 %v667
        %v1330 = vpop.f32.mrb[0].mxu0
        %v1331 = vadd.f32 0.0, %v1330
        %v1332 = vpop.f32.mrb[0].mxu0
        %1333 = vmatprep.mubr.f32.mxu0 0.0
        %1334 = vmatmul.mubr.f32.gmra.mrb[0].mxu0 %v670
        %v1335 = vpop.f32.mrb[0].mxu0
        %v1336 = vadd.f32 0.0, %v1335
        %v1337 = vpop.f32.mrb[0].mxu0
        %1338 = vmatprep.mubr.f32.mxu0 0.0
        %1339 = vmatmul.mubr.f32.gmra.mrb[0].mxu0 %v673
        %v1340 = vpop.f32.mrb[0].mxu0
        %v1341 = vadd.f32 0.0, %v1340
        %v1342 = vpop.f32.mrb[0].mxu0
        %1343 = vmatprep.mubr.f32.mxu0 0.0
        %1344 = vmatmul.mubr.f32.gmra.mrb[0].mxu0 %v676
        %v1345 = vpop.f32.mrb[0].mxu0
        %v1346 = vadd.f32 0.0, %v1345
        %v1347 = vpop.f32.mrb[0].mxu0
        %1348 = vmatprep.mubr.f32.mxu0 0.0
        %1349 = vmatmul.mubr.f32.gmra.mrb[0].mxu0 %v679
        %v1350 = vpop.f32.mrb[0].mxu0
        %v1351 = vadd.f32 0.0, %v1350
        %v1352 = vpop.f32.mrb[0].mxu0
        %1353 = vmatprep.mubr.f32.mxu0 0.0
        %1354 = vmatmul.mubr.f32.gmra.mrb[0].mxu0 %v682
        %v1355 = vpop.f32.mrb[0].mxu0
        %v1356 = vadd.f32 0.0, %v1355
        %v1357 = vpop.f32.mrb[0].mxu0
        %1358 = vmatprep.mubr.f32.mxu0 0.0
        %1359 = vmatmul.mubr.f32.gmra.mrb[0].mxu0 %v685
        %v1360 = vpop.f32.mrb[0].mxu0
        %v1361 = vadd.f32 0.0, %v1360
        %v1362 = vpop.f32.mrb[0].mxu0
        %1363 = vmatprep.mubr.f32.mxu0 0.0
        %1364 = vmatmul.mubr.f32.gmra.mrb[0].mxu0 %v688
        %v1365 = vpop.f32.mrb[0].mxu0
        %v1366 = vadd.f32 0.0, %v1365
        %v1367 = vpop.f32.mrb[0].mxu0
        %1368 = vmatprep.mubr.f32.mxu0 0.0
        %1369 = vmatmul.mubr.f32.gmra.mrb[0].mxu0 %v691
        %v1370 = vpop.f32.mrb[0].mxu0
        %v1371 = vadd.f32 0.0, %v1370
        %v1372 = vpop.f32.mrb[0].mxu0
        %1373 = vmatprep.mubr.f32.mxu0 0.0
        %1374 = vmatmul.mubr.f32.gmra.mrb[0].mxu0 %v694
        %v1375 = vpop.f32.mrb[0].mxu0
        %v1376 = vadd.f32 0.0, %v1375
        %v1377 = vpop.f32.mrb[0].mxu0
        %1378 = vmatprep.mubr.f32.mxu0 0.0
        %1379 = vmatmul.mubr.f32.gmra.mrb[0].mxu0 %v697
        %v1380 = vpop.f32.mrb[0].mxu0
        %v1381 = vadd.f32 0.0, %v1380
        %v1382 = vpop.f32.mrb[0].mxu0
        %1383 = vmatprep.mubr.f32.mxu0 0.0
        %1384 = vmatmul.mubr.f32.gmra.mrb[0].mxu0 %v700
        %v1385 = vpop.f32.mrb[0].mxu0
        %v1386 = vadd.f32 0.0, %v1385
        %v1387 = vpop.f32.mrb[0].mxu0
        %1388 = vmatprep.mubr.f32.mxu0 0.0
        %1389 = vmatmul.mubr.f32.gmra.mrb[0].mxu0 %v703
        %v1390 = vpop.f32.mrb[0].mxu0
        %v1391 = vadd.f32 0.0, %v1390
        %v1392 = vpop.f32.mrb[0].mxu0
        %1393 = vmatprep.mubr.f32.mxu0 0.0
        %1394 = vmatmul.mubr.f32.gmra.mrb[0].mxu0 %v706
        %v1395 = vpop.f32.mrb[0].mxu0
        %v1396 = vadd.f32 0.0, %v1395
        %v1397 = vpop.f32.mrb[0].mxu0
        %1398 = vmatprep.mubr.f32.mxu0 0.0
        %1399 = vmatmul.mubr.f32.gmra.mrb[0].mxu0 %v709
        %v1400 = vpop.f32.mrb[0].mxu0
        %v1401 = vadd.f32 0.0, %v1400
        %v1402 = vpop.f32.mrb[0].mxu0
        %1403 = vmatprep.mubr.f32.mxu0 0.0
        %1404 = vmatmul.mubr.f32.gmra.mrb[0].mxu0 %v712
        %v1405 = vpop.f32.mrb[0].mxu0
        %v1406 = vadd.f32 0.0, %v1405
        %v1407 = vpop.f32.mrb[0].mxu0
        %1408 = vmatprep.mubr.f32.mxu0 0.0
        %1409 = vmatmul.mubr.f32.gmra.mrb[0].mxu0 %v715
        %v1410 = vpop.f32.mrb[0].mxu0
        %v1411 = vadd.f32 0.0, %v1410
        %v1412 = vpop.f32.mrb[0].mxu0
        %1413 = vmatprep.mubr.f32.mxu0 0.0
        %1414 = vmatmul.mubr.f32.gmra.mrb[0].mxu0 %v718
        %v1415 = vpop.f32.mrb[0].mxu0
        %v1416 = vadd.f32 0.0, %v1415
        %v1417 = vpop.f32.mrb[0].mxu0
        %1418 = vmatprep.mubr.f32.mxu0 0.0
        %1419 = vmatmul.mubr.f32.gmra.mrb[0].mxu0 %v721
        %v1420 = vpop.f32.mrb[0].mxu0
        %v1421 = vadd.f32 0.0, %v1420
        %v1422 = vpop.f32.mrb[0].mxu0
        %1423 = vmatprep.mubr.f32.mxu0 0.0
        %1424 = vmatmul.mubr.f32.gmra.mrb[0].mxu0 %v724
        %v1425 = vpop.f32.mrb[0].mxu0
        %v1426 = vadd.f32 0.0, %v1425
        %v1427 = vpop.f32.mrb[0].mxu0
        %1428 = vmatprep.mubr.f32.mxu0 0.0
        %1429 = vmatmul.mubr.f32.gmra.mrb[0].mxu0 %v727
        %v1430 = vpop.f32.mrb[0].mxu0
        %v1431 = vadd.f32 0.0, %v1430
        %v1432 = vpop.f32.mrb[0].mxu0
        %1433 = vmatprep.mubr.f32.mxu0 0.0
        %1434 = vmatmul.mubr.f32.gmra.mrb[0].mxu0 %v730
        %v1435 = vpop.f32.mrb[0].mxu0
        %v1436 = vadd.f32 0.0, %v1435
        %v1437 = vpop.f32.mrb[0].mxu0
        %1438 = vmatprep.mubr.f32.mxu0 0.0
        %1439 = vmatmul.mubr.f32.gmra.mrb[0].mxu0 %v733
        %v1440 = vpop.f32.mrb[0].mxu0
        %v1441 = vadd.f32 0.0, %v1440
        %v1442 = vpop.f32.mrb[0].mxu0
        %1443 = vmatprep.mubr.f32.mxu0 0.0
        %1444 = vmatmul.mubr.f32.gmra.mrb[0].mxu0 %v736
        %v1445 = vpop.f32.mrb[0].mxu0
        %v1446 = vadd.f32 0.0, %v1445
        %v1447 = vpop.f32.mrb[0].mxu0
        %1448 = vmatprep.mubr.f32.mxu0 0.0
        %1449 = vmatmul.mubr.f32.gmra.mrb[0].mxu0 %v739
        %v1450 = vpop.f32.mrb[0].mxu0
        %v1451 = vadd.f32 0.0, %v1450
        %v1452 = vpop.f32.mrb[0].mxu0
        %1453 = vmatprep.mubr.f32.mxu0 0.0
        %1454 = vmatmul.mubr.f32.gmra.mrb[0].mxu0 %v742
        %v1455 = vpop.f32.mrb[0].mxu0
        %v1456 = vadd.f32 0.0, %v1455
        %v1457 = vpop.f32.mrb[0].mxu0
        %1458 = vmatprep.mubr.f32.mxu0 0.0
        %1459 = vmatmul.mubr.f32.gmra.mrb[0].mxu0 %v745
        %v1460 = vpop.f32.mrb[0].mxu0
        %v1461 = vadd.f32 0.0, %v1460
        %v1462 = vpop.f32.mrb[0].mxu0
        %1463 = vmatprep.mubr.f32.mxu0 0.0
        %1464 = vmatmul.mubr.f32.gmra.mrb[0].mxu0 %v748
        %v1465 = vpop.f32.mrb[0].mxu0
        %v1466 = vadd.f32 0.0, %v1465
        %v1467 = vpop.f32.mrb[0].mxu0
        %1468 = vmatprep.mubr.f32.mxu0 0.0
        %1469 = vmatmul.mubr.f32.gmra.mrb[0].mxu0 %v751
        %v1470 = vpop.f32.mrb[0].mxu0
        %v1471 = vadd.f32 0.0, %v1470
        %v1472 = vpop.f32.mrb[0].mxu0
        %1473 = vmatprep.mubr.f32.mxu0 0.0
        %1474 = vmatmul.mubr.f32.gmra.mrb[0].mxu0 %v754
        %v1475 = vpop.f32.mrb[0].mxu0
        %v1476 = vadd.f32 0.0, %v1475
        %v1477 = vpop.f32.mrb[0].mxu0
        %1478 = vmatprep.mubr.f32.mxu0 0.0
        %1479 = vmatmul.mubr.f32.gmra.mrb[0].mxu0 %v757
        %v1480 = vpop.f32.mrb[0].mxu0
        %v1481 = vadd.f32 0.0, %v1480
        %v1482 = vpop.f32.mrb[0].mxu0
        %1483 = vdwg.mxu0
        %v1484 = vadd.f32 %v826, %v831
        %v1485 = vadd.f32 %v1484, %v836
        %v1486 = vadd.f32 %v1485, %v841
        %v1487 = vadd.f32 %v1486, %v846
        %v1488 = vadd.f32 %v1487, %v851
        %v1489 = vadd.f32 %v1488, %v856
        %v1490 = vadd.f32 %v1489, %v861
        %v1491 = vadd.f32 %v1490, %v866
        %v1492 = vadd.f32 %v1491, %v871
        %v1493 = vadd.f32 %v1492, %v876
        %v1494 = vadd.f32 %v1493, %v881
        %v1495 = vadd.f32 %v1494, %v886
        %v1496 = vadd.f32 %v1495, %v891
        %v1497 = vadd.f32 %v1496, %v896
        %v1498 = vadd.f32 %v1497, %v901
        %v1499 = vadd.f32 %v1498, %v906
        %v1500 = vadd.f32 %v1499, %v911
        %v1501 = vadd.f32 %v1500, %v916
        %v1502 = vadd.f32 %v1501, %v921
        %v1503 = vadd.f32 %v1502, %v926
        %v1504 = vadd.f32 %v1503, %v931
        %v1505 = vadd.f32 %v1504, %v936
        %v1506 = vadd.f32 %v1505, %v941
        %v1507 = vadd.f32 %v1506, %v946
        %v1508 = vadd.f32 %v1507, %v951
        %v1509 = vadd.f32 %v1508, %v956
        %v1510 = vadd.f32 %v1509, %v961
        %v1511 = vadd.f32 %v1510, %v966
        %v1512 = vadd.f32 %v1511, %v971
        %v1513 = vadd.f32 %v1512, %v976
        %v1514 = vadd.f32 %v1513, %v981
        %v1515 = vadd.f32 %v1514, %v986
        %v1516 = vadd.f32 %v1515, %v991
        %v1517 = vadd.f32 %v1516, %v996
        %v1518 = vadd.f32 %v1517, %v1001
        %v1519 = vadd.f32 %v1518, %v1006
        %v1520 = vadd.f32 %v1519, %v1011
        %v1521 = vadd.f32 %v1520, %v1016
        %v1522 = vadd.f32 %v1521, %v1021
        %v1523 = vadd.f32 %v1522, %v1026
        %v1524 = vadd.f32 %v1523, %v1031
        %v1525 = vadd.f32 %v1524, %v1036
        %v1526 = vadd.f32 %v1525, %v1041
        %v1527 = vadd.f32 %v1526, %v1046
        %v1528 = vadd.f32 %v1527, %v1051
        %v1529 = vadd.f32 %v1528, %v1056
        %v1530 = vadd.f32 %v1529, %v1061
        %v1531 = vadd.f32 %v1530, %v1066
        %v1532 = vadd.f32 %v1531, %v1071
        %v1533 = vadd.f32 %v1532, %v1076
        %v1534 = vadd.f32 %v1533, %v1081
        %v1535 = vadd.f32 %v1534, %v1086
        %v1536 = vadd.f32 %v1535, %v1091
        %v1537 = vadd.f32 %v1536, %v1096
        %v1538 = vadd.f32 %v1537, %v1101
        %v1539 = vadd.f32 %v1538, %v1106
        %v1540 = vadd.f32 %v1539, %v1111
        %v1541 = vadd.f32 %v1540, %v1116
        %v1542 = vadd.f32 %v1541, %v1121
        %v1543 = vadd.f32 %v1542, %v1126
        %v1544 = vadd.f32 %v1543, %v1131
        %v1545 = vadd.f32 %v1544, %v1136
        %v1546 = vadd.f32 %v1545, %v1141
        %v1547 = vadd.f32 %v1546, %v1146
        %v1548 = vadd.f32 %v1547, %v1151
        %v1549 = vadd.f32 %v1548, %v1156
        %v1550 = vadd.f32 %v1549, %v1161
        %v1551 = vadd.f32 %v1550, %v1166
        %v1552 = vadd.f32 %v1551, %v1171
        %v1553 = vadd.f32 %v1552, %v1176
        %v1554 = vadd.f32 %v1553, %v1181
        %v1555 = vadd.f32 %v1554, %v1186
        %v1556 = vadd.f32 %v1555, %v1191
        %v1557 = vadd.f32 %v1556, %v1196
        %v1558 = vadd.f32 %v1557, %v1201
        %v1559 = vadd.f32 %v1558, %v1206
        %v1560 = vadd.f32 %v1559, %v1211
        %v1561 = vadd.f32 %v1560, %v1216
        %v1562 = vadd.f32 %v1561, %v1221
        %v1563 = vadd.f32 %v1562, %v1226
        %v1564 = vadd.f32 %v1563, %v1231
        %v1565 = vadd.f32 %v1564, %v1236
        %v1566 = vadd.f32 %v1565, %v1241
        %v1567 = vadd.f32 %v1566, %v1246
        %v1568 = vadd.f32 %v1567, %v1251
        %v1569 = vadd.f32 %v1568, %v1256
        %v1570 = vadd.f32 %v1569, %v1261
        %v1571 = vadd.f32 %v1570, %v1266
        %v1572 = vadd.f32 %v1571, %v1271
        %v1573 = vadd.f32 %v1572, %v1276
        %v1574 = vadd.f32 %v1573, %v1281
        %v1575 = vadd.f32 %v1574, %v1286
        %v1576 = vadd.f32 %v1575, %v1291
        %v1577 = vadd.f32 %v1576, %v1296
        %v1578 = vadd.f32 %v1577, %v1301
        %v1579 = vadd.f32 %v1578, %v1306
        %v1580 = vadd.f32 %v1579, %v1311
        %v1581 = vadd.f32 %v1580, %v1316
        %v1582 = vadd.f32 %v1581, %v1321
        %v1583 = vadd.f32 %v1582, %v1326
        %v1584 = vadd.f32 %v1583, %v1331
        %v1585 = vadd.f32 %v1584, %v1336
        %v1586 = vadd.f32 %v1585, %v1341
        %v1587 = vadd.f32 %v1586, %v1346
        %v1588 = vadd.f32 %v1587, %v1351
        %v1589 = vadd.f32 %v1588, %v1356
        %v1590 = vadd.f32 %v1589, %v1361
        %v1591 = vadd.f32 %v1590, %v1366
        %v1592 = vadd.f32 %v1591, %v1371
        %v1593 = vadd.f32 %v1592, %v1376
        %v1594 = vadd.f32 %v1593, %v1381
        %v1595 = vadd.f32 %v1594, %v1386
        %v1596 = vadd.f32 %v1595, %v1391
        %v1597 = vadd.f32 %v1596, %v1396
        %v1598 = vadd.f32 %v1597, %v1401
        %v1599 = vadd.f32 %v1598, %v1406
        %v1600 = vadd.f32 %v1599, %v1411
        %v1601 = vadd.f32 %v1600, %v1416
        %v1602 = vadd.f32 %v1601, %v1421
        %v1603 = vadd.f32 %v1602, %v1426
        %v1604 = vadd.f32 %v1603, %v1431
        %v1605 = vadd.f32 %v1604, %v1436
        %v1606 = vadd.f32 %v1605, %v1441
        %v1607 = vadd.f32 %v1606, %v1446
        %v1608 = vadd.f32 %v1607, %v1451
        %v1609 = vadd.f32 %v1608, %v1456
        %v1610 = vadd.f32 %v1609, %v1461
        %v1611 = vadd.f32 %v1610, %v1466
        %v1612 = vadd.f32 %v1611, %v1471
        %v1613 = vadd.f32 %v1612, %v1476
        %v1614 = vadd.f32 %v1613, %v1481
        %v1615 = vrot.slane %v1614, 4
        %v1616 = vadd.f32 %v1614, %v1615
        %v1617 = vrot.slane %v1616, 2
        %v1618 = vadd.f32 %v1616, %v1617
        %v1619 = vrot.slane %v1618, 1
        %v1620 = vadd.f32 %v1618, %v1619
        %v1621 = vmul.f32 %v826, %v826
        %v1622 = vmul.f32 %v831, %v831
        %v1623 = vmul.f32 %v836, %v836
        %v1624 = vmul.f32 %v841, %v841
        %v1625 = vmul.f32 %v846, %v846
        %v1626 = vmul.f32 %v851, %v851
        %v1627 = vmul.f32 %v856, %v856
        %v1628 = vmul.f32 %v861, %v861
        %v1629 = vmul.f32 %v866, %v866
        %v1630 = vmul.f32 %v871, %v871
        %v1631 = vmul.f32 %v876, %v876
        %v1632 = vmul.f32 %v881, %v881
        %v1633 = vmul.f32 %v886, %v886
        %v1634 = vmul.f32 %v891, %v891
        %v1635 = vmul.f32 %v896, %v896
        %v1636 = vmul.f32 %v901, %v901
        %v1637 = vmul.f32 %v906, %v906
        %v1638 = vmul.f32 %v911, %v911
        %v1639 = vmul.f32 %v916, %v916
        %v1640 = vmul.f32 %v921, %v921
        %v1641 = vmul.f32 %v926, %v926
        %v1642 = vmul.f32 %v931, %v931
        %v1643 = vmul.f32 %v936, %v936
        %v1644 = vmul.f32 %v941, %v941
        %v1645 = vmul.f32 %v946, %v946
        %v1646 = vmul.f32 %v951, %v951
        %v1647 = vmul.f32 %v956, %v956
        %v1648 = vmul.f32 %v961, %v961
        %v1649 = vmul.f32 %v966, %v966
        %v1650 = vmul.f32 %v971, %v971
        %v1651 = vmul.f32 %v976, %v976
        %v1652 = vmul.f32 %v981, %v981
        %v1653 = vmul.f32 %v986, %v986
        %v1654 = vmul.f32 %v991, %v991
        %v1655 = vmul.f32 %v996, %v996
        %v1656 = vmul.f32 %v1001, %v1001
        %v1657 = vmul.f32 %v1006, %v1006
        %v1658 = vmul.f32 %v1011, %v1011
        %v1659 = vmul.f32 %v1016, %v1016
        %v1660 = vmul.f32 %v1021, %v1021
        %v1661 = vmul.f32 %v1026, %v1026
        %v1662 = vmul.f32 %v1031, %v1031
        %v1663 = vmul.f32 %v1036, %v1036
        %v1664 = vmul.f32 %v1041, %v1041
        %v1665 = vmul.f32 %v1046, %v1046
        %v1666 = vmul.f32 %v1051, %v1051
        %v1667 = vmul.f32 %v1056, %v1056
        %v1668 = vmul.f32 %v1061, %v1061
        %v1669 = vmul.f32 %v1066, %v1066
        %v1670 = vmul.f32 %v1071, %v1071
        %v1671 = vmul.f32 %v1076, %v1076
        %v1672 = vmul.f32 %v1081, %v1081
        %v1673 = vmul.f32 %v1086, %v1086
        %v1674 = vmul.f32 %v1091, %v1091
        %v1675 = vmul.f32 %v1096, %v1096
        %v1676 = vmul.f32 %v1101, %v1101
        %v1677 = vmul.f32 %v1106, %v1106
        %v1678 = vmul.f32 %v1111, %v1111
        %v1679 = vmul.f32 %v1116, %v1116
        %v1680 = vmul.f32 %v1121, %v1121
        %v1681 = vmul.f32 %v1126, %v1126
        %v1682 = vmul.f32 %v1131, %v1131
        %v1683 = vmul.f32 %v1136, %v1136
        %v1684 = vmul.f32 %v1141, %v1141
        %v1685 = vmul.f32 %v1146, %v1146
        %v1686 = vmul.f32 %v1151, %v1151
        %v1687 = vmul.f32 %v1156, %v1156
        %v1688 = vmul.f32 %v1161, %v1161
        %v1689 = vmul.f32 %v1166, %v1166
        %v1690 = vmul.f32 %v1171, %v1171
        %v1691 = vmul.f32 %v1176, %v1176
        %v1692 = vmul.f32 %v1181, %v1181
        %v1693 = vmul.f32 %v1186, %v1186
        %v1694 = vmul.f32 %v1191, %v1191
        %v1695 = vmul.f32 %v1196, %v1196
        %v1696 = vmul.f32 %v1201, %v1201
        %v1697 = vmul.f32 %v1206, %v1206
        %v1698 = vmul.f32 %v1211, %v1211
        %v1699 = vmul.f32 %v1216, %v1216
        %v1700 = vmul.f32 %v1221, %v1221
        %v1701 = vmul.f32 %v1226, %v1226
        %v1702 = vmul.f32 %v1231, %v1231
        %v1703 = vmul.f32 %v1236, %v1236
        %v1704 = vmul.f32 %v1241, %v1241
        %v1705 = vmul.f32 %v1246, %v1246
        %v1706 = vmul.f32 %v1251, %v1251
        %v1707 = vmul.f32 %v1256, %v1256
        %v1708 = vmul.f32 %v1261, %v1261
        %v1709 = vmul.f32 %v1266, %v1266
        %v1710 = vmul.f32 %v1271, %v1271
        %v1711 = vmul.f32 %v1276, %v1276
        %v1712 = vmul.f32 %v1281, %v1281
        %v1713 = vmul.f32 %v1286, %v1286
        %v1714 = vmul.f32 %v1291, %v1291
        %v1715 = vmul.f32 %v1296, %v1296
        %v1716 = vmul.f32 %v1301, %v1301
        %v1717 = vmul.f32 %v1306, %v1306
        %v1718 = vmul.f32 %v1311, %v1311
        %v1719 = vmul.f32 %v1316, %v1316
        %v1720 = vmul.f32 %v1321, %v1321
        %v1721 = vmul.f32 %v1326, %v1326
        %v1722 = vmul.f32 %v1331, %v1331
        %v1723 = vmul.f32 %v1336, %v1336
        %v1724 = vmul.f32 %v1341, %v1341
        %v1725 = vmul.f32 %v1346, %v1346
        %v1726 = vmul.f32 %v1351, %v1351
        %v1727 = vmul.f32 %v1356, %v1356
        %v1728 = vmul.f32 %v1361, %v1361
        %v1729 = vmul.f32 %v1366, %v1366
        %v1730 = vmul.f32 %v1371, %v1371
        %v1731 = vmul.f32 %v1376, %v1376
        %v1732 = vmul.f32 %v1381, %v1381
        %v1733 = vmul.f32 %v1386, %v1386
        %v1734 = vmul.f32 %v1391, %v1391
        %v1735 = vmul.f32 %v1396, %v1396
        %v1736 = vmul.f32 %v1401, %v1401
        %v1737 = vmul.f32 %v1406, %v1406
        %v1738 = vmul.f32 %v1411, %v1411
        %v1739 = vmul.f32 %v1416, %v1416
        %v1740 = vmul.f32 %v1421, %v1421
        %v1741 = vmul.f32 %v1426, %v1426
        %v1742 = vmul.f32 %v1431, %v1431
        %v1743 = vmul.f32 %v1436, %v1436
        %v1744 = vmul.f32 %v1441, %v1441
        %v1745 = vmul.f32 %v1446, %v1446
        %v1746 = vmul.f32 %v1451, %v1451
        %v1747 = vmul.f32 %v1456, %v1456
        %v1748 = vmul.f32 %v1461, %v1461
        %v1749 = vmul.f32 %v1466, %v1466
        %v1750 = vmul.f32 %v1471, %v1471
        %v1751 = vmul.f32 %v1476, %v1476
        %v1752 = vmul.f32 %v1481, %v1481
        %v1753 = vadd.f32 %v1621, %v1622
        %v1754 = vadd.f32 %v1753, %v1623
        %v1755 = vadd.f32 %v1754, %v1624
        %v1756 = vadd.f32 %v1755, %v1625
        %v1757 = vadd.f32 %v1756, %v1626
        %v1758 = vadd.f32 %v1757, %v1627
        %v1759 = vadd.f32 %v1758, %v1628
        %v1760 = vadd.f32 %v1759, %v1629
        %v1761 = vadd.f32 %v1760, %v1630
        %v1762 = vadd.f32 %v1761, %v1631
        %v1763 = vadd.f32 %v1762, %v1632
        %v1764 = vadd.f32 %v1763, %v1633
        %v1765 = vadd.f32 %v1764, %v1634
        %v1766 = vadd.f32 %v1765, %v1635
        %v1767 = vadd.f32 %v1766, %v1636
        %v1768 = vadd.f32 %v1767, %v1637
        %v1769 = vadd.f32 %v1768, %v1638
        %v1770 = vadd.f32 %v1769, %v1639
        %v1771 = vadd.f32 %v1770, %v1640
        %v1772 = vadd.f32 %v1771, %v1641
        %v1773 = vadd.f32 %v1772, %v1642
        %v1774 = vadd.f32 %v1773, %v1643
        %v1775 = vadd.f32 %v1774, %v1644
        %v1776 = vadd.f32 %v1775, %v1645
        %v1777 = vadd.f32 %v1776, %v1646
        %v1778 = vadd.f32 %v1777, %v1647
        %v1779 = vadd.f32 %v1778, %v1648
        %v1780 = vadd.f32 %v1779, %v1649
        %v1781 = vadd.f32 %v1780, %v1650
        %v1782 = vadd.f32 %v1781, %v1651
        %v1783 = vadd.f32 %v1782, %v1652
        %v1784 = vadd.f32 %v1783, %v1653
        %v1785 = vadd.f32 %v1784, %v1654
        %v1786 = vadd.f32 %v1785, %v1655
        %v1787 = vadd.f32 %v1786, %v1656
        %v1788 = vadd.f32 %v1787, %v1657
        %v1789 = vadd.f32 %v1788, %v1658
        %v1790 = vadd.f32 %v1789, %v1659
        %v1791 = vadd.f32 %v1790, %v1660
        %v1792 = vadd.f32 %v1791, %v1661
        %v1793 = vadd.f32 %v1792, %v1662
        %v1794 = vadd.f32 %v1793, %v1663
        %v1795 = vadd.f32 %v1794, %v1664
        %v1796 = vadd.f32 %v1795, %v1665
        %v1797 = vadd.f32 %v1796, %v1666
        %v1798 = vadd.f32 %v1797, %v1667
        %v1799 = vadd.f32 %v1798, %v1668
        %v1800 = vadd.f32 %v1799, %v1669
        %v1801 = vadd.f32 %v1800, %v1670
        %v1802 = vadd.f32 %v1801, %v1671
        %v1803 = vadd.f32 %v1802, %v1672
        %v1804 = vadd.f32 %v1803, %v1673
        %v1805 = vadd.f32 %v1804, %v1674
        %v1806 = vadd.f32 %v1805, %v1675
        %v1807 = vadd.f32 %v1806, %v1676
        %v1808 = vadd.f32 %v1807, %v1677
        %v1809 = vadd.f32 %v1808, %v1678
        %v1810 = vadd.f32 %v1809, %v1679
        %v1811 = vadd.f32 %v1810, %v1680
        %v1812 = vadd.f32 %v1811, %v1681
        %v1813 = vadd.f32 %v1812, %v1682
        %v1814 = vadd.f32 %v1813, %v1683
        %v1815 = vadd.f32 %v1814, %v1684
        %v1816 = vadd.f32 %v1815, %v1685
        %v1817 = vadd.f32 %v1816, %v1686
        %v1818 = vadd.f32 %v1817, %v1687
        %v1819 = vadd.f32 %v1818, %v1688
        %v1820 = vadd.f32 %v1819, %v1689
        %v1821 = vadd.f32 %v1820, %v1690
        %v1822 = vadd.f32 %v1821, %v1691
        %v1823 = vadd.f32 %v1822, %v1692
        %v1824 = vadd.f32 %v1823, %v1693
        %v1825 = vadd.f32 %v1824, %v1694
        %v1826 = vadd.f32 %v1825, %v1695
        %v1827 = vadd.f32 %v1826, %v1696
        %v1828 = vadd.f32 %v1827, %v1697
        %v1829 = vadd.f32 %v1828, %v1698
        %v1830 = vadd.f32 %v1829, %v1699
        %v1831 = vadd.f32 %v1830, %v1700
        %v1832 = vadd.f32 %v1831, %v1701
        %v1833 = vadd.f32 %v1832, %v1702
        %v1834 = vadd.f32 %v1833, %v1703
        %v1835 = vadd.f32 %v1834, %v1704
        %v1836 = vadd.f32 %v1835, %v1705
        %v1837 = vadd.f32 %v1836, %v1706
        %v1838 = vadd.f32 %v1837, %v1707
        %v1839 = vadd.f32 %v1838, %v1708
        %v1840 = vadd.f32 %v1839, %v1709
        %v1841 = vadd.f32 %v1840, %v1710
        %v1842 = vadd.f32 %v1841, %v1711
        %v1843 = vadd.f32 %v1842, %v1712
        %v1844 = vadd.f32 %v1843, %v1713
        %v1845 = vadd.f32 %v1844, %v1714
        %v1846 = vadd.f32 %v1845, %v1715
        %v1847 = vadd.f32 %v1846, %v1716
        %v1848 = vadd.f32 %v1847, %v1717
        %v1849 = vadd.f32 %v1848, %v1718
        %v1850 = vadd.f32 %v1849, %v1719
        %v1851 = vadd.f32 %v1850, %v1720
        %v1852 = vadd.f32 %v1851, %v1721
        %v1853 = vadd.f32 %v1852, %v1722
        %v1854 = vadd.f32 %v1853, %v1723
        %v1855 = vadd.f32 %v1854, %v1724
        %v1856 = vadd.f32 %v1855, %v1725
        %v1857 = vadd.f32 %v1856, %v1726
        %v1858 = vadd.f32 %v1857, %v1727
        %v1859 = vadd.f32 %v1858, %v1728
        %v1860 = vadd.f32 %v1859, %v1729
        %v1861 = vadd.f32 %v1860, %v1730
        %v1862 = vadd.f32 %v1861, %v1731
        %v1863 = vadd.f32 %v1862, %v1732
        %v1864 = vadd.f32 %v1863, %v1733
        %v1865 = vadd.f32 %v1864, %v1734
        %v1866 = vadd.f32 %v1865, %v1735
        %v1867 = vadd.f32 %v1866, %v1736
        %v1868 = vadd.f32 %v1867, %v1737
        %v1869 = vadd.f32 %v1868, %v1738
        %v1870 = vadd.f32 %v1869, %v1739
        %v1871 = vadd.f32 %v1870, %v1740
        %v1872 = vadd.f32 %v1871, %v1741
        %v1873 = vadd.f32 %v1872, %v1742
        %v1874 = vadd.f32 %v1873, %v1743
        %v1875 = vadd.f32 %v1874, %v1744
        %v1876 = vadd.f32 %v1875, %v1745
        %v1877 = vadd.f32 %v1876, %v1746
        %v1878 = vadd.f32 %v1877, %v1747
        %v1879 = vadd.f32 %v1878, %v1748
        %v1880 = vadd.f32 %v1879, %v1749
        %v1881 = vadd.f32 %v1880, %v1750
        %v1882 = vadd.f32 %v1881, %v1751
        %v1883 = vadd.f32 %v1882, %v1752
        %v1884 = vrot.slane %v1883, 4
        %v1885 = vadd.f32 %v1883, %v1884
        %v1886 = vrot.slane %v1885, 2
        %v1887 = vadd.f32 %v1885, %v1886
        %v1888 = vrot.slane %v1887, 1
        %v1889 = vadd.f32 %v1887, %v1888
        %v1890 = vmul.f32 %v1620, 0.0012755102
        %v1891 = vmul.f32 %v1889, 0.0012755102
        %v1892 = vmul.f32 %v1890, %v1890
        %v1893 = vsub.f32 %v1891, %v1892
        %v1894 = vld [vmem:[%s2] sm:$0x1]
        %v1895 = vadd.f32 %v1893, 1e-05
        %v1896 = vrsqrt.pop %v1895
        %v1897 = vmul.f32 %v1894, %v1896
        %v1898 = vld [vmem:[%s3] sm:$0x1]
        %v1899 = vmul.f32 %v1890, %v1897
        %v1900 = vsub.f32 %v1898, %v1899
        %v1901 = vlaneseq
        %v1902 = vshrl.u32 %v1901, 7
        %v1903 = vadd.s32 %v1902, 8
        %v1904 = vadd.s32 %v1902, 16
        %v1905 = vadd.s32 %v1902, 24
        %v1906 = vadd.s32 %v1902, 32
        %v1907 = vadd.s32 %v1902, 40
        %v1908 = vadd.s32 %v1902, 48
        %v1909 = vadd.s32 %v1902, 56
        %v1910 = vadd.s32 %v1902, 64
        %v1911 = vadd.s32 %v1902, 72
        %v1912 = vadd.s32 %v1902, 80
        %v1913 = vadd.s32 %v1902, 88
        %v1914 = vadd.s32 %v1902, 96
        %v1915 = vadd.s32 %v1902, 104
        %v1916 = vadd.s32 %v1902, 112
        %v1917 = vadd.s32 %v1902, 120
        %v1918 = vadd.s32 %v1902, 128
        %v1919 = vadd.s32 %v1902, 136
        %v1920 = vadd.s32 %v1902, 144
        %v1921 = vadd.s32 %v1902, 152
        %v1922 = vadd.s32 %v1902, 160
        %v1923 = vadd.s32 %v1902, 168
        %v1924 = vadd.s32 %v1902, 176
        %v1925 = vadd.s32 %v1902, 184
        %v1926 = vadd.s32 %v1902, 192
        %v1927 = vadd.s32 %v1902, 200
        %v1928 = vadd.s32 %v1902, 208
        %v1929 = vadd.s32 %v1902, 216
        %v1930 = vadd.s32 %v1902, 224
        %v1931 = vadd.s32 %v1902, 232
        %v1932 = vadd.s32 %v1902, 240
        %v1933 = vadd.s32 %v1902, 248
        %v1934 = vadd.s32 %v1902, 256
        %v1935 = vadd.s32 %v1902, 264
        %v1936 = vadd.s32 %v1902, 272
        %v1937 = vadd.s32 %v1902, 280
        %v1938 = vadd.s32 %v1902, 288
        %v1939 = vadd.s32 %v1902, 296
        %v1940 = vadd.s32 %v1902, 304
        %v1941 = vadd.s32 %v1902, 312
        %v1942 = vadd.s32 %v1902, 320
        %v1943 = vadd.s32 %v1902, 328
        %v1944 = vadd.s32 %v1902, 336
        %v1945 = vadd.s32 %v1902, 344
        %v1946 = vadd.s32 %v1902, 352
        %v1947 = vadd.s32 %v1902, 360
        %v1948 = vadd.s32 %v1902, 368
        %v1949 = vadd.s32 %v1902, 376
        %v1950 = vadd.s32 %v1902, 384
        %v1951 = vadd.s32 %v1902, 392
        %v1952 = vadd.s32 %v1902, 400
        %v1953 = vadd.s32 %v1902, 408
        %v1954 = vadd.s32 %v1902, 416
        %v1955 = vadd.s32 %v1902, 424
        %v1956 = vadd.s32 %v1902, 432
        %v1957 = vadd.s32 %v1902, 440
        %v1958 = vadd.s32 %v1902, 448
        %v1959 = vadd.s32 %v1902, 456
        %v1960 = vadd.s32 %v1902, 464
        %v1961 = vadd.s32 %v1902, 472
        %v1962 = vadd.s32 %v1902, 480
        %v1963 = vadd.s32 %v1902, 488
        %v1964 = vadd.s32 %v1902, 496
        %v1965 = vadd.s32 %v1902, 504
        %v1966 = vadd.s32 %v1902, 512
        %v1967 = vadd.s32 %v1902, 520
        %v1968 = vadd.s32 %v1902, 528
        %v1969 = vadd.s32 %v1902, 536
        %v1970 = vadd.s32 %v1902, 544
        %v1971 = vadd.s32 %v1902, 552
        %v1972 = vadd.s32 %v1902, 560
        %v1973 = vadd.s32 %v1902, 568
        %v1974 = vadd.s32 %v1902, 576
        %v1975 = vadd.s32 %v1902, 584
        %v1976 = vadd.s32 %v1902, 592
        %v1977 = vadd.s32 %v1902, 600
        %v1978 = vadd.s32 %v1902, 608
        %v1979 = vadd.s32 %v1902, 616
        %v1980 = vadd.s32 %v1902, 624
        %v1981 = vadd.s32 %v1902, 632
        %v1982 = vadd.s32 %v1902, 640
        %v1983 = vadd.s32 %v1902, 648
        %v1984 = vadd.s32 %v1902, 656
        %v1985 = vadd.s32 %v1902, 664
        %v1986 = vadd.s32 %v1902, 672
        %v1987 = vadd.s32 %v1902, 680
        %v1988 = vadd.s32 %v1902, 688
        %v1989 = vadd.s32 %v1902, 696
        %v1990 = vadd.s32 %v1902, 704
        %v1991 = vadd.s32 %v1902, 712
        %v1992 = vadd.s32 %v1902, 720
        %v1993 = vadd.s32 %v1902, 728
        %v1994 = vadd.s32 %v1902, 736
        %v1995 = vadd.s32 %v1902, 744
        %v1996 = vadd.s32 %v1902, 752
        %v1997 = vadd.s32 %v1902, 760
        %v1998 = vadd.s32 %v1902, 768
        %v1999 = vadd.s32 %v1902, 776
        %v2000 = vadd.s32 %v1902, 784
        %v2001 = vadd.s32 %v1902, 792
        %v2002 = vadd.s32 %v1902, 800
        %v2003 = vadd.s32 %v1902, 808
        %v2004 = vadd.s32 %v1902, 816
        %v2005 = vadd.s32 %v1902, 824
        %v2006 = vadd.s32 %v1902, 832
        %v2007 = vadd.s32 %v1902, 840
        %v2008 = vadd.s32 %v1902, 848
        %v2009 = vadd.s32 %v1902, 856
        %v2010 = vadd.s32 %v1902, 864
        %v2011 = vadd.s32 %v1902, 872
        %v2012 = vadd.s32 %v1902, 880
        %v2013 = vadd.s32 %v1902, 888
        %v2014 = vadd.s32 %v1902, 896
        %v2015 = vadd.s32 %v1902, 904
        %v2016 = vadd.s32 %v1902, 912
        %v2017 = vadd.s32 %v1902, 920
        %v2018 = vadd.s32 %v1902, 928
        %v2019 = vadd.s32 %v1902, 936
        %v2020 = vadd.s32 %v1902, 944
        %v2021 = vadd.s32 %v1902, 952
        %v2022 = vadd.s32 %v1902, 960
        %v2023 = vadd.s32 %v1902, 968
        %v2024 = vadd.s32 %v1902, 976
        %v2025 = vadd.s32 %v1902, 984
        %v2026 = vadd.s32 %v1902, 992
        %v2027 = vadd.s32 %v1902, 1000
        %v2028 = vadd.s32 %v1902, 1008
        %v2029 = vadd.s32 %v1902, 1016
        %v2030 = vadd.s32 %v1902, 1024
        %v2031 = vadd.s32 %v1902, 1032
        %v2032 = vadd.s32 %v1902, 1040
        %v2033 = vadd.s32 %v1902, 1048
        %v2034 = vshra.s32 %v1902, 5
        %v2035 = vshra.s32 %v1903, 5
        %v2036 = vshra.s32 %v1904, 5
        %v2037 = vshra.s32 %v1905, 5
        %v2038 = vshra.s32 %v1906, 5
        %v2039 = vshra.s32 %v1907, 5
        %v2040 = vshra.s32 %v1908, 5
        %v2041 = vshra.s32 %v1909, 5
        %v2042 = vshra.s32 %v1910, 5
        %v2043 = vshra.s32 %v1911, 5
        %v2044 = vshra.s32 %v1912, 5
        %v2045 = vshra.s32 %v1913, 5
        %v2046 = vshra.s32 %v1914, 5
        %v2047 = vshra.s32 %v1915, 5
        %v2048 = vshra.s32 %v1916, 5
        %v2049 = vshra.s32 %v1917, 5
        %v2050 = vshra.s32 %v1918, 5
        %v2051 = vshra.s32 %v1919, 5
        %v2052 = vshra.s32 %v1920, 5
        %v2053 = vshra.s32 %v1921, 5
        %v2054 = vshra.s32 %v1922, 5
        %v2055 = vshra.s32 %v1923, 5
        %v2056 = vshra.s32 %v1924, 5
        %v2057 = vshra.s32 %v1925, 5
        %v2058 = vshra.s32 %v1926, 5
        %v2059 = vshra.s32 %v1927, 5
        %v2060 = vshra.s32 %v1928, 5
        %v2061 = vshra.s32 %v1929, 5
        %v2062 = vshra.s32 %v1930, 5
        %v2063 = vshra.s32 %v1931, 5
        %v2064 = vshra.s32 %v1932, 5
        %v2065 = vshra.s32 %v1933, 5
        %v2066 = vshra.s32 %v1934, 5
        %v2067 = vshra.s32 %v1935, 5
        %v2068 = vshra.s32 %v1936, 5
        %v2069 = vshra.s32 %v1937, 5
        %v2070 = vshra.s32 %v1938, 5
        %v2071 = vshra.s32 %v1939, 5
        %v2072 = vshra.s32 %v1940, 5
        %v2073 = vshra.s32 %v1941, 5
        %v2074 = vshra.s32 %v1942, 5
        %v2075 = vshra.s32 %v1943, 5
        %v2076 = vshra.s32 %v1944, 5
        %v2077 = vshra.s32 %v1945, 5
        %v2078 = vshra.s32 %v1946, 5
        %v2079 = vshra.s32 %v1947, 5
        %v2080 = vshra.s32 %v1948, 5
        %v2081 = vshra.s32 %v1949, 5
        %v2082 = vshra.s32 %v1950, 5
        %v2083 = vshra.s32 %v1951, 5
        %v2084 = vshra.s32 %v1952, 5
        %v2085 = vshra.s32 %v1953, 5
        %v2086 = vshra.s32 %v1954, 5
        %v2087 = vshra.s32 %v1955, 5
        %v2088 = vshra.s32 %v1956, 5
        %v2089 = vshra.s32 %v1957, 5
        %v2090 = vshra.s32 %v1958, 5
        %v2091 = vshra.s32 %v1959, 5
        %v2092 = vshra.s32 %v1960, 5
        %v2093 = vshra.s32 %v1961, 5
        %v2094 = vshra.s32 %v1962, 5
        %v2095 = vshra.s32 %v1963, 5
        %v2096 = vshra.s32 %v1964, 5
        %v2097 = vshra.s32 %v1965, 5
        %v2098 = vshra.s32 %v1966, 5
        %v2099 = vshra.s32 %v1967, 5
        %v2100 = vshra.s32 %v1968, 5
        %v2101 = vshra.s32 %v1969, 5
        %v2102 = vshra.s32 %v1970, 5
        %v2103 = vshra.s32 %v1971, 5
        %v2104 = vshra.s32 %v1972, 5
        %v2105 = vshra.s32 %v1973, 5
        %v2106 = vshra.s32 %v1974, 5
        %v2107 = vshra.s32 %v1975, 5
        %v2108 = vshra.s32 %v1976, 5
        %v2109 = vshra.s32 %v1977, 5
        %v2110 = vshra.s32 %v1978, 5
        %v2111 = vshra.s32 %v1979, 5
        %v2112 = vshra.s32 %v1980, 5
        %v2113 = vshra.s32 %v1981, 5
        %v2114 = vshra.s32 %v1982, 5
        %v2115 = vshra.s32 %v1983, 5
        %v2116 = vshra.s32 %v1984, 5
        %v2117 = vshra.s32 %v1985, 5
        %v2118 = vshra.s32 %v1986, 5
        %v2119 = vshra.s32 %v1987, 5
        %v2120 = vshra.s32 %v1988, 5
        %v2121 = vshra.s32 %v1989, 5
        %v2122 = vshra.s32 %v1990, 5
        %v2123 = vshra.s32 %v1991, 5
        %v2124 = vshra.s32 %v1992, 5
        %v2125 = vshra.s32 %v1993, 5
        %v2126 = vshra.s32 %v1994, 5
        %v2127 = vshra.s32 %v1995, 5
        %v2128 = vshra.s32 %v1996, 5
        %v2129 = vshra.s32 %v1997, 5
        %v2130 = vshra.s32 %v1998, 5
        %v2131 = vshra.s32 %v1999, 5
        %v2132 = vshra.s32 %v2000, 5
        %v2133 = vshra.s32 %v2001, 5
        %v2134 = vshra.s32 %v2002, 5
        %v2135 = vshra.s32 %v2003, 5
        %v2136 = vshra.s32 %v2004, 5
        %v2137 = vshra.s32 %v2005, 5
        %v2138 = vshra.s32 %v2006, 5
        %v2139 = vshra.s32 %v2007, 5
        %v2140 = vshra.s32 %v2008, 5
        %v2141 = vshra.s32 %v2009, 5
        %v2142 = vshra.s32 %v2010, 5
        %v2143 = vshra.s32 %v2011, 5
        %v2144 = vshra.s32 %v2012, 5
        %v2145 = vshra.s32 %v2013, 5
        %v2146 = vshra.s32 %v2014, 5
        %v2147 = vshra.s32 %v2015, 5
        %v2148 = vshra.s32 %v2016, 5
        %v2149 = vshra.s32 %v2017, 5
        %v2150 = vshra.s32 %v2018, 5
        %v2151 = vshra.s32 %v2019, 5
        %v2152 = vshra.s32 %v2020, 5
        %v2153 = vshra.s32 %v2021, 5
        %v2154 = vshra.s32 %v2022, 5
        %v2155 = vshra.s32 %v2023, 5
        %v2156 = vshra.s32 %v2024, 5
        %v2157 = vshra.s32 %v2025, 5
        %v2158 = vshra.s32 %v2026, 5
        %v2159 = vshra.s32 %v2027, 5
        %v2160 = vshra.s32 %v2028, 5
        %v2161 = vshra.s32 %v2029, 5
        %v2162 = vshra.s32 %v2030, 5
        %v2163 = vshra.s32 %v2031, 5
        %v2164 = vshra.s32 %v2032, 5
        %v2165 = vshra.s32 %v2033, 5
        %v2166 = vand.u32 %v1902, 31
        %v2167 = vand.u32 %v1903, 31
        %v2168 = vand.u32 %v1904, 31
        %v2169 = vand.u32 %v1905, 31
        %v2170 = vand.u32 %v1906, 31
        %v2171 = vand.u32 %v1907, 31
        %v2172 = vand.u32 %v1908, 31
        %v2173 = vand.u32 %v1909, 31
        %v2174 = vand.u32 %v1910, 31
        %v2175 = vand.u32 %v1911, 31
        %v2176 = vand.u32 %v1912, 31
        %v2177 = vand.u32 %v1913, 31
        %v2178 = vand.u32 %v1914, 31
        %v2179 = vand.u32 %v1915, 31
        %v2180 = vand.u32 %v1916, 31
        %v2181 = vand.u32 %v1917, 31
        %v2182 = vand.u32 %v1918, 31
        %v2183 = vand.u32 %v1919, 31
        %v2184 = vand.u32 %v1920, 31
        %v2185 = vand.u32 %v1921, 31
        %v2186 = vand.u32 %v1922, 31
        %v2187 = vand.u32 %v1923, 31
        %v2188 = vand.u32 %v1924, 31
        %v2189 = vand.u32 %v1925, 31
        %v2190 = vand.u32 %v1926, 31
        %v2191 = vand.u32 %v1927, 31
        %v2192 = vand.u32 %v1928, 31
        %v2193 = vand.u32 %v1929, 31
        %v2194 = vand.u32 %v1930, 31
        %v2195 = vand.u32 %v1931, 31
        %v2196 = vand.u32 %v1932, 31
        %v2197 = vand.u32 %v1933, 31
        %v2198 = vand.u32 %v1934, 31
        %v2199 = vand.u32 %v1935, 31
        %v2200 = vand.u32 %v1936, 31
        %v2201 = vand.u32 %v1937, 31
        %v2202 = vand.u32 %v1938, 31
        %v2203 = vand.u32 %v1939, 31
        %v2204 = vand.u32 %v1940, 31
        %v2205 = vand.u32 %v1941, 31
        %v2206 = vand.u32 %v1942, 31
        %v2207 = vand.u32 %v1943, 31
        %v2208 = vand.u32 %v1944, 31
        %v2209 = vand.u32 %v1945, 31
        %v2210 = vand.u32 %v1946, 31
        %v2211 = vand.u32 %v1947, 31
        %v2212 = vand.u32 %v1948, 31
        %v2213 = vand.u32 %v1949, 31
        %v2214 = vand.u32 %v1950, 31
        %v2215 = vand.u32 %v1951, 31
        %v2216 = vand.u32 %v1952, 31
        %v2217 = vand.u32 %v1953, 31
        %v2218 = vand.u32 %v1954, 31
        %v2219 = vand.u32 %v1955, 31
        %v2220 = vand.u32 %v1956, 31
        %v2221 = vand.u32 %v1957, 31
        %v2222 = vand.u32 %v1958, 31
        %v2223 = vand.u32 %v1959, 31
        %v2224 = vand.u32 %v1960, 31
        %v2225 = vand.u32 %v1961, 31
        %v2226 = vand.u32 %v1962, 31
        %v2227 = vand.u32 %v1963, 31
        %v2228 = vand.u32 %v1964, 31
        %v2229 = vand.u32 %v1965, 31
        %v2230 = vand.u32 %v1966, 31
        %v2231 = vand.u32 %v1967, 31
        %v2232 = vand.u32 %v1968, 31
        %v2233 = vand.u32 %v1969, 31
        %v2234 = vand.u32 %v1970, 31
        %v2235 = vand.u32 %v1971, 31
        %v2236 = vand.u32 %v1972, 31
        %v2237 = vand.u32 %v1973, 31
        %v2238 = vand.u32 %v1974, 31
        %v2239 = vand.u32 %v1975, 31
        %v2240 = vand.u32 %v1976, 31
        %v2241 = vand.u32 %v1977, 31
        %v2242 = vand.u32 %v1978, 31
        %v2243 = vand.u32 %v1979, 31
        %v2244 = vand.u32 %v1980, 31
        %v2245 = vand.u32 %v1981, 31
        %v2246 = vand.u32 %v1982, 31
        %v2247 = vand.u32 %v1983, 31
        %v2248 = vand.u32 %v1984, 31
        %v2249 = vand.u32 %v1985, 31
        %v2250 = vand.u32 %v1986, 31
        %v2251 = vand.u32 %v1987, 31
        %v2252 = vand.u32 %v1988, 31
        %v2253 = vand.u32 %v1989, 31
        %v2254 = vand.u32 %v1990, 31
        %v2255 = vand.u32 %v1991, 31
        %v2256 = vand.u32 %v1992, 31
        %v2257 = vand.u32 %v1993, 31
        %v2258 = vand.u32 %v1994, 31
        %v2259 = vand.u32 %v1995, 31
        %v2260 = vand.u32 %v1996, 31
        %v2261 = vand.u32 %v1997, 31
        %v2262 = vand.u32 %v1998, 31
        %v2263 = vand.u32 %v1999, 31
        %v2264 = vand.u32 %v2000, 31
        %v2265 = vand.u32 %v2001, 31
        %v2266 = vand.u32 %v2002, 31
        %v2267 = vand.u32 %v2003, 31
        %v2268 = vand.u32 %v2004, 31
        %v2269 = vand.u32 %v2005, 31
        %v2270 = vand.u32 %v2006, 31
        %v2271 = vand.u32 %v2007, 31
        %v2272 = vand.u32 %v2008, 31
        %v2273 = vand.u32 %v2009, 31
        %v2274 = vand.u32 %v2010, 31
        %v2275 = vand.u32 %v2011, 31
        %v2276 = vand.u32 %v2012, 31
        %v2277 = vand.u32 %v2013, 31
        %v2278 = vand.u32 %v2014, 31
        %v2279 = vand.u32 %v2015, 31
        %v2280 = vand.u32 %v2016, 31
        %v2281 = vand.u32 %v2017, 31
        %v2282 = vand.u32 %v2018, 31
        %v2283 = vand.u32 %v2019, 31
        %v2284 = vand.u32 %v2020, 31
        %v2285 = vand.u32 %v2021, 31
        %v2286 = vand.u32 %v2022, 31
        %v2287 = vand.u32 %v2023, 31
        %v2288 = vand.u32 %v2024, 31
        %v2289 = vand.u32 %v2025, 31
        %v2290 = vand.u32 %v2026, 31
        %v2291 = vand.u32 %v2027, 31
        %v2292 = vand.u32 %v2028, 31
        %v2293 = vand.u32 %v2029, 31
        %v2294 = vand.u32 %v2030, 31
        %v2295 = vand.u32 %v2031, 31
        %v2296 = vand.u32 %v2032, 31
        %v2297 = vand.u32 %v2033, 31
        %vm2298 = vcmp.ge.s32.totalorder %v2034, 2
        %vm2299 = vcmp.ge.s32.totalorder %v2035, 2
        %vm2300 = vcmp.ge.s32.totalorder %v2036, 2
        %vm2301 = vcmp.ge.s32.totalorder %v2037, 2
        %vm2302 = vcmp.ge.s32.totalorder %v2038, 2
        %vm2303 = vcmp.ge.s32.totalorder %v2039, 2
        %vm2304 = vcmp.ge.s32.totalorder %v2040, 2
        %vm2305 = vcmp.ge.s32.totalorder %v2041, 2
        %vm2306 = vcmp.ge.s32.totalorder %v2042, 2
        %vm2307 = vcmp.ge.s32.totalorder %v2043, 2
        %vm2308 = vcmp.ge.s32.totalorder %v2044, 2
        %vm2309 = vcmp.ge.s32.totalorder %v2045, 2
        %vm2310 = vcmp.ge.s32.totalorder %v2046, 2
        %vm2311 = vcmp.ge.s32.totalorder %v2047, 2
        %vm2312 = vcmp.ge.s32.totalorder %v2048, 2
        %vm2313 = vcmp.ge.s32.totalorder %v2049, 2
        %vm2314 = vcmp.ge.s32.totalorder %v2050, 2
        %vm2315 = vcmp.ge.s32.totalorder %v2051, 2
        %vm2316 = vcmp.ge.s32.totalorder %v2052, 2
        %vm2317 = vcmp.ge.s32.totalorder %v2053, 2
        %vm2318 = vcmp.ge.s32.totalorder %v2054, 2
        %vm2319 = vcmp.ge.s32.totalorder %v2055, 2
        %vm2320 = vcmp.ge.s32.totalorder %v2056, 2
        %vm2321 = vcmp.ge.s32.totalorder %v2057, 2
        %vm2322 = vcmp.ge.s32.totalorder %v2058, 2
        %vm2323 = vcmp.ge.s32.totalorder %v2059, 2
        %vm2324 = vcmp.ge.s32.totalorder %v2060, 2
        %vm2325 = vcmp.ge.s32.totalorder %v2061, 2
        %vm2326 = vcmp.ge.s32.totalorder %v2062, 2
        %vm2327 = vcmp.ge.s32.totalorder %v2063, 2
        %vm2328 = vcmp.ge.s32.totalorder %v2064, 2
        %vm2329 = vcmp.ge.s32.totalorder %v2065, 2
        %vm2330 = vcmp.ge.s32.totalorder %v2066, 2
        %vm2331 = vcmp.ge.s32.totalorder %v2067, 2
        %vm2332 = vcmp.ge.s32.totalorder %v2068, 2
        %vm2333 = vcmp.ge.s32.totalorder %v2069, 2
        %vm2334 = vcmp.ge.s32.totalorder %v2070, 2
        %vm2335 = vcmp.ge.s32.totalorder %v2071, 2
        %vm2336 = vcmp.ge.s32.totalorder %v2072, 2
        %vm2337 = vcmp.ge.s32.totalorder %v2073, 2
        %vm2338 = vcmp.ge.s32.totalorder %v2074, 2
        %vm2339 = vcmp.ge.s32.totalorder %v2075, 2
        %vm2340 = vcmp.ge.s32.totalorder %v2076, 2
        %vm2341 = vcmp.ge.s32.totalorder %v2077, 2
        %vm2342 = vcmp.ge.s32.totalorder %v2078, 2
        %vm2343 = vcmp.ge.s32.totalorder %v2079, 2
        %vm2344 = vcmp.ge.s32.totalorder %v2080, 2
        %vm2345 = vcmp.ge.s32.totalorder %v2081, 2
        %vm2346 = vcmp.ge.s32.totalorder %v2082, 2
        %vm2347 = vcmp.ge.s32.totalorder %v2083, 2
        %vm2348 = vcmp.ge.s32.totalorder %v2084, 2
        %vm2349 = vcmp.ge.s32.totalorder %v2085, 2
        %vm2350 = vcmp.ge.s32.totalorder %v2086, 2
        %vm2351 = vcmp.ge.s32.totalorder %v2087, 2
        %vm2352 = vcmp.ge.s32.totalorder %v2088, 2
        %vm2353 = vcmp.ge.s32.totalorder %v2089, 2
        %vm2354 = vcmp.ge.s32.totalorder %v2090, 2
        %vm2355 = vcmp.ge.s32.totalorder %v2091, 2
        %vm2356 = vcmp.ge.s32.totalorder %v2092, 2
        %vm2357 = vcmp.ge.s32.totalorder %v2093, 2
        %vm2358 = vcmp.ge.s32.totalorder %v2094, 2
        %vm2359 = vcmp.ge.s32.totalorder %v2095, 2
        %vm2360 = vcmp.ge.s32.totalorder %v2096, 2
        %vm2361 = vcmp.ge.s32.totalorder %v2097, 2
        %vm2362 = vcmp.ge.s32.totalorder %v2098, 2
        %vm2363 = vcmp.ge.s32.totalorder %v2099, 2
        %vm2364 = vcmp.ge.s32.totalorder %v2100, 2
        %vm2365 = vcmp.ge.s32.totalorder %v2101, 2
        %vm2366 = vcmp.ge.s32.totalorder %v2102, 2
        %vm2367 = vcmp.ge.s32.totalorder %v2103, 2
        %vm2368 = vcmp.ge.s32.totalorder %v2104, 2
        %vm2369 = vcmp.ge.s32.totalorder %v2105, 2
        %vm2370 = vcmp.ge.s32.totalorder %v2106, 2
        %vm2371 = vcmp.ge.s32.totalorder %v2107, 2
        %vm2372 = vcmp.ge.s32.totalorder %v2108, 2
        %vm2373 = vcmp.ge.s32.totalorder %v2109, 2
        %vm2374 = vcmp.ge.s32.totalorder %v2110, 2
        %vm2375 = vcmp.ge.s32.totalorder %v2111, 2
        %vm2376 = vcmp.ge.s32.totalorder %v2112, 2
        %vm2377 = vcmp.ge.s32.totalorder %v2113, 2
        %vm2378 = vcmp.ge.s32.totalorder %v2114, 2
        %vm2379 = vcmp.ge.s32.totalorder %v2115, 2
        %vm2380 = vcmp.ge.s32.totalorder %v2116, 2
        %vm2381 = vcmp.ge.s32.totalorder %v2117, 2
        %vm2382 = vcmp.ge.s32.totalorder %v2118, 2
        %vm2383 = vcmp.ge.s32.totalorder %v2119, 2
        %vm2384 = vcmp.ge.s32.totalorder %v2120, 2
        %vm2385 = vcmp.ge.s32.totalorder %v2121, 2
        %vm2386 = vcmp.ge.s32.totalorder %v2122, 2
        %vm2387 = vcmp.ge.s32.totalorder %v2123, 2
        %vm2388 = vcmp.ge.s32.totalorder %v2124, 2
        %vm2389 = vcmp.ge.s32.totalorder %v2125, 2
        %vm2390 = vcmp.ge.s32.totalorder %v2126, 2
        %vm2391 = vcmp.ge.s32.totalorder %v2127, 2
        %vm2392 = vcmp.ge.s32.totalorder %v2128, 2
        %vm2393 = vcmp.ge.s32.totalorder %v2129, 2
        %vm2394 = vcmp.ge.s32.totalorder %v2130, 2
        %vm2395 = vcmp.ge.s32.totalorder %v2131, 2
        %vm2396 = vcmp.ge.s32.totalorder %v2132, 2
        %vm2397 = vcmp.ge.s32.totalorder %v2133, 2
        %vm2398 = vcmp.ge.s32.totalorder %v2134, 2
        %vm2399 = vcmp.ge.s32.totalorder %v2135, 2
        %vm2400 = vcmp.ge.s32.totalorder %v2136, 2
        %vm2401 = vcmp.ge.s32.totalorder %v2137, 2
        %vm2402 = vcmp.ge.s32.totalorder %v2138, 2
        %vm2403 = vcmp.ge.s32.totalorder %v2139, 2
        %vm2404 = vcmp.ge.s32.totalorder %v2140, 2
        %vm2405 = vcmp.ge.s32.totalorder %v2141, 2
        %vm2406 = vcmp.ge.s32.totalorder %v2142, 2
        %vm2407 = vcmp.ge.s32.totalorder %v2143, 2
        %vm2408 = vcmp.ge.s32.totalorder %v2144, 2
        %vm2409 = vcmp.ge.s32.totalorder %v2145, 2
        %vm2410 = vcmp.ge.s32.totalorder %v2146, 2
        %vm2411 = vcmp.ge.s32.totalorder %v2147, 2
        %vm2412 = vcmp.ge.s32.totalorder %v2148, 2
        %vm2413 = vcmp.ge.s32.totalorder %v2149, 2
        %vm2414 = vcmp.ge.s32.totalorder %v2150, 2
        %vm2415 = vcmp.ge.s32.totalorder %v2151, 2
        %vm2416 = vcmp.ge.s32.totalorder %v2152, 2
        %vm2417 = vcmp.ge.s32.totalorder %v2153, 2
        %vm2418 = vcmp.ge.s32.totalorder %v2154, 2
        %vm2419 = vcmp.ge.s32.totalorder %v2155, 2
        %vm2420 = vcmp.ge.s32.totalorder %v2156, 2
        %vm2421 = vcmp.ge.s32.totalorder %v2157, 2
        %vm2422 = vcmp.ge.s32.totalorder %v2158, 2
        %vm2423 = vcmp.ge.s32.totalorder %v2159, 2
        %vm2424 = vcmp.ge.s32.totalorder %v2160, 2
        %vm2425 = vcmp.ge.s32.totalorder %v2161, 2
        %vm2426 = vcmp.ge.s32.totalorder %v2162, 2
        %vm2427 = vcmp.ge.s32.totalorder %v2163, 2
        %vm2428 = vcmp.ge.s32.totalorder %v2164, 2
        %vm2429 = vcmp.ge.s32.totalorder %v2165, 2
        %vm2430 = vcmp.lt.s32.totalorder %v2034, 30
        %vm2431 = vcmp.lt.s32.totalorder %v2035, 30
        %vm2432 = vcmp.lt.s32.totalorder %v2036, 30
        %vm2433 = vcmp.lt.s32.totalorder %v2037, 30
        %vm2434 = vcmp.lt.s32.totalorder %v2038, 30
        %vm2435 = vcmp.lt.s32.totalorder %v2039, 30
        %vm2436 = vcmp.lt.s32.totalorder %v2040, 30
        %vm2437 = vcmp.lt.s32.totalorder %v2041, 30
        %vm2438 = vcmp.lt.s32.totalorder %v2042, 30
        %vm2439 = vcmp.lt.s32.totalorder %v2043, 30
        %vm2440 = vcmp.lt.s32.totalorder %v2044, 30
        %vm2441 = vcmp.lt.s32.totalorder %v2045, 30
        %vm2442 = vcmp.lt.s32.totalorder %v2046, 30
        %vm2443 = vcmp.lt.s32.totalorder %v2047, 30
        %vm2444 = vcmp.lt.s32.totalorder %v2048, 30
        %vm2445 = vcmp.lt.s32.totalorder %v2049, 30
        %vm2446 = vcmp.lt.s32.totalorder %v2050, 30
        %vm2447 = vcmp.lt.s32.totalorder %v2051, 30
        %vm2448 = vcmp.lt.s32.totalorder %v2052, 30
        %vm2449 = vcmp.lt.s32.totalorder %v2053, 30
        %vm2450 = vcmp.lt.s32.totalorder %v2054, 30
        %vm2451 = vcmp.lt.s32.totalorder %v2055, 30
        %vm2452 = vcmp.lt.s32.totalorder %v2056, 30
        %vm2453 = vcmp.lt.s32.totalorder %v2057, 30
        %vm2454 = vcmp.lt.s32.totalorder %v2058, 30
        %vm2455 = vcmp.lt.s32.totalorder %v2059, 30
        %vm2456 = vcmp.lt.s32.totalorder %v2060, 30
        %vm2457 = vcmp.lt.s32.totalorder %v2061, 30
        %vm2458 = vcmp.lt.s32.totalorder %v2062, 30
        %vm2459 = vcmp.lt.s32.totalorder %v2063, 30
        %vm2460 = vcmp.lt.s32.totalorder %v2064, 30
        %vm2461 = vcmp.lt.s32.totalorder %v2065, 30
        %vm2462 = vcmp.lt.s32.totalorder %v2066, 30
        %vm2463 = vcmp.lt.s32.totalorder %v2067, 30
        %vm2464 = vcmp.lt.s32.totalorder %v2068, 30
        %vm2465 = vcmp.lt.s32.totalorder %v2069, 30
        %vm2466 = vcmp.lt.s32.totalorder %v2070, 30
        %vm2467 = vcmp.lt.s32.totalorder %v2071, 30
        %vm2468 = vcmp.lt.s32.totalorder %v2072, 30
        %vm2469 = vcmp.lt.s32.totalorder %v2073, 30
        %vm2470 = vcmp.lt.s32.totalorder %v2074, 30
        %vm2471 = vcmp.lt.s32.totalorder %v2075, 30
        %vm2472 = vcmp.lt.s32.totalorder %v2076, 30
        %vm2473 = vcmp.lt.s32.totalorder %v2077, 30
        %vm2474 = vcmp.lt.s32.totalorder %v2078, 30
        %vm2475 = vcmp.lt.s32.totalorder %v2079, 30
        %vm2476 = vcmp.lt.s32.totalorder %v2080, 30
        %vm2477 = vcmp.lt.s32.totalorder %v2081, 30
        %vm2478 = vcmp.lt.s32.totalorder %v2082, 30
        %vm2479 = vcmp.lt.s32.totalorder %v2083, 30
        %vm2480 = vcmp.lt.s32.totalorder %v2084, 30
        %vm2481 = vcmp.lt.s32.totalorder %v2085, 30
        %vm2482 = vcmp.lt.s32.totalorder %v2086, 30
        %vm2483 = vcmp.lt.s32.totalorder %v2087, 30
        %vm2484 = vcmp.lt.s32.totalorder %v2088, 30
        %vm2485 = vcmp.lt.s32.totalorder %v2089, 30
        %vm2486 = vcmp.lt.s32.totalorder %v2090, 30
        %vm2487 = vcmp.lt.s32.totalorder %v2091, 30
        %vm2488 = vcmp.lt.s32.totalorder %v2092, 30
        %vm2489 = vcmp.lt.s32.totalorder %v2093, 30
        %vm2490 = vcmp.lt.s32.totalorder %v2094, 30
        %vm2491 = vcmp.lt.s32.totalorder %v2095, 30
        %vm2492 = vcmp.lt.s32.totalorder %v2096, 30
        %vm2493 = vcmp.lt.s32.totalorder %v2097, 30
        %vm2494 = vcmp.lt.s32.totalorder %v2098, 30
        %vm2495 = vcmp.lt.s32.totalorder %v2099, 30
        %vm2496 = vcmp.lt.s32.totalorder %v2100, 30
        %vm2497 = vcmp.lt.s32.totalorder %v2101, 30
        %vm2498 = vcmp.lt.s32.totalorder %v2102, 30
        %vm2499 = vcmp.lt.s32.totalorder %v2103, 30
        %vm2500 = vcmp.lt.s32.totalorder %v2104, 30
        %vm2501 = vcmp.lt.s32.totalorder %v2105, 30
        %vm2502 = vcmp.lt.s32.totalorder %v2106, 30
        %vm2503 = vcmp.lt.s32.totalorder %v2107, 30
        %vm2504 = vcmp.lt.s32.totalorder %v2108, 30
        %vm2505 = vcmp.lt.s32.totalorder %v2109, 30
        %vm2506 = vcmp.lt.s32.totalorder %v2110, 30
        %vm2507 = vcmp.lt.s32.totalorder %v2111, 30
        %vm2508 = vcmp.lt.s32.totalorder %v2112, 30
        %vm2509 = vcmp.lt.s32.totalorder %v2113, 30
        %vm2510 = vcmp.lt.s32.totalorder %v2114, 30
        %vm2511 = vcmp.lt.s32.totalorder %v2115, 30
        %vm2512 = vcmp.lt.s32.totalorder %v2116, 30
        %vm2513 = vcmp.lt.s32.totalorder %v2117, 30
        %vm2514 = vcmp.lt.s32.totalorder %v2118, 30
        %vm2515 = vcmp.lt.s32.totalorder %v2119, 30
        %vm2516 = vcmp.lt.s32.totalorder %v2120, 30
        %vm2517 = vcmp.lt.s32.totalorder %v2121, 30
        %vm2518 = vcmp.lt.s32.totalorder %v2122, 30
        %vm2519 = vcmp.lt.s32.totalorder %v2123, 30
        %vm2520 = vcmp.lt.s32.totalorder %v2124, 30
        %vm2521 = vcmp.lt.s32.totalorder %v2125, 30
        %vm2522 = vcmp.lt.s32.totalorder %v2126, 30
        %vm2523 = vcmp.lt.s32.totalorder %v2127, 30
        %vm2524 = vcmp.lt.s32.totalorder %v2128, 30
        %vm2525 = vcmp.lt.s32.totalorder %v2129, 30
        %vm2526 = vcmp.lt.s32.totalorder %v2130, 30
        %vm2527 = vcmp.lt.s32.totalorder %v2131, 30
        %vm2528 = vcmp.lt.s32.totalorder %v2132, 30
        %vm2529 = vcmp.lt.s32.totalorder %v2133, 30
        %vm2530 = vcmp.lt.s32.totalorder %v2134, 30
        %vm2531 = vcmp.lt.s32.totalorder %v2135, 30
        %vm2532 = vcmp.lt.s32.totalorder %v2136, 30
        %vm2533 = vcmp.lt.s32.totalorder %v2137, 30
        %vm2534 = vcmp.lt.s32.totalorder %v2138, 30
        %vm2535 = vcmp.lt.s32.totalorder %v2139, 30
        %vm2536 = vcmp.lt.s32.totalorder %v2140, 30
        %vm2537 = vcmp.lt.s32.totalorder %v2141, 30
        %vm2538 = vcmp.lt.s32.totalorder %v2142, 30
        %vm2539 = vcmp.lt.s32.totalorder %v2143, 30
        %vm2540 = vcmp.lt.s32.totalorder %v2144, 30
        %vm2541 = vcmp.lt.s32.totalorder %v2145, 30
        %vm2542 = vcmp.lt.s32.totalorder %v2146, 30
        %vm2543 = vcmp.lt.s32.totalorder %v2147, 30
        %vm2544 = vcmp.lt.s32.totalorder %v2148, 30
        %vm2545 = vcmp.lt.s32.totalorder %v2149, 30
        %vm2546 = vcmp.lt.s32.totalorder %v2150, 30
        %vm2547 = vcmp.lt.s32.totalorder %v2151, 30
        %vm2548 = vcmp.lt.s32.totalorder %v2152, 30
        %vm2549 = vcmp.lt.s32.totalorder %v2153, 30
        %vm2550 = vcmp.lt.s32.totalorder %v2154, 30
        %vm2551 = vcmp.lt.s32.totalorder %v2155, 30
        %vm2552 = vcmp.lt.s32.totalorder %v2156, 30
        %vm2553 = vcmp.lt.s32.totalorder %v2157, 30
        %vm2554 = vcmp.lt.s32.totalorder %v2158, 30
        %vm2555 = vcmp.lt.s32.totalorder %v2159, 30
        %vm2556 = vcmp.lt.s32.totalorder %v2160, 30
        %vm2557 = vcmp.lt.s32.totalorder %v2161, 30
        %vm2558 = vcmp.lt.s32.totalorder %v2162, 30
        %vm2559 = vcmp.lt.s32.totalorder %v2163, 30
        %vm2560 = vcmp.lt.s32.totalorder %v2164, 30
        %vm2561 = vcmp.lt.s32.totalorder %v2165, 30
        %vm2562 = vmand %vm2298, %vm2430
        %vm2563 = vmand %vm2299, %vm2431
        %vm2564 = vmand %vm2300, %vm2432
        %vm2565 = vmand %vm2301, %vm2433
        %vm2566 = vmand %vm2302, %vm2434
        %vm2567 = vmand %vm2303, %vm2435
        %vm2568 = vmand %vm2304, %vm2436
        %vm2569 = vmand %vm2305, %vm2437
        %vm2570 = vmand %vm2306, %vm2438
        %vm2571 = vmand %vm2307, %vm2439
        %vm2572 = vmand %vm2308, %vm2440
        %vm2573 = vmand %vm2309, %vm2441
        %vm2574 = vmand %vm2310, %vm2442
        %vm2575 = vmand %vm2311, %vm2443
        %vm2576 = vmand %vm2312, %vm2444
        %vm2577 = vmand %vm2313, %vm2445
        %vm2578 = vmand %vm2314, %vm2446
        %vm2579 = vmand %vm2315, %vm2447
        %vm2580 = vmand %vm2316, %vm2448
        %vm2581 = vmand %vm2317, %vm2449
        %vm2582 = vmand %vm2318, %vm2450
        %vm2583 = vmand %vm2319, %vm2451
        %vm2584 = vmand %vm2320, %vm2452
        %vm2585 = vmand %vm2321, %vm2453
        %vm2586 = vmand %vm2322, %vm2454
        %vm2587 = vmand %vm2323, %vm2455
        %vm2588 = vmand %vm2324, %vm2456
        %vm2589 = vmand %vm2325, %vm2457
        %vm2590 = vmand %vm2326, %vm2458
        %vm2591 = vmand %vm2327, %vm2459
        %vm2592 = vmand %vm2328, %vm2460
        %vm2593 = vmand %vm2329, %vm2461
        %vm2594 = vmand %vm2330, %vm2462
        %vm2595 = vmand %vm2331, %vm2463
        %vm2596 = vmand %vm2332, %vm2464
        %vm2597 = vmand %vm2333, %vm2465
        %vm2598 = vmand %vm2334, %vm2466
        %vm2599 = vmand %vm2335, %vm2467
        %vm2600 = vmand %vm2336, %vm2468
        %vm2601 = vmand %vm2337, %vm2469
        %vm2602 = vmand %vm2338, %vm2470
        %vm2603 = vmand %vm2339, %vm2471
        %vm2604 = vmand %vm2340, %vm2472
        %vm2605 = vmand %vm2341, %vm2473
        %vm2606 = vmand %vm2342, %vm2474
        %vm2607 = vmand %vm2343, %vm2475
        %vm2608 = vmand %vm2344, %vm2476
        %vm2609 = vmand %vm2345, %vm2477
        %vm2610 = vmand %vm2346, %vm2478
        %vm2611 = vmand %vm2347, %vm2479
        %vm2612 = vmand %vm2348, %vm2480
        %vm2613 = vmand %vm2349, %vm2481
        %vm2614 = vmand %vm2350, %vm2482
        %vm2615 = vmand %vm2351, %vm2483
        %vm2616 = vmand %vm2352, %vm2484
        %vm2617 = vmand %vm2353, %vm2485
        %vm2618 = vmand %vm2354, %vm2486
        %vm2619 = vmand %vm2355, %vm2487
        %vm2620 = vmand %vm2356, %vm2488
        %vm2621 = vmand %vm2357, %vm2489
        %vm2622 = vmand %vm2358, %vm2490
        %vm2623 = vmand %vm2359, %vm2491
        %vm2624 = vmand %vm2360, %vm2492
        %vm2625 = vmand %vm2361, %vm2493
        %vm2626 = vmand %vm2362, %vm2494
        %vm2627 = vmand %vm2363, %vm2495
        %vm2628 = vmand %vm2364, %vm2496
        %vm2629 = vmand %vm2365, %vm2497
        %vm2630 = vmand %vm2366, %vm2498
        %vm2631 = vmand %vm2367, %vm2499
        %vm2632 = vmand %vm2368, %vm2500
        %vm2633 = vmand %vm2369, %vm2501
        %vm2634 = vmand %vm2370, %vm2502
        %vm2635 = vmand %vm2371, %vm2503
        %vm2636 = vmand %vm2372, %vm2504
        %vm2637 = vmand %vm2373, %vm2505
        %vm2638 = vmand %vm2374, %vm2506
        %vm2639 = vmand %vm2375, %vm2507
        %vm2640 = vmand %vm2376, %vm2508
        %vm2641 = vmand %vm2377, %vm2509
        %vm2642 = vmand %vm2378, %vm2510
        %vm2643 = vmand %vm2379, %vm2511
        %vm2644 = vmand %vm2380, %vm2512
        %vm2645 = vmand %vm2381, %vm2513
        %vm2646 = vmand %vm2382, %vm2514
        %vm2647 = vmand %vm2383, %vm2515
        %vm2648 = vmand %vm2384, %vm2516
        %vm2649 = vmand %vm2385, %vm2517
        %vm2650 = vmand %vm2386, %vm2518
        %vm2651 = vmand %vm2387, %vm2519
        %vm2652 = vmand %vm2388, %vm2520
        %vm2653 = vmand %vm2389, %vm2521
        %vm2654 = vmand %vm2390, %vm2522
        %vm2655 = vmand %vm2391, %vm2523
        %vm2656 = vmand %vm2392, %vm2524
        %vm2657 = vmand %vm2393, %vm2525
        %vm2658 = vmand %vm2394, %vm2526
        %vm2659 = vmand %vm2395, %vm2527
        %vm2660 = vmand %vm2396, %vm2528
        %vm2661 = vmand %vm2397, %vm2529
        %vm2662 = vmand %vm2398, %vm2530
        %vm2663 = vmand %vm2399, %vm2531
        %vm2664 = vmand %vm2400, %vm2532
        %vm2665 = vmand %vm2401, %vm2533
        %vm2666 = vmand %vm2402, %vm2534
        %vm2667 = vmand %vm2403, %vm2535
        %vm2668 = vmand %vm2404, %vm2536
        %vm2669 = vmand %vm2405, %vm2537
        %vm2670 = vmand %vm2406, %vm2538
        %vm2671 = vmand %vm2407, %vm2539
        %vm2672 = vmand %vm2408, %vm2540
        %vm2673 = vmand %vm2409, %vm2541
        %vm2674 = vmand %vm2410, %vm2542
        %vm2675 = vmand %vm2411, %vm2543
        %vm2676 = vmand %vm2412, %vm2544
        %vm2677 = vmand %vm2413, %vm2545
        %vm2678 = vmand %vm2414, %vm2546
        %vm2679 = vmand %vm2415, %vm2547
        %vm2680 = vmand %vm2416, %vm2548
        %vm2681 = vmand %vm2417, %vm2549
        %vm2682 = vmand %vm2418, %vm2550
        %vm2683 = vmand %vm2419, %vm2551
        %vm2684 = vmand %vm2420, %vm2552
        %vm2685 = vmand %vm2421, %vm2553
        %vm2686 = vmand %vm2422, %vm2554
        %vm2687 = vmand %vm2423, %vm2555
        %vm2688 = vmand %vm2424, %vm2556
        %vm2689 = vmand %vm2425, %vm2557
        %vm2690 = vmand %vm2426, %vm2558
        %vm2691 = vmand %vm2427, %vm2559
        %vm2692 = vmand %vm2428, %vm2560
        %vm2693 = vmand %vm2429, %vm2561
        %vm2694 = vcmp.ge.s32.totalorder %v2166, 2
        %vm2695 = vcmp.ge.s32.totalorder %v2167, 2
        %vm2696 = vcmp.ge.s32.totalorder %v2168, 2
        %vm2697 = vcmp.ge.s32.totalorder %v2169, 2
        %vm2698 = vcmp.ge.s32.totalorder %v2170, 2
        %vm2699 = vcmp.ge.s32.totalorder %v2171, 2
        %vm2700 = vcmp.ge.s32.totalorder %v2172, 2
        %vm2701 = vcmp.ge.s32.totalorder %v2173, 2
        %vm2702 = vcmp.ge.s32.totalorder %v2174, 2
        %vm2703 = vcmp.ge.s32.totalorder %v2175, 2
        %vm2704 = vcmp.ge.s32.totalorder %v2176, 2
        %vm2705 = vcmp.ge.s32.totalorder %v2177, 2
        %vm2706 = vcmp.ge.s32.totalorder %v2178, 2
        %vm2707 = vcmp.ge.s32.totalorder %v2179, 2
        %vm2708 = vcmp.ge.s32.totalorder %v2180, 2
        %vm2709 = vcmp.ge.s32.totalorder %v2181, 2
        %vm2710 = vcmp.ge.s32.totalorder %v2182, 2
        %vm2711 = vcmp.ge.s32.totalorder %v2183, 2
        %vm2712 = vcmp.ge.s32.totalorder %v2184, 2
        %vm2713 = vcmp.ge.s32.totalorder %v2185, 2
        %vm2714 = vcmp.ge.s32.totalorder %v2186, 2
        %vm2715 = vcmp.ge.s32.totalorder %v2187, 2
        %vm2716 = vcmp.ge.s32.totalorder %v2188, 2
        %vm2717 = vcmp.ge.s32.totalorder %v2189, 2
        %vm2718 = vcmp.ge.s32.totalorder %v2190, 2
        %vm2719 = vcmp.ge.s32.totalorder %v2191, 2
        %vm2720 = vcmp.ge.s32.totalorder %v2192, 2
        %vm2721 = vcmp.ge.s32.totalorder %v2193, 2
        %vm2722 = vcmp.ge.s32.totalorder %v2194, 2
        %vm2723 = vcmp.ge.s32.totalorder %v2195, 2
        %vm2724 = vcmp.ge.s32.totalorder %v2196, 2
        %vm2725 = vcmp.ge.s32.totalorder %v2197, 2
        %vm2726 = vcmp.ge.s32.totalorder %v2198, 2
        %vm2727 = vcmp.ge.s32.totalorder %v2199, 2
        %vm2728 = vcmp.ge.s32.totalorder %v2200, 2
        %vm2729 = vcmp.ge.s32.totalorder %v2201, 2
        %vm2730 = vcmp.ge.s32.totalorder %v2202, 2
        %vm2731 = vcmp.ge.s32.totalorder %v2203, 2
        %vm2732 = vcmp.ge.s32.totalorder %v2204, 2
        %vm2733 = vcmp.ge.s32.totalorder %v2205, 2
        %vm2734 = vcmp.ge.s32.totalorder %v2206, 2
        %vm2735 = vcmp.ge.s32.totalorder %v2207, 2
        %vm2736 = vcmp.ge.s32.totalorder %v2208, 2
        %vm2737 = vcmp.ge.s32.totalorder %v2209, 2
        %vm2738 = vcmp.ge.s32.totalorder %v2210, 2
        %vm2739 = vcmp.ge.s32.totalorder %v2211, 2
        %vm2740 = vcmp.ge.s32.totalorder %v2212, 2
        %vm2741 = vcmp.ge.s32.totalorder %v2213, 2
        %vm2742 = vcmp.ge.s32.totalorder %v2214, 2
        %vm2743 = vcmp.ge.s32.totalorder %v2215, 2
        %vm2744 = vcmp.ge.s32.totalorder %v2216, 2
        %vm2745 = vcmp.ge.s32.totalorder %v2217, 2
        %vm2746 = vcmp.ge.s32.totalorder %v2218, 2
        %vm2747 = vcmp.ge.s32.totalorder %v2219, 2
        %vm2748 = vcmp.ge.s32.totalorder %v2220, 2
        %vm2749 = vcmp.ge.s32.totalorder %v2221, 2
        %vm2750 = vcmp.ge.s32.totalorder %v2222, 2
        %vm2751 = vcmp.ge.s32.totalorder %v2223, 2
        %vm2752 = vcmp.ge.s32.totalorder %v2224, 2
        %vm2753 = vcmp.ge.s32.totalorder %v2225, 2
        %vm2754 = vcmp.ge.s32.totalorder %v2226, 2
        %vm2755 = vcmp.ge.s32.totalorder %v2227, 2
        %vm2756 = vcmp.ge.s32.totalorder %v2228, 2
        %vm2757 = vcmp.ge.s32.totalorder %v2229, 2
        %vm2758 = vcmp.ge.s32.totalorder %v2230, 2
        %vm2759 = vcmp.ge.s32.totalorder %v2231, 2
        %vm2760 = vcmp.ge.s32.totalorder %v2232, 2
        %vm2761 = vcmp.ge.s32.totalorder %v2233, 2
        %vm2762 = vcmp.ge.s32.totalorder %v2234, 2
        %vm2763 = vcmp.ge.s32.totalorder %v2235, 2
        %vm2764 = vcmp.ge.s32.totalorder %v2236, 2
        %vm2765 = vcmp.ge.s32.totalorder %v2237, 2
        %vm2766 = vcmp.ge.s32.totalorder %v2238, 2
        %vm2767 = vcmp.ge.s32.totalorder %v2239, 2
        %vm2768 = vcmp.ge.s32.totalorder %v2240, 2
        %vm2769 = vcmp.ge.s32.totalorder %v2241, 2
        %vm2770 = vcmp.ge.s32.totalorder %v2242, 2
        %vm2771 = vcmp.ge.s32.totalorder %v2243, 2
        %vm2772 = vcmp.ge.s32.totalorder %v2244, 2
        %vm2773 = vcmp.ge.s32.totalorder %v2245, 2
        %vm2774 = vcmp.ge.s32.totalorder %v2246, 2
        %vm2775 = vcmp.ge.s32.totalorder %v2247, 2
        %vm2776 = vcmp.ge.s32.totalorder %v2248, 2
        %vm2777 = vcmp.ge.s32.totalorder %v2249, 2
        %vm2778 = vcmp.ge.s32.totalorder %v2250, 2
        %vm2779 = vcmp.ge.s32.totalorder %v2251, 2
        %vm2780 = vcmp.ge.s32.totalorder %v2252, 2
        %vm2781 = vcmp.ge.s32.totalorder %v2253, 2
        %vm2782 = vcmp.ge.s32.totalorder %v2254, 2
        %vm2783 = vcmp.ge.s32.totalorder %v2255, 2
        %vm2784 = vcmp.ge.s32.totalorder %v2256, 2
        %vm2785 = vcmp.ge.s32.totalorder %v2257, 2
        %vm2786 = vcmp.ge.s32.totalorder %v2258, 2
        %vm2787 = vcmp.ge.s32.totalorder %v2259, 2
        %vm2788 = vcmp.ge.s32.totalorder %v2260, 2
        %vm2789 = vcmp.ge.s32.totalorder %v2261, 2
        %vm2790 = vcmp.ge.s32.totalorder %v2262, 2
        %vm2791 = vcmp.ge.s32.totalorder %v2263, 2
        %vm2792 = vcmp.ge.s32.totalorder %v2264, 2
        %vm2793 = vcmp.ge.s32.totalorder %v2265, 2
        %vm2794 = vcmp.ge.s32.totalorder %v2266, 2
        %vm2795 = vcmp.ge.s32.totalorder %v2267, 2
        %vm2796 = vcmp.ge.s32.totalorder %v2268, 2
        %vm2797 = vcmp.ge.s32.totalorder %v2269, 2
        %vm2798 = vcmp.ge.s32.totalorder %v2270, 2
        %vm2799 = vcmp.ge.s32.totalorder %v2271, 2
        %vm2800 = vcmp.ge.s32.totalorder %v2272, 2
        %vm2801 = vcmp.ge.s32.totalorder %v2273, 2
        %vm2802 = vcmp.ge.s32.totalorder %v2274, 2
        %vm2803 = vcmp.ge.s32.totalorder %v2275, 2
        %vm2804 = vcmp.ge.s32.totalorder %v2276, 2
        %vm2805 = vcmp.ge.s32.totalorder %v2277, 2
        %vm2806 = vcmp.ge.s32.totalorder %v2278, 2
        %vm2807 = vcmp.ge.s32.totalorder %v2279, 2
        %vm2808 = vcmp.ge.s32.totalorder %v2280, 2
        %vm2809 = vcmp.ge.s32.totalorder %v2281, 2
        %vm2810 = vcmp.ge.s32.totalorder %v2282, 2
        %vm2811 = vcmp.ge.s32.totalorder %v2283, 2
        %vm2812 = vcmp.ge.s32.totalorder %v2284, 2
        %vm2813 = vcmp.ge.s32.totalorder %v2285, 2
        %vm2814 = vcmp.ge.s32.totalorder %v2286, 2
        %vm2815 = vcmp.ge.s32.totalorder %v2287, 2
        %vm2816 = vcmp.ge.s32.totalorder %v2288, 2
        %vm2817 = vcmp.ge.s32.totalorder %v2289, 2
        %vm2818 = vcmp.ge.s32.totalorder %v2290, 2
        %vm2819 = vcmp.ge.s32.totalorder %v2291, 2
        %vm2820 = vcmp.ge.s32.totalorder %v2292, 2
        %vm2821 = vcmp.ge.s32.totalorder %v2293, 2
        %vm2822 = vcmp.ge.s32.totalorder %v2294, 2
        %vm2823 = vcmp.ge.s32.totalorder %v2295, 2
        %vm2824 = vcmp.ge.s32.totalorder %v2296, 2
        %vm2825 = vcmp.ge.s32.totalorder %v2297, 2
        %vm2826 = vmand %vm2562, %vm2694
        %vm2827 = vmand %vm2563, %vm2695
        %vm2828 = vmand %vm2564, %vm2696
        %vm2829 = vmand %vm2565, %vm2697
        %vm2830 = vmand %vm2566, %vm2698
        %vm2831 = vmand %vm2567, %vm2699
        %vm2832 = vmand %vm2568, %vm2700
        %vm2833 = vmand %vm2569, %vm2701
        %vm2834 = vmand %vm2570, %vm2702
        %vm2835 = vmand %vm2571, %vm2703
        %vm2836 = vmand %vm2572, %vm2704
        %vm2837 = vmand %vm2573, %vm2705
        %vm2838 = vmand %vm2574, %vm2706
        %vm2839 = vmand %vm2575, %vm2707
        %vm2840 = vmand %vm2576, %vm2708
        %vm2841 = vmand %vm2577, %vm2709
        %vm2842 = vmand %vm2578, %vm2710
        %vm2843 = vmand %vm2579, %vm2711
        %vm2844 = vmand %vm2580, %vm2712
        %vm2845 = vmand %vm2581, %vm2713
        %vm2846 = vmand %vm2582, %vm2714
        %vm2847 = vmand %vm2583, %vm2715
        %vm2848 = vmand %vm2584, %vm2716
        %vm2849 = vmand %vm2585, %vm2717
        %vm2850 = vmand %vm2586, %vm2718
        %vm2851 = vmand %vm2587, %vm2719
        %vm2852 = vmand %vm2588, %vm2720
        %vm2853 = vmand %vm2589, %vm2721
        %vm2854 = vmand %vm2590, %vm2722
        %vm2855 = vmand %vm2591, %vm2723
        %vm2856 = vmand %vm2592, %vm2724
        %vm2857 = vmand %vm2593, %vm2725
        %vm2858 = vmand %vm2594, %vm2726
        %vm2859 = vmand %vm2595, %vm2727
        %vm2860 = vmand %vm2596, %vm2728
        %vm2861 = vmand %vm2597, %vm2729
        %vm2862 = vmand %vm2598, %vm2730
        %vm2863 = vmand %vm2599, %vm2731
        %vm2864 = vmand %vm2600, %vm2732
        %vm2865 = vmand %vm2601, %vm2733
        %vm2866 = vmand %vm2602, %vm2734
        %vm2867 = vmand %vm2603, %vm2735
        %vm2868 = vmand %vm2604, %vm2736
        %vm2869 = vmand %vm2605, %vm2737
        %vm2870 = vmand %vm2606, %vm2738
        %vm2871 = vmand %vm2607, %vm2739
        %vm2872 = vmand %vm2608, %vm2740
        %vm2873 = vmand %vm2609, %vm2741
        %vm2874 = vmand %vm2610, %vm2742
        %vm2875 = vmand %vm2611, %vm2743
        %vm2876 = vmand %vm2612, %vm2744
        %vm2877 = vmand %vm2613, %vm2745
        %vm2878 = vmand %vm2614, %vm2746
        %vm2879 = vmand %vm2615, %vm2747
        %vm2880 = vmand %vm2616, %vm2748
        %vm2881 = vmand %vm2617, %vm2749
        %vm2882 = vmand %vm2618, %vm2750
        %vm2883 = vmand %vm2619, %vm2751
        %vm2884 = vmand %vm2620, %vm2752
        %vm2885 = vmand %vm2621, %vm2753
        %vm2886 = vmand %vm2622, %vm2754
        %vm2887 = vmand %vm2623, %vm2755
        %vm2888 = vmand %vm2624, %vm2756
        %vm2889 = vmand %vm2625, %vm2757
        %vm2890 = vmand %vm2626, %vm2758
        %vm2891 = vmand %vm2627, %vm2759
        %vm2892 = vmand %vm2628, %vm2760
        %vm2893 = vmand %vm2629, %vm2761
        %vm2894 = vmand %vm2630, %vm2762
        %vm2895 = vmand %vm2631, %vm2763
        %vm2896 = vmand %vm2632, %vm2764
        %vm2897 = vmand %vm2633, %vm2765
        %vm2898 = vmand %vm2634, %vm2766
        %vm2899 = vmand %vm2635, %vm2767
        %vm2900 = vmand %vm2636, %vm2768
        %vm2901 = vmand %vm2637, %vm2769
        %vm2902 = vmand %vm2638, %vm2770
        %vm2903 = vmand %vm2639, %vm2771
        %vm2904 = vmand %vm2640, %vm2772
        %vm2905 = vmand %vm2641, %vm2773
        %vm2906 = vmand %vm2642, %vm2774
        %vm2907 = vmand %vm2643, %vm2775
        %vm2908 = vmand %vm2644, %vm2776
        %vm2909 = vmand %vm2645, %vm2777
        %vm2910 = vmand %vm2646, %vm2778
        %vm2911 = vmand %vm2647, %vm2779
        %vm2912 = vmand %vm2648, %vm2780
        %vm2913 = vmand %vm2649, %vm2781
        %vm2914 = vmand %vm2650, %vm2782
        %vm2915 = vmand %vm2651, %vm2783
        %vm2916 = vmand %vm2652, %vm2784
        %vm2917 = vmand %vm2653, %vm2785
        %vm2918 = vmand %vm2654, %vm2786
        %vm2919 = vmand %vm2655, %vm2787
        %vm2920 = vmand %vm2656, %vm2788
        %vm2921 = vmand %vm2657, %vm2789
        %vm2922 = vmand %vm2658, %vm2790
        %vm2923 = vmand %vm2659, %vm2791
        %vm2924 = vmand %vm2660, %vm2792
        %vm2925 = vmand %vm2661, %vm2793
        %vm2926 = vmand %vm2662, %vm2794
        %vm2927 = vmand %vm2663, %vm2795
        %vm2928 = vmand %vm2664, %vm2796
        %vm2929 = vmand %vm2665, %vm2797
        %vm2930 = vmand %vm2666, %vm2798
        %vm2931 = vmand %vm2667, %vm2799
        %vm2932 = vmand %vm2668, %vm2800
        %vm2933 = vmand %vm2669, %vm2801
        %vm2934 = vmand %vm2670, %vm2802
        %vm2935 = vmand %vm2671, %vm2803
        %vm2936 = vmand %vm2672, %vm2804
        %vm2937 = vmand %vm2673, %vm2805
        %vm2938 = vmand %vm2674, %vm2806
        %vm2939 = vmand %vm2675, %vm2807
        %vm2940 = vmand %vm2676, %vm2808
        %vm2941 = vmand %vm2677, %vm2809
        %vm2942 = vmand %vm2678, %vm2810
        %vm2943 = vmand %vm2679, %vm2811
        %vm2944 = vmand %vm2680, %vm2812
        %vm2945 = vmand %vm2681, %vm2813
        %vm2946 = vmand %vm2682, %vm2814
        %vm2947 = vmand %vm2683, %vm2815
        %vm2948 = vmand %vm2684, %vm2816
        %vm2949 = vmand %vm2685, %vm2817
        %vm2950 = vmand %vm2686, %vm2818
        %vm2951 = vmand %vm2687, %vm2819
        %vm2952 = vmand %vm2688, %vm2820
        %vm2953 = vmand %vm2689, %vm2821
        %vm2954 = vmand %vm2690, %vm2822
        %vm2955 = vmand %vm2691, %vm2823
        %vm2956 = vmand %vm2692, %vm2824
        %vm2957 = vmand %vm2693, %vm2825
        %vm2958 = vcmp.lt.s32.totalorder %v2166, 30
        %vm2959 = vcmp.lt.s32.totalorder %v2167, 30
        %vm2960 = vcmp.lt.s32.totalorder %v2168, 30
        %vm2961 = vcmp.lt.s32.totalorder %v2169, 30
        %vm2962 = vcmp.lt.s32.totalorder %v2170, 30
        %vm2963 = vcmp.lt.s32.totalorder %v2171, 30
        %vm2964 = vcmp.lt.s32.totalorder %v2172, 30
        %vm2965 = vcmp.lt.s32.totalorder %v2173, 30
        %vm2966 = vcmp.lt.s32.totalorder %v2174, 30
        %vm2967 = vcmp.lt.s32.totalorder %v2175, 30
        %vm2968 = vcmp.lt.s32.totalorder %v2176, 30
        %vm2969 = vcmp.lt.s32.totalorder %v2177, 30
        %vm2970 = vcmp.lt.s32.totalorder %v2178, 30
        %vm2971 = vcmp.lt.s32.totalorder %v2179, 30
        %vm2972 = vcmp.lt.s32.totalorder %v2180, 30
        %vm2973 = vcmp.lt.s32.totalorder %v2181, 30
        %vm2974 = vcmp.lt.s32.totalorder %v2182, 30
        %vm2975 = vcmp.lt.s32.totalorder %v2183, 30
        %vm2976 = vcmp.lt.s32.totalorder %v2184, 30
        %vm2977 = vcmp.lt.s32.totalorder %v2185, 30
        %vm2978 = vcmp.lt.s32.totalorder %v2186, 30
        %vm2979 = vcmp.lt.s32.totalorder %v2187, 30
        %vm2980 = vcmp.lt.s32.totalorder %v2188, 30
        %vm2981 = vcmp.lt.s32.totalorder %v2189, 30
        %vm2982 = vcmp.lt.s32.totalorder %v2190, 30
        %vm2983 = vcmp.lt.s32.totalorder %v2191, 30
        %vm2984 = vcmp.lt.s32.totalorder %v2192, 30
        %vm2985 = vcmp.lt.s32.totalorder %v2193, 30
        %vm2986 = vcmp.lt.s32.totalorder %v2194, 30
        %vm2987 = vcmp.lt.s32.totalorder %v2195, 30
        %vm2988 = vcmp.lt.s32.totalorder %v2196, 30
        %vm2989 = vcmp.lt.s32.totalorder %v2197, 30
        %vm2990 = vcmp.lt.s32.totalorder %v2198, 30
        %vm2991 = vcmp.lt.s32.totalorder %v2199, 30
        %vm2992 = vcmp.lt.s32.totalorder %v2200, 30
        %vm2993 = vcmp.lt.s32.totalorder %v2201, 30
        %vm2994 = vcmp.lt.s32.totalorder %v2202, 30
        %vm2995 = vcmp.lt.s32.totalorder %v2203, 30
        %vm2996 = vcmp.lt.s32.totalorder %v2204, 30
        %vm2997 = vcmp.lt.s32.totalorder %v2205, 30
        %vm2998 = vcmp.lt.s32.totalorder %v2206, 30
        %vm2999 = vcmp.lt.s32.totalorder %v2207, 30
        %vm3000 = vcmp.lt.s32.totalorder %v2208, 30
        %vm3001 = vcmp.lt.s32.totalorder %v2209, 30
        %vm3002 = vcmp.lt.s32.totalorder %v2210, 30
        %vm3003 = vcmp.lt.s32.totalorder %v2211, 30
        %vm3004 = vcmp.lt.s32.totalorder %v2212, 30
        %vm3005 = vcmp.lt.s32.totalorder %v2213, 30
        %vm3006 = vcmp.lt.s32.totalorder %v2214, 30
        %vm3007 = vcmp.lt.s32.totalorder %v2215, 30
        %vm3008 = vcmp.lt.s32.totalorder %v2216, 30
        %vm3009 = vcmp.lt.s32.totalorder %v2217, 30
        %vm3010 = vcmp.lt.s32.totalorder %v2218, 30
        %vm3011 = vcmp.lt.s32.totalorder %v2219, 30
        %vm3012 = vcmp.lt.s32.totalorder %v2220, 30
        %vm3013 = vcmp.lt.s32.totalorder %v2221, 30
        %vm3014 = vcmp.lt.s32.totalorder %v2222, 30
        %vm3015 = vcmp.lt.s32.totalorder %v2223, 30
        %vm3016 = vcmp.lt.s32.totalorder %v2224, 30
        %vm3017 = vcmp.lt.s32.totalorder %v2225, 30
        %vm3018 = vcmp.lt.s32.totalorder %v2226, 30
        %vm3019 = vcmp.lt.s32.totalorder %v2227, 30
        %vm3020 = vcmp.lt.s32.totalorder %v2228, 30
        %vm3021 = vcmp.lt.s32.totalorder %v2229, 30
        %vm3022 = vcmp.lt.s32.totalorder %v2230, 30
        %vm3023 = vcmp.lt.s32.totalorder %v2231, 30
        %vm3024 = vcmp.lt.s32.totalorder %v2232, 30
        %vm3025 = vcmp.lt.s32.totalorder %v2233, 30
        %vm3026 = vcmp.lt.s32.totalorder %v2234, 30
        %vm3027 = vcmp.lt.s32.totalorder %v2235, 30
        %vm3028 = vcmp.lt.s32.totalorder %v2236, 30
        %vm3029 = vcmp.lt.s32.totalorder %v2237, 30
        %vm3030 = vcmp.lt.s32.totalorder %v2238, 30
        %vm3031 = vcmp.lt.s32.totalorder %v2239, 30
        %vm3032 = vcmp.lt.s32.totalorder %v2240, 30
        %vm3033 = vcmp.lt.s32.totalorder %v2241, 30
        %vm3034 = vcmp.lt.s32.totalorder %v2242, 30
        %vm3035 = vcmp.lt.s32.totalorder %v2243, 30
        %vm3036 = vcmp.lt.s32.totalorder %v2244, 30
        %vm3037 = vcmp.lt.s32.totalorder %v2245, 30
        %vm3038 = vcmp.lt.s32.totalorder %v2246, 30
        %vm3039 = vcmp.lt.s32.totalorder %v2247, 30
        %vm3040 = vcmp.lt.s32.totalorder %v2248, 30
        %vm3041 = vcmp.lt.s32.totalorder %v2249, 30
        %vm3042 = vcmp.lt.s32.totalorder %v2250, 30
        %vm3043 = vcmp.lt.s32.totalorder %v2251, 30
        %vm3044 = vcmp.lt.s32.totalorder %v2252, 30
        %vm3045 = vcmp.lt.s32.totalorder %v2253, 30
        %vm3046 = vcmp.lt.s32.totalorder %v2254, 30
        %vm3047 = vcmp.lt.s32.totalorder %v2255, 30
        %vm3048 = vcmp.lt.s32.totalorder %v2256, 30
        %vm3049 = vcmp.lt.s32.totalorder %v2257, 30
        %vm3050 = vcmp.lt.s32.totalorder %v2258, 30
        %vm3051 = vcmp.lt.s32.totalorder %v2259, 30
        %vm3052 = vcmp.lt.s32.totalorder %v2260, 30
        %vm3053 = vcmp.lt.s32.totalorder %v2261, 30
        %vm3054 = vcmp.lt.s32.totalorder %v2262, 30
        %vm3055 = vcmp.lt.s32.totalorder %v2263, 30
        %vm3056 = vcmp.lt.s32.totalorder %v2264, 30
        %vm3057 = vcmp.lt.s32.totalorder %v2265, 30
        %vm3058 = vcmp.lt.s32.totalorder %v2266, 30
        %vm3059 = vcmp.lt.s32.totalorder %v2267, 30
        %vm3060 = vcmp.lt.s32.totalorder %v2268, 30
        %vm3061 = vcmp.lt.s32.totalorder %v2269, 30
        %vm3062 = vcmp.lt.s32.totalorder %v2270, 30
        %vm3063 = vcmp.lt.s32.totalorder %v2271, 30
        %vm3064 = vcmp.lt.s32.totalorder %v2272, 30
        %vm3065 = vcmp.lt.s32.totalorder %v2273, 30
        %vm3066 = vcmp.lt.s32.totalorder %v2274, 30
        %vm3067 = vcmp.lt.s32.totalorder %v2275, 30
        %vm3068 = vcmp.lt.s32.totalorder %v2276, 30
        %vm3069 = vcmp.lt.s32.totalorder %v2277, 30
        %vm3070 = vcmp.lt.s32.totalorder %v2278, 30
        %vm3071 = vcmp.lt.s32.totalorder %v2279, 30
        %vm3072 = vcmp.lt.s32.totalorder %v2280, 30
        %vm3073 = vcmp.lt.s32.totalorder %v2281, 30
        %vm3074 = vcmp.lt.s32.totalorder %v2282, 30
        %vm3075 = vcmp.lt.s32.totalorder %v2283, 30
        %vm3076 = vcmp.lt.s32.totalorder %v2284, 30
        %vm3077 = vcmp.lt.s32.totalorder %v2285, 30
        %vm3078 = vcmp.lt.s32.totalorder %v2286, 30
        %vm3079 = vcmp.lt.s32.totalorder %v2287, 30
        %vm3080 = vcmp.lt.s32.totalorder %v2288, 30
        %vm3081 = vcmp.lt.s32.totalorder %v2289, 30
        %vm3082 = vcmp.lt.s32.totalorder %v2290, 30
        %vm3083 = vcmp.lt.s32.totalorder %v2291, 30
        %vm3084 = vcmp.lt.s32.totalorder %v2292, 30
        %vm3085 = vcmp.lt.s32.totalorder %v2293, 30
        %vm3086 = vcmp.lt.s32.totalorder %v2294, 30
        %vm3087 = vcmp.lt.s32.totalorder %v2295, 30
        %vm3088 = vcmp.lt.s32.totalorder %v2296, 30
        %vm3089 = vcmp.lt.s32.totalorder %v2297, 30
        %vm3090 = vmand %vm2826, %vm2958
        %vm3091 = vmand %vm2827, %vm2959
        %vm3092 = vmand %vm2828, %vm2960
        %vm3093 = vmand %vm2829, %vm2961
        %vm3094 = vmand %vm2830, %vm2962
        %vm3095 = vmand %vm2831, %vm2963
        %vm3096 = vmand %vm2832, %vm2964
        %vm3097 = vmand %vm2833, %vm2965
        %vm3098 = vmand %vm2834, %vm2966
        %vm3099 = vmand %vm2835, %vm2967
        %vm3100 = vmand %vm2836, %vm2968
        %vm3101 = vmand %vm2837, %vm2969
        %vm3102 = vmand %vm2838, %vm2970
        %vm3103 = vmand %vm2839, %vm2971
        %vm3104 = vmand %vm2840, %vm2972
        %vm3105 = vmand %vm2841, %vm2973
        %vm3106 = vmand %vm2842, %vm2974
        %vm3107 = vmand %vm2843, %vm2975
        %vm3108 = vmand %vm2844, %vm2976
        %vm3109 = vmand %vm2845, %vm2977
        %vm3110 = vmand %vm2846, %vm2978
        %vm3111 = vmand %vm2847, %vm2979
        %vm3112 = vmand %vm2848, %vm2980
        %vm3113 = vmand %vm2849, %vm2981
        %vm3114 = vmand %vm2850, %vm2982
        %vm3115 = vmand %vm2851, %vm2983
        %vm3116 = vmand %vm2852, %vm2984
        %vm3117 = vmand %vm2853, %vm2985
        %vm3118 = vmand %vm2854, %vm2986
        %vm3119 = vmand %vm2855, %vm2987
        %vm3120 = vmand %vm2856, %vm2988
        %vm3121 = vmand %vm2857, %vm2989
        %vm3122 = vmand %vm2858, %vm2990
        %vm3123 = vmand %vm2859, %vm2991
        %vm3124 = vmand %vm2860, %vm2992
        %vm3125 = vmand %vm2861, %vm2993
        %vm3126 = vmand %vm2862, %vm2994
        %vm3127 = vmand %vm2863, %vm2995
        %vm3128 = vmand %vm2864, %vm2996
        %vm3129 = vmand %vm2865, %vm2997
        %vm3130 = vmand %vm2866, %vm2998
        %vm3131 = vmand %vm2867, %vm2999
        %vm3132 = vmand %vm2868, %vm3000
        %vm3133 = vmand %vm2869, %vm3001
        %vm3134 = vmand %vm2870, %vm3002
        %vm3135 = vmand %vm2871, %vm3003
        %vm3136 = vmand %vm2872, %vm3004
        %vm3137 = vmand %vm2873, %vm3005
        %vm3138 = vmand %vm2874, %vm3006
        %vm3139 = vmand %vm2875, %vm3007
        %vm3140 = vmand %vm2876, %vm3008
        %vm3141 = vmand %vm2877, %vm3009
        %vm3142 = vmand %vm2878, %vm3010
        %vm3143 = vmand %vm2879, %vm3011
        %vm3144 = vmand %vm2880, %vm3012
        %vm3145 = vmand %vm2881, %vm3013
        %vm3146 = vmand %vm2882, %vm3014
        %vm3147 = vmand %vm2883, %vm3015
        %vm3148 = vmand %vm2884, %vm3016
        %vm3149 = vmand %vm2885, %vm3017
        %vm3150 = vmand %vm2886, %vm3018
        %vm3151 = vmand %vm2887, %vm3019
        %vm3152 = vmand %vm2888, %vm3020
        %vm3153 = vmand %vm2889, %vm3021
        %vm3154 = vmand %vm2890, %vm3022
        %vm3155 = vmand %vm2891, %vm3023
        %vm3156 = vmand %vm2892, %vm3024
        %vm3157 = vmand %vm2893, %vm3025
        %vm3158 = vmand %vm2894, %vm3026
        %vm3159 = vmand %vm2895, %vm3027
        %vm3160 = vmand %vm2896, %vm3028
        %vm3161 = vmand %vm2897, %vm3029
        %vm3162 = vmand %vm2898, %vm3030
        %vm3163 = vmand %vm2899, %vm3031
        %vm3164 = vmand %vm2900, %vm3032
        %vm3165 = vmand %vm2901, %vm3033
        %vm3166 = vmand %vm2902, %vm3034
        %vm3167 = vmand %vm2903, %vm3035
        %vm3168 = vmand %vm2904, %vm3036
        %vm3169 = vmand %vm2905, %vm3037
        %vm3170 = vmand %vm2906, %vm3038
        %vm3171 = vmand %vm2907, %vm3039
        %vm3172 = vmand %vm2908, %vm3040
        %vm3173 = vmand %vm2909, %vm3041
        %vm3174 = vmand %vm2910, %vm3042
        %vm3175 = vmand %vm2911, %vm3043
        %vm3176 = vmand %vm2912, %vm3044
        %vm3177 = vmand %vm2913, %vm3045
        %vm3178 = vmand %vm2914, %vm3046
        %vm3179 = vmand %vm2915, %vm3047
        %vm3180 = vmand %vm2916, %vm3048
        %vm3181 = vmand %vm2917, %vm3049
        %vm3182 = vmand %vm2918, %vm3050
        %vm3183 = vmand %vm2919, %vm3051
        %vm3184 = vmand %vm2920, %vm3052
        %vm3185 = vmand %vm2921, %vm3053
        %vm3186 = vmand %vm2922, %vm3054
        %vm3187 = vmand %vm2923, %vm3055
        %vm3188 = vmand %vm2924, %vm3056
        %vm3189 = vmand %vm2925, %vm3057
        %vm3190 = vmand %vm2926, %vm3058
        %vm3191 = vmand %vm2927, %vm3059
        %vm3192 = vmand %vm2928, %vm3060
        %vm3193 = vmand %vm2929, %vm3061
        %vm3194 = vmand %vm2930, %vm3062
        %vm3195 = vmand %vm2931, %vm3063
        %vm3196 = vmand %vm2932, %vm3064
        %vm3197 = vmand %vm2933, %vm3065
        %vm3198 = vmand %vm2934, %vm3066
        %vm3199 = vmand %vm2935, %vm3067
        %vm3200 = vmand %vm2936, %vm3068
        %vm3201 = vmand %vm2937, %vm3069
        %vm3202 = vmand %vm2938, %vm3070
        %vm3203 = vmand %vm2939, %vm3071
        %vm3204 = vmand %vm2940, %vm3072
        %vm3205 = vmand %vm2941, %vm3073
        %vm3206 = vmand %vm2942, %vm3074
        %vm3207 = vmand %vm2943, %vm3075
        %vm3208 = vmand %vm2944, %vm3076
        %vm3209 = vmand %vm2945, %vm3077
        %vm3210 = vmand %vm2946, %vm3078
        %vm3211 = vmand %vm2947, %vm3079
        %vm3212 = vmand %vm2948, %vm3080
        %vm3213 = vmand %vm2949, %vm3081
        %vm3214 = vmand %vm2950, %vm3082
        %vm3215 = vmand %vm2951, %vm3083
        %vm3216 = vmand %vm2952, %vm3084
        %vm3217 = vmand %vm2953, %vm3085
        %vm3218 = vmand %vm2954, %vm3086
        %vm3219 = vmand %vm2955, %vm3087
        %vm3220 = vmand %vm2956, %vm3088
        %vm3221 = vmand %vm2957, %vm3089
        %v3223 = vlaneseq
        %v3224 = vshrl.u32 %v3223, 7
        %v3225 = vsub.s32 0, %v3224
        %v3226 = vrot.slane %v1897, %v3225
        %v3228 = vmul.f32 %v826, %v3226
        %v3229 = vmul.f32 %v831, %v3226
        %v3230 = vmul.f32 %v836, %v3226
        %v3231 = vmul.f32 %v841, %v3226
        %v3232 = vmul.f32 %v846, %v3226
        %v3233 = vmul.f32 %v851, %v3226
        %v3234 = vmul.f32 %v856, %v3226
        %v3235 = vmul.f32 %v861, %v3226
        %v3236 = vmul.f32 %v866, %v3226
        %v3237 = vmul.f32 %v871, %v3226
        %v3238 = vmul.f32 %v876, %v3226
        %v3239 = vmul.f32 %v881, %v3226
        %v3240 = vmul.f32 %v886, %v3226
        %v3241 = vmul.f32 %v891, %v3226
        %v3242 = vmul.f32 %v896, %v3226
        %v3243 = vmul.f32 %v901, %v3226
        %v3244 = vmul.f32 %v906, %v3226
        %v3245 = vmul.f32 %v911, %v3226
        %v3246 = vmul.f32 %v916, %v3226
        %v3247 = vmul.f32 %v921, %v3226
        %v3248 = vmul.f32 %v926, %v3226
        %v3249 = vmul.f32 %v931, %v3226
        %v3250 = vmul.f32 %v936, %v3226
        %v3251 = vmul.f32 %v941, %v3226
        %v3252 = vmul.f32 %v946, %v3226
        %v3253 = vmul.f32 %v951, %v3226
        %v3254 = vmul.f32 %v956, %v3226
        %v3255 = vmul.f32 %v961, %v3226
        %v3256 = vmul.f32 %v966, %v3226
        %v3257 = vmul.f32 %v971, %v3226
        %v3258 = vmul.f32 %v976, %v3226
        %v3259 = vmul.f32 %v981, %v3226
        %v3260 = vmul.f32 %v986, %v3226
        %v3261 = vmul.f32 %v991, %v3226
        %v3262 = vmul.f32 %v996, %v3226
        %v3263 = vmul.f32 %v1001, %v3226
        %v3264 = vmul.f32 %v1006, %v3226
        %v3265 = vmul.f32 %v1011, %v3226
        %v3266 = vmul.f32 %v1016, %v3226
        %v3267 = vmul.f32 %v1021, %v3226
        %v3268 = vmul.f32 %v1026, %v3226
        %v3269 = vmul.f32 %v1031, %v3226
        %v3270 = vmul.f32 %v1036, %v3226
        %v3271 = vmul.f32 %v1041, %v3226
        %v3272 = vmul.f32 %v1046, %v3226
        %v3273 = vmul.f32 %v1051, %v3226
        %v3274 = vmul.f32 %v1056, %v3226
        %v3275 = vmul.f32 %v1061, %v3226
        %v3276 = vmul.f32 %v1066, %v3226
        %v3277 = vmul.f32 %v1071, %v3226
        %v3278 = vmul.f32 %v1076, %v3226
        %v3279 = vmul.f32 %v1081, %v3226
        %v3280 = vmul.f32 %v1086, %v3226
        %v3281 = vmul.f32 %v1091, %v3226
        %v3282 = vmul.f32 %v1096, %v3226
        %v3283 = vmul.f32 %v1101, %v3226
        %v3284 = vmul.f32 %v1106, %v3226
        %v3285 = vmul.f32 %v1111, %v3226
        %v3286 = vmul.f32 %v1116, %v3226
        %v3287 = vmul.f32 %v1121, %v3226
        %v3288 = vmul.f32 %v1126, %v3226
        %v3289 = vmul.f32 %v1131, %v3226
        %v3290 = vmul.f32 %v1136, %v3226
        %v3291 = vmul.f32 %v1141, %v3226
        %v3292 = vmul.f32 %v1146, %v3226
        %v3293 = vmul.f32 %v1151, %v3226
        %v3294 = vmul.f32 %v1156, %v3226
        %v3295 = vmul.f32 %v1161, %v3226
        %v3296 = vmul.f32 %v1166, %v3226
        %v3297 = vmul.f32 %v1171, %v3226
        %v3298 = vmul.f32 %v1176, %v3226
        %v3299 = vmul.f32 %v1181, %v3226
        %v3300 = vmul.f32 %v1186, %v3226
        %v3301 = vmul.f32 %v1191, %v3226
        %v3302 = vmul.f32 %v1196, %v3226
        %v3303 = vmul.f32 %v1201, %v3226
        %v3304 = vmul.f32 %v1206, %v3226
        %v3305 = vmul.f32 %v1211, %v3226
        %v3306 = vmul.f32 %v1216, %v3226
        %v3307 = vmul.f32 %v1221, %v3226
        %v3308 = vmul.f32 %v1226, %v3226
        %v3309 = vmul.f32 %v1231, %v3226
        %v3310 = vmul.f32 %v1236, %v3226
        %v3311 = vmul.f32 %v1241, %v3226
        %v3312 = vmul.f32 %v1246, %v3226
        %v3313 = vmul.f32 %v1251, %v3226
        %v3314 = vmul.f32 %v1256, %v3226
        %v3315 = vmul.f32 %v1261, %v3226
        %v3316 = vmul.f32 %v1266, %v3226
        %v3317 = vmul.f32 %v1271, %v3226
        %v3318 = vmul.f32 %v1276, %v3226
        %v3319 = vmul.f32 %v1281, %v3226
        %v3320 = vmul.f32 %v1286, %v3226
        %v3321 = vmul.f32 %v1291, %v3226
        %v3322 = vmul.f32 %v1296, %v3226
        %v3323 = vmul.f32 %v1301, %v3226
        %v3324 = vmul.f32 %v1306, %v3226
        %v3325 = vmul.f32 %v1311, %v3226
        %v3326 = vmul.f32 %v1316, %v3226
        %v3327 = vmul.f32 %v1321, %v3226
        %v3328 = vmul.f32 %v1326, %v3226
        %v3329 = vmul.f32 %v1331, %v3226
        %v3330 = vmul.f32 %v1336, %v3226
        %v3331 = vmul.f32 %v1341, %v3226
        %v3332 = vmul.f32 %v1346, %v3226
        %v3333 = vmul.f32 %v1351, %v3226
        %v3334 = vmul.f32 %v1356, %v3226
        %v3335 = vmul.f32 %v1361, %v3226
        %v3336 = vmul.f32 %v1366, %v3226
        %v3337 = vmul.f32 %v1371, %v3226
        %v3338 = vmul.f32 %v1376, %v3226
        %v3339 = vmul.f32 %v1381, %v3226
        %v3340 = vmul.f32 %v1386, %v3226
        %v3341 = vmul.f32 %v1391, %v3226
        %v3342 = vmul.f32 %v1396, %v3226
        %v3343 = vmul.f32 %v1401, %v3226
        %v3344 = vmul.f32 %v1406, %v3226
        %v3345 = vmul.f32 %v1411, %v3226
        %v3346 = vmul.f32 %v1416, %v3226
        %v3347 = vmul.f32 %v1421, %v3226
        %v3348 = vmul.f32 %v1426, %v3226
        %v3349 = vmul.f32 %v1431, %v3226
        %v3350 = vmul.f32 %v1436, %v3226
        %v3351 = vmul.f32 %v1441, %v3226
        %v3352 = vmul.f32 %v1446, %v3226
        %v3353 = vmul.f32 %v1451, %v3226
        %v3354 = vmul.f32 %v1456, %v3226
        %v3355 = vmul.f32 %v1461, %v3226
        %v3356 = vmul.f32 %v1466, %v3226
        %v3357 = vmul.f32 %v1471, %v3226
        %v3358 = vmul.f32 %v1476, %v3226
        %v3359 = vmul.f32 %v1481, %v3226
        %v3361 = vlaneseq
        %v3362 = vshrl.u32 %v3361, 7
        %v3363 = vsub.s32 0, %v3362
        %v3364 = vrot.slane %v1900, %v3363
        %v3366 = vadd.f32 %v3228, %v3364
        %v3367 = vadd.f32 %v3229, %v3364
        %v3368 = vadd.f32 %v3230, %v3364
        %v3369 = vadd.f32 %v3231, %v3364
        %v3370 = vadd.f32 %v3232, %v3364
        %v3371 = vadd.f32 %v3233, %v3364
        %v3372 = vadd.f32 %v3234, %v3364
        %v3373 = vadd.f32 %v3235, %v3364
        %v3374 = vadd.f32 %v3236, %v3364
        %v3375 = vadd.f32 %v3237, %v3364
        %v3376 = vadd.f32 %v3238, %v3364
        %v3377 = vadd.f32 %v3239, %v3364
        %v3378 = vadd.f32 %v3240, %v3364
        %v3379 = vadd.f32 %v3241, %v3364
        %v3380 = vadd.f32 %v3242, %v3364
        %v3381 = vadd.f32 %v3243, %v3364
        %v3382 = vadd.f32 %v3244, %v3364
        %v3383 = vadd.f32 %v3245, %v3364
        %v3384 = vadd.f32 %v3246, %v3364
        %v3385 = vadd.f32 %v3247, %v3364
        %v3386 = vadd.f32 %v3248, %v3364
        %v3387 = vadd.f32 %v3249, %v3364
        %v3388 = vadd.f32 %v3250, %v3364
        %v3389 = vadd.f32 %v3251, %v3364
        %v3390 = vadd.f32 %v3252, %v3364
        %v3391 = vadd.f32 %v3253, %v3364
        %v3392 = vadd.f32 %v3254, %v3364
        %v3393 = vadd.f32 %v3255, %v3364
        %v3394 = vadd.f32 %v3256, %v3364
        %v3395 = vadd.f32 %v3257, %v3364
        %v3396 = vadd.f32 %v3258, %v3364
        %v3397 = vadd.f32 %v3259, %v3364
        %v3398 = vadd.f32 %v3260, %v3364
        %v3399 = vadd.f32 %v3261, %v3364
        %v3400 = vadd.f32 %v3262, %v3364
        %v3401 = vadd.f32 %v3263, %v3364
        %v3402 = vadd.f32 %v3264, %v3364
        %v3403 = vadd.f32 %v3265, %v3364
        %v3404 = vadd.f32 %v3266, %v3364
        %v3405 = vadd.f32 %v3267, %v3364
        %v3406 = vadd.f32 %v3268, %v3364
        %v3407 = vadd.f32 %v3269, %v3364
        %v3408 = vadd.f32 %v3270, %v3364
        %v3409 = vadd.f32 %v3271, %v3364
        %v3410 = vadd.f32 %v3272, %v3364
        %v3411 = vadd.f32 %v3273, %v3364
        %v3412 = vadd.f32 %v3274, %v3364
        %v3413 = vadd.f32 %v3275, %v3364
        %v3414 = vadd.f32 %v3276, %v3364
        %v3415 = vadd.f32 %v3277, %v3364
        %v3416 = vadd.f32 %v3278, %v3364
        %v3417 = vadd.f32 %v3279, %v3364
        %v3418 = vadd.f32 %v3280, %v3364
        %v3419 = vadd.f32 %v3281, %v3364
        %v3420 = vadd.f32 %v3282, %v3364
        %v3421 = vadd.f32 %v3283, %v3364
        %v3422 = vadd.f32 %v3284, %v3364
        %v3423 = vadd.f32 %v3285, %v3364
        %v3424 = vadd.f32 %v3286, %v3364
        %v3425 = vadd.f32 %v3287, %v3364
        %v3426 = vadd.f32 %v3288, %v3364
        %v3427 = vadd.f32 %v3289, %v3364
        %v3428 = vadd.f32 %v3290, %v3364
        %v3429 = vadd.f32 %v3291, %v3364
        %v3430 = vadd.f32 %v3292, %v3364
        %v3431 = vadd.f32 %v3293, %v3364
        %v3432 = vadd.f32 %v3294, %v3364
        %v3433 = vadd.f32 %v3295, %v3364
        %v3434 = vadd.f32 %v3296, %v3364
        %v3435 = vadd.f32 %v3297, %v3364
        %v3436 = vadd.f32 %v3298, %v3364
        %v3437 = vadd.f32 %v3299, %v3364
        %v3438 = vadd.f32 %v3300, %v3364
        %v3439 = vadd.f32 %v3301, %v3364
        %v3440 = vadd.f32 %v3302, %v3364
        %v3441 = vadd.f32 %v3303, %v3364
        %v3442 = vadd.f32 %v3304, %v3364
        %v3443 = vadd.f32 %v3305, %v3364
        %v3444 = vadd.f32 %v3306, %v3364
        %v3445 = vadd.f32 %v3307, %v3364
        %v3446 = vadd.f32 %v3308, %v3364
        %v3447 = vadd.f32 %v3309, %v3364
        %v3448 = vadd.f32 %v3310, %v3364
        %v3449 = vadd.f32 %v3311, %v3364
        %v3450 = vadd.f32 %v3312, %v3364
        %v3451 = vadd.f32 %v3313, %v3364
        %v3452 = vadd.f32 %v3314, %v3364
        %v3453 = vadd.f32 %v3315, %v3364
        %v3454 = vadd.f32 %v3316, %v3364
        %v3455 = vadd.f32 %v3317, %v3364
        %v3456 = vadd.f32 %v3318, %v3364
        %v3457 = vadd.f32 %v3319, %v3364
        %v3458 = vadd.f32 %v3320, %v3364
        %v3459 = vadd.f32 %v3321, %v3364
        %v3460 = vadd.f32 %v3322, %v3364
        %v3461 = vadd.f32 %v3323, %v3364
        %v3462 = vadd.f32 %v3324, %v3364
        %v3463 = vadd.f32 %v3325, %v3364
        %v3464 = vadd.f32 %v3326, %v3364
        %v3465 = vadd.f32 %v3327, %v3364
        %v3466 = vadd.f32 %v3328, %v3364
        %v3467 = vadd.f32 %v3329, %v3364
        %v3468 = vadd.f32 %v3330, %v3364
        %v3469 = vadd.f32 %v3331, %v3364
        %v3470 = vadd.f32 %v3332, %v3364
        %v3471 = vadd.f32 %v3333, %v3364
        %v3472 = vadd.f32 %v3334, %v3364
        %v3473 = vadd.f32 %v3335, %v3364
        %v3474 = vadd.f32 %v3336, %v3364
        %v3475 = vadd.f32 %v3337, %v3364
        %v3476 = vadd.f32 %v3338, %v3364
        %v3477 = vadd.f32 %v3339, %v3364
        %v3478 = vadd.f32 %v3340, %v3364
        %v3479 = vadd.f32 %v3341, %v3364
        %v3480 = vadd.f32 %v3342, %v3364
        %v3481 = vadd.f32 %v3343, %v3364
        %v3482 = vadd.f32 %v3344, %v3364
        %v3483 = vadd.f32 %v3345, %v3364
        %v3484 = vadd.f32 %v3346, %v3364
        %v3485 = vadd.f32 %v3347, %v3364
        %v3486 = vadd.f32 %v3348, %v3364
        %v3487 = vadd.f32 %v3349, %v3364
        %v3488 = vadd.f32 %v3350, %v3364
        %v3489 = vadd.f32 %v3351, %v3364
        %v3490 = vadd.f32 %v3352, %v3364
        %v3491 = vadd.f32 %v3353, %v3364
        %v3492 = vadd.f32 %v3354, %v3364
        %v3493 = vadd.f32 %v3355, %v3364
        %v3494 = vadd.f32 %v3356, %v3364
        %v3495 = vadd.f32 %v3357, %v3364
        %v3496 = vadd.f32 %v3358, %v3364
        %v3497 = vadd.f32 %v3359, %v3364
        %v3498 = vmax.f32 %v3366, 0.0
        %v3499 = vmax.f32 %v3367, 0.0
        %v3500 = vmax.f32 %v3368, 0.0
        %v3501 = vmax.f32 %v3369, 0.0
        %v3502 = vmax.f32 %v3370, 0.0
        %v3503 = vmax.f32 %v3371, 0.0
        %v3504 = vmax.f32 %v3372, 0.0
        %v3505 = vmax.f32 %v3373, 0.0
        %v3506 = vmax.f32 %v3374, 0.0
        %v3507 = vmax.f32 %v3375, 0.0
        %v3508 = vmax.f32 %v3376, 0.0
        %v3509 = vmax.f32 %v3377, 0.0
        %v3510 = vmax.f32 %v3378, 0.0
        %v3511 = vmax.f32 %v3379, 0.0
        %v3512 = vmax.f32 %v3380, 0.0
        %v3513 = vmax.f32 %v3381, 0.0
        %v3514 = vmax.f32 %v3382, 0.0
        %v3515 = vmax.f32 %v3383, 0.0
        %v3516 = vmax.f32 %v3384, 0.0
        %v3517 = vmax.f32 %v3385, 0.0
        %v3518 = vmax.f32 %v3386, 0.0
        %v3519 = vmax.f32 %v3387, 0.0
        %v3520 = vmax.f32 %v3388, 0.0
        %v3521 = vmax.f32 %v3389, 0.0
        %v3522 = vmax.f32 %v3390, 0.0
        %v3523 = vmax.f32 %v3391, 0.0
        %v3524 = vmax.f32 %v3392, 0.0
        %v3525 = vmax.f32 %v3393, 0.0
        %v3526 = vmax.f32 %v3394, 0.0
        %v3527 = vmax.f32 %v3395, 0.0
        %v3528 = vmax.f32 %v3396, 0.0
        %v3529 = vmax.f32 %v3397, 0.0
        %v3530 = vmax.f32 %v3398, 0.0
        %v3531 = vmax.f32 %v3399, 0.0
        %v3532 = vmax.f32 %v3400, 0.0
        %v3533 = vmax.f32 %v3401, 0.0
        %v3534 = vmax.f32 %v3402, 0.0
        %v3535 = vmax.f32 %v3403, 0.0
        %v3536 = vmax.f32 %v3404, 0.0
        %v3537 = vmax.f32 %v3405, 0.0
        %v3538 = vmax.f32 %v3406, 0.0
        %v3539 = vmax.f32 %v3407, 0.0
        %v3540 = vmax.f32 %v3408, 0.0
        %v3541 = vmax.f32 %v3409, 0.0
        %v3542 = vmax.f32 %v3410, 0.0
        %v3543 = vmax.f32 %v3411, 0.0
        %v3544 = vmax.f32 %v3412, 0.0
        %v3545 = vmax.f32 %v3413, 0.0
        %v3546 = vmax.f32 %v3414, 0.0
        %v3547 = vmax.f32 %v3415, 0.0
        %v3548 = vmax.f32 %v3416, 0.0
        %v3549 = vmax.f32 %v3417, 0.0
        %v3550 = vmax.f32 %v3418, 0.0
        %v3551 = vmax.f32 %v3419, 0.0
        %v3552 = vmax.f32 %v3420, 0.0
        %v3553 = vmax.f32 %v3421, 0.0
        %v3554 = vmax.f32 %v3422, 0.0
        %v3555 = vmax.f32 %v3423, 0.0
        %v3556 = vmax.f32 %v3424, 0.0
        %v3557 = vmax.f32 %v3425, 0.0
        %v3558 = vmax.f32 %v3426, 0.0
        %v3559 = vmax.f32 %v3427, 0.0
        %v3560 = vmax.f32 %v3428, 0.0
        %v3561 = vmax.f32 %v3429, 0.0
        %v3562 = vmax.f32 %v3430, 0.0
        %v3563 = vmax.f32 %v3431, 0.0
        %v3564 = vmax.f32 %v3432, 0.0
        %v3565 = vmax.f32 %v3433, 0.0
        %v3566 = vmax.f32 %v3434, 0.0
        %v3567 = vmax.f32 %v3435, 0.0
        %v3568 = vmax.f32 %v3436, 0.0
        %v3569 = vmax.f32 %v3437, 0.0
        %v3570 = vmax.f32 %v3438, 0.0
        %v3571 = vmax.f32 %v3439, 0.0
        %v3572 = vmax.f32 %v3440, 0.0
        %v3573 = vmax.f32 %v3441, 0.0
        %v3574 = vmax.f32 %v3442, 0.0
        %v3575 = vmax.f32 %v3443, 0.0
        %v3576 = vmax.f32 %v3444, 0.0
        %v3577 = vmax.f32 %v3445, 0.0
        %v3578 = vmax.f32 %v3446, 0.0
        %v3579 = vmax.f32 %v3447, 0.0
        %v3580 = vmax.f32 %v3448, 0.0
        %v3581 = vmax.f32 %v3449, 0.0
        %v3582 = vmax.f32 %v3450, 0.0
        %v3583 = vmax.f32 %v3451, 0.0
        %v3584 = vmax.f32 %v3452, 0.0
        %v3585 = vmax.f32 %v3453, 0.0
        %v3586 = vmax.f32 %v3454, 0.0
        %v3587 = vmax.f32 %v3455, 0.0
        %v3588 = vmax.f32 %v3456, 0.0
        %v3589 = vmax.f32 %v3457, 0.0
        %v3590 = vmax.f32 %v3458, 0.0
        %v3591 = vmax.f32 %v3459, 0.0
        %v3592 = vmax.f32 %v3460, 0.0
        %v3593 = vmax.f32 %v3461, 0.0
        %v3594 = vmax.f32 %v3462, 0.0
        %v3595 = vmax.f32 %v3463, 0.0
        %v3596 = vmax.f32 %v3464, 0.0
        %v3597 = vmax.f32 %v3465, 0.0
        %v3598 = vmax.f32 %v3466, 0.0
        %v3599 = vmax.f32 %v3467, 0.0
        %v3600 = vmax.f32 %v3468, 0.0
        %v3601 = vmax.f32 %v3469, 0.0
        %v3602 = vmax.f32 %v3470, 0.0
        %v3603 = vmax.f32 %v3471, 0.0
        %v3604 = vmax.f32 %v3472, 0.0
        %v3605 = vmax.f32 %v3473, 0.0
        %v3606 = vmax.f32 %v3474, 0.0
        %v3607 = vmax.f32 %v3475, 0.0
        %v3608 = vmax.f32 %v3476, 0.0
        %v3609 = vmax.f32 %v3477, 0.0
        %v3610 = vmax.f32 %v3478, 0.0
        %v3611 = vmax.f32 %v3479, 0.0
        %v3612 = vmax.f32 %v3480, 0.0
        %v3613 = vmax.f32 %v3481, 0.0
        %v3614 = vmax.f32 %v3482, 0.0
        %v3615 = vmax.f32 %v3483, 0.0
        %v3616 = vmax.f32 %v3484, 0.0
        %v3617 = vmax.f32 %v3485, 0.0
        %v3618 = vmax.f32 %v3486, 0.0
        %v3619 = vmax.f32 %v3487, 0.0
        %v3620 = vmax.f32 %v3488, 0.0
        %v3621 = vmax.f32 %v3489, 0.0
        %v3622 = vmax.f32 %v3490, 0.0
        %v3623 = vmax.f32 %v3491, 0.0
        %v3624 = vmax.f32 %v3492, 0.0
        %v3625 = vmax.f32 %v3493, 0.0
        %v3626 = vmax.f32 %v3494, 0.0
        %v3627 = vmax.f32 %v3495, 0.0
        %v3628 = vmax.f32 %v3496, 0.0
        %v3629 = vmax.f32 %v3497, 0.0
        %v3630 = vsel %vm3090, 1, 0
        %v3631 = vsel %vm3091, 1, 0
        %v3632 = vsel %vm3092, 1, 0
        %v3633 = vsel %vm3093, 1, 0
        %v3634 = vsel %vm3094, 1, 0
        %v3635 = vsel %vm3095, 1, 0
        %v3636 = vsel %vm3096, 1, 0
        %v3637 = vsel %vm3097, 1, 0
        %v3638 = vsel %vm3098, 1, 0
        %v3639 = vsel %vm3099, 1, 0
        %v3640 = vsel %vm3100, 1, 0
        %v3641 = vsel %vm3101, 1, 0
        %v3642 = vsel %vm3102, 1, 0
        %v3643 = vsel %vm3103, 1, 0
        %v3644 = vsel %vm3104, 1, 0
        %v3645 = vsel %vm3105, 1, 0
        %v3646 = vsel %vm3106, 1, 0
        %v3647 = vsel %vm3107, 1, 0
        %v3648 = vsel %vm3108, 1, 0
        %v3649 = vsel %vm3109, 1, 0
        %v3650 = vsel %vm3110, 1, 0
        %v3651 = vsel %vm3111, 1, 0
        %v3652 = vsel %vm3112, 1, 0
        %v3653 = vsel %vm3113, 1, 0
        %v3654 = vsel %vm3114, 1, 0
        %v3655 = vsel %vm3115, 1, 0
        %v3656 = vsel %vm3116, 1, 0
        %v3657 = vsel %vm3117, 1, 0
        %v3658 = vsel %vm3118, 1, 0
        %v3659 = vsel %vm3119, 1, 0
        %v3660 = vsel %vm3120, 1, 0
        %v3661 = vsel %vm3121, 1, 0
        %v3662 = vsel %vm3122, 1, 0
        %v3663 = vsel %vm3123, 1, 0
        %v3664 = vsel %vm3124, 1, 0
        %v3665 = vsel %vm3125, 1, 0
        %v3666 = vsel %vm3126, 1, 0
        %v3667 = vsel %vm3127, 1, 0
        %v3668 = vsel %vm3128, 1, 0
        %v3669 = vsel %vm3129, 1, 0
        %v3670 = vsel %vm3130, 1, 0
        %v3671 = vsel %vm3131, 1, 0
        %v3672 = vsel %vm3132, 1, 0
        %v3673 = vsel %vm3133, 1, 0
        %v3674 = vsel %vm3134, 1, 0
        %v3675 = vsel %vm3135, 1, 0
        %v3676 = vsel %vm3136, 1, 0
        %v3677 = vsel %vm3137, 1, 0
        %v3678 = vsel %vm3138, 1, 0
        %v3679 = vsel %vm3139, 1, 0
        %v3680 = vsel %vm3140, 1, 0
        %v3681 = vsel %vm3141, 1, 0
        %v3682 = vsel %vm3142, 1, 0
        %v3683 = vsel %vm3143, 1, 0
        %v3684 = vsel %vm3144, 1, 0
        %v3685 = vsel %vm3145, 1, 0
        %v3686 = vsel %vm3146, 1, 0
        %v3687 = vsel %vm3147, 1, 0
        %v3688 = vsel %vm3148, 1, 0
        %v3689 = vsel %vm3149, 1, 0
        %v3690 = vsel %vm3150, 1, 0
        %v3691 = vsel %vm3151, 1, 0
        %v3692 = vsel %vm3152, 1, 0
        %v3693 = vsel %vm3153, 1, 0
        %v3694 = vsel %vm3154, 1, 0
        %v3695 = vsel %vm3155, 1, 0
        %v3696 = vsel %vm3156, 1, 0
        %v3697 = vsel %vm3157, 1, 0
        %v3698 = vsel %vm3158, 1, 0
        %v3699 = vsel %vm3159, 1, 0
        %v3700 = vsel %vm3160, 1, 0
        %v3701 = vsel %vm3161, 1, 0
        %v3702 = vsel %vm3162, 1, 0
        %v3703 = vsel %vm3163, 1, 0
        %v3704 = vsel %vm3164, 1, 0
        %v3705 = vsel %vm3165, 1, 0
        %v3706 = vsel %vm3166, 1, 0
        %v3707 = vsel %vm3167, 1, 0
        %v3708 = vsel %vm3168, 1, 0
        %v3709 = vsel %vm3169, 1, 0
        %v3710 = vsel %vm3170, 1, 0
        %v3711 = vsel %vm3171, 1, 0
        %v3712 = vsel %vm3172, 1, 0
        %v3713 = vsel %vm3173, 1, 0
        %v3714 = vsel %vm3174, 1, 0
        %v3715 = vsel %vm3175, 1, 0
        %v3716 = vsel %vm3176, 1, 0
        %v3717 = vsel %vm3177, 1, 0
        %v3718 = vsel %vm3178, 1, 0
        %v3719 = vsel %vm3179, 1, 0
        %v3720 = vsel %vm3180, 1, 0
        %v3721 = vsel %vm3181, 1, 0
        %v3722 = vsel %vm3182, 1, 0
        %v3723 = vsel %vm3183, 1, 0
        %v3724 = vsel %vm3184, 1, 0
        %v3725 = vsel %vm3185, 1, 0
        %v3726 = vsel %vm3186, 1, 0
        %v3727 = vsel %vm3187, 1, 0
        %v3728 = vsel %vm3188, 1, 0
        %v3729 = vsel %vm3189, 1, 0
        %v3730 = vsel %vm3190, 1, 0
        %v3731 = vsel %vm3191, 1, 0
        %v3732 = vsel %vm3192, 1, 0
        %v3733 = vsel %vm3193, 1, 0
        %v3734 = vsel %vm3194, 1, 0
        %v3735 = vsel %vm3195, 1, 0
        %v3736 = vsel %vm3196, 1, 0
        %v3737 = vsel %vm3197, 1, 0
        %v3738 = vsel %vm3198, 1, 0
        %v3739 = vsel %vm3199, 1, 0
        %v3740 = vsel %vm3200, 1, 0
        %v3741 = vsel %vm3201, 1, 0
        %v3742 = vsel %vm3202, 1, 0
        %v3743 = vsel %vm3203, 1, 0
        %v3744 = vsel %vm3204, 1, 0
        %v3745 = vsel %vm3205, 1, 0
        %v3746 = vsel %vm3206, 1, 0
        %v3747 = vsel %vm3207, 1, 0
        %v3748 = vsel %vm3208, 1, 0
        %v3749 = vsel %vm3209, 1, 0
        %v3750 = vsel %vm3210, 1, 0
        %v3751 = vsel %vm3211, 1, 0
        %v3752 = vsel %vm3212, 1, 0
        %v3753 = vsel %vm3213, 1, 0
        %v3754 = vsel %vm3214, 1, 0
        %v3755 = vsel %vm3215, 1, 0
        %v3756 = vsel %vm3216, 1, 0
        %v3757 = vsel %vm3217, 1, 0
        %v3758 = vsel %vm3218, 1, 0
        %v3759 = vsel %vm3219, 1, 0
        %v3760 = vsel %vm3220, 1, 0
        %v3761 = vsel %vm3221, 1, 0
        %vm3762 = vcmp.eq.s32.totalorder %v3630, 1
        %vm3763 = vcmp.eq.s32.totalorder %v3631, 1
        %vm3764 = vcmp.eq.s32.totalorder %v3632, 1
        %vm3765 = vcmp.eq.s32.totalorder %v3633, 1
        %vm3766 = vcmp.eq.s32.totalorder %v3634, 1
        %vm3767 = vcmp.eq.s32.totalorder %v3635, 1
        %vm3768 = vcmp.eq.s32.totalorder %v3636, 1
        %vm3769 = vcmp.eq.s32.totalorder %v3637, 1
        %vm3770 = vcmp.eq.s32.totalorder %v3638, 1
        %vm3771 = vcmp.eq.s32.totalorder %v3639, 1
        %vm3772 = vcmp.eq.s32.totalorder %v3640, 1
        %vm3773 = vcmp.eq.s32.totalorder %v3641, 1
        %vm3774 = vcmp.eq.s32.totalorder %v3642, 1
        %vm3775 = vcmp.eq.s32.totalorder %v3643, 1
        %vm3776 = vcmp.eq.s32.totalorder %v3644, 1
        %vm3777 = vcmp.eq.s32.totalorder %v3645, 1
        %vm3778 = vcmp.eq.s32.totalorder %v3646, 1
        %vm3779 = vcmp.eq.s32.totalorder %v3647, 1
        %vm3780 = vcmp.eq.s32.totalorder %v3648, 1
        %vm3781 = vcmp.eq.s32.totalorder %v3649, 1
        %vm3782 = vcmp.eq.s32.totalorder %v3650, 1
        %vm3783 = vcmp.eq.s32.totalorder %v3651, 1
        %vm3784 = vcmp.eq.s32.totalorder %v3652, 1
        %vm3785 = vcmp.eq.s32.totalorder %v3653, 1
        %vm3786 = vcmp.eq.s32.totalorder %v3654, 1
        %vm3787 = vcmp.eq.s32.totalorder %v3655, 1
        %vm3788 = vcmp.eq.s32.totalorder %v3656, 1
        %vm3789 = vcmp.eq.s32.totalorder %v3657, 1
        %vm3790 = vcmp.eq.s32.totalorder %v3658, 1
        %vm3791 = vcmp.eq.s32.totalorder %v3659, 1
        %vm3792 = vcmp.eq.s32.totalorder %v3660, 1
        %vm3793 = vcmp.eq.s32.totalorder %v3661, 1
        %vm3794 = vcmp.eq.s32.totalorder %v3662, 1
        %vm3795 = vcmp.eq.s32.totalorder %v3663, 1
        %vm3796 = vcmp.eq.s32.totalorder %v3664, 1
        %vm3797 = vcmp.eq.s32.totalorder %v3665, 1
        %vm3798 = vcmp.eq.s32.totalorder %v3666, 1
        %vm3799 = vcmp.eq.s32.totalorder %v3667, 1
        %vm3800 = vcmp.eq.s32.totalorder %v3668, 1
        %vm3801 = vcmp.eq.s32.totalorder %v3669, 1
        %vm3802 = vcmp.eq.s32.totalorder %v3670, 1
        %vm3803 = vcmp.eq.s32.totalorder %v3671, 1
        %vm3804 = vcmp.eq.s32.totalorder %v3672, 1
        %vm3805 = vcmp.eq.s32.totalorder %v3673, 1
        %vm3806 = vcmp.eq.s32.totalorder %v3674, 1
        %vm3807 = vcmp.eq.s32.totalorder %v3675, 1
        %vm3808 = vcmp.eq.s32.totalorder %v3676, 1
        %vm3809 = vcmp.eq.s32.totalorder %v3677, 1
        %vm3810 = vcmp.eq.s32.totalorder %v3678, 1
        %vm3811 = vcmp.eq.s32.totalorder %v3679, 1
        %vm3812 = vcmp.eq.s32.totalorder %v3680, 1
        %vm3813 = vcmp.eq.s32.totalorder %v3681, 1
        %vm3814 = vcmp.eq.s32.totalorder %v3682, 1
        %vm3815 = vcmp.eq.s32.totalorder %v3683, 1
        %vm3816 = vcmp.eq.s32.totalorder %v3684, 1
        %vm3817 = vcmp.eq.s32.totalorder %v3685, 1
        %vm3818 = vcmp.eq.s32.totalorder %v3686, 1
        %vm3819 = vcmp.eq.s32.totalorder %v3687, 1
        %vm3820 = vcmp.eq.s32.totalorder %v3688, 1
        %vm3821 = vcmp.eq.s32.totalorder %v3689, 1
        %vm3822 = vcmp.eq.s32.totalorder %v3690, 1
        %vm3823 = vcmp.eq.s32.totalorder %v3691, 1
        %vm3824 = vcmp.eq.s32.totalorder %v3692, 1
        %vm3825 = vcmp.eq.s32.totalorder %v3693, 1
        %vm3826 = vcmp.eq.s32.totalorder %v3694, 1
        %vm3827 = vcmp.eq.s32.totalorder %v3695, 1
        %vm3828 = vcmp.eq.s32.totalorder %v3696, 1
        %vm3829 = vcmp.eq.s32.totalorder %v3697, 1
        %vm3830 = vcmp.eq.s32.totalorder %v3698, 1
        %vm3831 = vcmp.eq.s32.totalorder %v3699, 1
        %vm3832 = vcmp.eq.s32.totalorder %v3700, 1
        %vm3833 = vcmp.eq.s32.totalorder %v3701, 1
        %vm3834 = vcmp.eq.s32.totalorder %v3702, 1
        %vm3835 = vcmp.eq.s32.totalorder %v3703, 1
        %vm3836 = vcmp.eq.s32.totalorder %v3704, 1
        %vm3837 = vcmp.eq.s32.totalorder %v3705, 1
        %vm3838 = vcmp.eq.s32.totalorder %v3706, 1
        %vm3839 = vcmp.eq.s32.totalorder %v3707, 1
        %vm3840 = vcmp.eq.s32.totalorder %v3708, 1
        %vm3841 = vcmp.eq.s32.totalorder %v3709, 1
        %vm3842 = vcmp.eq.s32.totalorder %v3710, 1
        %vm3843 = vcmp.eq.s32.totalorder %v3711, 1
        %vm3844 = vcmp.eq.s32.totalorder %v3712, 1
        %vm3845 = vcmp.eq.s32.totalorder %v3713, 1
        %vm3846 = vcmp.eq.s32.totalorder %v3714, 1
        %vm3847 = vcmp.eq.s32.totalorder %v3715, 1
        %vm3848 = vcmp.eq.s32.totalorder %v3716, 1
        %vm3849 = vcmp.eq.s32.totalorder %v3717, 1
        %vm3850 = vcmp.eq.s32.totalorder %v3718, 1
        %vm3851 = vcmp.eq.s32.totalorder %v3719, 1
        %vm3852 = vcmp.eq.s32.totalorder %v3720, 1
        %vm3853 = vcmp.eq.s32.totalorder %v3721, 1
        %vm3854 = vcmp.eq.s32.totalorder %v3722, 1
        %vm3855 = vcmp.eq.s32.totalorder %v3723, 1
        %vm3856 = vcmp.eq.s32.totalorder %v3724, 1
        %vm3857 = vcmp.eq.s32.totalorder %v3725, 1
        %vm3858 = vcmp.eq.s32.totalorder %v3726, 1
        %vm3859 = vcmp.eq.s32.totalorder %v3727, 1
        %vm3860 = vcmp.eq.s32.totalorder %v3728, 1
        %vm3861 = vcmp.eq.s32.totalorder %v3729, 1
        %vm3862 = vcmp.eq.s32.totalorder %v3730, 1
        %vm3863 = vcmp.eq.s32.totalorder %v3731, 1
        %vm3864 = vcmp.eq.s32.totalorder %v3732, 1
        %vm3865 = vcmp.eq.s32.totalorder %v3733, 1
        %vm3866 = vcmp.eq.s32.totalorder %v3734, 1
        %vm3867 = vcmp.eq.s32.totalorder %v3735, 1
        %vm3868 = vcmp.eq.s32.totalorder %v3736, 1
        %vm3869 = vcmp.eq.s32.totalorder %v3737, 1
        %vm3870 = vcmp.eq.s32.totalorder %v3738, 1
        %vm3871 = vcmp.eq.s32.totalorder %v3739, 1
        %vm3872 = vcmp.eq.s32.totalorder %v3740, 1
        %vm3873 = vcmp.eq.s32.totalorder %v3741, 1
        %vm3874 = vcmp.eq.s32.totalorder %v3742, 1
        %vm3875 = vcmp.eq.s32.totalorder %v3743, 1
        %vm3876 = vcmp.eq.s32.totalorder %v3744, 1
        %vm3877 = vcmp.eq.s32.totalorder %v3745, 1
        %vm3878 = vcmp.eq.s32.totalorder %v3746, 1
        %vm3879 = vcmp.eq.s32.totalorder %v3747, 1
        %vm3880 = vcmp.eq.s32.totalorder %v3748, 1
        %vm3881 = vcmp.eq.s32.totalorder %v3749, 1
        %vm3882 = vcmp.eq.s32.totalorder %v3750, 1
        %vm3883 = vcmp.eq.s32.totalorder %v3751, 1
        %vm3884 = vcmp.eq.s32.totalorder %v3752, 1
        %vm3885 = vcmp.eq.s32.totalorder %v3753, 1
        %vm3886 = vcmp.eq.s32.totalorder %v3754, 1
        %vm3887 = vcmp.eq.s32.totalorder %v3755, 1
        %vm3888 = vcmp.eq.s32.totalorder %v3756, 1
        %vm3889 = vcmp.eq.s32.totalorder %v3757, 1
        %vm3890 = vcmp.eq.s32.totalorder %v3758, 1
        %vm3891 = vcmp.eq.s32.totalorder %v3759, 1
        %vm3892 = vcmp.eq.s32.totalorder %v3760, 1
        %vm3893 = vcmp.eq.s32.totalorder %v3761, 1
        %v3894 = vsel %vm3762, %v3498, 0.0
        %v3895 = vsel %vm3763, %v3499, 0.0
        %v3896 = vsel %vm3764, %v3500, 0.0
        %v3897 = vsel %vm3765, %v3501, 0.0
        %v3898 = vsel %vm3766, %v3502, 0.0
        %v3899 = vsel %vm3767, %v3503, 0.0
        %v3900 = vsel %vm3768, %v3504, 0.0
        %v3901 = vsel %vm3769, %v3505, 0.0
        %v3902 = vsel %vm3770, %v3506, 0.0
        %v3903 = vsel %vm3771, %v3507, 0.0
        %v3904 = vsel %vm3772, %v3508, 0.0
        %v3905 = vsel %vm3773, %v3509, 0.0
        %v3906 = vsel %vm3774, %v3510, 0.0
        %v3907 = vsel %vm3775, %v3511, 0.0
        %v3908 = vsel %vm3776, %v3512, 0.0
        %v3909 = vsel %vm3777, %v3513, 0.0
        %v3910 = vsel %vm3778, %v3514, 0.0
        %v3911 = vsel %vm3779, %v3515, 0.0
        %v3912 = vsel %vm3780, %v3516, 0.0
        %v3913 = vsel %vm3781, %v3517, 0.0
        %v3914 = vsel %vm3782, %v3518, 0.0
        %v3915 = vsel %vm3783, %v3519, 0.0
        %v3916 = vsel %vm3784, %v3520, 0.0
        %v3917 = vsel %vm3785, %v3521, 0.0
        %v3918 = vsel %vm3786, %v3522, 0.0
        %v3919 = vsel %vm3787, %v3523, 0.0
        %v3920 = vsel %vm3788, %v3524, 0.0
        %v3921 = vsel %vm3789, %v3525, 0.0
        %v3922 = vsel %vm3790, %v3526, 0.0
        %v3923 = vsel %vm3791, %v3527, 0.0
        %v3924 = vsel %vm3792, %v3528, 0.0
        %v3925 = vsel %vm3793, %v3529, 0.0
        %v3926 = vsel %vm3794, %v3530, 0.0
        %v3927 = vsel %vm3795, %v3531, 0.0
        %v3928 = vsel %vm3796, %v3532, 0.0
        %v3929 = vsel %vm3797, %v3533, 0.0
        %v3930 = vsel %vm3798, %v3534, 0.0
        %v3931 = vsel %vm3799, %v3535, 0.0
        %v3932 = vsel %vm3800, %v3536, 0.0
        %v3933 = vsel %vm3801, %v3537, 0.0
        %v3934 = vsel %vm3802, %v3538, 0.0
        %v3935 = vsel %vm3803, %v3539, 0.0
        %v3936 = vsel %vm3804, %v3540, 0.0
        %v3937 = vsel %vm3805, %v3541, 0.0
        %v3938 = vsel %vm3806, %v3542, 0.0
        %v3939 = vsel %vm3807, %v3543, 0.0
        %v3940 = vsel %vm3808, %v3544, 0.0
        %v3941 = vsel %vm3809, %v3545, 0.0
        %v3942 = vsel %vm3810, %v3546, 0.0
        %v3943 = vsel %vm3811, %v3547, 0.0
        %v3944 = vsel %vm3812, %v3548, 0.0
        %v3945 = vsel %vm3813, %v3549, 0.0
        %v3946 = vsel %vm3814, %v3550, 0.0
        %v3947 = vsel %vm3815, %v3551, 0.0
        %v3948 = vsel %vm3816, %v3552, 0.0
        %v3949 = vsel %vm3817, %v3553, 0.0
        %v3950 = vsel %vm3818, %v3554, 0.0
        %v3951 = vsel %vm3819, %v3555, 0.0
        %v3952 = vsel %vm3820, %v3556, 0.0
        %v3953 = vsel %vm3821, %v3557, 0.0
        %v3954 = vsel %vm3822, %v3558, 0.0
        %v3955 = vsel %vm3823, %v3559, 0.0
        %v3956 = vsel %vm3824, %v3560, 0.0
        %v3957 = vsel %vm3825, %v3561, 0.0
        %v3958 = vsel %vm3826, %v3562, 0.0
        %v3959 = vsel %vm3827, %v3563, 0.0
        %v3960 = vsel %vm3828, %v3564, 0.0
        %v3961 = vsel %vm3829, %v3565, 0.0
        %v3962 = vsel %vm3830, %v3566, 0.0
        %v3963 = vsel %vm3831, %v3567, 0.0
        %v3964 = vsel %vm3832, %v3568, 0.0
        %v3965 = vsel %vm3833, %v3569, 0.0
        %v3966 = vsel %vm3834, %v3570, 0.0
        %v3967 = vsel %vm3835, %v3571, 0.0
        %v3968 = vsel %vm3836, %v3572, 0.0
        %v3969 = vsel %vm3837, %v3573, 0.0
        %v3970 = vsel %vm3838, %v3574, 0.0
        %v3971 = vsel %vm3839, %v3575, 0.0
        %v3972 = vsel %vm3840, %v3576, 0.0
        %v3973 = vsel %vm3841, %v3577, 0.0
        %v3974 = vsel %vm3842, %v3578, 0.0
        %v3975 = vsel %vm3843, %v3579, 0.0
        %v3976 = vsel %vm3844, %v3580, 0.0
        %v3977 = vsel %vm3845, %v3581, 0.0
        %v3978 = vsel %vm3846, %v3582, 0.0
        %v3979 = vsel %vm3847, %v3583, 0.0
        %v3980 = vsel %vm3848, %v3584, 0.0
        %v3981 = vsel %vm3849, %v3585, 0.0
        %v3982 = vsel %vm3850, %v3586, 0.0
        %v3983 = vsel %vm3851, %v3587, 0.0
        %v3984 = vsel %vm3852, %v3588, 0.0
        %v3985 = vsel %vm3853, %v3589, 0.0
        %v3986 = vsel %vm3854, %v3590, 0.0
        %v3987 = vsel %vm3855, %v3591, 0.0
        %v3988 = vsel %vm3856, %v3592, 0.0
        %v3989 = vsel %vm3857, %v3593, 0.0
        %v3990 = vsel %vm3858, %v3594, 0.0
        %v3991 = vsel %vm3859, %v3595, 0.0
        %v3992 = vsel %vm3860, %v3596, 0.0
        %v3993 = vsel %vm3861, %v3597, 0.0
        %v3994 = vsel %vm3862, %v3598, 0.0
        %v3995 = vsel %vm3863, %v3599, 0.0
        %v3996 = vsel %vm3864, %v3600, 0.0
        %v3997 = vsel %vm3865, %v3601, 0.0
        %v3998 = vsel %vm3866, %v3602, 0.0
        %v3999 = vsel %vm3867, %v3603, 0.0
        %v4000 = vsel %vm3868, %v3604, 0.0
        %v4001 = vsel %vm3869, %v3605, 0.0
        %v4002 = vsel %vm3870, %v3606, 0.0
        %v4003 = vsel %vm3871, %v3607, 0.0
        %v4004 = vsel %vm3872, %v3608, 0.0
        %v4005 = vsel %vm3873, %v3609, 0.0
        %v4006 = vsel %vm3874, %v3610, 0.0
        %v4007 = vsel %vm3875, %v3611, 0.0
        %v4008 = vsel %vm3876, %v3612, 0.0
        %v4009 = vsel %vm3877, %v3613, 0.0
        %v4010 = vsel %vm3878, %v3614, 0.0
        %v4011 = vsel %vm3879, %v3615, 0.0
        %v4012 = vsel %vm3880, %v3616, 0.0
        %v4013 = vsel %vm3881, %v3617, 0.0
        %v4014 = vsel %vm3882, %v3618, 0.0
        %v4015 = vsel %vm3883, %v3619, 0.0
        %v4016 = vsel %vm3884, %v3620, 0.0
        %v4017 = vsel %vm3885, %v3621, 0.0
        %v4018 = vsel %vm3886, %v3622, 0.0
        %v4019 = vsel %vm3887, %v3623, 0.0
        %v4020 = vsel %vm3888, %v3624, 0.0
        %v4021 = vsel %vm3889, %v3625, 0.0
        %v4022 = vsel %vm3890, %v3626, 0.0
        %v4023 = vsel %vm3891, %v3627, 0.0
        %v4024 = vsel %vm3892, %v3628, 0.0
        %v4025 = vsel %vm3893, %v3629, 0.0
        %4026 = vst [vmem:[#allocation2] sm:$0xff] %v3894
        %4027 = vst [vmem:[#allocation2 + $0x8] sm:$0xff] %v3895
        %4028 = vst [vmem:[#allocation2 + $0x10] sm:$0xff] %v3896
        %4029 = vst [vmem:[#allocation2 + $0x18] sm:$0xff] %v3897
        %4030 = vst [vmem:[#allocation2 + $0x20] sm:$0xff] %v3898
        %4031 = vst [vmem:[#allocation2 + $0x28] sm:$0xff] %v3899
        %4032 = vst [vmem:[#allocation2 + $0x30] sm:$0xff] %v3900
        %4033 = vst [vmem:[#allocation2 + $0x38] sm:$0xff] %v3901
        %4034 = vst [vmem:[#allocation2 + $0x40] sm:$0xff] %v3902
        %4035 = vst [vmem:[#allocation2 + $0x48] sm:$0xff] %v3903
        %4036 = vst [vmem:[#allocation2 + $0x50] sm:$0xff] %v3904
        %4037 = vst [vmem:[#allocation2 + $0x58] sm:$0xff] %v3905
        %4038 = vst [vmem:[#allocation2 + $0x60] sm:$0xff] %v3906
        %4039 = vst [vmem:[#allocation2 + $0x68] sm:$0xff] %v3907
        %4040 = vst [vmem:[#allocation2 + $0x70] sm:$0xff] %v3908
        %4041 = vst [vmem:[#allocation2 + $0x78] sm:$0xff] %v3909
        %4042 = vst [vmem:[#allocation2 + $0x80] sm:$0xff] %v3910
        %4043 = vst [vmem:[#allocation2 + $0x88] sm:$0xff] %v3911
        %4044 = vst [vmem:[#allocation2 + $0x90] sm:$0xff] %v3912
        %4045 = vst [vmem:[#allocation2 + $0x98] sm:$0xff] %v3913
        %4046 = vst [vmem:[#allocation2 + $0xa0] sm:$0xff] %v3914
        %4047 = vst [vmem:[#allocation2 + $0xa8] sm:$0xff] %v3915
        %4048 = vst [vmem:[#allocation2 + $0xb0] sm:$0xff] %v3916
        %4049 = vst [vmem:[#allocation2 + $0xb8] sm:$0xff] %v3917
        %4050 = vst [vmem:[#allocation2 + $0xc0] sm:$0xff] %v3918
        %4051 = vst [vmem:[#allocation2 + $0xc8] sm:$0xff] %v3919
        %4052 = vst [vmem:[#allocation2 + $0xd0] sm:$0xff] %v3920
        %4053 = vst [vmem:[#allocation2 + $0xd8] sm:$0xff] %v3921
        %4054 = vst [vmem:[#allocation2 + $0xe0] sm:$0xff] %v3922
        %4055 = vst [vmem:[#allocation2 + $0xe8] sm:$0xff] %v3923
        %4056 = vst [vmem:[#allocation2 + $0xf0] sm:$0xff] %v3924
        %4057 = vst [vmem:[#allocation2 + $0xf8] sm:$0xff] %v3925
        %4058 = vst [vmem:[#allocation2 + $0x100] sm:$0xff] %v3926
        %4059 = vst [vmem:[#allocation2 + $0x108] sm:$0xff] %v3927
        %4060 = vst [vmem:[#allocation2 + $0x110] sm:$0xff] %v3928
        %4061 = vst [vmem:[#allocation2 + $0x118] sm:$0xff] %v3929
        %4062 = vst [vmem:[#allocation2 + $0x120] sm:$0xff] %v3930
        %4063 = vst [vmem:[#allocation2 + $0x128] sm:$0xff] %v3931
        %4064 = vst [vmem:[#allocation2 + $0x130] sm:$0xff] %v3932
        %4065 = vst [vmem:[#allocation2 + $0x138] sm:$0xff] %v3933
        %4066 = vst [vmem:[#allocation2 + $0x140] sm:$0xff] %v3934
        %4067 = vst [vmem:[#allocation2 + $0x148] sm:$0xff] %v3935
        %4068 = vst [vmem:[#allocation2 + $0x150] sm:$0xff] %v3936
        %4069 = vst [vmem:[#allocation2 + $0x158] sm:$0xff] %v3937
        %4070 = vst [vmem:[#allocation2 + $0x160] sm:$0xff] %v3938
        %4071 = vst [vmem:[#allocation2 + $0x168] sm:$0xff] %v3939
        %4072 = vst [vmem:[#allocation2 + $0x170] sm:$0xff] %v3940
        %4073 = vst [vmem:[#allocation2 + $0x178] sm:$0xff] %v3941
        %4074 = vst [vmem:[#allocation2 + $0x180] sm:$0xff] %v3942
        %4075 = vst [vmem:[#allocation2 + $0x188] sm:$0xff] %v3943
        %4076 = vst [vmem:[#allocation2 + $0x190] sm:$0xff] %v3944
        %4077 = vst [vmem:[#allocation2 + $0x198] sm:$0xff] %v3945
        %4078 = vst [vmem:[#allocation2 + $0x1a0] sm:$0xff] %v3946
        %4079 = vst [vmem:[#allocation2 + $0x1a8] sm:$0xff] %v3947
        %4080 = vst [vmem:[#allocation2 + $0x1b0] sm:$0xff] %v3948
        %4081 = vst [vmem:[#allocation2 + $0x1b8] sm:$0xff] %v3949
        %4082 = vst [vmem:[#allocation2 + $0x1c0] sm:$0xff] %v3950
        %4083 = vst [vmem:[#allocation2 + $0x1c8] sm:$0xff] %v3951
        %4084 = vst [vmem:[#allocation2 + $0x1d0] sm:$0xff] %v3952
        %4085 = vst [vmem:[#allocation2 + $0x1d8] sm:$0xff] %v3953
        %4086 = vst [vmem:[#allocation2 + $0x1e0] sm:$0xff] %v3954
        %4087 = vst [vmem:[#allocation2 + $0x1e8] sm:$0xff] %v3955
        %4088 = vst [vmem:[#allocation2 + $0x1f0] sm:$0xff] %v3956
        %4089 = vst [vmem:[#allocation2 + $0x1f8] sm:$0xff] %v3957
        %4090 = vst [vmem:[#allocation2 + $0x200] sm:$0xff] %v3958
        %4091 = vst [vmem:[#allocation2 + $0x208] sm:$0xff] %v3959
        %4092 = vst [vmem:[#allocation2 + $0x210] sm:$0xff] %v3960
        %4093 = vst [vmem:[#allocation2 + $0x218] sm:$0xff] %v3961
        %4094 = vst [vmem:[#allocation2 + $0x220] sm:$0xff] %v3962
        %4095 = vst [vmem:[#allocation2 + $0x228] sm:$0xff] %v3963
        %4096 = vst [vmem:[#allocation2 + $0x230] sm:$0xff] %v3964
        %4097 = vst [vmem:[#allocation2 + $0x238] sm:$0xff] %v3965
        %4098 = vst [vmem:[#allocation2 + $0x240] sm:$0xff] %v3966
        %4099 = vst [vmem:[#allocation2 + $0x248] sm:$0xff] %v3967
        %4100 = vst [vmem:[#allocation2 + $0x250] sm:$0xff] %v3968
        %4101 = vst [vmem:[#allocation2 + $0x258] sm:$0xff] %v3969
        %4102 = vst [vmem:[#allocation2 + $0x260] sm:$0xff] %v3970
        %4103 = vst [vmem:[#allocation2 + $0x268] sm:$0xff] %v3971
        %4104 = vst [vmem:[#allocation2 + $0x270] sm:$0xff] %v3972
        %4105 = vst [vmem:[#allocation2 + $0x278] sm:$0xff] %v3973
        %4106 = vst [vmem:[#allocation2 + $0x280] sm:$0xff] %v3974
        %4107 = vst [vmem:[#allocation2 + $0x288] sm:$0xff] %v3975
        %4108 = vst [vmem:[#allocation2 + $0x290] sm:$0xff] %v3976
        %4109 = vst [vmem:[#allocation2 + $0x298] sm:$0xff] %v3977
        %4110 = vst [vmem:[#allocation2 + $0x2a0] sm:$0xff] %v3978
        %4111 = vst [vmem:[#allocation2 + $0x2a8] sm:$0xff] %v3979
        %4112 = vst [vmem:[#allocation2 + $0x2b0] sm:$0xff] %v3980
        %4113 = vst [vmem:[#allocation2 + $0x2b8] sm:$0xff] %v3981
        %4114 = vst [vmem:[#allocation2 + $0x2c0] sm:$0xff] %v3982
        %4115 = vst [vmem:[#allocation2 + $0x2c8] sm:$0xff] %v3983
        %4116 = vst [vmem:[#allocation2 + $0x2d0] sm:$0xff] %v3984
        %4117 = vst [vmem:[#allocation2 + $0x2d8] sm:$0xff] %v3985
        %4118 = vst [vmem:[#allocation2 + $0x2e0] sm:$0xff] %v3986
        %4119 = vst [vmem:[#allocation2 + $0x2e8] sm:$0xff] %v3987
        %4120 = vst [vmem:[#allocation2 + $0x2f0] sm:$0xff] %v3988
        %4121 = vst [vmem:[#allocation2 + $0x2f8] sm:$0xff] %v3989
        %4122 = vst [vmem:[#allocation2 + $0x300] sm:$0xff] %v3990
        %4123 = vst [vmem:[#allocation2 + $0x308] sm:$0xff] %v3991
        %4124 = vst [vmem:[#allocation2 + $0x310] sm:$0xff] %v3992
        %4125 = vst [vmem:[#allocation2 + $0x318] sm:$0xff] %v3993
        %4126 = vst [vmem:[#allocation2 + $0x320] sm:$0xff] %v3994
        %4127 = vst [vmem:[#allocation2 + $0x328] sm:$0xff] %v3995
        %4128 = vst [vmem:[#allocation2 + $0x330] sm:$0xff] %v3996
        %4129 = vst [vmem:[#allocation2 + $0x338] sm:$0xff] %v3997
        %4130 = vst [vmem:[#allocation2 + $0x340] sm:$0xff] %v3998
        %4131 = vst [vmem:[#allocation2 + $0x348] sm:$0xff] %v3999
        %4132 = vst [vmem:[#allocation2 + $0x350] sm:$0xff] %v4000
        %4133 = vst [vmem:[#allocation2 + $0x358] sm:$0xff] %v4001
        %4134 = vst [vmem:[#allocation2 + $0x360] sm:$0xff] %v4002
        %4135 = vst [vmem:[#allocation2 + $0x368] sm:$0xff] %v4003
        %4136 = vst [vmem:[#allocation2 + $0x370] sm:$0xff] %v4004
        %4137 = vst [vmem:[#allocation2 + $0x378] sm:$0xff] %v4005
        %4138 = vst [vmem:[#allocation2 + $0x380] sm:$0xff] %v4006
        %4139 = vst [vmem:[#allocation2 + $0x388] sm:$0xff] %v4007
        %4140 = vst [vmem:[#allocation2 + $0x390] sm:$0xff] %v4008
        %4141 = vst [vmem:[#allocation2 + $0x398] sm:$0xff] %v4009
        %4142 = vst [vmem:[#allocation2 + $0x3a0] sm:$0xff] %v4010
        %4143 = vst [vmem:[#allocation2 + $0x3a8] sm:$0xff] %v4011
        %4144 = vst [vmem:[#allocation2 + $0x3b0] sm:$0xff] %v4012
        %4145 = vst [vmem:[#allocation2 + $0x3b8] sm:$0xff] %v4013
        %4146 = vst [vmem:[#allocation2 + $0x3c0] sm:$0xff] %v4014
        %4147 = vst [vmem:[#allocation2 + $0x3c8] sm:$0xff] %v4015
        %4148 = vst [vmem:[#allocation2 + $0x3d0] sm:$0xff] %v4016
        %4149 = vst [vmem:[#allocation2 + $0x3d8] sm:$0xff] %v4017
        %4150 = vst [vmem:[#allocation2 + $0x3e0] sm:$0xff] %v4018
        %4151 = vst [vmem:[#allocation2 + $0x3e8] sm:$0xff] %v4019
        %4152 = vst [vmem:[#allocation2 + $0x3f0] sm:$0xff] %v4020
        %4153 = vst [vmem:[#allocation2 + $0x3f8] sm:$0xff] %v4021
        %4154 = vst [vmem:[#allocation2 + $0x400] sm:$0xff] %v4022
        %4155 = vst [vmem:[#allocation2 + $0x408] sm:$0xff] %v4023
        %4156 = vst [vmem:[#allocation2 + $0x410] sm:$0xff] %v4024
        %4157 = vst [vmem:[#allocation2 + $0x418] sm:$0xff] %v4025
        %v4158 = vld [vmem:[#allocation2 + $0x1] sm:$0xff]
        %v4159 = vld [vmem:[#allocation2 + $0x9] sm:$0xff]
        %v4160 = vld [vmem:[#allocation2 + $0x11] sm:$0xff]
        %v4161 = vld [vmem:[#allocation2 + $0x19] sm:$0xff]
        %v4162 = vld [vmem:[#allocation2 + $0x21] sm:$0xff]
        %v4163 = vld [vmem:[#allocation2 + $0x29] sm:$0xff]
        %v4164 = vld [vmem:[#allocation2 + $0x31] sm:$0xff]
        %v4165 = vld [vmem:[#allocation2 + $0x39] sm:$0xff]
        %v4166 = vld [vmem:[#allocation2 + $0x41] sm:$0xff]
        %v4167 = vld [vmem:[#allocation2 + $0x49] sm:$0xff]
        %v4168 = vld [vmem:[#allocation2 + $0x51] sm:$0xff]
        %v4169 = vld [vmem:[#allocation2 + $0x59] sm:$0xff]
        %v4170 = vld [vmem:[#allocation2 + $0x61] sm:$0xff]
        %v4171 = vld [vmem:[#allocation2 + $0x69] sm:$0xff]
        %v4172 = vld [vmem:[#allocation2 + $0x71] sm:$0xff]
        %v4173 = vld [vmem:[#allocation2 + $0x79] sm:$0xff]
        %v4174 = vld [vmem:[#allocation2 + $0x81] sm:$0xff]
        %v4175 = vld [vmem:[#allocation2 + $0x89] sm:$0xff]
        %v4176 = vld [vmem:[#allocation2 + $0x91] sm:$0xff]
        %v4177 = vld [vmem:[#allocation2 + $0x99] sm:$0xff]
        %v4178 = vld [vmem:[#allocation2 + $0xa1] sm:$0xff]
        %v4179 = vld [vmem:[#allocation2 + $0xa9] sm:$0xff]
        %v4180 = vld [vmem:[#allocation2 + $0xb1] sm:$0xff]
        %v4181 = vld [vmem:[#allocation2 + $0xb9] sm:$0xff]
        %v4182 = vld [vmem:[#allocation2 + $0xc1] sm:$0xff]
        %v4183 = vld [vmem:[#allocation2 + $0xc9] sm:$0xff]
        %v4184 = vld [vmem:[#allocation2 + $0xd1] sm:$0xff]
        %v4185 = vld [vmem:[#allocation2 + $0xd9] sm:$0xff]
        %v4186 = vld [vmem:[#allocation2 + $0xe1] sm:$0xff]
        %v4187 = vld [vmem:[#allocation2 + $0xe9] sm:$0xff]
        %v4188 = vld [vmem:[#allocation2 + $0xf1] sm:$0xff]
        %v4189 = vld [vmem:[#allocation2 + $0xf9] sm:$0xff]
        %v4190 = vld [vmem:[#allocation2 + $0x101] sm:$0xff]
        %v4191 = vld [vmem:[#allocation2 + $0x109] sm:$0xff]
        %v4192 = vld [vmem:[#allocation2 + $0x111] sm:$0xff]
        %v4193 = vld [vmem:[#allocation2 + $0x119] sm:$0xff]
        %v4194 = vld [vmem:[#allocation2 + $0x121] sm:$0xff]
        %v4195 = vld [vmem:[#allocation2 + $0x129] sm:$0xff]
        %v4196 = vld [vmem:[#allocation2 + $0x131] sm:$0xff]
        %v4197 = vld [vmem:[#allocation2 + $0x139] sm:$0xff]
        %v4198 = vld [vmem:[#allocation2 + $0x141] sm:$0xff]
        %v4199 = vld [vmem:[#allocation2 + $0x149] sm:$0xff]
        %v4200 = vld [vmem:[#allocation2 + $0x151] sm:$0xff]
        %v4201 = vld [vmem:[#allocation2 + $0x159] sm:$0xff]
        %v4202 = vld [vmem:[#allocation2 + $0x161] sm:$0xff]
        %v4203 = vld [vmem:[#allocation2 + $0x169] sm:$0xff]
        %v4204 = vld [vmem:[#allocation2 + $0x171] sm:$0xff]
        %v4205 = vld [vmem:[#allocation2 + $0x179] sm:$0xff]
        %v4206 = vld [vmem:[#allocation2 + $0x181] sm:$0xff]
        %v4207 = vld [vmem:[#allocation2 + $0x189] sm:$0xff]
        %v4208 = vld [vmem:[#allocation2 + $0x191] sm:$0xff]
        %v4209 = vld [vmem:[#allocation2 + $0x199] sm:$0xff]
        %v4210 = vld [vmem:[#allocation2 + $0x1a1] sm:$0xff]
        %v4211 = vld [vmem:[#allocation2 + $0x1a9] sm:$0xff]
        %v4212 = vld [vmem:[#allocation2 + $0x1b1] sm:$0xff]
        %v4213 = vld [vmem:[#allocation2 + $0x1b9] sm:$0xff]
        %v4214 = vld [vmem:[#allocation2 + $0x1c1] sm:$0xff]
        %v4215 = vld [vmem:[#allocation2 + $0x1c9] sm:$0xff]
        %v4216 = vld [vmem:[#allocation2 + $0x1d1] sm:$0xff]
        %v4217 = vld [vmem:[#allocation2 + $0x1d9] sm:$0xff]
        %v4218 = vld [vmem:[#allocation2 + $0x1e1] sm:$0xff]
        %v4219 = vld [vmem:[#allocation2 + $0x1e9] sm:$0xff]
        %v4220 = vld [vmem:[#allocation2 + $0x1f1] sm:$0xff]
        %v4221 = vld [vmem:[#allocation2 + $0x1f9] sm:$0xff]
        %v4222 = vld [vmem:[#allocation2 + $0x201] sm:$0xff]
        %v4223 = vld [vmem:[#allocation2 + $0x209] sm:$0xff]
        %v4224 = vld [vmem:[#allocation2 + $0x211] sm:$0xff]
        %v4225 = vld [vmem:[#allocation2 + $0x219] sm:$0xff]
        %v4226 = vld [vmem:[#allocation2 + $0x221] sm:$0xff]
        %v4227 = vld [vmem:[#allocation2 + $0x229] sm:$0xff]
        %v4228 = vld [vmem:[#allocation2 + $0x231] sm:$0xff]
        %v4229 = vld [vmem:[#allocation2 + $0x239] sm:$0xff]
        %v4230 = vld [vmem:[#allocation2 + $0x241] sm:$0xff]
        %v4231 = vld [vmem:[#allocation2 + $0x249] sm:$0xff]
        %v4232 = vld [vmem:[#allocation2 + $0x251] sm:$0xff]
        %v4233 = vld [vmem:[#allocation2 + $0x259] sm:$0xff]
        %v4234 = vld [vmem:[#allocation2 + $0x261] sm:$0xff]
        %v4235 = vld [vmem:[#allocation2 + $0x269] sm:$0xff]
        %v4236 = vld [vmem:[#allocation2 + $0x271] sm:$0xff]
        %v4237 = vld [vmem:[#allocation2 + $0x279] sm:$0xff]
        %v4238 = vld [vmem:[#allocation2 + $0x281] sm:$0xff]
        %v4239 = vld [vmem:[#allocation2 + $0x289] sm:$0xff]
        %v4240 = vld [vmem:[#allocation2 + $0x291] sm:$0xff]
        %v4241 = vld [vmem:[#allocation2 + $0x299] sm:$0xff]
        %v4242 = vld [vmem:[#allocation2 + $0x2a1] sm:$0xff]
        %v4243 = vld [vmem:[#allocation2 + $0x2a9] sm:$0xff]
        %v4244 = vld [vmem:[#allocation2 + $0x2b1] sm:$0xff]
        %v4245 = vld [vmem:[#allocation2 + $0x2b9] sm:$0xff]
        %v4246 = vld [vmem:[#allocation2 + $0x2c1] sm:$0xff]
        %v4247 = vld [vmem:[#allocation2 + $0x2c9] sm:$0xff]
        %v4248 = vld [vmem:[#allocation2 + $0x2d1] sm:$0xff]
        %v4249 = vld [vmem:[#allocation2 + $0x2d9] sm:$0xff]
        %v4250 = vld [vmem:[#allocation2 + $0x2e1] sm:$0xff]
        %v4251 = vld [vmem:[#allocation2 + $0x2e9] sm:$0xff]
        %v4252 = vld [vmem:[#allocation2 + $0x2f1] sm:$0xff]
        %v4253 = vld [vmem:[#allocation2 + $0x2f9] sm:$0xff]
        %v4254 = vld [vmem:[#allocation2 + $0x301] sm:$0xff]
        %v4255 = vld [vmem:[#allocation2 + $0x309] sm:$0xff]
        %v4256 = vld [vmem:[#allocation2 + $0x311] sm:$0xff]
        %v4257 = vld [vmem:[#allocation2 + $0x319] sm:$0xff]
        %v4258 = vld [vmem:[#allocation2 + $0x321] sm:$0xff]
        %v4259 = vld [vmem:[#allocation2 + $0x329] sm:$0xff]
        %v4260 = vld [vmem:[#allocation2 + $0x331] sm:$0xff]
        %v4261 = vld [vmem:[#allocation2 + $0x339] sm:$0xff]
        %v4262 = vld [vmem:[#allocation2 + $0x341] sm:$0xff]
        %v4263 = vld [vmem:[#allocation2 + $0x349] sm:$0xff]
        %v4264 = vld [vmem:[#allocation2 + $0x351] sm:$0xff]
        %v4265 = vld [vmem:[#allocation2 + $0x359] sm:$0xff]
        %v4266 = vld [vmem:[#allocation2 + $0x361] sm:$0xff]
        %v4267 = vld [vmem:[#allocation2 + $0x369] sm:$0xff]
        %v4268 = vld [vmem:[#allocation2 + $0x371] sm:$0xff]
        %v4269 = vld [vmem:[#allocation2 + $0x379] sm:$0xff]
        %v4270 = vld [vmem:[#allocation2 + $0x381] sm:$0xff]
        %v4271 = vld [vmem:[#allocation2 + $0x389] sm:$0xff]
        %v4272 = vld [vmem:[#allocation2 + $0x391] sm:$0xff]
        %v4273 = vld [vmem:[#allocation2 + $0x399] sm:$0xff]
        %v4274 = vld [vmem:[#allocation2 + $0x3a1] sm:$0xff]
        %v4275 = vld [vmem:[#allocation2 + $0x3a9] sm:$0xff]
        %v4276 = vld [vmem:[#allocation2 + $0x3b1] sm:$0xff]
        %v4277 = vld [vmem:[#allocation2 + $0x3b9] sm:$0xff]
        %v4278 = vld [vmem:[#allocation2 + $0x3c1] sm:$0xff]
        %v4279 = vld [vmem:[#allocation2 + $0x3c9] sm:$0xff]
        %v4280 = vld [vmem:[#allocation2 + $0x3d1] sm:$0xff]
        %v4281 = vld [vmem:[#allocation2 + $0x3d9] sm:$0xff]
        %v4282 = vld [vmem:[#allocation2 + $0x3e1] sm:$0xff]
        %v4283 = vld [vmem:[#allocation2 + $0x3e9] sm:$0xff]
        %v4284 = vld [vmem:[#allocation2 + $0x3f1] sm:$0xff]
        %v4285 = vld [vmem:[#allocation2 + $0x3f9] sm:$0xff]
        %4286 = vst [vmem:[#allocation3] sm:$0xff] %v4158
        %4287 = vst [vmem:[#allocation3 + $0x8] sm:$0xff] %v4159
        %4288 = vst [vmem:[#allocation3 + $0x10] sm:$0xff] %v4160
        %4289 = vst [vmem:[#allocation3 + $0x18] sm:$0xff] %v4161
        %4290 = vst [vmem:[#allocation3 + $0x20] sm:$0xff] %v4162
        %4291 = vst [vmem:[#allocation3 + $0x28] sm:$0xff] %v4163
        %4292 = vst [vmem:[#allocation3 + $0x30] sm:$0xff] %v4164
        %4293 = vst [vmem:[#allocation3 + $0x38] sm:$0xff] %v4165
        %4294 = vst [vmem:[#allocation3 + $0x40] sm:$0xff] %v4166
        %4295 = vst [vmem:[#allocation3 + $0x48] sm:$0xff] %v4167
        %4296 = vst [vmem:[#allocation3 + $0x50] sm:$0xff] %v4168
        %4297 = vst [vmem:[#allocation3 + $0x58] sm:$0xff] %v4169
        %4298 = vst [vmem:[#allocation3 + $0x60] sm:$0xff] %v4170
        %4299 = vst [vmem:[#allocation3 + $0x68] sm:$0xff] %v4171
        %4300 = vst [vmem:[#allocation3 + $0x70] sm:$0xff] %v4172
        %4301 = vst [vmem:[#allocation3 + $0x78] sm:$0xff] %v4173
        %4302 = vst [vmem:[#allocation3 + $0x80] sm:$0xff] %v4174
        %4303 = vst [vmem:[#allocation3 + $0x88] sm:$0xff] %v4175
        %4304 = vst [vmem:[#allocation3 + $0x90] sm:$0xff] %v4176
        %4305 = vst [vmem:[#allocation3 + $0x98] sm:$0xff] %v4177
        %4306 = vst [vmem:[#allocation3 + $0xa0] sm:$0xff] %v4178
        %4307 = vst [vmem:[#allocation3 + $0xa8] sm:$0xff] %v4179
        %4308 = vst [vmem:[#allocation3 + $0xb0] sm:$0xff] %v4180
        %4309 = vst [vmem:[#allocation3 + $0xb8] sm:$0xff] %v4181
        %4310 = vst [vmem:[#allocation3 + $0xc0] sm:$0xff] %v4182
        %4311 = vst [vmem:[#allocation3 + $0xc8] sm:$0xff] %v4183
        %4312 = vst [vmem:[#allocation3 + $0xd0] sm:$0xff] %v4184
        %4313 = vst [vmem:[#allocation3 + $0xd8] sm:$0xff] %v4185
        %4314 = vst [vmem:[#allocation3 + $0xe0] sm:$0xff] %v4186
        %4315 = vst [vmem:[#allocation3 + $0xe8] sm:$0xff] %v4187
        %4316 = vst [vmem:[#allocation3 + $0xf0] sm:$0xff] %v4188
        %4317 = vst [vmem:[#allocation3 + $0xf8] sm:$0xff] %v4189
        %4318 = vst [vmem:[#allocation3 + $0x100] sm:$0xff] %v4190
        %4319 = vst [vmem:[#allocation3 + $0x108] sm:$0xff] %v4191
        %4320 = vst [vmem:[#allocation3 + $0x110] sm:$0xff] %v4192
        %4321 = vst [vmem:[#allocation3 + $0x118] sm:$0xff] %v4193
        %4322 = vst [vmem:[#allocation3 + $0x120] sm:$0xff] %v4194
        %4323 = vst [vmem:[#allocation3 + $0x128] sm:$0xff] %v4195
        %4324 = vst [vmem:[#allocation3 + $0x130] sm:$0xff] %v4196
        %4325 = vst [vmem:[#allocation3 + $0x138] sm:$0xff] %v4197
        %4326 = vst [vmem:[#allocation3 + $0x140] sm:$0xff] %v4198
        %4327 = vst [vmem:[#allocation3 + $0x148] sm:$0xff] %v4199
        %4328 = vst [vmem:[#allocation3 + $0x150] sm:$0xff] %v4200
        %4329 = vst [vmem:[#allocation3 + $0x158] sm:$0xff] %v4201
        %4330 = vst [vmem:[#allocation3 + $0x160] sm:$0xff] %v4202
        %4331 = vst [vmem:[#allocation3 + $0x168] sm:$0xff] %v4203
        %4332 = vst [vmem:[#allocation3 + $0x170] sm:$0xff] %v4204
        %4333 = vst [vmem:[#allocation3 + $0x178] sm:$0xff] %v4205
        %4334 = vst [vmem:[#allocation3 + $0x180] sm:$0xff] %v4206
        %4335 = vst [vmem:[#allocation3 + $0x188] sm:$0xff] %v4207
        %4336 = vst [vmem:[#allocation3 + $0x190] sm:$0xff] %v4208
        %4337 = vst [vmem:[#allocation3 + $0x198] sm:$0xff] %v4209
        %4338 = vst [vmem:[#allocation3 + $0x1a0] sm:$0xff] %v4210
        %4339 = vst [vmem:[#allocation3 + $0x1a8] sm:$0xff] %v4211
        %4340 = vst [vmem:[#allocation3 + $0x1b0] sm:$0xff] %v4212
        %4341 = vst [vmem:[#allocation3 + $0x1b8] sm:$0xff] %v4213
        %4342 = vst [vmem:[#allocation3 + $0x1c0] sm:$0xff] %v4214
        %4343 = vst [vmem:[#allocation3 + $0x1c8] sm:$0xff] %v4215
        %4344 = vst [vmem:[#allocation3 + $0x1d0] sm:$0xff] %v4216
        %4345 = vst [vmem:[#allocation3 + $0x1d8] sm:$0xff] %v4217
        %4346 = vst [vmem:[#allocation3 + $0x1e0] sm:$0xff] %v4218
        %4347 = vst [vmem:[#allocation3 + $0x1e8] sm:$0xff] %v4219
        %4348 = vst [vmem:[#allocation3 + $0x1f0] sm:$0xff] %v4220
        %4349 = vst [vmem:[#allocation3 + $0x1f8] sm:$0xff] %v4221
        %4350 = vst [vmem:[#allocation3 + $0x200] sm:$0xff] %v4222
        %4351 = vst [vmem:[#allocation3 + $0x208] sm:$0xff] %v4223
        %4352 = vst [vmem:[#allocation3 + $0x210] sm:$0xff] %v4224
        %4353 = vst [vmem:[#allocation3 + $0x218] sm:$0xff] %v4225
        %4354 = vst [vmem:[#allocation3 + $0x220] sm:$0xff] %v4226
        %4355 = vst [vmem:[#allocation3 + $0x228] sm:$0xff] %v4227
        %4356 = vst [vmem:[#allocation3 + $0x230] sm:$0xff] %v4228
        %4357 = vst [vmem:[#allocation3 + $0x238] sm:$0xff] %v4229
        %4358 = vst [vmem:[#allocation3 + $0x240] sm:$0xff] %v4230
        %4359 = vst [vmem:[#allocation3 + $0x248] sm:$0xff] %v4231
        %4360 = vst [vmem:[#allocation3 + $0x250] sm:$0xff] %v4232
        %4361 = vst [vmem:[#allocation3 + $0x258] sm:$0xff] %v4233
        %4362 = vst [vmem:[#allocation3 + $0x260] sm:$0xff] %v4234
        %4363 = vst [vmem:[#allocation3 + $0x268] sm:$0xff] %v4235
        %4364 = vst [vmem:[#allocation3 + $0x270] sm:$0xff] %v4236
        %4365 = vst [vmem:[#allocation3 + $0x278] sm:$0xff] %v4237
        %4366 = vst [vmem:[#allocation3 + $0x280] sm:$0xff] %v4238
        %4367 = vst [vmem:[#allocation3 + $0x288] sm:$0xff] %v4239
        %4368 = vst [vmem:[#allocation3 + $0x290] sm:$0xff] %v4240
        %4369 = vst [vmem:[#allocation3 + $0x298] sm:$0xff] %v4241
        %4370 = vst [vmem:[#allocation3 + $0x2a0] sm:$0xff] %v4242
        %4371 = vst [vmem:[#allocation3 + $0x2a8] sm:$0xff] %v4243
        %4372 = vst [vmem:[#allocation3 + $0x2b0] sm:$0xff] %v4244
        %4373 = vst [vmem:[#allocation3 + $0x2b8] sm:$0xff] %v4245
        %4374 = vst [vmem:[#allocation3 + $0x2c0] sm:$0xff] %v4246
        %4375 = vst [vmem:[#allocation3 + $0x2c8] sm:$0xff] %v4247
        %4376 = vst [vmem:[#allocation3 + $0x2d0] sm:$0xff] %v4248
        %4377 = vst [vmem:[#allocation3 + $0x2d8] sm:$0xff] %v4249
        %4378 = vst [vmem:[#allocation3 + $0x2e0] sm:$0xff] %v4250
        %4379 = vst [vmem:[#allocation3 + $0x2e8] sm:$0xff] %v4251
        %4380 = vst [vmem:[#allocation3 + $0x2f0] sm:$0xff] %v4252
        %4381 = vst [vmem:[#allocation3 + $0x2f8] sm:$0xff] %v4253
        %4382 = vst [vmem:[#allocation3 + $0x300] sm:$0xff] %v4254
        %4383 = vst [vmem:[#allocation3 + $0x308] sm:$0xff] %v4255
        %4384 = vst [vmem:[#allocation3 + $0x310] sm:$0xff] %v4256
        %4385 = vst [vmem:[#allocation3 + $0x318] sm:$0xff] %v4257
        %4386 = vst [vmem:[#allocation3 + $0x320] sm:$0xff] %v4258
        %4387 = vst [vmem:[#allocation3 + $0x328] sm:$0xff] %v4259
        %4388 = vst [vmem:[#allocation3 + $0x330] sm:$0xff] %v4260
        %4389 = vst [vmem:[#allocation3 + $0x338] sm:$0xff] %v4261
        %4390 = vst [vmem:[#allocation3 + $0x340] sm:$0xff] %v4262
        %4391 = vst [vmem:[#allocation3 + $0x348] sm:$0xff] %v4263
        %4392 = vst [vmem:[#allocation3 + $0x350] sm:$0xff] %v4264
        %4393 = vst [vmem:[#allocation3 + $0x358] sm:$0xff] %v4265
        %4394 = vst [vmem:[#allocation3 + $0x360] sm:$0xff] %v4266
        %4395 = vst [vmem:[#allocation3 + $0x368] sm:$0xff] %v4267
        %4396 = vst [vmem:[#allocation3 + $0x370] sm:$0xff] %v4268
        %4397 = vst [vmem:[#allocation3 + $0x378] sm:$0xff] %v4269
        %4398 = vst [vmem:[#allocation3 + $0x380] sm:$0xff] %v4270
        %4399 = vst [vmem:[#allocation3 + $0x388] sm:$0xff] %v4271
        %4400 = vst [vmem:[#allocation3 + $0x390] sm:$0xff] %v4272
        %4401 = vst [vmem:[#allocation3 + $0x398] sm:$0xff] %v4273
        %4402 = vst [vmem:[#allocation3 + $0x3a0] sm:$0xff] %v4274
        %4403 = vst [vmem:[#allocation3 + $0x3a8] sm:$0xff] %v4275
        %4404 = vst [vmem:[#allocation3 + $0x3b0] sm:$0xff] %v4276
        %4405 = vst [vmem:[#allocation3 + $0x3b8] sm:$0xff] %v4277
        %4406 = vst [vmem:[#allocation3 + $0x3c0] sm:$0xff] %v4278
        %4407 = vst [vmem:[#allocation3 + $0x3c8] sm:$0xff] %v4279
        %4408 = vst [vmem:[#allocation3 + $0x3d0] sm:$0xff] %v4280
        %4409 = vst [vmem:[#allocation3 + $0x3d8] sm:$0xff] %v4281
        %4410 = vst [vmem:[#allocation3 + $0x3e0] sm:$0xff] %v4282
        %4411 = vst [vmem:[#allocation3 + $0x3e8] sm:$0xff] %v4283
        %4412 = vst [vmem:[#allocation3 + $0x3f0] sm:$0xff] %v4284
        %4413 = vst [vmem:[#allocation3 + $0x3f8] sm:$0xff] %v4285
        %v4414 = vld [vmem:[#allocation2 + $0x2] sm:$0xff]
        %v4415 = vld [vmem:[#allocation2 + $0xa] sm:$0xff]
        %v4416 = vld [vmem:[#allocation2 + $0x12] sm:$0xff]
        %v4417 = vld [vmem:[#allocation2 + $0x1a] sm:$0xff]
        %v4418 = vld [vmem:[#allocation2 + $0x22] sm:$0xff]
        %v4419 = vld [vmem:[#allocation2 + $0x2a] sm:$0xff]
        %v4420 = vld [vmem:[#allocation2 + $0x32] sm:$0xff]
        %v4421 = vld [vmem:[#allocation2 + $0x3a] sm:$0xff]
        %v4422 = vld [vmem:[#allocation2 + $0x42] sm:$0xff]
        %v4423 = vld [vmem:[#allocation2 + $0x4a] sm:$0xff]
        %v4424 = vld [vmem:[#allocation2 + $0x52] sm:$0xff]
        %v4425 = vld [vmem:[#allocation2 + $0x5a] sm:$0xff]
        %v4426 = vld [vmem:[#allocation2 + $0x62] sm:$0xff]
        %v4427 = vld [vmem:[#allocation2 + $0x6a] sm:$0xff]
        %v4428 = vld [vmem:[#allocation2 + $0x72] sm:$0xff]
        %v4429 = vld [vmem:[#allocation2 + $0x7a] sm:$0xff]
        %v4430 = vld [vmem:[#allocation2 + $0x82] sm:$0xff]
        %v4431 = vld [vmem:[#allocation2 + $0x8a] sm:$0xff]
        %v4432 = vld [vmem:[#allocation2 + $0x92] sm:$0xff]
        %v4433 = vld [vmem:[#allocation2 + $0x9a] sm:$0xff]
        %v4434 = vld [vmem:[#allocation2 + $0xa2] sm:$0xff]
        %v4435 = vld [vmem:[#allocation2 + $0xaa] sm:$0xff]
        %v4436 = vld [vmem:[#allocation2 + $0xb2] sm:$0xff]
        %v4437 = vld [vmem:[#allocation2 + $0xba] sm:$0xff]
        %v4438 = vld [vmem:[#allocation2 + $0xc2] sm:$0xff]
        %v4439 = vld [vmem:[#allocation2 + $0xca] sm:$0xff]
        %v4440 = vld [vmem:[#allocation2 + $0xd2] sm:$0xff]
        %v4441 = vld [vmem:[#allocation2 + $0xda] sm:$0xff]
        %v4442 = vld [vmem:[#allocation2 + $0xe2] sm:$0xff]
        %v4443 = vld [vmem:[#allocation2 + $0xea] sm:$0xff]
        %v4444 = vld [vmem:[#allocation2 + $0xf2] sm:$0xff]
        %v4445 = vld [vmem:[#allocation2 + $0xfa] sm:$0xff]
        %v4446 = vld [vmem:[#allocation2 + $0x102] sm:$0xff]
        %v4447 = vld [vmem:[#allocation2 + $0x10a] sm:$0xff]
        %v4448 = vld [vmem:[#allocation2 + $0x112] sm:$0xff]
        %v4449 = vld [vmem:[#allocation2 + $0x11a] sm:$0xff]
        %v4450 = vld [vmem:[#allocation2 + $0x122] sm:$0xff]
        %v4451 = vld [vmem:[#allocation2 + $0x12a] sm:$0xff]
        %v4452 = vld [vmem:[#allocation2 + $0x132] sm:$0xff]
        %v4453 = vld [vmem:[#allocation2 + $0x13a] sm:$0xff]
        %v4454 = vld [vmem:[#allocation2 + $0x142] sm:$0xff]
        %v4455 = vld [vmem:[#allocation2 + $0x14a] sm:$0xff]
        %v4456 = vld [vmem:[#allocation2 + $0x152] sm:$0xff]
        %v4457 = vld [vmem:[#allocation2 + $0x15a] sm:$0xff]
        %v4458 = vld [vmem:[#allocation2 + $0x162] sm:$0xff]
        %v4459 = vld [vmem:[#allocation2 + $0x16a] sm:$0xff]
        %v4460 = vld [vmem:[#allocation2 + $0x172] sm:$0xff]
        %v4461 = vld [vmem:[#allocation2 + $0x17a] sm:$0xff]
        %v4462 = vld [vmem:[#allocation2 + $0x182] sm:$0xff]
        %v4463 = vld [vmem:[#allocation2 + $0x18a] sm:$0xff]
        %v4464 = vld [vmem:[#allocation2 + $0x192] sm:$0xff]
        %v4465 = vld [vmem:[#allocation2 + $0x19a] sm:$0xff]
        %v4466 = vld [vmem:[#allocation2 + $0x1a2] sm:$0xff]
        %v4467 = vld [vmem:[#allocation2 + $0x1aa] sm:$0xff]
        %v4468 = vld [vmem:[#allocation2 + $0x1b2] sm:$0xff]
        %v4469 = vld [vmem:[#allocation2 + $0x1ba] sm:$0xff]
        %v4470 = vld [vmem:[#allocation2 + $0x1c2] sm:$0xff]
        %v4471 = vld [vmem:[#allocation2 + $0x1ca] sm:$0xff]
        %v4472 = vld [vmem:[#allocation2 + $0x1d2] sm:$0xff]
        %v4473 = vld [vmem:[#allocation2 + $0x1da] sm:$0xff]
        %v4474 = vld [vmem:[#allocation2 + $0x1e2] sm:$0xff]
        %v4475 = vld [vmem:[#allocation2 + $0x1ea] sm:$0xff]
        %v4476 = vld [vmem:[#allocation2 + $0x1f2] sm:$0xff]
        %v4477 = vld [vmem:[#allocation2 + $0x1fa] sm:$0xff]
        %v4478 = vld [vmem:[#allocation2 + $0x202] sm:$0xff]
        %v4479 = vld [vmem:[#allocation2 + $0x20a] sm:$0xff]
        %v4480 = vld [vmem:[#allocation2 + $0x212] sm:$0xff]
        %v4481 = vld [vmem:[#allocation2 + $0x21a] sm:$0xff]
        %v4482 = vld [vmem:[#allocation2 + $0x222] sm:$0xff]
        %v4483 = vld [vmem:[#allocation2 + $0x22a] sm:$0xff]
        %v4484 = vld [vmem:[#allocation2 + $0x232] sm:$0xff]
        %v4485 = vld [vmem:[#allocation2 + $0x23a] sm:$0xff]
        %v4486 = vld [vmem:[#allocation2 + $0x242] sm:$0xff]
        %v4487 = vld [vmem:[#allocation2 + $0x24a] sm:$0xff]
        %v4488 = vld [vmem:[#allocation2 + $0x252] sm:$0xff]
        %v4489 = vld [vmem:[#allocation2 + $0x25a] sm:$0xff]
        %v4490 = vld [vmem:[#allocation2 + $0x262] sm:$0xff]
        %v4491 = vld [vmem:[#allocation2 + $0x26a] sm:$0xff]
        %v4492 = vld [vmem:[#allocation2 + $0x272] sm:$0xff]
        %v4493 = vld [vmem:[#allocation2 + $0x27a] sm:$0xff]
        %v4494 = vld [vmem:[#allocation2 + $0x282] sm:$0xff]
        %v4495 = vld [vmem:[#allocation2 + $0x28a] sm:$0xff]
        %v4496 = vld [vmem:[#allocation2 + $0x292] sm:$0xff]
        %v4497 = vld [vmem:[#allocation2 + $0x29a] sm:$0xff]
        %v4498 = vld [vmem:[#allocation2 + $0x2a2] sm:$0xff]
        %v4499 = vld [vmem:[#allocation2 + $0x2aa] sm:$0xff]
        %v4500 = vld [vmem:[#allocation2 + $0x2b2] sm:$0xff]
        %v4501 = vld [vmem:[#allocation2 + $0x2ba] sm:$0xff]
        %v4502 = vld [vmem:[#allocation2 + $0x2c2] sm:$0xff]
        %v4503 = vld [vmem:[#allocation2 + $0x2ca] sm:$0xff]
        %v4504 = vld [vmem:[#allocation2 + $0x2d2] sm:$0xff]
        %v4505 = vld [vmem:[#allocation2 + $0x2da] sm:$0xff]
        %v4506 = vld [vmem:[#allocation2 + $0x2e2] sm:$0xff]
        %v4507 = vld [vmem:[#allocation2 + $0x2ea] sm:$0xff]
        %v4508 = vld [vmem:[#allocation2 + $0x2f2] sm:$0xff]
        %v4509 = vld [vmem:[#allocation2 + $0x2fa] sm:$0xff]
        %v4510 = vld [vmem:[#allocation2 + $0x302] sm:$0xff]
        %v4511 = vld [vmem:[#allocation2 + $0x30a] sm:$0xff]
        %v4512 = vld [vmem:[#allocation2 + $0x312] sm:$0xff]
        %v4513 = vld [vmem:[#allocation2 + $0x31a] sm:$0xff]
        %v4514 = vld [vmem:[#allocation2 + $0x322] sm:$0xff]
        %v4515 = vld [vmem:[#allocation2 + $0x32a] sm:$0xff]
        %v4516 = vld [vmem:[#allocation2 + $0x332] sm:$0xff]
        %v4517 = vld [vmem:[#allocation2 + $0x33a] sm:$0xff]
        %v4518 = vld [vmem:[#allocation2 + $0x342] sm:$0xff]
        %v4519 = vld [vmem:[#allocation2 + $0x34a] sm:$0xff]
        %v4520 = vld [vmem:[#allocation2 + $0x352] sm:$0xff]
        %v4521 = vld [vmem:[#allocation2 + $0x35a] sm:$0xff]
        %v4522 = vld [vmem:[#allocation2 + $0x362] sm:$0xff]
        %v4523 = vld [vmem:[#allocation2 + $0x36a] sm:$0xff]
        %v4524 = vld [vmem:[#allocation2 + $0x372] sm:$0xff]
        %v4525 = vld [vmem:[#allocation2 + $0x37a] sm:$0xff]
        %v4526 = vld [vmem:[#allocation2 + $0x382] sm:$0xff]
        %v4527 = vld [vmem:[#allocation2 + $0x38a] sm:$0xff]
        %v4528 = vld [vmem:[#allocation2 + $0x392] sm:$0xff]
        %v4529 = vld [vmem:[#allocation2 + $0x39a] sm:$0xff]
        %v4530 = vld [vmem:[#allocation2 + $0x3a2] sm:$0xff]
        %v4531 = vld [vmem:[#allocation2 + $0x3aa] sm:$0xff]
        %v4532 = vld [vmem:[#allocation2 + $0x3b2] sm:$0xff]
        %v4533 = vld [vmem:[#allocation2 + $0x3ba] sm:$0xff]
        %v4534 = vld [vmem:[#allocation2 + $0x3c2] sm:$0xff]
        %v4535 = vld [vmem:[#allocation2 + $0x3ca] sm:$0xff]
        %v4536 = vld [vmem:[#allocation2 + $0x3d2] sm:$0xff]
        %v4537 = vld [vmem:[#allocation2 + $0x3da] sm:$0xff]
        %v4538 = vld [vmem:[#allocation2 + $0x3e2] sm:$0xff]
        %v4539 = vld [vmem:[#allocation2 + $0x3ea] sm:$0xff]
        %v4540 = vld [vmem:[#allocation2 + $0x3f2] sm:$0xff]
        %v4541 = vld [vmem:[#allocation2 + $0x3fa] sm:$0xff]
        %4542 = vst [vmem:[#allocation3 + $0x400] sm:$0xff] %v4414
        %4543 = vst [vmem:[#allocation3 + $0x408] sm:$0xff] %v4415
        %4544 = vst [vmem:[#allocation3 + $0x410] sm:$0xff] %v4416
        %4545 = vst [vmem:[#allocation3 + $0x418] sm:$0xff] %v4417
        %4546 = vst [vmem:[#allocation3 + $0x420] sm:$0xff] %v4418
        %4547 = vst [vmem:[#allocation3 + $0x428] sm:$0xff] %v4419
        %4548 = vst [vmem:[#allocation3 + $0x430] sm:$0xff] %v4420
        %4549 = vst [vmem:[#allocation3 + $0x438] sm:$0xff] %v4421
        %4550 = vst [vmem:[#allocation3 + $0x440] sm:$0xff] %v4422
        %4551 = vst [vmem:[#allocation3 + $0x448] sm:$0xff] %v4423
        %4552 = vst [vmem:[#allocation3 + $0x450] sm:$0xff] %v4424
        %4553 = vst [vmem:[#allocation3 + $0x458] sm:$0xff] %v4425
        %4554 = vst [vmem:[#allocation3 + $0x460] sm:$0xff] %v4426
        %4555 = vst [vmem:[#allocation3 + $0x468] sm:$0xff] %v4427
        %4556 = vst [vmem:[#allocation3 + $0x470] sm:$0xff] %v4428
        %4557 = vst [vmem:[#allocation3 + $0x478] sm:$0xff] %v4429
        %4558 = vst [vmem:[#allocation3 + $0x480] sm:$0xff] %v4430
        %4559 = vst [vmem:[#allocation3 + $0x488] sm:$0xff] %v4431
        %4560 = vst [vmem:[#allocation3 + $0x490] sm:$0xff] %v4432
        %4561 = vst [vmem:[#allocation3 + $0x498] sm:$0xff] %v4433
        %4562 = vst [vmem:[#allocation3 + $0x4a0] sm:$0xff] %v4434
        %4563 = vst [vmem:[#allocation3 + $0x4a8] sm:$0xff] %v4435
        %4564 = vst [vmem:[#allocation3 + $0x4b0] sm:$0xff] %v4436
        %4565 = vst [vmem:[#allocation3 + $0x4b8] sm:$0xff] %v4437
        %4566 = vst [vmem:[#allocation3 + $0x4c0] sm:$0xff] %v4438
        %4567 = vst [vmem:[#allocation3 + $0x4c8] sm:$0xff] %v4439
        %4568 = vst [vmem:[#allocation3 + $0x4d0] sm:$0xff] %v4440
        %4569 = vst [vmem:[#allocation3 + $0x4d8] sm:$0xff] %v4441
        %4570 = vst [vmem:[#allocation3 + $0x4e0] sm:$0xff] %v4442
        %4571 = vst [vmem:[#allocation3 + $0x4e8] sm:$0xff] %v4443
        %4572 = vst [vmem:[#allocation3 + $0x4f0] sm:$0xff] %v4444
        %4573 = vst [vmem:[#allocation3 + $0x4f8] sm:$0xff] %v4445
        %4574 = vst [vmem:[#allocation3 + $0x500] sm:$0xff] %v4446
        %4575 = vst [vmem:[#allocation3 + $0x508] sm:$0xff] %v4447
        %4576 = vst [vmem:[#allocation3 + $0x510] sm:$0xff] %v4448
        %4577 = vst [vmem:[#allocation3 + $0x518] sm:$0xff] %v4449
        %4578 = vst [vmem:[#allocation3 + $0x520] sm:$0xff] %v4450
        %4579 = vst [vmem:[#allocation3 + $0x528] sm:$0xff] %v4451
        %4580 = vst [vmem:[#allocation3 + $0x530] sm:$0xff] %v4452
        %4581 = vst [vmem:[#allocation3 + $0x538] sm:$0xff] %v4453
        %4582 = vst [vmem:[#allocation3 + $0x540] sm:$0xff] %v4454
        %4583 = vst [vmem:[#allocation3 + $0x548] sm:$0xff] %v4455
        %4584 = vst [vmem:[#allocation3 + $0x550] sm:$0xff] %v4456
        %4585 = vst [vmem:[#allocation3 + $0x558] sm:$0xff] %v4457
        %4586 = vst [vmem:[#allocation3 + $0x560] sm:$0xff] %v4458
        %4587 = vst [vmem:[#allocation3 + $0x568] sm:$0xff] %v4459
        %4588 = vst [vmem:[#allocation3 + $0x570] sm:$0xff] %v4460
        %4589 = vst [vmem:[#allocation3 + $0x578] sm:$0xff] %v4461
        %4590 = vst [vmem:[#allocation3 + $0x580] sm:$0xff] %v4462
        %4591 = vst [vmem:[#allocation3 + $0x588] sm:$0xff] %v4463
        %4592 = vst [vmem:[#allocation3 + $0x590] sm:$0xff] %v4464
        %4593 = vst [vmem:[#allocation3 + $0x598] sm:$0xff] %v4465
        %4594 = vst [vmem:[#allocation3 + $0x5a0] sm:$0xff] %v4466
        %4595 = vst [vmem:[#allocation3 + $0x5a8] sm:$0xff] %v4467
        %4596 = vst [vmem:[#allocation3 + $0x5b0] sm:$0xff] %v4468
        %4597 = vst [vmem:[#allocation3 + $0x5b8] sm:$0xff] %v4469
        %4598 = vst [vmem:[#allocation3 + $0x5c0] sm:$0xff] %v4470
        %4599 = vst [vmem:[#allocation3 + $0x5c8] sm:$0xff] %v4471
        %4600 = vst [vmem:[#allocation3 + $0x5d0] sm:$0xff] %v4472
        %4601 = vst [vmem:[#allocation3 + $0x5d8] sm:$0xff] %v4473
        %4602 = vst [vmem:[#allocation3 + $0x5e0] sm:$0xff] %v4474
        %4603 = vst [vmem:[#allocation3 + $0x5e8] sm:$0xff] %v4475
        %4604 = vst [vmem:[#allocation3 + $0x5f0] sm:$0xff] %v4476
        %4605 = vst [vmem:[#allocation3 + $0x5f8] sm:$0xff] %v4477
        %4606 = vst [vmem:[#allocation3 + $0x600] sm:$0xff] %v4478
        %4607 = vst [vmem:[#allocation3 + $0x608] sm:$0xff] %v4479
        %4608 = vst [vmem:[#allocation3 + $0x610] sm:$0xff] %v4480
        %4609 = vst [vmem:[#allocation3 + $0x618] sm:$0xff] %v4481
        %4610 = vst [vmem:[#allocation3 + $0x620] sm:$0xff] %v4482
        %4611 = vst [vmem:[#allocation3 + $0x628] sm:$0xff] %v4483
        %4612 = vst [vmem:[#allocation3 + $0x630] sm:$0xff] %v4484
        %4613 = vst [vmem:[#allocation3 + $0x638] sm:$0xff] %v4485
        %4614 = vst [vmem:[#allocation3 + $0x640] sm:$0xff] %v4486
        %4615 = vst [vmem:[#allocation3 + $0x648] sm:$0xff] %v4487
        %4616 = vst [vmem:[#allocation3 + $0x650] sm:$0xff] %v4488
        %4617 = vst [vmem:[#allocation3 + $0x658] sm:$0xff] %v4489
        %4618 = vst [vmem:[#allocation3 + $0x660] sm:$0xff] %v4490
        %4619 = vst [vmem:[#allocation3 + $0x668] sm:$0xff] %v4491
        %4620 = vst [vmem:[#allocation3 + $0x670] sm:$0xff] %v4492
        %4621 = vst [vmem:[#allocation3 + $0x678] sm:$0xff] %v4493
        %4622 = vst [vmem:[#allocation3 + $0x680] sm:$0xff] %v4494
        %4623 = vst [vmem:[#allocation3 + $0x688] sm:$0xff] %v4495
        %4624 = vst [vmem:[#allocation3 + $0x690] sm:$0xff] %v4496
        %4625 = vst [vmem:[#allocation3 + $0x698] sm:$0xff] %v4497
        %4626 = vst [vmem:[#allocation3 + $0x6a0] sm:$0xff] %v4498
        %4627 = vst [vmem:[#allocation3 + $0x6a8] sm:$0xff] %v4499
        %4628 = vst [vmem:[#allocation3 + $0x6b0] sm:$0xff] %v4500
        %4629 = vst [vmem:[#allocation3 + $0x6b8] sm:$0xff] %v4501
        %4630 = vst [vmem:[#allocation3 + $0x6c0] sm:$0xff] %v4502
        %4631 = vst [vmem:[#allocation3 + $0x6c8] sm:$0xff] %v4503
        %4632 = vst [vmem:[#allocation3 + $0x6d0] sm:$0xff] %v4504
        %4633 = vst [vmem:[#allocation3 + $0x6d8] sm:$0xff] %v4505
        %4634 = vst [vmem:[#allocation3 + $0x6e0] sm:$0xff] %v4506
        %4635 = vst [vmem:[#allocation3 + $0x6e8] sm:$0xff] %v4507
        %4636 = vst [vmem:[#allocation3 + $0x6f0] sm:$0xff] %v4508
        %4637 = vst [vmem:[#allocation3 + $0x6f8] sm:$0xff] %v4509
        %4638 = vst [vmem:[#allocation3 + $0x700] sm:$0xff] %v4510
        %4639 = vst [vmem:[#allocation3 + $0x708] sm:$0xff] %v4511
        %4640 = vst [vmem:[#allocation3 + $0x710] sm:$0xff] %v4512
        %4641 = vst [vmem:[#allocation3 + $0x718] sm:$0xff] %v4513
        %4642 = vst [vmem:[#allocation3 + $0x720] sm:$0xff] %v4514
        %4643 = vst [vmem:[#allocation3 + $0x728] sm:$0xff] %v4515
        %4644 = vst [vmem:[#allocation3 + $0x730] sm:$0xff] %v4516
        %4645 = vst [vmem:[#allocation3 + $0x738] sm:$0xff] %v4517
        %4646 = vst [vmem:[#allocation3 + $0x740] sm:$0xff] %v4518
        %4647 = vst [vmem:[#allocation3 + $0x748] sm:$0xff] %v4519
        %4648 = vst [vmem:[#allocation3 + $0x750] sm:$0xff] %v4520
        %4649 = vst [vmem:[#allocation3 + $0x758] sm:$0xff] %v4521
        %4650 = vst [vmem:[#allocation3 + $0x760] sm:$0xff] %v4522
        %4651 = vst [vmem:[#allocation3 + $0x768] sm:$0xff] %v4523
        %4652 = vst [vmem:[#allocation3 + $0x770] sm:$0xff] %v4524
        %4653 = vst [vmem:[#allocation3 + $0x778] sm:$0xff] %v4525
        %4654 = vst [vmem:[#allocation3 + $0x780] sm:$0xff] %v4526
        %4655 = vst [vmem:[#allocation3 + $0x788] sm:$0xff] %v4527
        %4656 = vst [vmem:[#allocation3 + $0x790] sm:$0xff] %v4528
        %4657 = vst [vmem:[#allocation3 + $0x798] sm:$0xff] %v4529
        %4658 = vst [vmem:[#allocation3 + $0x7a0] sm:$0xff] %v4530
        %4659 = vst [vmem:[#allocation3 + $0x7a8] sm:$0xff] %v4531
        %4660 = vst [vmem:[#allocation3 + $0x7b0] sm:$0xff] %v4532
        %4661 = vst [vmem:[#allocation3 + $0x7b8] sm:$0xff] %v4533
        %4662 = vst [vmem:[#allocation3 + $0x7c0] sm:$0xff] %v4534
        %4663 = vst [vmem:[#allocation3 + $0x7c8] sm:$0xff] %v4535
        %4664 = vst [vmem:[#allocation3 + $0x7d0] sm:$0xff] %v4536
        %4665 = vst [vmem:[#allocation3 + $0x7d8] sm:$0xff] %v4537
        %4666 = vst [vmem:[#allocation3 + $0x7e0] sm:$0xff] %v4538
        %4667 = vst [vmem:[#allocation3 + $0x7e8] sm:$0xff] %v4539
        %4668 = vst [vmem:[#allocation3 + $0x7f0] sm:$0xff] %v4540
        %4669 = vst [vmem:[#allocation3 + $0x7f8] sm:$0xff] %v4541
        %v4670 = vld [vmem:[#allocation2 + $0x3] sm:$0xff]
        %v4671 = vld [vmem:[#allocation2 + $0xb] sm:$0xff]
        %v4672 = vld [vmem:[#allocation2 + $0x13] sm:$0xff]
        %v4673 = vld [vmem:[#allocation2 + $0x1b] sm:$0xff]
        %v4674 = vld [vmem:[#allocation2 + $0x23] sm:$0xff]
        %v4675 = vld [vmem:[#allocation2 + $0x2b] sm:$0xff]
        %v4676 = vld [vmem:[#allocation2 + $0x33] sm:$0xff]
        %v4677 = vld [vmem:[#allocation2 + $0x3b] sm:$0xff]
        %v4678 = vld [vmem:[#allocation2 + $0x43] sm:$0xff]
        %v4679 = vld [vmem:[#allocation2 + $0x4b] sm:$0xff]
        %v4680 = vld [vmem:[#allocation2 + $0x53] sm:$0xff]
        %v4681 = vld [vmem:[#allocation2 + $0x5b] sm:$0xff]
        %v4682 = vld [vmem:[#allocation2 + $0x63] sm:$0xff]
        %v4683 = vld [vmem:[#allocation2 + $0x6b] sm:$0xff]
        %v4684 = vld [vmem:[#allocation2 + $0x73] sm:$0xff]
        %v4685 = vld [vmem:[#allocation2 + $0x7b] sm:$0xff]
        %v4686 = vld [vmem:[#allocation2 + $0x83] sm:$0xff]
        %v4687 = vld [vmem:[#allocation2 + $0x8b] sm:$0xff]
        %v4688 = vld [vmem:[#allocation2 + $0x93] sm:$0xff]
        %v4689 = vld [vmem:[#allocation2 + $0x9b] sm:$0xff]
        %v4690 = vld [vmem:[#allocation2 + $0xa3] sm:$0xff]
        %v4691 = vld [vmem:[#allocation2 + $0xab] sm:$0xff]
        %v4692 = vld [vmem:[#allocation2 + $0xb3] sm:$0xff]
        %v4693 = vld [vmem:[#allocation2 + $0xbb] sm:$0xff]
        %v4694 = vld [vmem:[#allocation2 + $0xc3] sm:$0xff]
        %v4695 = vld [vmem:[#allocation2 + $0xcb] sm:$0xff]
        %v4696 = vld [vmem:[#allocation2 + $0xd3] sm:$0xff]
        %v4697 = vld [vmem:[#allocation2 + $0xdb] sm:$0xff]
        %v4698 = vld [vmem:[#allocation2 + $0xe3] sm:$0xff]
        %v4699 = vld [vmem:[#allocation2 + $0xeb] sm:$0xff]
        %v4700 = vld [vmem:[#allocation2 + $0xf3] sm:$0xff]
        %v4701 = vld [vmem:[#allocation2 + $0xfb] sm:$0xff]
        %v4702 = vld [vmem:[#allocation2 + $0x103] sm:$0xff]
        %v4703 = vld [vmem:[#allocation2 + $0x10b] sm:$0xff]
        %v4704 = vld [vmem:[#allocation2 + $0x113] sm:$0xff]
        %v4705 = vld [vmem:[#allocation2 + $0x11b] sm:$0xff]
        %v4706 = vld [vmem:[#allocation2 + $0x123] sm:$0xff]
        %v4707 = vld [vmem:[#allocation2 + $0x12b] sm:$0xff]
        %v4708 = vld [vmem:[#allocation2 + $0x133] sm:$0xff]
        %v4709 = vld [vmem:[#allocation2 + $0x13b] sm:$0xff]
        %v4710 = vld [vmem:[#allocation2 + $0x143] sm:$0xff]
        %v4711 = vld [vmem:[#allocation2 + $0x14b] sm:$0xff]
        %v4712 = vld [vmem:[#allocation2 + $0x153] sm:$0xff]
        %v4713 = vld [vmem:[#allocation2 + $0x15b] sm:$0xff]
        %v4714 = vld [vmem:[#allocation2 + $0x163] sm:$0xff]
        %v4715 = vld [vmem:[#allocation2 + $0x16b] sm:$0xff]
        %v4716 = vld [vmem:[#allocation2 + $0x173] sm:$0xff]
        %v4717 = vld [vmem:[#allocation2 + $0x17b] sm:$0xff]
        %v4718 = vld [vmem:[#allocation2 + $0x183] sm:$0xff]
        %v4719 = vld [vmem:[#allocation2 + $0x18b] sm:$0xff]
        %v4720 = vld [vmem:[#allocation2 + $0x193] sm:$0xff]
        %v4721 = vld [vmem:[#allocation2 + $0x19b] sm:$0xff]
        %v4722 = vld [vmem:[#allocation2 + $0x1a3] sm:$0xff]
        %v4723 = vld [vmem:[#allocation2 + $0x1ab] sm:$0xff]
        %v4724 = vld [vmem:[#allocation2 + $0x1b3] sm:$0xff]
        %v4725 = vld [vmem:[#allocation2 + $0x1bb] sm:$0xff]
        %v4726 = vld [vmem:[#allocation2 + $0x1c3] sm:$0xff]
        %v4727 = vld [vmem:[#allocation2 + $0x1cb] sm:$0xff]
        %v4728 = vld [vmem:[#allocation2 + $0x1d3] sm:$0xff]
        %v4729 = vld [vmem:[#allocation2 + $0x1db] sm:$0xff]
        %v4730 = vld [vmem:[#allocation2 + $0x1e3] sm:$0xff]
        %v4731 = vld [vmem:[#allocation2 + $0x1eb] sm:$0xff]
        %v4732 = vld [vmem:[#allocation2 + $0x1f3] sm:$0xff]
        %v4733 = vld [vmem:[#allocation2 + $0x1fb] sm:$0xff]
        %v4734 = vld [vmem:[#allocation2 + $0x203] sm:$0xff]
        %v4735 = vld [vmem:[#allocation2 + $0x20b] sm:$0xff]
        %v4736 = vld [vmem:[#allocation2 + $0x213] sm:$0xff]
        %v4737 = vld [vmem:[#allocation2 + $0x21b] sm:$0xff]
        %v4738 = vld [vmem:[#allocation2 + $0x223] sm:$0xff]
        %v4739 = vld [vmem:[#allocation2 + $0x22b] sm:$0xff]
        %v4740 = vld [vmem:[#allocation2 + $0x233] sm:$0xff]
        %v4741 = vld [vmem:[#allocation2 + $0x23b] sm:$0xff]
        %v4742 = vld [vmem:[#allocation2 + $0x243] sm:$0xff]
        %v4743 = vld [vmem:[#allocation2 + $0x24b] sm:$0xff]
        %v4744 = vld [vmem:[#allocation2 + $0x253] sm:$0xff]
        %v4745 = vld [vmem:[#allocation2 + $0x25b] sm:$0xff]
        %v4746 = vld [vmem:[#allocation2 + $0x263] sm:$0xff]
        %v4747 = vld [vmem:[#allocation2 + $0x26b] sm:$0xff]
        %v4748 = vld [vmem:[#allocation2 + $0x273] sm:$0xff]
        %v4749 = vld [vmem:[#allocation2 + $0x27b] sm:$0xff]
        %v4750 = vld [vmem:[#allocation2 + $0x283] sm:$0xff]
        %v4751 = vld [vmem:[#allocation2 + $0x28b] sm:$0xff]
        %v4752 = vld [vmem:[#allocation2 + $0x293] sm:$0xff]
        %v4753 = vld [vmem:[#allocation2 + $0x29b] sm:$0xff]
        %v4754 = vld [vmem:[#allocation2 + $0x2a3] sm:$0xff]
        %v4755 = vld [vmem:[#allocation2 + $0x2ab] sm:$0xff]
        %v4756 = vld [vmem:[#allocation2 + $0x2b3] sm:$0xff]
        %v4757 = vld [vmem:[#allocation2 + $0x2bb] sm:$0xff]
        %v4758 = vld [vmem:[#allocation2 + $0x2c3] sm:$0xff]
        %v4759 = vld [vmem:[#allocation2 + $0x2cb] sm:$0xff]
        %v4760 = vld [vmem:[#allocation2 + $0x2d3] sm:$0xff]
        %v4761 = vld [vmem:[#allocation2 + $0x2db] sm:$0xff]
        %v4762 = vld [vmem:[#allocation2 + $0x2e3] sm:$0xff]
        %v4763 = vld [vmem:[#allocation2 + $0x2eb] sm:$0xff]
        %v4764 = vld [vmem:[#allocation2 + $0x2f3] sm:$0xff]
        %v4765 = vld [vmem:[#allocation2 + $0x2fb] sm:$0xff]
        %v4766 = vld [vmem:[#allocation2 + $0x303] sm:$0xff]
        %v4767 = vld [vmem:[#allocation2 + $0x30b] sm:$0xff]
        %v4768 = vld [vmem:[#allocation2 + $0x313] sm:$0xff]
        %v4769 = vld [vmem:[#allocation2 + $0x31b] sm:$0xff]
        %v4770 = vld [vmem:[#allocation2 + $0x323] sm:$0xff]
        %v4771 = vld [vmem:[#allocation2 + $0x32b] sm:$0xff]
        %v4772 = vld [vmem:[#allocation2 + $0x333] sm:$0xff]
        %v4773 = vld [vmem:[#allocation2 + $0x33b] sm:$0xff]
        %v4774 = vld [vmem:[#allocation2 + $0x343] sm:$0xff]
        %v4775 = vld [vmem:[#allocation2 + $0x34b] sm:$0xff]
        %v4776 = vld [vmem:[#allocation2 + $0x353] sm:$0xff]
        %v4777 = vld [vmem:[#allocation2 + $0x35b] sm:$0xff]
        %v4778 = vld [vmem:[#allocation2 + $0x363] sm:$0xff]
        %v4779 = vld [vmem:[#allocation2 + $0x36b] sm:$0xff]
        %v4780 = vld [vmem:[#allocation2 + $0x373] sm:$0xff]
        %v4781 = vld [vmem:[#allocation2 + $0x37b] sm:$0xff]
        %v4782 = vld [vmem:[#allocation2 + $0x383] sm:$0xff]
        %v4783 = vld [vmem:[#allocation2 + $0x38b] sm:$0xff]
        %v4784 = vld [vmem:[#allocation2 + $0x393] sm:$0xff]
        %v4785 = vld [vmem:[#allocation2 + $0x39b] sm:$0xff]
        %v4786 = vld [vmem:[#allocation2 + $0x3a3] sm:$0xff]
        %v4787 = vld [vmem:[#allocation2 + $0x3ab] sm:$0xff]
        %v4788 = vld [vmem:[#allocation2 + $0x3b3] sm:$0xff]
        %v4789 = vld [vmem:[#allocation2 + $0x3bb] sm:$0xff]
        %v4790 = vld [vmem:[#allocation2 + $0x3c3] sm:$0xff]
        %v4791 = vld [vmem:[#allocation2 + $0x3cb] sm:$0xff]
        %v4792 = vld [vmem:[#allocation2 + $0x3d3] sm:$0xff]
        %v4793 = vld [vmem:[#allocation2 + $0x3db] sm:$0xff]
        %v4794 = vld [vmem:[#allocation2 + $0x3e3] sm:$0xff]
        %v4795 = vld [vmem:[#allocation2 + $0x3eb] sm:$0xff]
        %v4796 = vld [vmem:[#allocation2 + $0x3f3] sm:$0xff]
        %v4797 = vld [vmem:[#allocation2 + $0x3fb] sm:$0xff]
        %4798 = vst [vmem:[#allocation3 + $0x800] sm:$0xff] %v4670
        %4799 = vst [vmem:[#allocation3 + $0x808] sm:$0xff] %v4671
        %4800 = vst [vmem:[#allocation3 + $0x810] sm:$0xff] %v4672
        %4801 = vst [vmem:[#allocation3 + $0x818] sm:$0xff] %v4673
        %4802 = vst [vmem:[#allocation3 + $0x820] sm:$0xff] %v4674
        %4803 = vst [vmem:[#allocation3 + $0x828] sm:$0xff] %v4675
        %4804 = vst [vmem:[#allocation3 + $0x830] sm:$0xff] %v4676
        %4805 = vst [vmem:[#allocation3 + $0x838] sm:$0xff] %v4677
        %4806 = vst [vmem:[#allocation3 + $0x840] sm:$0xff] %v4678
        %4807 = vst [vmem:[#allocation3 + $0x848] sm:$0xff] %v4679
        %4808 = vst [vmem:[#allocation3 + $0x850] sm:$0xff] %v4680
        %4809 = vst [vmem:[#allocation3 + $0x858] sm:$0xff] %v4681
        %4810 = vst [vmem:[#allocation3 + $0x860] sm:$0xff] %v4682
        %4811 = vst [vmem:[#allocation3 + $0x868] sm:$0xff] %v4683
        %4812 = vst [vmem:[#allocation3 + $0x870] sm:$0xff] %v4684
        %4813 = vst [vmem:[#allocation3 + $0x878] sm:$0xff] %v4685
        %4814 = vst [vmem:[#allocation3 + $0x880] sm:$0xff] %v4686
        %4815 = vst [vmem:[#allocation3 + $0x888] sm:$0xff] %v4687
        %4816 = vst [vmem:[#allocation3 + $0x890] sm:$0xff] %v4688
        %4817 = vst [vmem:[#allocation3 + $0x898] sm:$0xff] %v4689
        %4818 = vst [vmem:[#allocation3 + $0x8a0] sm:$0xff] %v4690
        %4819 = vst [vmem:[#allocation3 + $0x8a8] sm:$0xff] %v4691
        %4820 = vst [vmem:[#allocation3 + $0x8b0] sm:$0xff] %v4692
        %4821 = vst [vmem:[#allocation3 + $0x8b8] sm:$0xff] %v4693
        %4822 = vst [vmem:[#allocation3 + $0x8c0] sm:$0xff] %v4694
        %4823 = vst [vmem:[#allocation3 + $0x8c8] sm:$0xff] %v4695
        %4824 = vst [vmem:[#allocation3 + $0x8d0] sm:$0xff] %v4696
        %4825 = vst [vmem:[#allocation3 + $0x8d8] sm:$0xff] %v4697
        %4826 = vst [vmem:[#allocation3 + $0x8e0] sm:$0xff] %v4698
        %4827 = vst [vmem:[#allocation3 + $0x8e8] sm:$0xff] %v4699
        %4828 = vst [vmem:[#allocation3 + $0x8f0] sm:$0xff] %v4700
        %4829 = vst [vmem:[#allocation3 + $0x8f8] sm:$0xff] %v4701
        %4830 = vst [vmem:[#allocation3 + $0x900] sm:$0xff] %v4702
        %4831 = vst [vmem:[#allocation3 + $0x908] sm:$0xff] %v4703
        %4832 = vst [vmem:[#allocation3 + $0x910] sm:$0xff] %v4704
        %4833 = vst [vmem:[#allocation3 + $0x918] sm:$0xff] %v4705
        %4834 = vst [vmem:[#allocation3 + $0x920] sm:$0xff] %v4706
        %4835 = vst [vmem:[#allocation3 + $0x928] sm:$0xff] %v4707
        %4836 = vst [vmem:[#allocation3 + $0x930] sm:$0xff] %v4708
        %4837 = vst [vmem:[#allocation3 + $0x938] sm:$0xff] %v4709
        %4838 = vst [vmem:[#allocation3 + $0x940] sm:$0xff] %v4710
        %4839 = vst [vmem:[#allocation3 + $0x948] sm:$0xff] %v4711
        %4840 = vst [vmem:[#allocation3 + $0x950] sm:$0xff] %v4712
        %4841 = vst [vmem:[#allocation3 + $0x958] sm:$0xff] %v4713
        %4842 = vst [vmem:[#allocation3 + $0x960] sm:$0xff] %v4714
        %4843 = vst [vmem:[#allocation3 + $0x968] sm:$0xff] %v4715
        %4844 = vst [vmem:[#allocation3 + $0x970] sm:$0xff] %v4716
        %4845 = vst [vmem:[#allocation3 + $0x978] sm:$0xff] %v4717
        %4846 = vst [vmem:[#allocation3 + $0x980] sm:$0xff] %v4718
        %4847 = vst [vmem:[#allocation3 + $0x988] sm:$0xff] %v4719
        %4848 = vst [vmem:[#allocation3 + $0x990] sm:$0xff] %v4720
        %4849 = vst [vmem:[#allocation3 + $0x998] sm:$0xff] %v4721
        %4850 = vst [vmem:[#allocation3 + $0x9a0] sm:$0xff] %v4722
        %4851 = vst [vmem:[#allocation3 + $0x9a8] sm:$0xff] %v4723
        %4852 = vst [vmem:[#allocation3 + $0x9b0] sm:$0xff] %v4724
        %4853 = vst [vmem:[#allocation3 + $0x9b8] sm:$0xff] %v4725
        %4854 = vst [vmem:[#allocation3 + $0x9c0] sm:$0xff] %v4726
        %4855 = vst [vmem:[#allocation3 + $0x9c8] sm:$0xff] %v4727
        %4856 = vst [vmem:[#allocation3 + $0x9d0] sm:$0xff] %v4728
        %4857 = vst [vmem:[#allocation3 + $0x9d8] sm:$0xff] %v4729
        %4858 = vst [vmem:[#allocation3 + $0x9e0] sm:$0xff] %v4730
        %4859 = vst [vmem:[#allocation3 + $0x9e8] sm:$0xff] %v4731
        %4860 = vst [vmem:[#allocation3 + $0x9f0] sm:$0xff] %v4732
        %4861 = vst [vmem:[#allocation3 + $0x9f8] sm:$0xff] %v4733
        %4862 = vst [vmem:[#allocation3 + $0xa00] sm:$0xff] %v4734
        %4863 = vst [vmem:[#allocation3 + $0xa08] sm:$0xff] %v4735
        %4864 = vst [vmem:[#allocation3 + $0xa10] sm:$0xff] %v4736
        %4865 = vst [vmem:[#allocation3 + $0xa18] sm:$0xff] %v4737
        %4866 = vst [vmem:[#allocation3 + $0xa20] sm:$0xff] %v4738
        %4867 = vst [vmem:[#allocation3 + $0xa28] sm:$0xff] %v4739
        %4868 = vst [vmem:[#allocation3 + $0xa30] sm:$0xff] %v4740
        %4869 = vst [vmem:[#allocation3 + $0xa38] sm:$0xff] %v4741
        %4870 = vst [vmem:[#allocation3 + $0xa40] sm:$0xff] %v4742
        %4871 = vst [vmem:[#allocation3 + $0xa48] sm:$0xff] %v4743
        %4872 = vst [vmem:[#allocation3 + $0xa50] sm:$0xff] %v4744
        %4873 = vst [vmem:[#allocation3 + $0xa58] sm:$0xff] %v4745
        %4874 = vst [vmem:[#allocation3 + $0xa60] sm:$0xff] %v4746
        %4875 = vst [vmem:[#allocation3 + $0xa68] sm:$0xff] %v4747
        %4876 = vst [vmem:[#allocation3 + $0xa70] sm:$0xff] %v4748
        %4877 = vst [vmem:[#allocation3 + $0xa78] sm:$0xff] %v4749
        %4878 = vst [vmem:[#allocation3 + $0xa80] sm:$0xff] %v4750
        %4879 = vst [vmem:[#allocation3 + $0xa88] sm:$0xff] %v4751
        %4880 = vst [vmem:[#allocation3 + $0xa90] sm:$0xff] %v4752
        %4881 = vst [vmem:[#allocation3 + $0xa98] sm:$0xff] %v4753
        %4882 = vst [vmem:[#allocation3 + $0xaa0] sm:$0xff] %v4754
        %4883 = vst [vmem:[#allocation3 + $0xaa8] sm:$0xff] %v4755
        %4884 = vst [vmem:[#allocation3 + $0xab0] sm:$0xff] %v4756
        %4885 = vst [vmem:[#allocation3 + $0xab8] sm:$0xff] %v4757
        %4886 = vst [vmem:[#allocation3 + $0xac0] sm:$0xff] %v4758
        %4887 = vst [vmem:[#allocation3 + $0xac8] sm:$0xff] %v4759
        %4888 = vst [vmem:[#allocation3 + $0xad0] sm:$0xff] %v4760
        %4889 = vst [vmem:[#allocation3 + $0xad8] sm:$0xff] %v4761
        %4890 = vst [vmem:[#allocation3 + $0xae0] sm:$0xff] %v4762
        %4891 = vst [vmem:[#allocation3 + $0xae8] sm:$0xff] %v4763
        %4892 = vst [vmem:[#allocation3 + $0xaf0] sm:$0xff] %v4764
        %4893 = vst [vmem:[#allocation3 + $0xaf8] sm:$0xff] %v4765
        %4894 = vst [vmem:[#allocation3 + $0xb00] sm:$0xff] %v4766
        %4895 = vst [vmem:[#allocation3 + $0xb08] sm:$0xff] %v4767
        %4896 = vst [vmem:[#allocation3 + $0xb10] sm:$0xff] %v4768
        %4897 = vst [vmem:[#allocation3 + $0xb18] sm:$0xff] %v4769
        %4898 = vst [vmem:[#allocation3 + $0xb20] sm:$0xff] %v4770
        %4899 = vst [vmem:[#allocation3 + $0xb28] sm:$0xff] %v4771
        %4900 = vst [vmem:[#allocation3 + $0xb30] sm:$0xff] %v4772
        %4901 = vst [vmem:[#allocation3 + $0xb38] sm:$0xff] %v4773
        %4902 = vst [vmem:[#allocation3 + $0xb40] sm:$0xff] %v4774
        %4903 = vst [vmem:[#allocation3 + $0xb48] sm:$0xff] %v4775
        %4904 = vst [vmem:[#allocation3 + $0xb50] sm:$0xff] %v4776
        %4905 = vst [vmem:[#allocation3 + $0xb58] sm:$0xff] %v4777
        %4906 = vst [vmem:[#allocation3 + $0xb60] sm:$0xff] %v4778
        %4907 = vst [vmem:[#allocation3 + $0xb68] sm:$0xff] %v4779
        %4908 = vst [vmem:[#allocation3 + $0xb70] sm:$0xff] %v4780
        %4909 = vst [vmem:[#allocation3 + $0xb78] sm:$0xff] %v4781
        %4910 = vst [vmem:[#allocation3 + $0xb80] sm:$0xff] %v4782
        %4911 = vst [vmem:[#allocation3 + $0xb88] sm:$0xff] %v4783
        %4912 = vst [vmem:[#allocation3 + $0xb90] sm:$0xff] %v4784
        %4913 = vst [vmem:[#allocation3 + $0xb98] sm:$0xff] %v4785
        %4914 = vst [vmem:[#allocation3 + $0xba0] sm:$0xff] %v4786
        %4915 = vst [vmem:[#allocation3 + $0xba8] sm:$0xff] %v4787
        %4916 = vst [vmem:[#allocation3 + $0xbb0] sm:$0xff] %v4788
        %4917 = vst [vmem:[#allocation3 + $0xbb8] sm:$0xff] %v4789
        %4918 = vst [vmem:[#allocation3 + $0xbc0] sm:$0xff] %v4790
        %4919 = vst [vmem:[#allocation3 + $0xbc8] sm:$0xff] %v4791
        %4920 = vst [vmem:[#allocation3 + $0xbd0] sm:$0xff] %v4792
        %4921 = vst [vmem:[#allocation3 + $0xbd8] sm:$0xff] %v4793
        %4922 = vst [vmem:[#allocation3 + $0xbe0] sm:$0xff] %v4794
        %4923 = vst [vmem:[#allocation3 + $0xbe8] sm:$0xff] %v4795
        %4924 = vst [vmem:[#allocation3 + $0xbf0] sm:$0xff] %v4796
        %4925 = vst [vmem:[#allocation3 + $0xbf8] sm:$0xff] %v4797
        %v4926 = vld [vmem:[#allocation2 + $0x4] sm:$0xff]
        %v4927 = vld [vmem:[#allocation2 + $0xc] sm:$0xff]
        %v4928 = vld [vmem:[#allocation2 + $0x14] sm:$0xff]
        %v4929 = vld [vmem:[#allocation2 + $0x1c] sm:$0xff]
        %v4930 = vld [vmem:[#allocation2 + $0x24] sm:$0xff]
        %v4931 = vld [vmem:[#allocation2 + $0x2c] sm:$0xff]
        %v4932 = vld [vmem:[#allocation2 + $0x34] sm:$0xff]
        %v4933 = vld [vmem:[#allocation2 + $0x3c] sm:$0xff]
        %v4934 = vld [vmem:[#allocation2 + $0x44] sm:$0xff]
        %v4935 = vld [vmem:[#allocation2 + $0x4c] sm:$0xff]
        %v4936 = vld [vmem:[#allocation2 + $0x54] sm:$0xff]
        %v4937 = vld [vmem:[#allocation2 + $0x5c] sm:$0xff]
        %v4938 = vld [vmem:[#allocation2 + $0x64] sm:$0xff]
        %v4939 = vld [vmem:[#allocation2 + $0x6c] sm:$0xff]
        %v4940 = vld [vmem:[#allocation2 + $0x74] sm:$0xff]
        %v4941 = vld [vmem:[#allocation2 + $0x7c] sm:$0xff]
        %v4942 = vld [vmem:[#allocation2 + $0x84] sm:$0xff]
        %v4943 = vld [vmem:[#allocation2 + $0x8c] sm:$0xff]
        %v4944 = vld [vmem:[#allocation2 + $0x94] sm:$0xff]
        %v4945 = vld [vmem:[#allocation2 + $0x9c] sm:$0xff]
        %v4946 = vld [vmem:[#allocation2 + $0xa4] sm:$0xff]
        %v4947 = vld [vmem:[#allocation2 + $0xac] sm:$0xff]
        %v4948 = vld [vmem:[#allocation2 + $0xb4] sm:$0xff]
        %v4949 = vld [vmem:[#allocation2 + $0xbc] sm:$0xff]
        %v4950 = vld [vmem:[#allocation2 + $0xc4] sm:$0xff]
        %v4951 = vld [vmem:[#allocation2 + $0xcc] sm:$0xff]
        %v4952 = vld [vmem:[#allocation2 + $0xd4] sm:$0xff]
        %v4953 = vld [vmem:[#allocation2 + $0xdc] sm:$0xff]
        %v4954 = vld [vmem:[#allocation2 + $0xe4] sm:$0xff]
        %v4955 = vld [vmem:[#allocation2 + $0xec] sm:$0xff]
        %v4956 = vld [vmem:[#allocation2 + $0xf4] sm:$0xff]
        %v4957 = vld [vmem:[#allocation2 + $0xfc] sm:$0xff]
        %v4958 = vld [vmem:[#allocation2 + $0x104] sm:$0xff]
        %v4959 = vld [vmem:[#allocation2 + $0x10c] sm:$0xff]
        %v4960 = vld [vmem:[#allocation2 + $0x114] sm:$0xff]
        %v4961 = vld [vmem:[#allocation2 + $0x11c] sm:$0xff]
        %v4962 = vld [vmem:[#allocation2 + $0x124] sm:$0xff]
        %v4963 = vld [vmem:[#allocation2 + $0x12c] sm:$0xff]
        %v4964 = vld [vmem:[#allocation2 + $0x134] sm:$0xff]
        %v4965 = vld [vmem:[#allocation2 + $0x13c] sm:$0xff]
        %v4966 = vld [vmem:[#allocation2 + $0x144] sm:$0xff]
        %v4967 = vld [vmem:[#allocation2 + $0x14c] sm:$0xff]
        %v4968 = vld [vmem:[#allocation2 + $0x154] sm:$0xff]
        %v4969 = vld [vmem:[#allocation2 + $0x15c] sm:$0xff]
        %v4970 = vld [vmem:[#allocation2 + $0x164] sm:$0xff]
        %v4971 = vld [vmem:[#allocation2 + $0x16c] sm:$0xff]
        %v4972 = vld [vmem:[#allocation2 + $0x174] sm:$0xff]
        %v4973 = vld [vmem:[#allocation2 + $0x17c] sm:$0xff]
        %v4974 = vld [vmem:[#allocation2 + $0x184] sm:$0xff]
        %v4975 = vld [vmem:[#allocation2 + $0x18c] sm:$0xff]
        %v4976 = vld [vmem:[#allocation2 + $0x194] sm:$0xff]
        %v4977 = vld [vmem:[#allocation2 + $0x19c] sm:$0xff]
        %v4978 = vld [vmem:[#allocation2 + $0x1a4] sm:$0xff]
        %v4979 = vld [vmem:[#allocation2 + $0x1ac] sm:$0xff]
        %v4980 = vld [vmem:[#allocation2 + $0x1b4] sm:$0xff]
        %v4981 = vld [vmem:[#allocation2 + $0x1bc] sm:$0xff]
        %v4982 = vld [vmem:[#allocation2 + $0x1c4] sm:$0xff]
        %v4983 = vld [vmem:[#allocation2 + $0x1cc] sm:$0xff]
        %v4984 = vld [vmem:[#allocation2 + $0x1d4] sm:$0xff]
        %v4985 = vld [vmem:[#allocation2 + $0x1dc] sm:$0xff]
        %v4986 = vld [vmem:[#allocation2 + $0x1e4] sm:$0xff]
        %v4987 = vld [vmem:[#allocation2 + $0x1ec] sm:$0xff]
        %v4988 = vld [vmem:[#allocation2 + $0x1f4] sm:$0xff]
        %v4989 = vld [vmem:[#allocation2 + $0x1fc] sm:$0xff]
        %v4990 = vld [vmem:[#allocation2 + $0x204] sm:$0xff]
        %v4991 = vld [vmem:[#allocation2 + $0x20c] sm:$0xff]
        %v4992 = vld [vmem:[#allocation2 + $0x214] sm:$0xff]
        %v4993 = vld [vmem:[#allocation2 + $0x21c] sm:$0xff]
        %v4994 = vld [vmem:[#allocation2 + $0x224] sm:$0xff]
        %v4995 = vld [vmem:[#allocation2 + $0x22c] sm:$0xff]
        %v4996 = vld [vmem:[#allocation2 + $0x234] sm:$0xff]
        %v4997 = vld [vmem:[#allocation2 + $0x23c] sm:$0xff]
        %v4998 = vld [vmem:[#allocation2 + $0x244] sm:$0xff]
        %v4999 = vld [vmem:[#allocation2 + $0x24c] sm:$0xff]
        %v5000 = vld [vmem:[#allocation2 + $0x254] sm:$0xff]
        %v5001 = vld [vmem:[#allocation2 + $0x25c] sm:$0xff]
        %v5002 = vld [vmem:[#allocation2 + $0x264] sm:$0xff]
        %v5003 = vld [vmem:[#allocation2 + $0x26c] sm:$0xff]
        %v5004 = vld [vmem:[#allocation2 + $0x274] sm:$0xff]
        %v5005 = vld [vmem:[#allocation2 + $0x27c] sm:$0xff]
        %v5006 = vld [vmem:[#allocation2 + $0x284] sm:$0xff]
        %v5007 = vld [vmem:[#allocation2 + $0x28c] sm:$0xff]
        %v5008 = vld [vmem:[#allocation2 + $0x294] sm:$0xff]
        %v5009 = vld [vmem:[#allocation2 + $0x29c] sm:$0xff]
        %v5010 = vld [vmem:[#allocation2 + $0x2a4] sm:$0xff]
        %v5011 = vld [vmem:[#allocation2 + $0x2ac] sm:$0xff]
        %v5012 = vld [vmem:[#allocation2 + $0x2b4] sm:$0xff]
        %v5013 = vld [vmem:[#allocation2 + $0x2bc] sm:$0xff]
        %v5014 = vld [vmem:[#allocation2 + $0x2c4] sm:$0xff]
        %v5015 = vld [vmem:[#allocation2 + $0x2cc] sm:$0xff]
        %v5016 = vld [vmem:[#allocation2 + $0x2d4] sm:$0xff]
        %v5017 = vld [vmem:[#allocation2 + $0x2dc] sm:$0xff]
        %v5018 = vld [vmem:[#allocation2 + $0x2e4] sm:$0xff]
        %v5019 = vld [vmem:[#allocation2 + $0x2ec] sm:$0xff]
        %v5020 = vld [vmem:[#allocation2 + $0x2f4] sm:$0xff]
        %v5021 = vld [vmem:[#allocation2 + $0x2fc] sm:$0xff]
        %v5022 = vld [vmem:[#allocation2 + $0x304] sm:$0xff]
        %v5023 = vld [vmem:[#allocation2 + $0x30c] sm:$0xff]
        %v5024 = vld [vmem:[#allocation2 + $0x314] sm:$0xff]
        %v5025 = vld [vmem:[#allocation2 + $0x31c] sm:$0xff]
        %v5026 = vld [vmem:[#allocation2 + $0x324] sm:$0xff]
        %v5027 = vld [vmem:[#allocation2 + $0x32c] sm:$0xff]
        %v5028 = vld [vmem:[#allocation2 + $0x334] sm:$0xff]
        %v5029 = vld [vmem:[#allocation2 + $0x33c] sm:$0xff]
        %v5030 = vld [vmem:[#allocation2 + $0x344] sm:$0xff]
        %v5031 = vld [vmem:[#allocation2 + $0x34c] sm:$0xff]
        %v5032 = vld [vmem:[#allocation2 + $0x354] sm:$0xff]
        %v5033 = vld [vmem:[#allocation2 + $0x35c] sm:$0xff]
        %v5034 = vld [vmem:[#allocation2 + $0x364] sm:$0xff]
        %v5035 = vld [vmem:[#allocation2 + $0x36c] sm:$0xff]
        %v5036 = vld [vmem:[#allocation2 + $0x374] sm:$0xff]
        %v5037 = vld [vmem:[#allocation2 + $0x37c] sm:$0xff]
        %v5038 = vld [vmem:[#allocation2 + $0x384] sm:$0xff]
        %v5039 = vld [vmem:[#allocation2 + $0x38c] sm:$0xff]
        %v5040 = vld [vmem:[#allocation2 + $0x394] sm:$0xff]
        %v5041 = vld [vmem:[#allocation2 + $0x39c] sm:$0xff]
        %v5042 = vld [vmem:[#allocation2 + $0x3a4] sm:$0xff]
        %v5043 = vld [vmem:[#allocation2 + $0x3ac] sm:$0xff]
        %v5044 = vld [vmem:[#allocation2 + $0x3b4] sm:$0xff]
        %v5045 = vld [vmem:[#allocation2 + $0x3bc] sm:$0xff]
        %v5046 = vld [vmem:[#allocation2 + $0x3c4] sm:$0xff]
        %v5047 = vld [vmem:[#allocation2 + $0x3cc] sm:$0xff]
        %v5048 = vld [vmem:[#allocation2 + $0x3d4] sm:$0xff]
        %v5049 = vld [vmem:[#allocation2 + $0x3dc] sm:$0xff]
        %v5050 = vld [vmem:[#allocation2 + $0x3e4] sm:$0xff]
        %v5051 = vld [vmem:[#allocation2 + $0x3ec] sm:$0xff]
        %v5052 = vld [vmem:[#allocation2 + $0x3f4] sm:$0xff]
        %v5053 = vld [vmem:[#allocation2 + $0x3fc] sm:$0xff]
        %5054 = vst [vmem:[#allocation3 + $0xc00] sm:$0xff] %v4926
        %5055 = vst [vmem:[#allocation3 + $0xc08] sm:$0xff] %v4927
        %5056 = vst [vmem:[#allocation3 + $0xc10] sm:$0xff] %v4928
        %5057 = vst [vmem:[#allocation3 + $0xc18] sm:$0xff] %v4929
        %5058 = vst [vmem:[#allocation3 + $0xc20] sm:$0xff] %v4930
        %5059 = vst [vmem:[#allocation3 + $0xc28] sm:$0xff] %v4931
        %5060 = vst [vmem:[#allocation3 + $0xc30] sm:$0xff] %v4932
        %5061 = vst [vmem:[#allocation3 + $0xc38] sm:$0xff] %v4933
        %5062 = vst [vmem:[#allocation3 + $0xc40] sm:$0xff] %v4934
        %5063 = vst [vmem:[#allocation3 + $0xc48] sm:$0xff] %v4935
        %5064 = vst [vmem:[#allocation3 + $0xc50] sm:$0xff] %v4936
        %5065 = vst [vmem:[#allocation3 + $0xc58] sm:$0xff] %v4937
        %5066 = vst [vmem:[#allocation3 + $0xc60] sm:$0xff] %v4938
        %5067 = vst [vmem:[#allocation3 + $0xc68] sm:$0xff] %v4939
        %5068 = vst [vmem:[#allocation3 + $0xc70] sm:$0xff] %v4940
        %5069 = vst [vmem:[#allocation3 + $0xc78] sm:$0xff] %v4941
        %5070 = vst [vmem:[#allocation3 + $0xc80] sm:$0xff] %v4942
        %5071 = vst [vmem:[#allocation3 + $0xc88] sm:$0xff] %v4943
        %5072 = vst [vmem:[#allocation3 + $0xc90] sm:$0xff] %v4944
        %5073 = vst [vmem:[#allocation3 + $0xc98] sm:$0xff] %v4945
        %5074 = vst [vmem:[#allocation3 + $0xca0] sm:$0xff] %v4946
        %5075 = vst [vmem:[#allocation3 + $0xca8] sm:$0xff] %v4947
        %5076 = vst [vmem:[#allocation3 + $0xcb0] sm:$0xff] %v4948
        %5077 = vst [vmem:[#allocation3 + $0xcb8] sm:$0xff] %v4949
        %5078 = vst [vmem:[#allocation3 + $0xcc0] sm:$0xff] %v4950
        %5079 = vst [vmem:[#allocation3 + $0xcc8] sm:$0xff] %v4951
        %5080 = vst [vmem:[#allocation3 + $0xcd0] sm:$0xff] %v4952
        %5081 = vst [vmem:[#allocation3 + $0xcd8] sm:$0xff] %v4953
        %5082 = vst [vmem:[#allocation3 + $0xce0] sm:$0xff] %v4954
        %5083 = vst [vmem:[#allocation3 + $0xce8] sm:$0xff] %v4955
        %5084 = vst [vmem:[#allocation3 + $0xcf0] sm:$0xff] %v4956
        %5085 = vst [vmem:[#allocation3 + $0xcf8] sm:$0xff] %v4957
        %5086 = vst [vmem:[#allocation3 + $0xd00] sm:$0xff] %v4958
        %5087 = vst [vmem:[#allocation3 + $0xd08] sm:$0xff] %v4959
        %5088 = vst [vmem:[#allocation3 + $0xd10] sm:$0xff] %v4960
        %5089 = vst [vmem:[#allocation3 + $0xd18] sm:$0xff] %v4961
        %5090 = vst [vmem:[#allocation3 + $0xd20] sm:$0xff] %v4962
        %5091 = vst [vmem:[#allocation3 + $0xd28] sm:$0xff] %v4963
        %5092 = vst [vmem:[#allocation3 + $0xd30] sm:$0xff] %v4964
        %5093 = vst [vmem:[#allocation3 + $0xd38] sm:$0xff] %v4965
        %5094 = vst [vmem:[#allocation3 + $0xd40] sm:$0xff] %v4966
        %5095 = vst [vmem:[#allocation3 + $0xd48] sm:$0xff] %v4967
        %5096 = vst [vmem:[#allocation3 + $0xd50] sm:$0xff] %v4968
        %5097 = vst [vmem:[#allocation3 + $0xd58] sm:$0xff] %v4969
        %5098 = vst [vmem:[#allocation3 + $0xd60] sm:$0xff] %v4970
        %5099 = vst [vmem:[#allocation3 + $0xd68] sm:$0xff] %v4971
        %5100 = vst [vmem:[#allocation3 + $0xd70] sm:$0xff] %v4972
        %5101 = vst [vmem:[#allocation3 + $0xd78] sm:$0xff] %v4973
        %5102 = vst [vmem:[#allocation3 + $0xd80] sm:$0xff] %v4974
        %5103 = vst [vmem:[#allocation3 + $0xd88] sm:$0xff] %v4975
        %5104 = vst [vmem:[#allocation3 + $0xd90] sm:$0xff] %v4976
        %5105 = vst [vmem:[#allocation3 + $0xd98] sm:$0xff] %v4977
        %5106 = vst [vmem:[#allocation3 + $0xda0] sm:$0xff] %v4978
        %5107 = vst [vmem:[#allocation3 + $0xda8] sm:$0xff] %v4979
        %5108 = vst [vmem:[#allocation3 + $0xdb0] sm:$0xff] %v4980
        %5109 = vst [vmem:[#allocation3 + $0xdb8] sm:$0xff] %v4981
        %5110 = vst [vmem:[#allocation3 + $0xdc0] sm:$0xff] %v4982
        %5111 = vst [vmem:[#allocation3 + $0xdc8] sm:$0xff] %v4983
        %5112 = vst [vmem:[#allocation3 + $0xdd0] sm:$0xff] %v4984
        %5113 = vst [vmem:[#allocation3 + $0xdd8] sm:$0xff] %v4985
        %5114 = vst [vmem:[#allocation3 + $0xde0] sm:$0xff] %v4986
        %5115 = vst [vmem:[#allocation3 + $0xde8] sm:$0xff] %v4987
        %5116 = vst [vmem:[#allocation3 + $0xdf0] sm:$0xff] %v4988
        %5117 = vst [vmem:[#allocation3 + $0xdf8] sm:$0xff] %v4989
        %5118 = vst [vmem:[#allocation3 + $0xe00] sm:$0xff] %v4990
        %5119 = vst [vmem:[#allocation3 + $0xe08] sm:$0xff] %v4991
        %5120 = vst [vmem:[#allocation3 + $0xe10] sm:$0xff] %v4992
        %5121 = vst [vmem:[#allocation3 + $0xe18] sm:$0xff] %v4993
        %5122 = vst [vmem:[#allocation3 + $0xe20] sm:$0xff] %v4994
        %5123 = vst [vmem:[#allocation3 + $0xe28] sm:$0xff] %v4995
        %5124 = vst [vmem:[#allocation3 + $0xe30] sm:$0xff] %v4996
        %5125 = vst [vmem:[#allocation3 + $0xe38] sm:$0xff] %v4997
        %5126 = vst [vmem:[#allocation3 + $0xe40] sm:$0xff] %v4998
        %5127 = vst [vmem:[#allocation3 + $0xe48] sm:$0xff] %v4999
        %5128 = vst [vmem:[#allocation3 + $0xe50] sm:$0xff] %v5000
        %5129 = vst [vmem:[#allocation3 + $0xe58] sm:$0xff] %v5001
        %5130 = vst [vmem:[#allocation3 + $0xe60] sm:$0xff] %v5002
        %5131 = vst [vmem:[#allocation3 + $0xe68] sm:$0xff] %v5003
        %5132 = vst [vmem:[#allocation3 + $0xe70] sm:$0xff] %v5004
        %5133 = vst [vmem:[#allocation3 + $0xe78] sm:$0xff] %v5005
        %5134 = vst [vmem:[#allocation3 + $0xe80] sm:$0xff] %v5006
        %5135 = vst [vmem:[#allocation3 + $0xe88] sm:$0xff] %v5007
        %5136 = vst [vmem:[#allocation3 + $0xe90] sm:$0xff] %v5008
        %5137 = vst [vmem:[#allocation3 + $0xe98] sm:$0xff] %v5009
        %5138 = vst [vmem:[#allocation3 + $0xea0] sm:$0xff] %v5010
        %5139 = vst [vmem:[#allocation3 + $0xea8] sm:$0xff] %v5011
        %5140 = vst [vmem:[#allocation3 + $0xeb0] sm:$0xff] %v5012
        %5141 = vst [vmem:[#allocation3 + $0xeb8] sm:$0xff] %v5013
        %5142 = vst [vmem:[#allocation3 + $0xec0] sm:$0xff] %v5014
        %5143 = vst [vmem:[#allocation3 + $0xec8] sm:$0xff] %v5015
        %5144 = vst [vmem:[#allocation3 + $0xed0] sm:$0xff] %v5016
        %5145 = vst [vmem:[#allocation3 + $0xed8] sm:$0xff] %v5017
        %5146 = vst [vmem:[#allocation3 + $0xee0] sm:$0xff] %v5018
        %5147 = vst [vmem:[#allocation3 + $0xee8] sm:$0xff] %v5019
        %5148 = vst [vmem:[#allocation3 + $0xef0] sm:$0xff] %v5020
        %5149 = vst [vmem:[#allocation3 + $0xef8] sm:$0xff] %v5021
        %5150 = vst [vmem:[#allocation3 + $0xf00] sm:$0xff] %v5022
        %5151 = vst [vmem:[#allocation3 + $0xf08] sm:$0xff] %v5023
        %5152 = vst [vmem:[#allocation3 + $0xf10] sm:$0xff] %v5024
        %5153 = vst [vmem:[#allocation3 + $0xf18] sm:$0xff] %v5025
        %5154 = vst [vmem:[#allocation3 + $0xf20] sm:$0xff] %v5026
        %5155 = vst [vmem:[#allocation3 + $0xf28] sm:$0xff] %v5027
        %5156 = vst [vmem:[#allocation3 + $0xf30] sm:$0xff] %v5028
        %5157 = vst [vmem:[#allocation3 + $0xf38] sm:$0xff] %v5029
        %5158 = vst [vmem:[#allocation3 + $0xf40] sm:$0xff] %v5030
        %5159 = vst [vmem:[#allocation3 + $0xf48] sm:$0xff] %v5031
        %5160 = vst [vmem:[#allocation3 + $0xf50] sm:$0xff] %v5032
        %5161 = vst [vmem:[#allocation3 + $0xf58] sm:$0xff] %v5033
        %5162 = vst [vmem:[#allocation3 + $0xf60] sm:$0xff] %v5034
        %5163 = vst [vmem:[#allocation3 + $0xf68] sm:$0xff] %v5035
        %5164 = vst [vmem:[#allocation3 + $0xf70] sm:$0xff] %v5036
        %5165 = vst [vmem:[#allocation3 + $0xf78] sm:$0xff] %v5037
        %5166 = vst [vmem:[#allocation3 + $0xf80] sm:$0xff] %v5038
        %5167 = vst [vmem:[#allocation3 + $0xf88] sm:$0xff] %v5039
        %5168 = vst [vmem:[#allocation3 + $0xf90] sm:$0xff] %v5040
        %5169 = vst [vmem:[#allocation3 + $0xf98] sm:$0xff] %v5041
        %5170 = vst [vmem:[#allocation3 + $0xfa0] sm:$0xff] %v5042
        %5171 = vst [vmem:[#allocation3 + $0xfa8] sm:$0xff] %v5043
        %5172 = vst [vmem:[#allocation3 + $0xfb0] sm:$0xff] %v5044
        %5173 = vst [vmem:[#allocation3 + $0xfb8] sm:$0xff] %v5045
        %5174 = vst [vmem:[#allocation3 + $0xfc0] sm:$0xff] %v5046
        %5175 = vst [vmem:[#allocation3 + $0xfc8] sm:$0xff] %v5047
        %5176 = vst [vmem:[#allocation3 + $0xfd0] sm:$0xff] %v5048
        %5177 = vst [vmem:[#allocation3 + $0xfd8] sm:$0xff] %v5049
        %5178 = vst [vmem:[#allocation3 + $0xfe0] sm:$0xff] %v5050
        %5179 = vst [vmem:[#allocation3 + $0xfe8] sm:$0xff] %v5051
        %5180 = vst [vmem:[#allocation3 + $0xff0] sm:$0xff] %v5052
        %5181 = vst [vmem:[#allocation3 + $0xff8] sm:$0xff] %v5053
        %v5182 = vld [vmem:[%s4] sm:$0xff]
        %v5183 = vld [vmem:[%s4 + $0x8] sm:$0xff]
        %v5184 = vld [vmem:[%s4 + $0x10] sm:$0xff]
        %v5185 = vld [vmem:[%s4 + $0x18] sm:$0xff]
        %v5186 = vlaneseq
        %v5187 = vshrl.u32 %v5186, 7
        %v5188 = vsub.s32 0, %v5187
        %v5189 = vrot.slane %v5182, %v5188
        %5190 = vst [vmem:[#allocation4] sm:$0xff] %v5189
        %5191 = vst [vmem:[#allocation4 + $0x8] sm:$0xff] %v5189
        %5192 = vst [vmem:[#allocation4 + $0x10] sm:$0xff] %v5189
        %5193 = vst [vmem:[#allocation4 + $0x18] sm:$0xff] %v5189
        %5194 = vst [vmem:[#allocation4 + $0x20] sm:$0xff] %v5189
        %5195 = vst [vmem:[#allocation4 + $0x28] sm:$0xff] %v5189
        %5196 = vst [vmem:[#allocation4 + $0x30] sm:$0xff] %v5189
        %5197 = vst [vmem:[#allocation4 + $0x38] sm:$0xff] %v5189
        %5198 = vst [vmem:[#allocation4 + $0x40] sm:$0xff] %v5189
        %5199 = vst [vmem:[#allocation4 + $0x48] sm:$0xff] %v5189
        %5200 = vst [vmem:[#allocation4 + $0x50] sm:$0xff] %v5189
        %5201 = vst [vmem:[#allocation4 + $0x58] sm:$0xff] %v5189
        %5202 = vst [vmem:[#allocation4 + $0x60] sm:$0xff] %v5189
        %5203 = vst [vmem:[#allocation4 + $0x68] sm:$0xff] %v5189
        %5204 = vst [vmem:[#allocation4 + $0x70] sm:$0xff] %v5189
        %5205 = vst [vmem:[#allocation4 + $0x78] sm:$0xff] %v5189
        %v5206 = vlaneseq
        %v5207 = vshrl.u32 %v5206, 7
        %v5208 = vsub.s32 1, %v5207
        %v5209 = vrot.slane %v5182, %v5208
        %5210 = vst [vmem:[#allocation4 + $0x80] sm:$0xff] %v5209
        %5211 = vst [vmem:[#allocation4 + $0x88] sm:$0xff] %v5209
        %5212 = vst [vmem:[#allocation4 + $0x90] sm:$0xff] %v5209
        %5213 = vst [vmem:[#allocation4 + $0x98] sm:$0xff] %v5209
        %5214 = vst [vmem:[#allocation4 + $0xa0] sm:$0xff] %v5209
        %5215 = vst [vmem:[#allocation4 + $0xa8] sm:$0xff] %v5209
        %5216 = vst [vmem:[#allocation4 + $0xb0] sm:$0xff] %v5209
        %5217 = vst [vmem:[#allocation4 + $0xb8] sm:$0xff] %v5209
        %5218 = vst [vmem:[#allocation4 + $0xc0] sm:$0xff] %v5209
        %5219 = vst [vmem:[#allocation4 + $0xc8] sm:$0xff] %v5209
        %5220 = vst [vmem:[#allocation4 + $0xd0] sm:$0xff] %v5209
        %5221 = vst [vmem:[#allocation4 + $0xd8] sm:$0xff] %v5209
        %5222 = vst [vmem:[#allocation4 + $0xe0] sm:$0xff] %v5209
        %5223 = vst [vmem:[#allocation4 + $0xe8] sm:$0xff] %v5209
        %5224 = vst [vmem:[#allocation4 + $0xf0] sm:$0xff] %v5209
        %5225 = vst [vmem:[#allocation4 + $0xf8] sm:$0xff] %v5209
        %v5226 = vlaneseq
        %v5227 = vshrl.u32 %v5226, 7
        %v5228 = vsub.s32 2, %v5227
        %v5229 = vrot.slane %v5182, %v5228
        %5230 = vst [vmem:[#allocation4 + $0x100] sm:$0xff] %v5229
        %5231 = vst [vmem:[#allocation4 + $0x108] sm:$0xff] %v5229
        %5232 = vst [vmem:[#allocation4 + $0x110] sm:$0xff] %v5229
        %5233 = vst [vmem:[#allocation4 + $0x118] sm:$0xff] %v5229
        %5234 = vst [vmem:[#allocation4 + $0x120] sm:$0xff] %v5229
        %5235 = vst [vmem:[#allocation4 + $0x128] sm:$0xff] %v5229
        %5236 = vst [vmem:[#allocation4 + $0x130] sm:$0xff] %v5229
        %5237 = vst [vmem:[#allocation4 + $0x138] sm:$0xff] %v5229
        %5238 = vst [vmem:[#allocation4 + $0x140] sm:$0xff] %v5229
        %5239 = vst [vmem:[#allocation4 + $0x148] sm:$0xff] %v5229
        %5240 = vst [vmem:[#allocation4 + $0x150] sm:$0xff] %v5229
        %5241 = vst [vmem:[#allocation4 + $0x158] sm:$0xff] %v5229
        %5242 = vst [vmem:[#allocation4 + $0x160] sm:$0xff] %v5229
        %5243 = vst [vmem:[#allocation4 + $0x168] sm:$0xff] %v5229
        %5244 = vst [vmem:[#allocation4 + $0x170] sm:$0xff] %v5229
        %5245 = vst [vmem:[#allocation4 + $0x178] sm:$0xff] %v5229
        %v5246 = vlaneseq
        %v5247 = vshrl.u32 %v5246, 7
        %v5248 = vsub.s32 3, %v5247
        %v5249 = vrot.slane %v5182, %v5248
        %5250 = vst [vmem:[#allocation4 + $0x180] sm:$0xff] %v5249
        %5251 = vst [vmem:[#allocation4 + $0x188] sm:$0xff] %v5249
        %5252 = vst [vmem:[#allocation4 + $0x190] sm:$0xff] %v5249
        %5253 = vst [vmem:[#allocation4 + $0x198] sm:$0xff] %v5249
        %5254 = vst [vmem:[#allocation4 + $0x1a0] sm:$0xff] %v5249
        %5255 = vst [vmem:[#allocation4 + $0x1a8] sm:$0xff] %v5249
        %5256 = vst [vmem:[#allocation4 + $0x1b0] sm:$0xff] %v5249
        %5257 = vst [vmem:[#allocation4 + $0x1b8] sm:$0xff] %v5249
        %5258 = vst [vmem:[#allocation4 + $0x1c0] sm:$0xff] %v5249
        %5259 = vst [vmem:[#allocation4 + $0x1c8] sm:$0xff] %v5249
        %5260 = vst [vmem:[#allocation4 + $0x1d0] sm:$0xff] %v5249
        %5261 = vst [vmem:[#allocation4 + $0x1d8] sm:$0xff] %v5249
        %5262 = vst [vmem:[#allocation4 + $0x1e0] sm:$0xff] %v5249
        %5263 = vst [vmem:[#allocation4 + $0x1e8] sm:$0xff] %v5249
        %5264 = vst [vmem:[#allocation4 + $0x1f0] sm:$0xff] %v5249
        %5265 = vst [vmem:[#allocation4 + $0x1f8] sm:$0xff] %v5249
        %v5266 = vlaneseq
        %v5267 = vshrl.u32 %v5266, 7
        %v5268 = vsub.s32 4, %v5267
        %v5269 = vrot.slane %v5182, %v5268
        %5270 = vst [vmem:[#allocation4 + $0x200] sm:$0xff] %v5269
        %5271 = vst [vmem:[#allocation4 + $0x208] sm:$0xff] %v5269
        %5272 = vst [vmem:[#allocation4 + $0x210] sm:$0xff] %v5269
        %5273 = vst [vmem:[#allocation4 + $0x218] sm:$0xff] %v5269
        %5274 = vst [vmem:[#allocation4 + $0x220] sm:$0xff] %v5269
        %5275 = vst [vmem:[#allocation4 + $0x228] sm:$0xff] %v5269
        %5276 = vst [vmem:[#allocation4 + $0x230] sm:$0xff] %v5269
        %5277 = vst [vmem:[#allocation4 + $0x238] sm:$0xff] %v5269
        %5278 = vst [vmem:[#allocation4 + $0x240] sm:$0xff] %v5269
        %5279 = vst [vmem:[#allocation4 + $0x248] sm:$0xff] %v5269
        %5280 = vst [vmem:[#allocation4 + $0x250] sm:$0xff] %v5269
        %5281 = vst [vmem:[#allocation4 + $0x258] sm:$0xff] %v5269
        %5282 = vst [vmem:[#allocation4 + $0x260] sm:$0xff] %v5269
        %5283 = vst [vmem:[#allocation4 + $0x268] sm:$0xff] %v5269
        %5284 = vst [vmem:[#allocation4 + $0x270] sm:$0xff] %v5269
        %5285 = vst [vmem:[#allocation4 + $0x278] sm:$0xff] %v5269
        %v5286 = vlaneseq
        %v5287 = vshrl.u32 %v5286, 7
        %v5288 = vsub.s32 5, %v5287
        %v5289 = vrot.slane %v5182, %v5288
        %5290 = vst [vmem:[#allocation4 + $0x280] sm:$0xff] %v5289
        %5291 = vst [vmem:[#allocation4 + $0x288] sm:$0xff] %v5289
        %5292 = vst [vmem:[#allocation4 + $0x290] sm:$0xff] %v5289
        %5293 = vst [vmem:[#allocation4 + $0x298] sm:$0xff] %v5289
        %5294 = vst [vmem:[#allocation4 + $0x2a0] sm:$0xff] %v5289
        %5295 = vst [vmem:[#allocation4 + $0x2a8] sm:$0xff] %v5289
        %5296 = vst [vmem:[#allocation4 + $0x2b0] sm:$0xff] %v5289
        %5297 = vst [vmem:[#allocation4 + $0x2b8] sm:$0xff] %v5289
        %5298 = vst [vmem:[#allocation4 + $0x2c0] sm:$0xff] %v5289
        %5299 = vst [vmem:[#allocation4 + $0x2c8] sm:$0xff] %v5289
        %5300 = vst [vmem:[#allocation4 + $0x2d0] sm:$0xff] %v5289
        %5301 = vst [vmem:[#allocation4 + $0x2d8] sm:$0xff] %v5289
        %5302 = vst [vmem:[#allocation4 + $0x2e0] sm:$0xff] %v5289
        %5303 = vst [vmem:[#allocation4 + $0x2e8] sm:$0xff] %v5289
        %5304 = vst [vmem:[#allocation4 + $0x2f0] sm:$0xff] %v5289
        %5305 = vst [vmem:[#allocation4 + $0x2f8] sm:$0xff] %v5289
        %v5306 = vlaneseq
        %v5307 = vshrl.u32 %v5306, 7
        %v5308 = vsub.s32 6, %v5307
        %v5309 = vrot.slane %v5182, %v5308
        %5310 = vst [vmem:[#allocation4 + $0x300] sm:$0xff] %v5309
        %5311 = vst [vmem:[#allocation4 + $0x308] sm:$0xff] %v5309
        %5312 = vst [vmem:[#allocation4 + $0x310] sm:$0xff] %v5309
        %5313 = vst [vmem:[#allocation4 + $0x318] sm:$0xff] %v5309
        %5314 = vst [vmem:[#allocation4 + $0x320] sm:$0xff] %v5309
        %5315 = vst [vmem:[#allocation4 + $0x328] sm:$0xff] %v5309
        %5316 = vst [vmem:[#allocation4 + $0x330] sm:$0xff] %v5309
        %5317 = vst [vmem:[#allocation4 + $0x338] sm:$0xff] %v5309
        %5318 = vst [vmem:[#allocation4 + $0x340] sm:$0xff] %v5309
        %5319 = vst [vmem:[#allocation4 + $0x348] sm:$0xff] %v5309
        %5320 = vst [vmem:[#allocation4 + $0x350] sm:$0xff] %v5309
        %5321 = vst [vmem:[#allocation4 + $0x358] sm:$0xff] %v5309
        %5322 = vst [vmem:[#allocation4 + $0x360] sm:$0xff] %v5309
        %5323 = vst [vmem:[#allocation4 + $0x368] sm:$0xff] %v5309
        %5324 = vst [vmem:[#allocation4 + $0x370] sm:$0xff] %v5309
        %5325 = vst [vmem:[#allocation4 + $0x378] sm:$0xff] %v5309
        %v5326 = vlaneseq
        %v5327 = vshrl.u32 %v5326, 7
        %v5328 = vsub.s32 7, %v5327
        %v5329 = vrot.slane %v5182, %v5328
        %5330 = vst [vmem:[#allocation4 + $0x380] sm:$0xff] %v5329
        %5331 = vst [vmem:[#allocation4 + $0x388] sm:$0xff] %v5329
        %5332 = vst [vmem:[#allocation4 + $0x390] sm:$0xff] %v5329
        %5333 = vst [vmem:[#allocation4 + $0x398] sm:$0xff] %v5329
        %5334 = vst [vmem:[#allocation4 + $0x3a0] sm:$0xff] %v5329
        %5335 = vst [vmem:[#allocation4 + $0x3a8] sm:$0xff] %v5329
        %5336 = vst [vmem:[#allocation4 + $0x3b0] sm:$0xff] %v5329
        %5337 = vst [vmem:[#allocation4 + $0x3b8] sm:$0xff] %v5329
        %5338 = vst [vmem:[#allocation4 + $0x3c0] sm:$0xff] %v5329
        %5339 = vst [vmem:[#allocation4 + $0x3c8] sm:$0xff] %v5329
        %5340 = vst [vmem:[#allocation4 + $0x3d0] sm:$0xff] %v5329
        %5341 = vst [vmem:[#allocation4 + $0x3d8] sm:$0xff] %v5329
        %5342 = vst [vmem:[#allocation4 + $0x3e0] sm:$0xff] %v5329
        %5343 = vst [vmem:[#allocation4 + $0x3e8] sm:$0xff] %v5329
        %5344 = vst [vmem:[#allocation4 + $0x3f0] sm:$0xff] %v5329
        %5345 = vst [vmem:[#allocation4 + $0x3f8] sm:$0xff] %v5329
        %v5346 = vlaneseq
        %v5347 = vshrl.u32 %v5346, 7
        %v5348 = vsub.s32 0, %v5347
        %v5349 = vrot.slane %v5183, %v5348
        %5350 = vst [vmem:[#allocation4 + $0x400] sm:$0xff] %v5349
        %5351 = vst [vmem:[#allocation4 + $0x408] sm:$0xff] %v5349
        %5352 = vst [vmem:[#allocation4 + $0x410] sm:$0xff] %v5349
        %5353 = vst [vmem:[#allocation4 + $0x418] sm:$0xff] %v5349
        %5354 = vst [vmem:[#allocation4 + $0x420] sm:$0xff] %v5349
        %5355 = vst [vmem:[#allocation4 + $0x428] sm:$0xff] %v5349
        %5356 = vst [vmem:[#allocation4 + $0x430] sm:$0xff] %v5349
        %5357 = vst [vmem:[#allocation4 + $0x438] sm:$0xff] %v5349
        %5358 = vst [vmem:[#allocation4 + $0x440] sm:$0xff] %v5349
        %5359 = vst [vmem:[#allocation4 + $0x448] sm:$0xff] %v5349
        %5360 = vst [vmem:[#allocation4 + $0x450] sm:$0xff] %v5349
        %5361 = vst [vmem:[#allocation4 + $0x458] sm:$0xff] %v5349
        %5362 = vst [vmem:[#allocation4 + $0x460] sm:$0xff] %v5349
        %5363 = vst [vmem:[#allocation4 + $0x468] sm:$0xff] %v5349
        %5364 = vst [vmem:[#allocation4 + $0x470] sm:$0xff] %v5349
        %5365 = vst [vmem:[#allocation4 + $0x478] sm:$0xff] %v5349
        %v5366 = vlaneseq
        %v5367 = vshrl.u32 %v5366, 7
        %v5368 = vsub.s32 1, %v5367
        %v5369 = vrot.slane %v5183, %v5368
        %5370 = vst [vmem:[#allocation4 + $0x480] sm:$0xff] %v5369
        %5371 = vst [vmem:[#allocation4 + $0x488] sm:$0xff] %v5369
        %5372 = vst [vmem:[#allocation4 + $0x490] sm:$0xff] %v5369
        %5373 = vst [vmem:[#allocation4 + $0x498] sm:$0xff] %v5369
        %5374 = vst [vmem:[#allocation4 + $0x4a0] sm:$0xff] %v5369
        %5375 = vst [vmem:[#allocation4 + $0x4a8] sm:$0xff] %v5369
        %5376 = vst [vmem:[#allocation4 + $0x4b0] sm:$0xff] %v5369
        %5377 = vst [vmem:[#allocation4 + $0x4b8] sm:$0xff] %v5369
        %5378 = vst [vmem:[#allocation4 + $0x4c0] sm:$0xff] %v5369
        %5379 = vst [vmem:[#allocation4 + $0x4c8] sm:$0xff] %v5369
        %5380 = vst [vmem:[#allocation4 + $0x4d0] sm:$0xff] %v5369
        %5381 = vst [vmem:[#allocation4 + $0x4d8] sm:$0xff] %v5369
        %5382 = vst [vmem:[#allocation4 + $0x4e0] sm:$0xff] %v5369
        %5383 = vst [vmem:[#allocation4 + $0x4e8] sm:$0xff] %v5369
        %5384 = vst [vmem:[#allocation4 + $0x4f0] sm:$0xff] %v5369
        %5385 = vst [vmem:[#allocation4 + $0x4f8] sm:$0xff] %v5369
        %v5386 = vlaneseq
        %v5387 = vshrl.u32 %v5386, 7
        %v5388 = vsub.s32 2, %v5387
        %v5389 = vrot.slane %v5183, %v5388
        %5390 = vst [vmem:[#allocation4 + $0x500] sm:$0xff] %v5389
        %5391 = vst [vmem:[#allocation4 + $0x508] sm:$0xff] %v5389
        %5392 = vst [vmem:[#allocation4 + $0x510] sm:$0xff] %v5389
        %5393 = vst [vmem:[#allocation4 + $0x518] sm:$0xff] %v5389
        %5394 = vst [vmem:[#allocation4 + $0x520] sm:$0xff] %v5389
        %5395 = vst [vmem:[#allocation4 + $0x528] sm:$0xff] %v5389
        %5396 = vst [vmem:[#allocation4 + $0x530] sm:$0xff] %v5389
        %5397 = vst [vmem:[#allocation4 + $0x538] sm:$0xff] %v5389
        %5398 = vst [vmem:[#allocation4 + $0x540] sm:$0xff] %v5389
        %5399 = vst [vmem:[#allocation4 + $0x548] sm:$0xff] %v5389
        %5400 = vst [vmem:[#allocation4 + $0x550] sm:$0xff] %v5389
        %5401 = vst [vmem:[#allocation4 + $0x558] sm:$0xff] %v5389
        %5402 = vst [vmem:[#allocation4 + $0x560] sm:$0xff] %v5389
        %5403 = vst [vmem:[#allocation4 + $0x568] sm:$0xff] %v5389
        %5404 = vst [vmem:[#allocation4 + $0x570] sm:$0xff] %v5389
        %5405 = vst [vmem:[#allocation4 + $0x578] sm:$0xff] %v5389
        %v5406 = vlaneseq
        %v5407 = vshrl.u32 %v5406, 7
        %v5408 = vsub.s32 3, %v5407
        %v5409 = vrot.slane %v5183, %v5408
        %5410 = vst [vmem:[#allocation4 + $0x580] sm:$0xff] %v5409
        %5411 = vst [vmem:[#allocation4 + $0x588] sm:$0xff] %v5409
        %5412 = vst [vmem:[#allocation4 + $0x590] sm:$0xff] %v5409
        %5413 = vst [vmem:[#allocation4 + $0x598] sm:$0xff] %v5409
        %5414 = vst [vmem:[#allocation4 + $0x5a0] sm:$0xff] %v5409
        %5415 = vst [vmem:[#allocation4 + $0x5a8] sm:$0xff] %v5409
        %5416 = vst [vmem:[#allocation4 + $0x5b0] sm:$0xff] %v5409
        %5417 = vst [vmem:[#allocation4 + $0x5b8] sm:$0xff] %v5409
        %5418 = vst [vmem:[#allocation4 + $0x5c0] sm:$0xff] %v5409
        %5419 = vst [vmem:[#allocation4 + $0x5c8] sm:$0xff] %v5409
        %5420 = vst [vmem:[#allocation4 + $0x5d0] sm:$0xff] %v5409
        %5421 = vst [vmem:[#allocation4 + $0x5d8] sm:$0xff] %v5409
        %5422 = vst [vmem:[#allocation4 + $0x5e0] sm:$0xff] %v5409
        %5423 = vst [vmem:[#allocation4 + $0x5e8] sm:$0xff] %v5409
        %5424 = vst [vmem:[#allocation4 + $0x5f0] sm:$0xff] %v5409
        %5425 = vst [vmem:[#allocation4 + $0x5f8] sm:$0xff] %v5409
        %v5426 = vlaneseq
        %v5427 = vshrl.u32 %v5426, 7
        %v5428 = vsub.s32 4, %v5427
        %v5429 = vrot.slane %v5183, %v5428
        %5430 = vst [vmem:[#allocation4 + $0x600] sm:$0xff] %v5429
        %5431 = vst [vmem:[#allocation4 + $0x608] sm:$0xff] %v5429
        %5432 = vst [vmem:[#allocation4 + $0x610] sm:$0xff] %v5429
        %5433 = vst [vmem:[#allocation4 + $0x618] sm:$0xff] %v5429
        %5434 = vst [vmem:[#allocation4 + $0x620] sm:$0xff] %v5429
        %5435 = vst [vmem:[#allocation4 + $0x628] sm:$0xff] %v5429
        %5436 = vst [vmem:[#allocation4 + $0x630] sm:$0xff] %v5429
        %5437 = vst [vmem:[#allocation4 + $0x638] sm:$0xff] %v5429
        %5438 = vst [vmem:[#allocation4 + $0x640] sm:$0xff] %v5429
        %5439 = vst [vmem:[#allocation4 + $0x648] sm:$0xff] %v5429
        %5440 = vst [vmem:[#allocation4 + $0x650] sm:$0xff] %v5429
        %5441 = vst [vmem:[#allocation4 + $0x658] sm:$0xff] %v5429
        %5442 = vst [vmem:[#allocation4 + $0x660] sm:$0xff] %v5429
        %5443 = vst [vmem:[#allocation4 + $0x668] sm:$0xff] %v5429
        %5444 = vst [vmem:[#allocation4 + $0x670] sm:$0xff] %v5429
        %5445 = vst [vmem:[#allocation4 + $0x678] sm:$0xff] %v5429
        %v5446 = vlaneseq
        %v5447 = vshrl.u32 %v5446, 7
        %v5448 = vsub.s32 5, %v5447
        %v5449 = vrot.slane %v5183, %v5448
        %5450 = vst [vmem:[#allocation4 + $0x680] sm:$0xff] %v5449
        %5451 = vst [vmem:[#allocation4 + $0x688] sm:$0xff] %v5449
        %5452 = vst [vmem:[#allocation4 + $0x690] sm:$0xff] %v5449
        %5453 = vst [vmem:[#allocation4 + $0x698] sm:$0xff] %v5449
        %5454 = vst [vmem:[#allocation4 + $0x6a0] sm:$0xff] %v5449
        %5455 = vst [vmem:[#allocation4 + $0x6a8] sm:$0xff] %v5449
        %5456 = vst [vmem:[#allocation4 + $0x6b0] sm:$0xff] %v5449
        %5457 = vst [vmem:[#allocation4 + $0x6b8] sm:$0xff] %v5449
        %5458 = vst [vmem:[#allocation4 + $0x6c0] sm:$0xff] %v5449
        %5459 = vst [vmem:[#allocation4 + $0x6c8] sm:$0xff] %v5449
        %5460 = vst [vmem:[#allocation4 + $0x6d0] sm:$0xff] %v5449
        %5461 = vst [vmem:[#allocation4 + $0x6d8] sm:$0xff] %v5449
        %5462 = vst [vmem:[#allocation4 + $0x6e0] sm:$0xff] %v5449
        %5463 = vst [vmem:[#allocation4 + $0x6e8] sm:$0xff] %v5449
        %5464 = vst [vmem:[#allocation4 + $0x6f0] sm:$0xff] %v5449
        %5465 = vst [vmem:[#allocation4 + $0x6f8] sm:$0xff] %v5449
        %v5466 = vlaneseq
        %v5467 = vshrl.u32 %v5466, 7
        %v5468 = vsub.s32 6, %v5467
        %v5469 = vrot.slane %v5183, %v5468
        %5470 = vst [vmem:[#allocation4 + $0x700] sm:$0xff] %v5469
        %5471 = vst [vmem:[#allocation4 + $0x708] sm:$0xff] %v5469
        %5472 = vst [vmem:[#allocation4 + $0x710] sm:$0xff] %v5469
        %5473 = vst [vmem:[#allocation4 + $0x718] sm:$0xff] %v5469
        %5474 = vst [vmem:[#allocation4 + $0x720] sm:$0xff] %v5469
        %5475 = vst [vmem:[#allocation4 + $0x728] sm:$0xff] %v5469
        %5476 = vst [vmem:[#allocation4 + $0x730] sm:$0xff] %v5469
        %5477 = vst [vmem:[#allocation4 + $0x738] sm:$0xff] %v5469
        %5478 = vst [vmem:[#allocation4 + $0x740] sm:$0xff] %v5469
        %5479 = vst [vmem:[#allocation4 + $0x748] sm:$0xff] %v5469
        %5480 = vst [vmem:[#allocation4 + $0x750] sm:$0xff] %v5469
        %5481 = vst [vmem:[#allocation4 + $0x758] sm:$0xff] %v5469
        %5482 = vst [vmem:[#allocation4 + $0x760] sm:$0xff] %v5469
        %5483 = vst [vmem:[#allocation4 + $0x768] sm:$0xff] %v5469
        %5484 = vst [vmem:[#allocation4 + $0x770] sm:$0xff] %v5469
        %5485 = vst [vmem:[#allocation4 + $0x778] sm:$0xff] %v5469
        %v5486 = vlaneseq
        %v5487 = vshrl.u32 %v5486, 7
        %v5488 = vsub.s32 7, %v5487
        %v5489 = vrot.slane %v5183, %v5488
        %5490 = vst [vmem:[#allocation4 + $0x780] sm:$0xff] %v5489
        %5491 = vst [vmem:[#allocation4 + $0x788] sm:$0xff] %v5489
        %5492 = vst [vmem:[#allocation4 + $0x790] sm:$0xff] %v5489
        %5493 = vst [vmem:[#allocation4 + $0x798] sm:$0xff] %v5489
        %5494 = vst [vmem:[#allocation4 + $0x7a0] sm:$0xff] %v5489
        %5495 = vst [vmem:[#allocation4 + $0x7a8] sm:$0xff] %v5489
        %5496 = vst [vmem:[#allocation4 + $0x7b0] sm:$0xff] %v5489
        %5497 = vst [vmem:[#allocation4 + $0x7b8] sm:$0xff] %v5489
        %5498 = vst [vmem:[#allocation4 + $0x7c0] sm:$0xff] %v5489
        %5499 = vst [vmem:[#allocation4 + $0x7c8] sm:$0xff] %v5489
        %5500 = vst [vmem:[#allocation4 + $0x7d0] sm:$0xff] %v5489
        %5501 = vst [vmem:[#allocation4 + $0x7d8] sm:$0xff] %v5489
        %5502 = vst [vmem:[#allocation4 + $0x7e0] sm:$0xff] %v5489
        %5503 = vst [vmem:[#allocation4 + $0x7e8] sm:$0xff] %v5489
        %5504 = vst [vmem:[#allocation4 + $0x7f0] sm:$0xff] %v5489
        %5505 = vst [vmem:[#allocation4 + $0x7f8] sm:$0xff] %v5489
        %v5506 = vlaneseq
        %v5507 = vshrl.u32 %v5506, 7
        %v5508 = vsub.s32 0, %v5507
        %v5509 = vrot.slane %v5184, %v5508
        %5510 = vst [vmem:[#allocation4 + $0x800] sm:$0xff] %v5509
        %5511 = vst [vmem:[#allocation4 + $0x808] sm:$0xff] %v5509
        %5512 = vst [vmem:[#allocation4 + $0x810] sm:$0xff] %v5509
        %5513 = vst [vmem:[#allocation4 + $0x818] sm:$0xff] %v5509
        %5514 = vst [vmem:[#allocation4 + $0x820] sm:$0xff] %v5509
        %5515 = vst [vmem:[#allocation4 + $0x828] sm:$0xff] %v5509
        %5516 = vst [vmem:[#allocation4 + $0x830] sm:$0xff] %v5509
        %5517 = vst [vmem:[#allocation4 + $0x838] sm:$0xff] %v5509
        %5518 = vst [vmem:[#allocation4 + $0x840] sm:$0xff] %v5509
        %5519 = vst [vmem:[#allocation4 + $0x848] sm:$0xff] %v5509
        %5520 = vst [vmem:[#allocation4 + $0x850] sm:$0xff] %v5509
        %5521 = vst [vmem:[#allocation4 + $0x858] sm:$0xff] %v5509
        %5522 = vst [vmem:[#allocation4 + $0x860] sm:$0xff] %v5509
        %5523 = vst [vmem:[#allocation4 + $0x868] sm:$0xff] %v5509
        %5524 = vst [vmem:[#allocation4 + $0x870] sm:$0xff] %v5509
        %5525 = vst [vmem:[#allocation4 + $0x878] sm:$0xff] %v5509
        %v5526 = vlaneseq
        %v5527 = vshrl.u32 %v5526, 7
        %v5528 = vsub.s32 1, %v5527
        %v5529 = vrot.slane %v5184, %v5528
        %5530 = vst [vmem:[#allocation4 + $0x880] sm:$0xff] %v5529
        %5531 = vst [vmem:[#allocation4 + $0x888] sm:$0xff] %v5529
        %5532 = vst [vmem:[#allocation4 + $0x890] sm:$0xff] %v5529
        %5533 = vst [vmem:[#allocation4 + $0x898] sm:$0xff] %v5529
        %5534 = vst [vmem:[#allocation4 + $0x8a0] sm:$0xff] %v5529
        %5535 = vst [vmem:[#allocation4 + $0x8a8] sm:$0xff] %v5529
        %5536 = vst [vmem:[#allocation4 + $0x8b0] sm:$0xff] %v5529
        %5537 = vst [vmem:[#allocation4 + $0x8b8] sm:$0xff] %v5529
        %5538 = vst [vmem:[#allocation4 + $0x8c0] sm:$0xff] %v5529
        %5539 = vst [vmem:[#allocation4 + $0x8c8] sm:$0xff] %v5529
        %5540 = vst [vmem:[#allocation4 + $0x8d0] sm:$0xff] %v5529
        %5541 = vst [vmem:[#allocation4 + $0x8d8] sm:$0xff] %v5529
        %5542 = vst [vmem:[#allocation4 + $0x8e0] sm:$0xff] %v5529
        %5543 = vst [vmem:[#allocation4 + $0x8e8] sm:$0xff] %v5529
        %5544 = vst [vmem:[#allocation4 + $0x8f0] sm:$0xff] %v5529
        %5545 = vst [vmem:[#allocation4 + $0x8f8] sm:$0xff] %v5529
        %v5546 = vlaneseq
        %v5547 = vshrl.u32 %v5546, 7
        %v5548 = vsub.s32 2, %v5547
        %v5549 = vrot.slane %v5184, %v5548
        %5550 = vst [vmem:[#allocation4 + $0x900] sm:$0xff] %v5549
        %5551 = vst [vmem:[#allocation4 + $0x908] sm:$0xff] %v5549
        %5552 = vst [vmem:[#allocation4 + $0x910] sm:$0xff] %v5549
        %5553 = vst [vmem:[#allocation4 + $0x918] sm:$0xff] %v5549
        %5554 = vst [vmem:[#allocation4 + $0x920] sm:$0xff] %v5549
        %5555 = vst [vmem:[#allocation4 + $0x928] sm:$0xff] %v5549
        %5556 = vst [vmem:[#allocation4 + $0x930] sm:$0xff] %v5549
        %5557 = vst [vmem:[#allocation4 + $0x938] sm:$0xff] %v5549
        %5558 = vst [vmem:[#allocation4 + $0x940] sm:$0xff] %v5549
        %5559 = vst [vmem:[#allocation4 + $0x948] sm:$0xff] %v5549
        %5560 = vst [vmem:[#allocation4 + $0x950] sm:$0xff] %v5549
        %5561 = vst [vmem:[#allocation4 + $0x958] sm:$0xff] %v5549
        %5562 = vst [vmem:[#allocation4 + $0x960] sm:$0xff] %v5549
        %5563 = vst [vmem:[#allocation4 + $0x968] sm:$0xff] %v5549
        %5564 = vst [vmem:[#allocation4 + $0x970] sm:$0xff] %v5549
        %5565 = vst [vmem:[#allocation4 + $0x978] sm:$0xff] %v5549
        %v5566 = vlaneseq
        %v5567 = vshrl.u32 %v5566, 7
        %v5568 = vsub.s32 3, %v5567
        %v5569 = vrot.slane %v5184, %v5568
        %5570 = vst [vmem:[#allocation4 + $0x980] sm:$0xff] %v5569
        %5571 = vst [vmem:[#allocation4 + $0x988] sm:$0xff] %v5569
        %5572 = vst [vmem:[#allocation4 + $0x990] sm:$0xff] %v5569
        %5573 = vst [vmem:[#allocation4 + $0x998] sm:$0xff] %v5569
        %5574 = vst [vmem:[#allocation4 + $0x9a0] sm:$0xff] %v5569
        %5575 = vst [vmem:[#allocation4 + $0x9a8] sm:$0xff] %v5569
        %5576 = vst [vmem:[#allocation4 + $0x9b0] sm:$0xff] %v5569
        %5577 = vst [vmem:[#allocation4 + $0x9b8] sm:$0xff] %v5569
        %5578 = vst [vmem:[#allocation4 + $0x9c0] sm:$0xff] %v5569
        %5579 = vst [vmem:[#allocation4 + $0x9c8] sm:$0xff] %v5569
        %5580 = vst [vmem:[#allocation4 + $0x9d0] sm:$0xff] %v5569
        %5581 = vst [vmem:[#allocation4 + $0x9d8] sm:$0xff] %v5569
        %5582 = vst [vmem:[#allocation4 + $0x9e0] sm:$0xff] %v5569
        %5583 = vst [vmem:[#allocation4 + $0x9e8] sm:$0xff] %v5569
        %5584 = vst [vmem:[#allocation4 + $0x9f0] sm:$0xff] %v5569
        %5585 = vst [vmem:[#allocation4 + $0x9f8] sm:$0xff] %v5569
        %v5586 = vlaneseq
        %v5587 = vshrl.u32 %v5586, 7
        %v5588 = vsub.s32 4, %v5587
        %v5589 = vrot.slane %v5184, %v5588
        %5590 = vst [vmem:[#allocation4 + $0xa00] sm:$0xff] %v5589
        %5591 = vst [vmem:[#allocation4 + $0xa08] sm:$0xff] %v5589
        %5592 = vst [vmem:[#allocation4 + $0xa10] sm:$0xff] %v5589
        %5593 = vst [vmem:[#allocation4 + $0xa18] sm:$0xff] %v5589
        %5594 = vst [vmem:[#allocation4 + $0xa20] sm:$0xff] %v5589
        %5595 = vst [vmem:[#allocation4 + $0xa28] sm:$0xff] %v5589
        %5596 = vst [vmem:[#allocation4 + $0xa30] sm:$0xff] %v5589
        %5597 = vst [vmem:[#allocation4 + $0xa38] sm:$0xff] %v5589
        %5598 = vst [vmem:[#allocation4 + $0xa40] sm:$0xff] %v5589
        %5599 = vst [vmem:[#allocation4 + $0xa48] sm:$0xff] %v5589
        %5600 = vst [vmem:[#allocation4 + $0xa50] sm:$0xff] %v5589
        %5601 = vst [vmem:[#allocation4 + $0xa58] sm:$0xff] %v5589
        %5602 = vst [vmem:[#allocation4 + $0xa60] sm:$0xff] %v5589
        %5603 = vst [vmem:[#allocation4 + $0xa68] sm:$0xff] %v5589
        %5604 = vst [vmem:[#allocation4 + $0xa70] sm:$0xff] %v5589
        %5605 = vst [vmem:[#allocation4 + $0xa78] sm:$0xff] %v5589
        %v5606 = vlaneseq
        %v5607 = vshrl.u32 %v5606, 7
        %v5608 = vsub.s32 5, %v5607
        %v5609 = vrot.slane %v5184, %v5608
        %5610 = vst [vmem:[#allocation4 + $0xa80] sm:$0xff] %v5609
        %5611 = vst [vmem:[#allocation4 + $0xa88] sm:$0xff] %v5609
        %5612 = vst [vmem:[#allocation4 + $0xa90] sm:$0xff] %v5609
        %5613 = vst [vmem:[#allocation4 + $0xa98] sm:$0xff] %v5609
        %5614 = vst [vmem:[#allocation4 + $0xaa0] sm:$0xff] %v5609
        %5615 = vst [vmem:[#allocation4 + $0xaa8] sm:$0xff] %v5609
        %5616 = vst [vmem:[#allocation4 + $0xab0] sm:$0xff] %v5609
        %5617 = vst [vmem:[#allocation4 + $0xab8] sm:$0xff] %v5609
        %5618 = vst [vmem:[#allocation4 + $0xac0] sm:$0xff] %v5609
        %5619 = vst [vmem:[#allocation4 + $0xac8] sm:$0xff] %v5609
        %5620 = vst [vmem:[#allocation4 + $0xad0] sm:$0xff] %v5609
        %5621 = vst [vmem:[#allocation4 + $0xad8] sm:$0xff] %v5609
        %5622 = vst [vmem:[#allocation4 + $0xae0] sm:$0xff] %v5609
        %5623 = vst [vmem:[#allocation4 + $0xae8] sm:$0xff] %v5609
        %5624 = vst [vmem:[#allocation4 + $0xaf0] sm:$0xff] %v5609
        %5625 = vst [vmem:[#allocation4 + $0xaf8] sm:$0xff] %v5609
        %v5626 = vlaneseq
        %v5627 = vshrl.u32 %v5626, 7
        %v5628 = vsub.s32 6, %v5627
        %v5629 = vrot.slane %v5184, %v5628
        %5630 = vst [vmem:[#allocation4 + $0xb00] sm:$0xff] %v5629
        %5631 = vst [vmem:[#allocation4 + $0xb08] sm:$0xff] %v5629
        %5632 = vst [vmem:[#allocation4 + $0xb10] sm:$0xff] %v5629
        %5633 = vst [vmem:[#allocation4 + $0xb18] sm:$0xff] %v5629
        %5634 = vst [vmem:[#allocation4 + $0xb20] sm:$0xff] %v5629
        %5635 = vst [vmem:[#allocation4 + $0xb28] sm:$0xff] %v5629
        %5636 = vst [vmem:[#allocation4 + $0xb30] sm:$0xff] %v5629
        %5637 = vst [vmem:[#allocation4 + $0xb38] sm:$0xff] %v5629
        %5638 = vst [vmem:[#allocation4 + $0xb40] sm:$0xff] %v5629
        %5639 = vst [vmem:[#allocation4 + $0xb48] sm:$0xff] %v5629
        %5640 = vst [vmem:[#allocation4 + $0xb50] sm:$0xff] %v5629
        %5641 = vst [vmem:[#allocation4 + $0xb58] sm:$0xff] %v5629
        %5642 = vst [vmem:[#allocation4 + $0xb60] sm:$0xff] %v5629
        %5643 = vst [vmem:[#allocation4 + $0xb68] sm:$0xff] %v5629
        %5644 = vst [vmem:[#allocation4 + $0xb70] sm:$0xff] %v5629
        %5645 = vst [vmem:[#allocation4 + $0xb78] sm:$0xff] %v5629
        %v5646 = vlaneseq
        %v5647 = vshrl.u32 %v5646, 7
        %v5648 = vsub.s32 7, %v5647
        %v5649 = vrot.slane %v5184, %v5648
        %5650 = vst [vmem:[#allocation4 + $0xb80] sm:$0xff] %v5649
        %5651 = vst [vmem:[#allocation4 + $0xb88] sm:$0xff] %v5649
        %5652 = vst [vmem:[#allocation4 + $0xb90] sm:$0xff] %v5649
        %5653 = vst [vmem:[#allocation4 + $0xb98] sm:$0xff] %v5649
        %5654 = vst [vmem:[#allocation4 + $0xba0] sm:$0xff] %v5649
        %5655 = vst [vmem:[#allocation4 + $0xba8] sm:$0xff] %v5649
        %5656 = vst [vmem:[#allocation4 + $0xbb0] sm:$0xff] %v5649
        %5657 = vst [vmem:[#allocation4 + $0xbb8] sm:$0xff] %v5649
        %5658 = vst [vmem:[#allocation4 + $0xbc0] sm:$0xff] %v5649
        %5659 = vst [vmem:[#allocation4 + $0xbc8] sm:$0xff] %v5649
        %5660 = vst [vmem:[#allocation4 + $0xbd0] sm:$0xff] %v5649
        %5661 = vst [vmem:[#allocation4 + $0xbd8] sm:$0xff] %v5649
        %5662 = vst [vmem:[#allocation4 + $0xbe0] sm:$0xff] %v5649
        %5663 = vst [vmem:[#allocation4 + $0xbe8] sm:$0xff] %v5649
        %5664 = vst [vmem:[#allocation4 + $0xbf0] sm:$0xff] %v5649
        %5665 = vst [vmem:[#allocation4 + $0xbf8] sm:$0xff] %v5649
        %v5666 = vlaneseq
        %v5667 = vshrl.u32 %v5666, 7
        %v5668 = vsub.s32 0, %v5667
        %v5669 = vrot.slane %v5185, %v5668
        %5670 = vst [vmem:[#allocation4 + $0xc00] sm:$0xff] %v5669
        %5671 = vst [vmem:[#allocation4 + $0xc08] sm:$0xff] %v5669
        %5672 = vst [vmem:[#allocation4 + $0xc10] sm:$0xff] %v5669
        %5673 = vst [vmem:[#allocation4 + $0xc18] sm:$0xff] %v5669
        %5674 = vst [vmem:[#allocation4 + $0xc20] sm:$0xff] %v5669
        %5675 = vst [vmem:[#allocation4 + $0xc28] sm:$0xff] %v5669
        %5676 = vst [vmem:[#allocation4 + $0xc30] sm:$0xff] %v5669
        %5677 = vst [vmem:[#allocation4 + $0xc38] sm:$0xff] %v5669
        %5678 = vst [vmem:[#allocation4 + $0xc40] sm:$0xff] %v5669
        %5679 = vst [vmem:[#allocation4 + $0xc48] sm:$0xff] %v5669
        %5680 = vst [vmem:[#allocation4 + $0xc50] sm:$0xff] %v5669
        %5681 = vst [vmem:[#allocation4 + $0xc58] sm:$0xff] %v5669
        %5682 = vst [vmem:[#allocation4 + $0xc60] sm:$0xff] %v5669
        %5683 = vst [vmem:[#allocation4 + $0xc68] sm:$0xff] %v5669
        %5684 = vst [vmem:[#allocation4 + $0xc70] sm:$0xff] %v5669
        %5685 = vst [vmem:[#allocation4 + $0xc78] sm:$0xff] %v5669
      $region44: #{fused_forward.1} parent=39 // pred_fallthru
        _
      %p5686 = scmp.gt.s32.totalorder %s16, 0
      // Predicated region
      $region45: #{fused_forward.1} parent=39 // pred_check
        %p5687 = pneg %p5686
      $region46: #{fused_forward.1} parent=39 // pred_check_branch
        %5689 = sbr.rel (%p5687) target = $region48
      $region47: #{fused_forward.1} parent=39 // pred_region
        %s5690 = ssub.s32 %s16, 1
        %s5691 = smul.u32 %s5690, 128
        %s5692 = scalar_lea.vmem [#allocation2], %s5691
        %v5693 = vld [vmem:[%s5692] sm:$0xff]
        %v5694 = vld [vmem:[%s5692 + $0x8] sm:$0xff]
        %v5695 = vld [vmem:[%s5692 + $0x10] sm:$0xff]
        %v5696 = vld [vmem:[%s5692 + $0x18] sm:$0xff]
        %v5697 = vld [vmem:[%s5692 + $0x20] sm:$0xff]
        %v5698 = vld [vmem:[%s5692 + $0x28] sm:$0xff]
        %v5699 = vld [vmem:[%s5692 + $0x30] sm:$0xff]
        %v5700 = vld [vmem:[%s5692 + $0x38] sm:$0xff]
        %v5701 = vld [vmem:[%s5692 + $0x40] sm:$0xff]
        %v5702 = vld [vmem:[%s5692 + $0x48] sm:$0xff]
        %v5703 = vld [vmem:[%s5692 + $0x50] sm:$0xff]
        %v5704 = vld [vmem:[%s5692 + $0x58] sm:$0xff]
        %v5705 = vld [vmem:[%s5692 + $0x60] sm:$0xff]
        %v5706 = vld [vmem:[%s5692 + $0x68] sm:$0xff]
        %v5707 = vld [vmem:[%s5692 + $0x70] sm:$0xff]
        %v5708 = vld [vmem:[%s5692 + $0x78] sm:$0xff]
        %v5709 = vld [vmem:[#allocation4] sm:$0xff]
        %v5710 = vld [vmem:[#allocation4 + $0x8] sm:$0xff]
        %v5711 = vld [vmem:[#allocation4 + $0x10] sm:$0xff]
        %v5712 = vld [vmem:[#allocation4 + $0x18] sm:$0xff]
        %v5713 = vld [vmem:[#allocation4 + $0x20] sm:$0xff]
        %v5714 = vld [vmem:[#allocation4 + $0x28] sm:$0xff]
        %v5715 = vld [vmem:[#allocation4 + $0x30] sm:$0xff]
        %v5716 = vld [vmem:[#allocation4 + $0x38] sm:$0xff]
        %v5717 = vld [vmem:[#allocation4 + $0x40] sm:$0xff]
        %v5718 = vld [vmem:[#allocation4 + $0x48] sm:$0xff]
        %v5719 = vld [vmem:[#allocation4 + $0x50] sm:$0xff]
        %v5720 = vld [vmem:[#allocation4 + $0x58] sm:$0xff]
        %v5721 = vld [vmem:[#allocation4 + $0x60] sm:$0xff]
        %v5722 = vld [vmem:[#allocation4 + $0x68] sm:$0xff]
        %v5723 = vld [vmem:[#allocation4 + $0x70] sm:$0xff]
        %v5724 = vld [vmem:[#allocation4 + $0x78] sm:$0xff]
        %v5725 = vmul.f32 %v5693, %v5709
        %v5726 = vmul.f32 %v5694, %v5710
        %v5727 = vmul.f32 %v5695, %v5711
        %v5728 = vmul.f32 %v5696, %v5712
        %v5729 = vmul.f32 %v5697, %v5713
        %v5730 = vmul.f32 %v5698, %v5714
        %v5731 = vmul.f32 %v5699, %v5715
        %v5732 = vmul.f32 %v5700, %v5716
        %v5733 = vmul.f32 %v5701, %v5717
        %v5734 = vmul.f32 %v5702, %v5718
        %v5735 = vmul.f32 %v5703, %v5719
        %v5736 = vmul.f32 %v5704, %v5720
        %v5737 = vmul.f32 %v5705, %v5721
        %v5738 = vmul.f32 %v5706, %v5722
        %v5739 = vmul.f32 %v5707, %v5723
        %v5740 = vmul.f32 %v5708, %v5724
        %v5741 = vadd.f32 %v5725, 0.0
        %v5742 = vadd.f32 %v5726, 0.0
        %v5743 = vadd.f32 %v5727, 0.0
        %v5744 = vadd.f32 %v5728, 0.0
        %v5745 = vadd.f32 %v5729, 0.0
        %v5746 = vadd.f32 %v5730, 0.0
        %v5747 = vadd.f32 %v5731, 0.0
        %v5748 = vadd.f32 %v5732, 0.0
        %v5749 = vadd.f32 %v5733, 0.0
        %v5750 = vadd.f32 %v5734, 0.0
        %v5751 = vadd.f32 %v5735, 0.0
        %v5752 = vadd.f32 %v5736, 0.0
        %v5753 = vadd.f32 %v5737, 0.0
        %v5754 = vadd.f32 %v5738, 0.0
        %v5755 = vadd.f32 %v5739, 0.0
        %v5756 = vadd.f32 %v5740, 0.0
        %s5757 = scalar_lea.vmem [#allocation3], %s5691
        %v5758 = vld [vmem:[%s5757] sm:$0xff]
        %v5759 = vld [vmem:[%s5757 + $0x8] sm:$0xff]
        %v5760 = vld [vmem:[%s5757 + $0x10] sm:$0xff]
        %v5761 = vld [vmem:[%s5757 + $0x18] sm:$0xff]
        %v5762 = vld [vmem:[%s5757 + $0x20] sm:$0xff]
        %v5763 = vld [vmem:[%s5757 + $0x28] sm:$0xff]
        %v5764 = vld [vmem:[%s5757 + $0x30] sm:$0xff]
        %v5765 = vld [vmem:[%s5757 + $0x38] sm:$0xff]
        %v5766 = vld [vmem:[%s5757 + $0x40] sm:$0xff]
        %v5767 = vld [vmem:[%s5757 + $0x48] sm:$0xff]
        %v5768 = vld [vmem:[%s5757 + $0x50] sm:$0xff]
        %v5769 = vld [vmem:[%s5757 + $0x58] sm:$0xff]
        %v5770 = vld [vmem:[%s5757 + $0x60] sm:$0xff]
        %v5771 = vld [vmem:[%s5757 + $0x68] sm:$0xff]
        %v5772 = vld [vmem:[%s5757 + $0x70] sm:$0xff]
        %v5773 = vld [vmem:[%s5757 + $0x78] sm:$0xff]
        %v5774 = vld [vmem:[#allocation4 + $0x80] sm:$0xff]
        %v5775 = vld [vmem:[#allocation4 + $0x88] sm:$0xff]
        %v5776 = vld [vmem:[#allocation4 + $0x90] sm:$0xff]
        %v5777 = vld [vmem:[#allocation4 + $0x98] sm:$0xff]
        %v5778 = vld [vmem:[#allocation4 + $0xa0] sm:$0xff]
        %v5779 = vld [vmem:[#allocation4 + $0xa8] sm:$0xff]
        %v5780 = vld [vmem:[#allocation4 + $0xb0] sm:$0xff]
        %v5781 = vld [vmem:[#allocation4 + $0xb8] sm:$0xff]
        %v5782 = vld [vmem:[#allocation4 + $0xc0] sm:$0xff]
        %v5783 = vld [vmem:[#allocation4 + $0xc8] sm:$0xff]
        %v5784 = vld [vmem:[#allocation4 + $0xd0] sm:$0xff]
        %v5785 = vld [vmem:[#allocation4 + $0xd8] sm:$0xff]
        %v5786 = vld [vmem:[#allocation4 + $0xe0] sm:$0xff]
        %v5787 = vld [vmem:[#allocation4 + $0xe8] sm:$0xff]
        %v5788 = vld [vmem:[#allocation4 + $0xf0] sm:$0xff]
        %v5789 = vld [vmem:[#allocation4 + $0xf8] sm:$0xff]
        %v5790 = vmul.f32 %v5758, %v5774
        %v5791 = vmul.f32 %v5759, %v5775
        %v5792 = vmul.f32 %v5760, %v5776
        %v5793 = vmul.f32 %v5761, %v5777
        %v5794 = vmul.f32 %v5762, %v5778
        %v5795 = vmul.f32 %v5763, %v5779
        %v5796 = vmul.f32 %v5764, %v5780
        %v5797 = vmul.f32 %v5765, %v5781
        %v5798 = vmul.f32 %v5766, %v5782
        %v5799 = vmul.f32 %v5767, %v5783
        %v5800 = vmul.f32 %v5768, %v5784
        %v5801 = vmul.f32 %v5769, %v5785
        %v5802 = vmul.f32 %v5770, %v5786
        %v5803 = vmul.f32 %v5771, %v5787
        %v5804 = vmul.f32 %v5772, %v5788
        %v5805 = vmul.f32 %v5773, %v5789
        %v5806 = vadd.f32 %v5741, %v5790
        %v5807 = vadd.f32 %v5742, %v5791
        %v5808 = vadd.f32 %v5743, %v5792
        %v5809 = vadd.f32 %v5744, %v5793
        %v5810 = vadd.f32 %v5745, %v5794
        %v5811 = vadd.f32 %v5746, %v5795
        %v5812 = vadd.f32 %v5747, %v5796
        %v5813 = vadd.f32 %v5748, %v5797
        %v5814 = vadd.f32 %v5749, %v5798
        %v5815 = vadd.f32 %v5750, %v5799
        %v5816 = vadd.f32 %v5751, %v5800
        %v5817 = vadd.f32 %v5752, %v5801
        %v5818 = vadd.f32 %v5753, %v5802
        %v5819 = vadd.f32 %v5754, %v5803
        %v5820 = vadd.f32 %v5755, %v5804
        %v5821 = vadd.f32 %v5756, %v5805
        %s5822 = sadd.s32 %s5691, 1024
        %s5823 = scalar_lea.vmem [#allocation3], %s5822
        %v5824 = vld [vmem:[%s5823] sm:$0xff]
        %v5825 = vld [vmem:[%s5823 + $0x8] sm:$0xff]
        %v5826 = vld [vmem:[%s5823 + $0x10] sm:$0xff]
        %v5827 = vld [vmem:[%s5823 + $0x18] sm:$0xff]
        %v5828 = vld [vmem:[%s5823 + $0x20] sm:$0xff]
        %v5829 = vld [vmem:[%s5823 + $0x28] sm:$0xff]
        %v5830 = vld [vmem:[%s5823 + $0x30] sm:$0xff]
        %v5831 = vld [vmem:[%s5823 + $0x38] sm:$0xff]
        %v5832 = vld [vmem:[%s5823 + $0x40] sm:$0xff]
        %v5833 = vld [vmem:[%s5823 + $0x48] sm:$0xff]
        %v5834 = vld [vmem:[%s5823 + $0x50] sm:$0xff]
        %v5835 = vld [vmem:[%s5823 + $0x58] sm:$0xff]
        %v5836 = vld [vmem:[%s5823 + $0x60] sm:$0xff]
        %v5837 = vld [vmem:[%s5823 + $0x68] sm:$0xff]
        %v5838 = vld [vmem:[%s5823 + $0x70] sm:$0xff]
        %v5839 = vld [vmem:[%s5823 + $0x78] sm:$0xff]
        %v5840 = vld [vmem:[#allocation4 + $0x100] sm:$0xff]
        %v5841 = vld [vmem:[#allocation4 + $0x108] sm:$0xff]
        %v5842 = vld [vmem:[#allocation4 + $0x110] sm:$0xff]
        %v5843 = vld [vmem:[#allocation4 + $0x118] sm:$0xff]
        %v5844 = vld [vmem:[#allocation4 + $0x120] sm:$0xff]
        %v5845 = vld [vmem:[#allocation4 + $0x128] sm:$0xff]
        %v5846 = vld [vmem:[#allocation4 + $0x130] sm:$0xff]
        %v5847 = vld [vmem:[#allocation4 + $0x138] sm:$0xff]
        %v5848 = vld [vmem:[#allocation4 + $0x140] sm:$0xff]
        %v5849 = vld [vmem:[#allocation4 + $0x148] sm:$0xff]
        %v5850 = vld [vmem:[#allocation4 + $0x150] sm:$0xff]
        %v5851 = vld [vmem:[#allocation4 + $0x158] sm:$0xff]
        %v5852 = vld [vmem:[#allocation4 + $0x160] sm:$0xff]
        %v5853 = vld [vmem:[#allocation4 + $0x168] sm:$0xff]
        %v5854 = vld [vmem:[#allocation4 + $0x170] sm:$0xff]
        %v5855 = vld [vmem:[#allocation4 + $0x178] sm:$0xff]
        %v5856 = vmul.f32 %v5824, %v5840
        %v5857 = vmul.f32 %v5825, %v5841
        %v5858 = vmul.f32 %v5826, %v5842
        %v5859 = vmul.f32 %v5827, %v5843
        %v5860 = vmul.f32 %v5828, %v5844
        %v5861 = vmul.f32 %v5829, %v5845
        %v5862 = vmul.f32 %v5830, %v5846
        %v5863 = vmul.f32 %v5831, %v5847
        %v5864 = vmul.f32 %v5832, %v5848
        %v5865 = vmul.f32 %v5833, %v5849
        %v5866 = vmul.f32 %v5834, %v5850
        %v5867 = vmul.f32 %v5835, %v5851
        %v5868 = vmul.f32 %v5836, %v5852
        %v5869 = vmul.f32 %v5837, %v5853
        %v5870 = vmul.f32 %v5838, %v5854
        %v5871 = vmul.f32 %v5839, %v5855
        %v5872 = vadd.f32 %v5806, %v5856
        %v5873 = vadd.f32 %v5807, %v5857
        %v5874 = vadd.f32 %v5808, %v5858
        %v5875 = vadd.f32 %v5809, %v5859
        %v5876 = vadd.f32 %v5810, %v5860
        %v5877 = vadd.f32 %v5811, %v5861
        %v5878 = vadd.f32 %v5812, %v5862
        %v5879 = vadd.f32 %v5813, %v5863
        %v5880 = vadd.f32 %v5814, %v5864
        %v5881 = vadd.f32 %v5815, %v5865
        %v5882 = vadd.f32 %v5816, %v5866
        %v5883 = vadd.f32 %v5817, %v5867
        %v5884 = vadd.f32 %v5818, %v5868
        %v5885 = vadd.f32 %v5819, %v5869
        %v5886 = vadd.f32 %v5820, %v5870
        %v5887 = vadd.f32 %v5821, %v5871
        %s5888 = sadd.s32 %s5691, 2048
        %s5889 = scalar_lea.vmem [#allocation3], %s5888
        %v5890 = vld [vmem:[%s5889] sm:$0xff]
        %v5891 = vld [vmem:[%s5889 + $0x8] sm:$0xff]
        %v5892 = vld [vmem:[%s5889 + $0x10] sm:$0xff]
        %v5893 = vld [vmem:[%s5889 + $0x18] sm:$0xff]
        %v5894 = vld [vmem:[%s5889 + $0x20] sm:$0xff]
        %v5895 = vld [vmem:[%s5889 + $0x28] sm:$0xff]
        %v5896 = vld [vmem:[%s5889 + $0x30] sm:$0xff]
        %v5897 = vld [vmem:[%s5889 + $0x38] sm:$0xff]
        %v5898 = vld [vmem:[%s5889 + $0x40] sm:$0xff]
        %v5899 = vld [vmem:[%s5889 + $0x48] sm:$0xff]
        %v5900 = vld [vmem:[%s5889 + $0x50] sm:$0xff]
        %v5901 = vld [vmem:[%s5889 + $0x58] sm:$0xff]
        %v5902 = vld [vmem:[%s5889 + $0x60] sm:$0xff]
        %v5903 = vld [vmem:[%s5889 + $0x68] sm:$0xff]
        %v5904 = vld [vmem:[%s5889 + $0x70] sm:$0xff]
        %v5905 = vld [vmem:[%s5889 + $0x78] sm:$0xff]
        %v5906 = vld [vmem:[#allocation4 + $0x180] sm:$0xff]
        %v5907 = vld [vmem:[#allocation4 + $0x188] sm:$0xff]
        %v5908 = vld [vmem:[#allocation4 + $0x190] sm:$0xff]
        %v5909 = vld [vmem:[#allocation4 + $0x198] sm:$0xff]
        %v5910 = vld [vmem:[#allocation4 + $0x1a0] sm:$0xff]
        %v5911 = vld [vmem:[#allocation4 + $0x1a8] sm:$0xff]
        %v5912 = vld [vmem:[#allocation4 + $0x1b0] sm:$0xff]
        %v5913 = vld [vmem:[#allocation4 + $0x1b8] sm:$0xff]
        %v5914 = vld [vmem:[#allocation4 + $0x1c0] sm:$0xff]
        %v5915 = vld [vmem:[#allocation4 + $0x1c8] sm:$0xff]
        %v5916 = vld [vmem:[#allocation4 + $0x1d0] sm:$0xff]
        %v5917 = vld [vmem:[#allocation4 + $0x1d8] sm:$0xff]
        %v5918 = vld [vmem:[#allocation4 + $0x1e0] sm:$0xff]
        %v5919 = vld [vmem:[#allocation4 + $0x1e8] sm:$0xff]
        %v5920 = vld [vmem:[#allocation4 + $0x1f0] sm:$0xff]
        %v5921 = vld [vmem:[#allocation4 + $0x1f8] sm:$0xff]
        %v5922 = vmul.f32 %v5890, %v5906
        %v5923 = vmul.f32 %v5891, %v5907
        %v5924 = vmul.f32 %v5892, %v5908
        %v5925 = vmul.f32 %v5893, %v5909
        %v5926 = vmul.f32 %v5894, %v5910
        %v5927 = vmul.f32 %v5895, %v5911
        %v5928 = vmul.f32 %v5896, %v5912
        %v5929 = vmul.f32 %v5897, %v5913
        %v5930 = vmul.f32 %v5898, %v5914
        %v5931 = vmul.f32 %v5899, %v5915
        %v5932 = vmul.f32 %v5900, %v5916
        %v5933 = vmul.f32 %v5901, %v5917
        %v5934 = vmul.f32 %v5902, %v5918
        %v5935 = vmul.f32 %v5903, %v5919
        %v5936 = vmul.f32 %v5904, %v5920
        %v5937 = vmul.f32 %v5905, %v5921
        %v5938 = vadd.f32 %v5872, %v5922
        %v5939 = vadd.f32 %v5873, %v5923
        %v5940 = vadd.f32 %v5874, %v5924
        %v5941 = vadd.f32 %v5875, %v5925
        %v5942 = vadd.f32 %v5876, %v5926
        %v5943 = vadd.f32 %v5877, %v5927
        %v5944 = vadd.f32 %v5878, %v5928
        %v5945 = vadd.f32 %v5879, %v5929
        %v5946 = vadd.f32 %v5880, %v5930
        %v5947 = vadd.f32 %v5881, %v5931
        %v5948 = vadd.f32 %v5882, %v5932
        %v5949 = vadd.f32 %v5883, %v5933
        %v5950 = vadd.f32 %v5884, %v5934
        %v5951 = vadd.f32 %v5885, %v5935
        %v5952 = vadd.f32 %v5886, %v5936
        %v5953 = vadd.f32 %v5887, %v5937
        %s5954 = sadd.s32 %s5691, 3072
        %s5955 = scalar_lea.vmem [#allocation3], %s5954
        %v5956 = vld [vmem:[%s5955] sm:$0xff]
        %v5957 = vld [vmem:[%s5955 + $0x8] sm:$0xff]
        %v5958 = vld [vmem:[%s5955 + $0x10] sm:$0xff]
        %v5959 = vld [vmem:[%s5955 + $0x18] sm:$0xff]
        %v5960 = vld [vmem:[%s5955 + $0x20] sm:$0xff]
        %v5961 = vld [vmem:[%s5955 + $0x28] sm:$0xff]
        %v5962 = vld [vmem:[%s5955 + $0x30] sm:$0xff]
        %v5963 = vld [vmem:[%s5955 + $0x38] sm:$0xff]
        %v5964 = vld [vmem:[%s5955 + $0x40] sm:$0xff]
        %v5965 = vld [vmem:[%s5955 + $0x48] sm:$0xff]
        %v5966 = vld [vmem:[%s5955 + $0x50] sm:$0xff]
        %v5967 = vld [vmem:[%s5955 + $0x58] sm:$0xff]
        %v5968 = vld [vmem:[%s5955 + $0x60] sm:$0xff]
        %v5969 = vld [vmem:[%s5955 + $0x68] sm:$0xff]
        %v5970 = vld [vmem:[%s5955 + $0x70] sm:$0xff]
        %v5971 = vld [vmem:[%s5955 + $0x78] sm:$0xff]
        %v5972 = vld [vmem:[#allocation4 + $0x200] sm:$0xff]
        %v5973 = vld [vmem:[#allocation4 + $0x208] sm:$0xff]
        %v5974 = vld [vmem:[#allocation4 + $0x210] sm:$0xff]
        %v5975 = vld [vmem:[#allocation4 + $0x218] sm:$0xff]
        %v5976 = vld [vmem:[#allocation4 + $0x220] sm:$0xff]
        %v5977 = vld [vmem:[#allocation4 + $0x228] sm:$0xff]
        %v5978 = vld [vmem:[#allocation4 + $0x230] sm:$0xff]
        %v5979 = vld [vmem:[#allocation4 + $0x238] sm:$0xff]
        %v5980 = vld [vmem:[#allocation4 + $0x240] sm:$0xff]
        %v5981 = vld [vmem:[#allocation4 + $0x248] sm:$0xff]
        %v5982 = vld [vmem:[#allocation4 + $0x250] sm:$0xff]
        %v5983 = vld [vmem:[#allocation4 + $0x258] sm:$0xff]
        %v5984 = vld [vmem:[#allocation4 + $0x260] sm:$0xff]
        %v5985 = vld [vmem:[#allocation4 + $0x268] sm:$0xff]
        %v5986 = vld [vmem:[#allocation4 + $0x270] sm:$0xff]
        %v5987 = vld [vmem:[#allocation4 + $0x278] sm:$0xff]
        %v5988 = vmul.f32 %v5956, %v5972
        %v5989 = vmul.f32 %v5957, %v5973
        %v5990 = vmul.f32 %v5958, %v5974
        %v5991 = vmul.f32 %v5959, %v5975
        %v5992 = vmul.f32 %v5960, %v5976
        %v5993 = vmul.f32 %v5961, %v5977
        %v5994 = vmul.f32 %v5962, %v5978
        %v5995 = vmul.f32 %v5963, %v5979
        %v5996 = vmul.f32 %v5964, %v5980
        %v5997 = vmul.f32 %v5965, %v5981
        %v5998 = vmul.f32 %v5966, %v5982
        %v5999 = vmul.f32 %v5967, %v5983
        %v6000 = vmul.f32 %v5968, %v5984
        %v6001 = vmul.f32 %v5969, %v5985
        %v6002 = vmul.f32 %v5970, %v5986
        %v6003 = vmul.f32 %v5971, %v5987
        %v6004 = vadd.f32 %v5938, %v5988
        %v6005 = vadd.f32 %v5939, %v5989
        %v6006 = vadd.f32 %v5940, %v5990
        %v6007 = vadd.f32 %v5941, %v5991
        %v6008 = vadd.f32 %v5942, %v5992
        %v6009 = vadd.f32 %v5943, %v5993
        %v6010 = vadd.f32 %v5944, %v5994
        %v6011 = vadd.f32 %v5945, %v5995
        %v6012 = vadd.f32 %v5946, %v5996
        %v6013 = vadd.f32 %v5947, %v5997
        %v6014 = vadd.f32 %v5948, %v5998
        %v6015 = vadd.f32 %v5949, %v5999
        %v6016 = vadd.f32 %v5950, %v6000
        %v6017 = vadd.f32 %v5951, %v6001
        %v6018 = vadd.f32 %v5952, %v6002
        %v6019 = vadd.f32 %v5953, %v6003
        %s6020 = sadd.s32 %s5691, 32
        %s6021 = scalar_lea.vmem [#allocation2], %s6020
        %v6022 = vld [vmem:[%s6021] sm:$0xff]
        %v6023 = vld [vmem:[%s6021 + $0x8] sm:$0xff]
        %v6024 = vld [vmem:[%s6021 + $0x10] sm:$0xff]
        %v6025 = vld [vmem:[%s6021 + $0x18] sm:$0xff]
        %v6026 = vld [vmem:[%s6021 + $0x20] sm:$0xff]
        %v6027 = vld [vmem:[%s6021 + $0x28] sm:$0xff]
        %v6028 = vld [vmem:[%s6021 + $0x30] sm:$0xff]
        %v6029 = vld [vmem:[%s6021 + $0x38] sm:$0xff]
        %v6030 = vld [vmem:[%s6021 + $0x40] sm:$0xff]
        %v6031 = vld [vmem:[%s6021 + $0x48] sm:$0xff]
        %v6032 = vld [vmem:[%s6021 + $0x50] sm:$0xff]
        %v6033 = vld [vmem:[%s6021 + $0x58] sm:$0xff]
        %v6034 = vld [vmem:[%s6021 + $0x60] sm:$0xff]
        %v6035 = vld [vmem:[%s6021 + $0x68] sm:$0xff]
        %v6036 = vld [vmem:[%s6021 + $0x70] sm:$0xff]
        %v6037 = vld [vmem:[%s6021 + $0x78] sm:$0xff]
        %v6038 = vld [vmem:[#allocation4 + $0x280] sm:$0xff]
        %v6039 = vld [vmem:[#allocation4 + $0x288] sm:$0xff]
        %v6040 = vld [vmem:[#allocation4 + $0x290] sm:$0xff]
        %v6041 = vld [vmem:[#allocation4 + $0x298] sm:$0xff]
        %v6042 = vld [vmem:[#allocation4 + $0x2a0] sm:$0xff]
        %v6043 = vld [vmem:[#allocation4 + $0x2a8] sm:$0xff]
        %v6044 = vld [vmem:[#allocation4 + $0x2b0] sm:$0xff]
        %v6045 = vld [vmem:[#allocation4 + $0x2b8] sm:$0xff]
        %v6046 = vld [vmem:[#allocation4 + $0x2c0] sm:$0xff]
        %v6047 = vld [vmem:[#allocation4 + $0x2c8] sm:$0xff]
        %v6048 = vld [vmem:[#allocation4 + $0x2d0] sm:$0xff]
        %v6049 = vld [vmem:[#allocation4 + $0x2d8] sm:$0xff]
        %v6050 = vld [vmem:[#allocation4 + $0x2e0] sm:$0xff]
        %v6051 = vld [vmem:[#allocation4 + $0x2e8] sm:$0xff]
        %v6052 = vld [vmem:[#allocation4 + $0x2f0] sm:$0xff]
        %v6053 = vld [vmem:[#allocation4 + $0x2f8] sm:$0xff]
        %v6054 = vmul.f32 %v6022, %v6038
        %v6055 = vmul.f32 %v6023, %v6039
        %v6056 = vmul.f32 %v6024, %v6040
        %v6057 = vmul.f32 %v6025, %v6041
        %v6058 = vmul.f32 %v6026, %v6042
        %v6059 = vmul.f32 %v6027, %v6043
        %v6060 = vmul.f32 %v6028, %v6044
        %v6061 = vmul.f32 %v6029, %v6045
        %v6062 = vmul.f32 %v6030, %v6046
        %v6063 = vmul.f32 %v6031, %v6047
        %v6064 = vmul.f32 %v6032, %v6048
        %v6065 = vmul.f32 %v6033, %v6049
        %v6066 = vmul.f32 %v6034, %v6050
        %v6067 = vmul.f32 %v6035, %v6051
        %v6068 = vmul.f32 %v6036, %v6052
        %v6069 = vmul.f32 %v6037, %v6053
        %v6070 = vadd.f32 %v6004, %v6054
        %v6071 = vadd.f32 %v6005, %v6055
        %v6072 = vadd.f32 %v6006, %v6056
        %v6073 = vadd.f32 %v6007, %v6057
        %v6074 = vadd.f32 %v6008, %v6058
        %v6075 = vadd.f32 %v6009, %v6059
        %v6076 = vadd.f32 %v6010, %v6060
        %v6077 = vadd.f32 %v6011, %v6061
        %v6078 = vadd.f32 %v6012, %v6062
        %v6079 = vadd.f32 %v6013, %v6063
        %v6080 = vadd.f32 %v6014, %v6064
        %v6081 = vadd.f32 %v6015, %v6065
        %v6082 = vadd.f32 %v6016, %v6066
        %v6083 = vadd.f32 %v6017, %v6067
        %v6084 = vadd.f32 %v6018, %v6068
        %v6085 = vadd.f32 %v6019, %v6069
        %s6086 = scalar_lea.vmem [#allocation3], %s6020
        %v6087 = vld [vmem:[%s6086] sm:$0xff]
        %v6088 = vld [vmem:[%s6086 + $0x8] sm:$0xff]
        %v6089 = vld [vmem:[%s6086 + $0x10] sm:$0xff]
        %v6090 = vld [vmem:[%s6086 + $0x18] sm:$0xff]
        %v6091 = vld [vmem:[%s6086 + $0x20] sm:$0xff]
        %v6092 = vld [vmem:[%s6086 + $0x28] sm:$0xff]
        %v6093 = vld [vmem:[%s6086 + $0x30] sm:$0xff]
        %v6094 = vld [vmem:[%s6086 + $0x38] sm:$0xff]
        %v6095 = vld [vmem:[%s6086 + $0x40] sm:$0xff]
        %v6096 = vld [vmem:[%s6086 + $0x48] sm:$0xff]
        %v6097 = vld [vmem:[%s6086 + $0x50] sm:$0xff]
        %v6098 = vld [vmem:[%s6086 + $0x58] sm:$0xff]
        %v6099 = vld [vmem:[%s6086 + $0x60] sm:$0xff]
        %v6100 = vld [vmem:[%s6086 + $0x68] sm:$0xff]
        %v6101 = vld [vmem:[%s6086 + $0x70] sm:$0xff]
        %v6102 = vld [vmem:[%s6086 + $0x78] sm:$0xff]
        %v6103 = vld [vmem:[#allocation4 + $0x300] sm:$0xff]
        %v6104 = vld [vmem:[#allocation4 + $0x308] sm:$0xff]
        %v6105 = vld [vmem:[#allocation4 + $0x310] sm:$0xff]
        %v6106 = vld [vmem:[#allocation4 + $0x318] sm:$0xff]
        %v6107 = vld [vmem:[#allocation4 + $0x320] sm:$0xff]
        %v6108 = vld [vmem:[#allocation4 + $0x328] sm:$0xff]
        %v6109 = vld [vmem:[#allocation4 + $0x330] sm:$0xff]
        %v6110 = vld [vmem:[#allocation4 + $0x338] sm:$0xff]
        %v6111 = vld [vmem:[#allocation4 + $0x340] sm:$0xff]
        %v6112 = vld [vmem:[#allocation4 + $0x348] sm:$0xff]
        %v6113 = vld [vmem:[#allocation4 + $0x350] sm:$0xff]
        %v6114 = vld [vmem:[#allocation4 + $0x358] sm:$0xff]
        %v6115 = vld [vmem:[#allocation4 + $0x360] sm:$0xff]
        %v6116 = vld [vmem:[#allocation4 + $0x368] sm:$0xff]
        %v6117 = vld [vmem:[#allocation4 + $0x370] sm:$0xff]
        %v6118 = vld [vmem:[#allocation4 + $0x378] sm:$0xff]
        %v6119 = vmul.f32 %v6087, %v6103
        %v6120 = vmul.f32 %v6088, %v6104
        %v6121 = vmul.f32 %v6089, %v6105
        %v6122 = vmul.f32 %v6090, %v6106
        %v6123 = vmul.f32 %v6091, %v6107
        %v6124 = vmul.f32 %v6092, %v6108
        %v6125 = vmul.f32 %v6093, %v6109
        %v6126 = vmul.f32 %v6094, %v6110
        %v6127 = vmul.f32 %v6095, %v6111
        %v6128 = vmul.f32 %v6096, %v6112
        %v6129 = vmul.f32 %v6097, %v6113
        %v6130 = vmul.f32 %v6098, %v6114
        %v6131 = vmul.f32 %v6099, %v6115
        %v6132 = vmul.f32 %v6100, %v6116
        %v6133 = vmul.f32 %v6101, %v6117
        %v6134 = vmul.f32 %v6102, %v6118
        %v6135 = vadd.f32 %v6070, %v6119
        %v6136 = vadd.f32 %v6071, %v6120
        %v6137 = vadd.f32 %v6072, %v6121
        %v6138 = vadd.f32 %v6073, %v6122
        %v6139 = vadd.f32 %v6074, %v6123
        %v6140 = vadd.f32 %v6075, %v6124
        %v6141 = vadd.f32 %v6076, %v6125
        %v6142 = vadd.f32 %v6077, %v6126
        %v6143 = vadd.f32 %v6078, %v6127
        %v6144 = vadd.f32 %v6079, %v6128
        %v6145 = vadd.f32 %v6080, %v6129
        %v6146 = vadd.f32 %v6081, %v6130
        %v6147 = vadd.f32 %v6082, %v6131
        %v6148 = vadd.f32 %v6083, %v6132
        %v6149 = vadd.f32 %v6084, %v6133
        %v6150 = vadd.f32 %v6085, %v6134
        %s6151 = sadd.s32 %s6020, 1024
        %s6152 = scalar_lea.vmem [#allocation3], %s6151
        %v6153 = vld [vmem:[%s6152] sm:$0xff]
        %v6154 = vld [vmem:[%s6152 + $0x8] sm:$0xff]
        %v6155 = vld [vmem:[%s6152 + $0x10] sm:$0xff]
        %v6156 = vld [vmem:[%s6152 + $0x18] sm:$0xff]
        %v6157 = vld [vmem:[%s6152 + $0x20] sm:$0xff]
        %v6158 = vld [vmem:[%s6152 + $0x28] sm:$0xff]
        %v6159 = vld [vmem:[%s6152 + $0x30] sm:$0xff]
        %v6160 = vld [vmem:[%s6152 + $0x38] sm:$0xff]
        %v6161 = vld [vmem:[%s6152 + $0x40] sm:$0xff]
        %v6162 = vld [vmem:[%s6152 + $0x48] sm:$0xff]
        %v6163 = vld [vmem:[%s6152 + $0x50] sm:$0xff]
        %v6164 = vld [vmem:[%s6152 + $0x58] sm:$0xff]
        %v6165 = vld [vmem:[%s6152 + $0x60] sm:$0xff]
        %v6166 = vld [vmem:[%s6152 + $0x68] sm:$0xff]
        %v6167 = vld [vmem:[%s6152 + $0x70] sm:$0xff]
        %v6168 = vld [vmem:[%s6152 + $0x78] sm:$0xff]
        %v6169 = vld [vmem:[#allocation4 + $0x380] sm:$0xff]
        %v6170 = vld [vmem:[#allocation4 + $0x388] sm:$0xff]
        %v6171 = vld [vmem:[#allocation4 + $0x390] sm:$0xff]
        %v6172 = vld [vmem:[#allocation4 + $0x398] sm:$0xff]
        %v6173 = vld [vmem:[#allocation4 + $0x3a0] sm:$0xff]
        %v6174 = vld [vmem:[#allocation4 + $0x3a8] sm:$0xff]
        %v6175 = vld [vmem:[#allocation4 + $0x3b0] sm:$0xff]
        %v6176 = vld [vmem:[#allocation4 + $0x3b8] sm:$0xff]
        %v6177 = vld [vmem:[#allocation4 + $0x3c0] sm:$0xff]
        %v6178 = vld [vmem:[#allocation4 + $0x3c8] sm:$0xff]
        %v6179 = vld [vmem:[#allocation4 + $0x3d0] sm:$0xff]
        %v6180 = vld [vmem:[#allocation4 + $0x3d8] sm:$0xff]
        %v6181 = vld [vmem:[#allocation4 + $0x3e0] sm:$0xff]
        %v6182 = vld [vmem:[#allocation4 + $0x3e8] sm:$0xff]
        %v6183 = vld [vmem:[#allocation4 + $0x3f0] sm:$0xff]
        %v6184 = vld [vmem:[#allocation4 + $0x3f8] sm:$0xff]
        %v6185 = vmul.f32 %v6153, %v6169
        %v6186 = vmul.f32 %v6154, %v6170
        %v6187 = vmul.f32 %v6155, %v6171
        %v6188 = vmul.f32 %v6156, %v6172
        %v6189 = vmul.f32 %v6157, %v6173
        %v6190 = vmul.f32 %v6158, %v6174
        %v6191 = vmul.f32 %v6159, %v6175
        %v6192 = vmul.f32 %v6160, %v6176
        %v6193 = vmul.f32 %v6161, %v6177
        %v6194 = vmul.f32 %v6162, %v6178
        %v6195 = vmul.f32 %v6163, %v6179
        %v6196 = vmul.f32 %v6164, %v6180
        %v6197 = vmul.f32 %v6165, %v6181
        %v6198 = vmul.f32 %v6166, %v6182
        %v6199 = vmul.f32 %v6167, %v6183
        %v6200 = vmul.f32 %v6168, %v6184
        %v6201 = vadd.f32 %v6135, %v6185
        %v6202 = vadd.f32 %v6136, %v6186
        %v6203 = vadd.f32 %v6137, %v6187
        %v6204 = vadd.f32 %v6138, %v6188
        %v6205 = vadd.f32 %v6139, %v6189
        %v6206 = vadd.f32 %v6140, %v6190
        %v6207 = vadd.f32 %v6141, %v6191
        %v6208 = vadd.f32 %v6142, %v6192
        %v6209 = vadd.f32 %v6143, %v6193
        %v6210 = vadd.f32 %v6144, %v6194
        %v6211 = vadd.f32 %v6145, %v6195
        %v6212 = vadd.f32 %v6146, %v6196
        %v6213 = vadd.f32 %v6147, %v6197
        %v6214 = vadd.f32 %v6148, %v6198
        %v6215 = vadd.f32 %v6149, %v6199
        %v6216 = vadd.f32 %v6150, %v6200
        %s6217 = sadd.s32 %s6020, 2048
        %s6218 = scalar_lea.vmem [#allocation3], %s6217
        %v6219 = vld [vmem:[%s6218] sm:$0xff]
        %v6220 = vld [vmem:[%s6218 + $0x8] sm:$0xff]
        %v6221 = vld [vmem:[%s6218 + $0x10] sm:$0xff]
        %v6222 = vld [vmem:[%s6218 + $0x18] sm:$0xff]
        %v6223 = vld [vmem:[%s6218 + $0x20] sm:$0xff]
        %v6224 = vld [vmem:[%s6218 + $0x28] sm:$0xff]
        %v6225 = vld [vmem:[%s6218 + $0x30] sm:$0xff]
        %v6226 = vld [vmem:[%s6218 + $0x38] sm:$0xff]
        %v6227 = vld [vmem:[%s6218 + $0x40] sm:$0xff]
        %v6228 = vld [vmem:[%s6218 + $0x48] sm:$0xff]
        %v6229 = vld [vmem:[%s6218 + $0x50] sm:$0xff]
        %v6230 = vld [vmem:[%s6218 + $0x58] sm:$0xff]
        %v6231 = vld [vmem:[%s6218 + $0x60] sm:$0xff]
        %v6232 = vld [vmem:[%s6218 + $0x68] sm:$0xff]
        %v6233 = vld [vmem:[%s6218 + $0x70] sm:$0xff]
        %v6234 = vld [vmem:[%s6218 + $0x78] sm:$0xff]
        %v6235 = vld [vmem:[#allocation4 + $0x400] sm:$0xff]
        %v6236 = vld [vmem:[#allocation4 + $0x408] sm:$0xff]
        %v6237 = vld [vmem:[#allocation4 + $0x410] sm:$0xff]
        %v6238 = vld [vmem:[#allocation4 + $0x418] sm:$0xff]
        %v6239 = vld [vmem:[#allocation4 + $0x420] sm:$0xff]
        %v6240 = vld [vmem:[#allocation4 + $0x428] sm:$0xff]
        %v6241 = vld [vmem:[#allocation4 + $0x430] sm:$0xff]
        %v6242 = vld [vmem:[#allocation4 + $0x438] sm:$0xff]
        %v6243 = vld [vmem:[#allocation4 + $0x440] sm:$0xff]
        %v6244 = vld [vmem:[#allocation4 + $0x448] sm:$0xff]
        %v6245 = vld [vmem:[#allocation4 + $0x450] sm:$0xff]
        %v6246 = vld [vmem:[#allocation4 + $0x458] sm:$0xff]
        %v6247 = vld [vmem:[#allocation4 + $0x460] sm:$0xff]
        %v6248 = vld [vmem:[#allocation4 + $0x468] sm:$0xff]
        %v6249 = vld [vmem:[#allocation4 + $0x470] sm:$0xff]
        %v6250 = vld [vmem:[#allocation4 + $0x478] sm:$0xff]
        %v6251 = vmul.f32 %v6219, %v6235
        %v6252 = vmul.f32 %v6220, %v6236
        %v6253 = vmul.f32 %v6221, %v6237
        %v6254 = vmul.f32 %v6222, %v6238
        %v6255 = vmul.f32 %v6223, %v6239
        %v6256 = vmul.f32 %v6224, %v6240
        %v6257 = vmul.f32 %v6225, %v6241
        %v6258 = vmul.f32 %v6226, %v6242
        %v6259 = vmul.f32 %v6227, %v6243
        %v6260 = vmul.f32 %v6228, %v6244
        %v6261 = vmul.f32 %v6229, %v6245
        %v6262 = vmul.f32 %v6230, %v6246
        %v6263 = vmul.f32 %v6231, %v6247
        %v6264 = vmul.f32 %v6232, %v6248
        %v6265 = vmul.f32 %v6233, %v6249
        %v6266 = vmul.f32 %v6234, %v6250
        %v6267 = vadd.f32 %v6201, %v6251
        %v6268 = vadd.f32 %v6202, %v6252
        %v6269 = vadd.f32 %v6203, %v6253
        %v6270 = vadd.f32 %v6204, %v6254
        %v6271 = vadd.f32 %v6205, %v6255
        %v6272 = vadd.f32 %v6206, %v6256
        %v6273 = vadd.f32 %v6207, %v6257
        %v6274 = vadd.f32 %v6208, %v6258
        %v6275 = vadd.f32 %v6209, %v6259
        %v6276 = vadd.f32 %v6210, %v6260
        %v6277 = vadd.f32 %v6211, %v6261
        %v6278 = vadd.f32 %v6212, %v6262
        %v6279 = vadd.f32 %v6213, %v6263
        %v6280 = vadd.f32 %v6214, %v6264
        %v6281 = vadd.f32 %v6215, %v6265
        %v6282 = vadd.f32 %v6216, %v6266
        %s6283 = sadd.s32 %s6020, 3072
        %s6284 = scalar_lea.vmem [#allocation3], %s6283
        %v6285 = vld [vmem:[%s6284] sm:$0xff]
        %v6286 = vld [vmem:[%s6284 + $0x8] sm:$0xff]
        %v6287 = vld [vmem:[%s6284 + $0x10] sm:$0xff]
        %v6288 = vld [vmem:[%s6284 + $0x18] sm:$0xff]
        %v6289 = vld [vmem:[%s6284 + $0x20] sm:$0xff]
        %v6290 = vld [vmem:[%s6284 + $0x28] sm:$0xff]
        %v6291 = vld [vmem:[%s6284 + $0x30] sm:$0xff]
        %v6292 = vld [vmem:[%s6284 + $0x38] sm:$0xff]
        %v6293 = vld [vmem:[%s6284 + $0x40] sm:$0xff]
        %v6294 = vld [vmem:[%s6284 + $0x48] sm:$0xff]
        %v6295 = vld [vmem:[%s6284 + $0x50] sm:$0xff]
        %v6296 = vld [vmem:[%s6284 + $0x58] sm:$0xff]
        %v6297 = vld [vmem:[%s6284 + $0x60] sm:$0xff]
        %v6298 = vld [vmem:[%s6284 + $0x68] sm:$0xff]
        %v6299 = vld [vmem:[%s6284 + $0x70] sm:$0xff]
        %v6300 = vld [vmem:[%s6284 + $0x78] sm:$0xff]
        %v6301 = vld [vmem:[#allocation4 + $0x480] sm:$0xff]
        %v6302 = vld [vmem:[#allocation4 + $0x488] sm:$0xff]
        %v6303 = vld [vmem:[#allocation4 + $0x490] sm:$0xff]
        %v6304 = vld [vmem:[#allocation4 + $0x498] sm:$0xff]
        %v6305 = vld [vmem:[#allocation4 + $0x4a0] sm:$0xff]
        %v6306 = vld [vmem:[#allocation4 + $0x4a8] sm:$0xff]
        %v6307 = vld [vmem:[#allocation4 + $0x4b0] sm:$0xff]
        %v6308 = vld [vmem:[#allocation4 + $0x4b8] sm:$0xff]
        %v6309 = vld [vmem:[#allocation4 + $0x4c0] sm:$0xff]
        %v6310 = vld [vmem:[#allocation4 + $0x4c8] sm:$0xff]
        %v6311 = vld [vmem:[#allocation4 + $0x4d0] sm:$0xff]
        %v6312 = vld [vmem:[#allocation4 + $0x4d8] sm:$0xff]
        %v6313 = vld [vmem:[#allocation4 + $0x4e0] sm:$0xff]
        %v6314 = vld [vmem:[#allocation4 + $0x4e8] sm:$0xff]
        %v6315 = vld [vmem:[#allocation4 + $0x4f0] sm:$0xff]
        %v6316 = vld [vmem:[#allocation4 + $0x4f8] sm:$0xff]
        %v6317 = vmul.f32 %v6285, %v6301
        %v6318 = vmul.f32 %v6286, %v6302
        %v6319 = vmul.f32 %v6287, %v6303
        %v6320 = vmul.f32 %v6288, %v6304
        %v6321 = vmul.f32 %v6289, %v6305
        %v6322 = vmul.f32 %v6290, %v6306
        %v6323 = vmul.f32 %v6291, %v6307
        %v6324 = vmul.f32 %v6292, %v6308
        %v6325 = vmul.f32 %v6293, %v6309
        %v6326 = vmul.f32 %v6294, %v6310
        %v6327 = vmul.f32 %v6295, %v6311
        %v6328 = vmul.f32 %v6296, %v6312
        %v6329 = vmul.f32 %v6297, %v6313
        %v6330 = vmul.f32 %v6298, %v6314
        %v6331 = vmul.f32 %v6299, %v6315
        %v6332 = vmul.f32 %v6300, %v6316
        %v6333 = vadd.f32 %v6267, %v6317
        %v6334 = vadd.f32 %v6268, %v6318
        %v6335 = vadd.f32 %v6269, %v6319
        %v6336 = vadd.f32 %v6270, %v6320
        %v6337 = vadd.f32 %v6271, %v6321
        %v6338 = vadd.f32 %v6272, %v6322
        %v6339 = vadd.f32 %v6273, %v6323
        %v6340 = vadd.f32 %v6274, %v6324
        %v6341 = vadd.f32 %v6275, %v6325
        %v6342 = vadd.f32 %v6276, %v6326
        %v6343 = vadd.f32 %v6277, %v6327
        %v6344 = vadd.f32 %v6278, %v6328
        %v6345 = vadd.f32 %v6279, %v6329
        %v6346 = vadd.f32 %v6280, %v6330
        %v6347 = vadd.f32 %v6281, %v6331
        %v6348 = vadd.f32 %v6282, %v6332
        %s6349 = sadd.s32 %s5691, 64
        %s6350 = scalar_lea.vmem [#allocation2], %s6349
        %v6351 = vld [vmem:[%s6350] sm:$0xff]
        %v6352 = vld [vmem:[%s6350 + $0x8] sm:$0xff]
        %v6353 = vld [vmem:[%s6350 + $0x10] sm:$0xff]
        %v6354 = vld [vmem:[%s6350 + $0x18] sm:$0xff]
        %v6355 = vld [vmem:[%s6350 + $0x20] sm:$0xff]
        %v6356 = vld [vmem:[%s6350 + $0x28] sm:$0xff]
        %v6357 = vld [vmem:[%s6350 + $0x30] sm:$0xff]
        %v6358 = vld [vmem:[%s6350 + $0x38] sm:$0xff]
        %v6359 = vld [vmem:[%s6350 + $0x40] sm:$0xff]
        %v6360 = vld [vmem:[%s6350 + $0x48] sm:$0xff]
        %v6361 = vld [vmem:[%s6350 + $0x50] sm:$0xff]
        %v6362 = vld [vmem:[%s6350 + $0x58] sm:$0xff]
        %v6363 = vld [vmem:[%s6350 + $0x60] sm:$0xff]
        %v6364 = vld [vmem:[%s6350 + $0x68] sm:$0xff]
        %v6365 = vld [vmem:[%s6350 + $0x70] sm:$0xff]
        %v6366 = vld [vmem:[%s6350 + $0x78] sm:$0xff]
        %v6367 = vld [vmem:[#allocation4 + $0x500] sm:$0xff]
        %v6368 = vld [vmem:[#allocation4 + $0x508] sm:$0xff]
        %v6369 = vld [vmem:[#allocation4 + $0x510] sm:$0xff]
        %v6370 = vld [vmem:[#allocation4 + $0x518] sm:$0xff]
        %v6371 = vld [vmem:[#allocation4 + $0x520] sm:$0xff]
        %v6372 = vld [vmem:[#allocation4 + $0x528] sm:$0xff]
        %v6373 = vld [vmem:[#allocation4 + $0x530] sm:$0xff]
        %v6374 = vld [vmem:[#allocation4 + $0x538] sm:$0xff]
        %v6375 = vld [vmem:[#allocation4 + $0x540] sm:$0xff]
        %v6376 = vld [vmem:[#allocation4 + $0x548] sm:$0xff]
        %v6377 = vld [vmem:[#allocation4 + $0x550] sm:$0xff]
        %v6378 = vld [vmem:[#allocation4 + $0x558] sm:$0xff]
        %v6379 = vld [vmem:[#allocation4 + $0x560] sm:$0xff]
        %v6380 = vld [vmem:[#allocation4 + $0x568] sm:$0xff]
        %v6381 = vld [vmem:[#allocation4 + $0x570] sm:$0xff]
        %v6382 = vld [vmem:[#allocation4 + $0x578] sm:$0xff]
        %v6383 = vmul.f32 %v6351, %v6367
        %v6384 = vmul.f32 %v6352, %v6368
        %v6385 = vmul.f32 %v6353, %v6369
        %v6386 = vmul.f32 %v6354, %v6370
        %v6387 = vmul.f32 %v6355, %v6371
        %v6388 = vmul.f32 %v6356, %v6372
        %v6389 = vmul.f32 %v6357, %v6373
        %v6390 = vmul.f32 %v6358, %v6374
        %v6391 = vmul.f32 %v6359, %v6375
        %v6392 = vmul.f32 %v6360, %v6376
        %v6393 = vmul.f32 %v6361, %v6377
        %v6394 = vmul.f32 %v6362, %v6378
        %v6395 = vmul.f32 %v6363, %v6379
        %v6396 = vmul.f32 %v6364, %v6380
        %v6397 = vmul.f32 %v6365, %v6381
        %v6398 = vmul.f32 %v6366, %v6382
        %v6399 = vadd.f32 %v6333, %v6383
        %v6400 = vadd.f32 %v6334, %v6384
        %v6401 = vadd.f32 %v6335, %v6385
        %v6402 = vadd.f32 %v6336, %v6386
        %v6403 = vadd.f32 %v6337, %v6387
        %v6404 = vadd.f32 %v6338, %v6388
        %v6405 = vadd.f32 %v6339, %v6389
        %v6406 = vadd.f32 %v6340, %v6390
        %v6407 = vadd.f32 %v6341, %v6391
        %v6408 = vadd.f32 %v6342, %v6392
        %v6409 = vadd.f32 %v6343, %v6393
        %v6410 = vadd.f32 %v6344, %v6394
        %v6411 = vadd.f32 %v6345, %v6395
        %v6412 = vadd.f32 %v6346, %v6396
        %v6413 = vadd.f32 %v6347, %v6397
        %v6414 = vadd.f32 %v6348, %v6398
        %s6415 = scalar_lea.vmem [#allocation3], %s6349
        %v6416 = vld [vmem:[%s6415] sm:$0xff]
        %v6417 = vld [vmem:[%s6415 + $0x8] sm:$0xff]
        %v6418 = vld [vmem:[%s6415 + $0x10] sm:$0xff]
        %v6419 = vld [vmem:[%s6415 + $0x18] sm:$0xff]
        %v6420 = vld [vmem:[%s6415 + $0x20] sm:$0xff]
        %v6421 = vld [vmem:[%s6415 + $0x28] sm:$0xff]
        %v6422 = vld [vmem:[%s6415 + $0x30] sm:$0xff]
        %v6423 = vld [vmem:[%s6415 + $0x38] sm:$0xff]
        %v6424 = vld [vmem:[%s6415 + $0x40] sm:$0xff]
        %v6425 = vld [vmem:[%s6415 + $0x48] sm:$0xff]
        %v6426 = vld [vmem:[%s6415 + $0x50] sm:$0xff]
        %v6427 = vld [vmem:[%s6415 + $0x58] sm:$0xff]
        %v6428 = vld [vmem:[%s6415 + $0x60] sm:$0xff]
        %v6429 = vld [vmem:[%s6415 + $0x68] sm:$0xff]
        %v6430 = vld [vmem:[%s6415 + $0x70] sm:$0xff]
        %v6431 = vld [vmem:[%s6415 + $0x78] sm:$0xff]
        %v6432 = vld [vmem:[#allocation4 + $0x580] sm:$0xff]
        %v6433 = vld [vmem:[#allocation4 + $0x588] sm:$0xff]
        %v6434 = vld [vmem:[#allocation4 + $0x590] sm:$0xff]
        %v6435 = vld [vmem:[#allocation4 + $0x598] sm:$0xff]
        %v6436 = vld [vmem:[#allocation4 + $0x5a0] sm:$0xff]
        %v6437 = vld [vmem:[#allocation4 + $0x5a8] sm:$0xff]
        %v6438 = vld [vmem:[#allocation4 + $0x5b0] sm:$0xff]
        %v6439 = vld [vmem:[#allocation4 + $0x5b8] sm:$0xff]
        %v6440 = vld [vmem:[#allocation4 + $0x5c0] sm:$0xff]
        %v6441 = vld [vmem:[#allocation4 + $0x5c8] sm:$0xff]
        %v6442 = vld [vmem:[#allocation4 + $0x5d0] sm:$0xff]
        %v6443 = vld [vmem:[#allocation4 + $0x5d8] sm:$0xff]
        %v6444 = vld [vmem:[#allocation4 + $0x5e0] sm:$0xff]
        %v6445 = vld [vmem:[#allocation4 + $0x5e8] sm:$0xff]
        %v6446 = vld [vmem:[#allocation4 + $0x5f0] sm:$0xff]
        %v6447 = vld [vmem:[#allocation4 + $0x5f8] sm:$0xff]
        %v6448 = vmul.f32 %v6416, %v6432
        %v6449 = vmul.f32 %v6417, %v6433
        %v6450 = vmul.f32 %v6418, %v6434
        %v6451 = vmul.f32 %v6419, %v6435
        %v6452 = vmul.f32 %v6420, %v6436
        %v6453 = vmul.f32 %v6421, %v6437
        %v6454 = vmul.f32 %v6422, %v6438
        %v6455 = vmul.f32 %v6423, %v6439
        %v6456 = vmul.f32 %v6424, %v6440
        %v6457 = vmul.f32 %v6425, %v6441
        %v6458 = vmul.f32 %v6426, %v6442
        %v6459 = vmul.f32 %v6427, %v6443
        %v6460 = vmul.f32 %v6428, %v6444
        %v6461 = vmul.f32 %v6429, %v6445
        %v6462 = vmul.f32 %v6430, %v6446
        %v6463 = vmul.f32 %v6431, %v6447
        %v6464 = vadd.f32 %v6399, %v6448
        %v6465 = vadd.f32 %v6400, %v6449
        %v6466 = vadd.f32 %v6401, %v6450
        %v6467 = vadd.f32 %v6402, %v6451
        %v6468 = vadd.f32 %v6403, %v6452
        %v6469 = vadd.f32 %v6404, %v6453
        %v6470 = vadd.f32 %v6405, %v6454
        %v6471 = vadd.f32 %v6406, %v6455
        %v6472 = vadd.f32 %v6407, %v6456
        %v6473 = vadd.f32 %v6408, %v6457
        %v6474 = vadd.f32 %v6409, %v6458
        %v6475 = vadd.f32 %v6410, %v6459
        %v6476 = vadd.f32 %v6411, %v6460
        %v6477 = vadd.f32 %v6412, %v6461
        %v6478 = vadd.f32 %v6413, %v6462
        %v6479 = vadd.f32 %v6414, %v6463
        %s6480 = sadd.s32 %s6349, 1024
        %s6481 = scalar_lea.vmem [#allocation3], %s6480
        %v6482 = vld [vmem:[%s6481] sm:$0xff]
        %v6483 = vld [vmem:[%s6481 + $0x8] sm:$0xff]
        %v6484 = vld [vmem:[%s6481 + $0x10] sm:$0xff]
        %v6485 = vld [vmem:[%s6481 + $0x18] sm:$0xff]
        %v6486 = vld [vmem:[%s6481 + $0x20] sm:$0xff]
        %v6487 = vld [vmem:[%s6481 + $0x28] sm:$0xff]
        %v6488 = vld [vmem:[%s6481 + $0x30] sm:$0xff]
        %v6489 = vld [vmem:[%s6481 + $0x38] sm:$0xff]
        %v6490 = vld [vmem:[%s6481 + $0x40] sm:$0xff]
        %v6491 = vld [vmem:[%s6481 + $0x48] sm:$0xff]
        %v6492 = vld [vmem:[%s6481 + $0x50] sm:$0xff]
        %v6493 = vld [vmem:[%s6481 + $0x58] sm:$0xff]
        %v6494 = vld [vmem:[%s6481 + $0x60] sm:$0xff]
        %v6495 = vld [vmem:[%s6481 + $0x68] sm:$0xff]
        %v6496 = vld [vmem:[%s6481 + $0x70] sm:$0xff]
        %v6497 = vld [vmem:[%s6481 + $0x78] sm:$0xff]
        %v6498 = vld [vmem:[#allocation4 + $0x600] sm:$0xff]
        %v6499 = vld [vmem:[#allocation4 + $0x608] sm:$0xff]
        %v6500 = vld [vmem:[#allocation4 + $0x610] sm:$0xff]
        %v6501 = vld [vmem:[#allocation4 + $0x618] sm:$0xff]
        %v6502 = vld [vmem:[#allocation4 + $0x620] sm:$0xff]
        %v6503 = vld [vmem:[#allocation4 + $0x628] sm:$0xff]
        %v6504 = vld [vmem:[#allocation4 + $0x630] sm:$0xff]
        %v6505 = vld [vmem:[#allocation4 + $0x638] sm:$0xff]
        %v6506 = vld [vmem:[#allocation4 + $0x640] sm:$0xff]
        %v6507 = vld [vmem:[#allocation4 + $0x648] sm:$0xff]
        %v6508 = vld [vmem:[#allocation4 + $0x650] sm:$0xff]
        %v6509 = vld [vmem:[#allocation4 + $0x658] sm:$0xff]
        %v6510 = vld [vmem:[#allocation4 + $0x660] sm:$0xff]
        %v6511 = vld [vmem:[#allocation4 + $0x668] sm:$0xff]
        %v6512 = vld [vmem:[#allocation4 + $0x670] sm:$0xff]
        %v6513 = vld [vmem:[#allocation4 + $0x678] sm:$0xff]
        %v6514 = vmul.f32 %v6482, %v6498
        %v6515 = vmul.f32 %v6483, %v6499
        %v6516 = vmul.f32 %v6484, %v6500
        %v6517 = vmul.f32 %v6485, %v6501
        %v6518 = vmul.f32 %v6486, %v6502
        %v6519 = vmul.f32 %v6487, %v6503
        %v6520 = vmul.f32 %v6488, %v6504
        %v6521 = vmul.f32 %v6489, %v6505
        %v6522 = vmul.f32 %v6490, %v6506
        %v6523 = vmul.f32 %v6491, %v6507
        %v6524 = vmul.f32 %v6492, %v6508
        %v6525 = vmul.f32 %v6493, %v6509
        %v6526 = vmul.f32 %v6494, %v6510
        %v6527 = vmul.f32 %v6495, %v6511
        %v6528 = vmul.f32 %v6496, %v6512
        %v6529 = vmul.f32 %v6497, %v6513
        %v6530 = vadd.f32 %v6464, %v6514
        %v6531 = vadd.f32 %v6465, %v6515
        %v6532 = vadd.f32 %v6466, %v6516
        %v6533 = vadd.f32 %v6467, %v6517
        %v6534 = vadd.f32 %v6468, %v6518
        %v6535 = vadd.f32 %v6469, %v6519
        %v6536 = vadd.f32 %v6470, %v6520
        %v6537 = vadd.f32 %v6471, %v6521
        %v6538 = vadd.f32 %v6472, %v6522
        %v6539 = vadd.f32 %v6473, %v6523
        %v6540 = vadd.f32 %v6474, %v6524
        %v6541 = vadd.f32 %v6475, %v6525
        %v6542 = vadd.f32 %v6476, %v6526
        %v6543 = vadd.f32 %v6477, %v6527
        %v6544 = vadd.f32 %v6478, %v6528
        %v6545 = vadd.f32 %v6479, %v6529
        %s6546 = sadd.s32 %s6349, 2048
        %s6547 = scalar_lea.vmem [#allocation3], %s6546
        %v6548 = vld [vmem:[%s6547] sm:$0xff]
        %v6549 = vld [vmem:[%s6547 + $0x8] sm:$0xff]
        %v6550 = vld [vmem:[%s6547 + $0x10] sm:$0xff]
        %v6551 = vld [vmem:[%s6547 + $0x18] sm:$0xff]
        %v6552 = vld [vmem:[%s6547 + $0x20] sm:$0xff]
        %v6553 = vld [vmem:[%s6547 + $0x28] sm:$0xff]
        %v6554 = vld [vmem:[%s6547 + $0x30] sm:$0xff]
        %v6555 = vld [vmem:[%s6547 + $0x38] sm:$0xff]
        %v6556 = vld [vmem:[%s6547 + $0x40] sm:$0xff]
        %v6557 = vld [vmem:[%s6547 + $0x48] sm:$0xff]
        %v6558 = vld [vmem:[%s6547 + $0x50] sm:$0xff]
        %v6559 = vld [vmem:[%s6547 + $0x58] sm:$0xff]
        %v6560 = vld [vmem:[%s6547 + $0x60] sm:$0xff]
        %v6561 = vld [vmem:[%s6547 + $0x68] sm:$0xff]
        %v6562 = vld [vmem:[%s6547 + $0x70] sm:$0xff]
        %v6563 = vld [vmem:[%s6547 + $0x78] sm:$0xff]
        %v6564 = vld [vmem:[#allocation4 + $0x680] sm:$0xff]
        %v6565 = vld [vmem:[#allocation4 + $0x688] sm:$0xff]
        %v6566 = vld [vmem:[#allocation4 + $0x690] sm:$0xff]
        %v6567 = vld [vmem:[#allocation4 + $0x698] sm:$0xff]
        %v6568 = vld [vmem:[#allocation4 + $0x6a0] sm:$0xff]
        %v6569 = vld [vmem:[#allocation4 + $0x6a8] sm:$0xff]
        %v6570 = vld [vmem:[#allocation4 + $0x6b0] sm:$0xff]
        %v6571 = vld [vmem:[#allocation4 + $0x6b8] sm:$0xff]
        %v6572 = vld [vmem:[#allocation4 + $0x6c0] sm:$0xff]
        %v6573 = vld [vmem:[#allocation4 + $0x6c8] sm:$0xff]
        %v6574 = vld [vmem:[#allocation4 + $0x6d0] sm:$0xff]
        %v6575 = vld [vmem:[#allocation4 + $0x6d8] sm:$0xff]
        %v6576 = vld [vmem:[#allocation4 + $0x6e0] sm:$0xff]
        %v6577 = vld [vmem:[#allocation4 + $0x6e8] sm:$0xff]
        %v6578 = vld [vmem:[#allocation4 + $0x6f0] sm:$0xff]
        %v6579 = vld [vmem:[#allocation4 + $0x6f8] sm:$0xff]
        %v6580 = vmul.f32 %v6548, %v6564
        %v6581 = vmul.f32 %v6549, %v6565
        %v6582 = vmul.f32 %v6550, %v6566
        %v6583 = vmul.f32 %v6551, %v6567
        %v6584 = vmul.f32 %v6552, %v6568
        %v6585 = vmul.f32 %v6553, %v6569
        %v6586 = vmul.f32 %v6554, %v6570
        %v6587 = vmul.f32 %v6555, %v6571
        %v6588 = vmul.f32 %v6556, %v6572
        %v6589 = vmul.f32 %v6557, %v6573
        %v6590 = vmul.f32 %v6558, %v6574
        %v6591 = vmul.f32 %v6559, %v6575
        %v6592 = vmul.f32 %v6560, %v6576
        %v6593 = vmul.f32 %v6561, %v6577
        %v6594 = vmul.f32 %v6562, %v6578
        %v6595 = vmul.f32 %v6563, %v6579
        %v6596 = vadd.f32 %v6530, %v6580
        %v6597 = vadd.f32 %v6531, %v6581
        %v6598 = vadd.f32 %v6532, %v6582
        %v6599 = vadd.f32 %v6533, %v6583
        %v6600 = vadd.f32 %v6534, %v6584
        %v6601 = vadd.f32 %v6535, %v6585
        %v6602 = vadd.f32 %v6536, %v6586
        %v6603 = vadd.f32 %v6537, %v6587
        %v6604 = vadd.f32 %v6538, %v6588
        %v6605 = vadd.f32 %v6539, %v6589
        %v6606 = vadd.f32 %v6540, %v6590
        %v6607 = vadd.f32 %v6541, %v6591
        %v6608 = vadd.f32 %v6542, %v6592
        %v6609 = vadd.f32 %v6543, %v6593
        %v6610 = vadd.f32 %v6544, %v6594
        %v6611 = vadd.f32 %v6545, %v6595
        %s6612 = sadd.s32 %s6349, 3072
        %s6613 = scalar_lea.vmem [#allocation3], %s6612
        %v6614 = vld [vmem:[%s6613] sm:$0xff]
        %v6615 = vld [vmem:[%s6613 + $0x8] sm:$0xff]
        %v6616 = vld [vmem:[%s6613 + $0x10] sm:$0xff]
        %v6617 = vld [vmem:[%s6613 + $0x18] sm:$0xff]
        %v6618 = vld [vmem:[%s6613 + $0x20] sm:$0xff]
        %v6619 = vld [vmem:[%s6613 + $0x28] sm:$0xff]
        %v6620 = vld [vmem:[%s6613 + $0x30] sm:$0xff]
        %v6621 = vld [vmem:[%s6613 + $0x38] sm:$0xff]
        %v6622 = vld [vmem:[%s6613 + $0x40] sm:$0xff]
        %v6623 = vld [vmem:[%s6613 + $0x48] sm:$0xff]
        %v6624 = vld [vmem:[%s6613 + $0x50] sm:$0xff]
        %v6625 = vld [vmem:[%s6613 + $0x58] sm:$0xff]
        %v6626 = vld [vmem:[%s6613 + $0x60] sm:$0xff]
        %v6627 = vld [vmem:[%s6613 + $0x68] sm:$0xff]
        %v6628 = vld [vmem:[%s6613 + $0x70] sm:$0xff]
        %v6629 = vld [vmem:[%s6613 + $0x78] sm:$0xff]
        %v6630 = vld [vmem:[#allocation4 + $0x700] sm:$0xff]
        %v6631 = vld [vmem:[#allocation4 + $0x708] sm:$0xff]
        %v6632 = vld [vmem:[#allocation4 + $0x710] sm:$0xff]
        %v6633 = vld [vmem:[#allocation4 + $0x718] sm:$0xff]
        %v6634 = vld [vmem:[#allocation4 + $0x720] sm:$0xff]
        %v6635 = vld [vmem:[#allocation4 + $0x728] sm:$0xff]
        %v6636 = vld [vmem:[#allocation4 + $0x730] sm:$0xff]
        %v6637 = vld [vmem:[#allocation4 + $0x738] sm:$0xff]
        %v6638 = vld [vmem:[#allocation4 + $0x740] sm:$0xff]
        %v6639 = vld [vmem:[#allocation4 + $0x748] sm:$0xff]
        %v6640 = vld [vmem:[#allocation4 + $0x750] sm:$0xff]
        %v6641 = vld [vmem:[#allocation4 + $0x758] sm:$0xff]
        %v6642 = vld [vmem:[#allocation4 + $0x760] sm:$0xff]
        %v6643 = vld [vmem:[#allocation4 + $0x768] sm:$0xff]
        %v6644 = vld [vmem:[#allocation4 + $0x770] sm:$0xff]
        %v6645 = vld [vmem:[#allocation4 + $0x778] sm:$0xff]
        %v6646 = vmul.f32 %v6614, %v6630
        %v6647 = vmul.f32 %v6615, %v6631
        %v6648 = vmul.f32 %v6616, %v6632
        %v6649 = vmul.f32 %v6617, %v6633
        %v6650 = vmul.f32 %v6618, %v6634
        %v6651 = vmul.f32 %v6619, %v6635
        %v6652 = vmul.f32 %v6620, %v6636
        %v6653 = vmul.f32 %v6621, %v6637
        %v6654 = vmul.f32 %v6622, %v6638
        %v6655 = vmul.f32 %v6623, %v6639
        %v6656 = vmul.f32 %v6624, %v6640
        %v6657 = vmul.f32 %v6625, %v6641
        %v6658 = vmul.f32 %v6626, %v6642
        %v6659 = vmul.f32 %v6627, %v6643
        %v6660 = vmul.f32 %v6628, %v6644
        %v6661 = vmul.f32 %v6629, %v6645
        %v6662 = vadd.f32 %v6596, %v6646
        %v6663 = vadd.f32 %v6597, %v6647
        %v6664 = vadd.f32 %v6598, %v6648
        %v6665 = vadd.f32 %v6599, %v6649
        %v6666 = vadd.f32 %v6600, %v6650
        %v6667 = vadd.f32 %v6601, %v6651
        %v6668 = vadd.f32 %v6602, %v6652
        %v6669 = vadd.f32 %v6603, %v6653
        %v6670 = vadd.f32 %v6604, %v6654
        %v6671 = vadd.f32 %v6605, %v6655
        %v6672 = vadd.f32 %v6606, %v6656
        %v6673 = vadd.f32 %v6607, %v6657
        %v6674 = vadd.f32 %v6608, %v6658
        %v6675 = vadd.f32 %v6609, %v6659
        %v6676 = vadd.f32 %v6610, %v6660
        %v6677 = vadd.f32 %v6611, %v6661
        %s6678 = sadd.s32 %s5691, 96
        %s6679 = scalar_lea.vmem [#allocation2], %s6678
        %v6680 = vld [vmem:[%s6679] sm:$0xff]
        %v6681 = vld [vmem:[%s6679 + $0x8] sm:$0xff]
        %v6682 = vld [vmem:[%s6679 + $0x10] sm:$0xff]
        %v6683 = vld [vmem:[%s6679 + $0x18] sm:$0xff]
        %v6684 = vld [vmem:[%s6679 + $0x20] sm:$0xff]
        %v6685 = vld [vmem:[%s6679 + $0x28] sm:$0xff]
        %v6686 = vld [vmem:[%s6679 + $0x30] sm:$0xff]
        %v6687 = vld [vmem:[%s6679 + $0x38] sm:$0xff]
        %v6688 = vld [vmem:[%s6679 + $0x40] sm:$0xff]
        %v6689 = vld [vmem:[%s6679 + $0x48] sm:$0xff]
        %v6690 = vld [vmem:[%s6679 + $0x50] sm:$0xff]
        %v6691 = vld [vmem:[%s6679 + $0x58] sm:$0xff]
        %v6692 = vld [vmem:[%s6679 + $0x60] sm:$0xff]
        %v6693 = vld [vmem:[%s6679 + $0x68] sm:$0xff]
        %v6694 = vld [vmem:[%s6679 + $0x70] sm:$0xff]
        %v6695 = vld [vmem:[%s6679 + $0x78] sm:$0xff]
        %v6696 = vld [vmem:[#allocation4 + $0x780] sm:$0xff]
        %v6697 = vld [vmem:[#allocation4 + $0x788] sm:$0xff]
        %v6698 = vld [vmem:[#allocation4 + $0x790] sm:$0xff]
        %v6699 = vld [vmem:[#allocation4 + $0x798] sm:$0xff]
        %v6700 = vld [vmem:[#allocation4 + $0x7a0] sm:$0xff]
        %v6701 = vld [vmem:[#allocation4 + $0x7a8] sm:$0xff]
        %v6702 = vld [vmem:[#allocation4 + $0x7b0] sm:$0xff]
        %v6703 = vld [vmem:[#allocation4 + $0x7b8] sm:$0xff]
        %v6704 = vld [vmem:[#allocation4 + $0x7c0] sm:$0xff]
        %v6705 = vld [vmem:[#allocation4 + $0x7c8] sm:$0xff]
        %v6706 = vld [vmem:[#allocation4 + $0x7d0] sm:$0xff]
        %v6707 = vld [vmem:[#allocation4 + $0x7d8] sm:$0xff]
        %v6708 = vld [vmem:[#allocation4 + $0x7e0] sm:$0xff]
        %v6709 = vld [vmem:[#allocation4 + $0x7e8] sm:$0xff]
        %v6710 = vld [vmem:[#allocation4 + $0x7f0] sm:$0xff]
        %v6711 = vld [vmem:[#allocation4 + $0x7f8] sm:$0xff]
        %v6712 = vmul.f32 %v6680, %v6696
        %v6713 = vmul.f32 %v6681, %v6697
        %v6714 = vmul.f32 %v6682, %v6698
        %v6715 = vmul.f32 %v6683, %v6699
        %v6716 = vmul.f32 %v6684, %v6700
        %v6717 = vmul.f32 %v6685, %v6701
        %v6718 = vmul.f32 %v6686, %v6702
        %v6719 = vmul.f32 %v6687, %v6703
        %v6720 = vmul.f32 %v6688, %v6704
        %v6721 = vmul.f32 %v6689, %v6705
        %v6722 = vmul.f32 %v6690, %v6706
        %v6723 = vmul.f32 %v6691, %v6707
        %v6724 = vmul.f32 %v6692, %v6708
        %v6725 = vmul.f32 %v6693, %v6709
        %v6726 = vmul.f32 %v6694, %v6710
        %v6727 = vmul.f32 %v6695, %v6711
        %v6728 = vadd.f32 %v6662, %v6712
        %v6729 = vadd.f32 %v6663, %v6713
        %v6730 = vadd.f32 %v6664, %v6714
        %v6731 = vadd.f32 %v6665, %v6715
        %v6732 = vadd.f32 %v6666, %v6716
        %v6733 = vadd.f32 %v6667, %v6717
        %v6734 = vadd.f32 %v6668, %v6718
        %v6735 = vadd.f32 %v6669, %v6719
        %v6736 = vadd.f32 %v6670, %v6720
        %v6737 = vadd.f32 %v6671, %v6721
        %v6738 = vadd.f32 %v6672, %v6722
        %v6739 = vadd.f32 %v6673, %v6723
        %v6740 = vadd.f32 %v6674, %v6724
        %v6741 = vadd.f32 %v6675, %v6725
        %v6742 = vadd.f32 %v6676, %v6726
        %v6743 = vadd.f32 %v6677, %v6727
        %s6744 = scalar_lea.vmem [#allocation3], %s6678
        %v6745 = vld [vmem:[%s6744] sm:$0xff]
        %v6746 = vld [vmem:[%s6744 + $0x8] sm:$0xff]
        %v6747 = vld [vmem:[%s6744 + $0x10] sm:$0xff]
        %v6748 = vld [vmem:[%s6744 + $0x18] sm:$0xff]
        %v6749 = vld [vmem:[%s6744 + $0x20] sm:$0xff]
        %v6750 = vld [vmem:[%s6744 + $0x28] sm:$0xff]
        %v6751 = vld [vmem:[%s6744 + $0x30] sm:$0xff]
        %v6752 = vld [vmem:[%s6744 + $0x38] sm:$0xff]
        %v6753 = vld [vmem:[%s6744 + $0x40] sm:$0xff]
        %v6754 = vld [vmem:[%s6744 + $0x48] sm:$0xff]
        %v6755 = vld [vmem:[%s6744 + $0x50] sm:$0xff]
        %v6756 = vld [vmem:[%s6744 + $0x58] sm:$0xff]
        %v6757 = vld [vmem:[%s6744 + $0x60] sm:$0xff]
        %v6758 = vld [vmem:[%s6744 + $0x68] sm:$0xff]
        %v6759 = vld [vmem:[%s6744 + $0x70] sm:$0xff]
        %v6760 = vld [vmem:[%s6744 + $0x78] sm:$0xff]
        %v6761 = vld [vmem:[#allocation4 + $0x800] sm:$0xff]
        %v6762 = vld [vmem:[#allocation4 + $0x808] sm:$0xff]
        %v6763 = vld [vmem:[#allocation4 + $0x810] sm:$0xff]
        %v6764 = vld [vmem:[#allocation4 + $0x818] sm:$0xff]
        %v6765 = vld [vmem:[#allocation4 + $0x820] sm:$0xff]
        %v6766 = vld [vmem:[#allocation4 + $0x828] sm:$0xff]
        %v6767 = vld [vmem:[#allocation4 + $0x830] sm:$0xff]
        %v6768 = vld [vmem:[#allocation4 + $0x838] sm:$0xff]
        %v6769 = vld [vmem:[#allocation4 + $0x840] sm:$0xff]
        %v6770 = vld [vmem:[#allocation4 + $0x848] sm:$0xff]
        %v6771 = vld [vmem:[#allocation4 + $0x850] sm:$0xff]
        %v6772 = vld [vmem:[#allocation4 + $0x858] sm:$0xff]
        %v6773 = vld [vmem:[#allocation4 + $0x860] sm:$0xff]
        %v6774 = vld [vmem:[#allocation4 + $0x868] sm:$0xff]
        %v6775 = vld [vmem:[#allocation4 + $0x870] sm:$0xff]
        %v6776 = vld [vmem:[#allocation4 + $0x878] sm:$0xff]
        %v6777 = vmul.f32 %v6745, %v6761
        %v6778 = vmul.f32 %v6746, %v6762
        %v6779 = vmul.f32 %v6747, %v6763
        %v6780 = vmul.f32 %v6748, %v6764
        %v6781 = vmul.f32 %v6749, %v6765
        %v6782 = vmul.f32 %v6750, %v6766
        %v6783 = vmul.f32 %v6751, %v6767
        %v6784 = vmul.f32 %v6752, %v6768
        %v6785 = vmul.f32 %v6753, %v6769
        %v6786 = vmul.f32 %v6754, %v6770
        %v6787 = vmul.f32 %v6755, %v6771
        %v6788 = vmul.f32 %v6756, %v6772
        %v6789 = vmul.f32 %v6757, %v6773
        %v6790 = vmul.f32 %v6758, %v6774
        %v6791 = vmul.f32 %v6759, %v6775
        %v6792 = vmul.f32 %v6760, %v6776
        %v6793 = vadd.f32 %v6728, %v6777
        %v6794 = vadd.f32 %v6729, %v6778
        %v6795 = vadd.f32 %v6730, %v6779
        %v6796 = vadd.f32 %v6731, %v6780
        %v6797 = vadd.f32 %v6732, %v6781
        %v6798 = vadd.f32 %v6733, %v6782
        %v6799 = vadd.f32 %v6734, %v6783
        %v6800 = vadd.f32 %v6735, %v6784
        %v6801 = vadd.f32 %v6736, %v6785
        %v6802 = vadd.f32 %v6737, %v6786
        %v6803 = vadd.f32 %v6738, %v6787
        %v6804 = vadd.f32 %v6739, %v6788
        %v6805 = vadd.f32 %v6740, %v6789
        %v6806 = vadd.f32 %v6741, %v6790
        %v6807 = vadd.f32 %v6742, %v6791
        %v6808 = vadd.f32 %v6743, %v6792
        %s6809 = sadd.s32 %s6678, 1024
        %s6810 = scalar_lea.vmem [#allocation3], %s6809
        %v6811 = vld [vmem:[%s6810] sm:$0xff]
        %v6812 = vld [vmem:[%s6810 + $0x8] sm:$0xff]
        %v6813 = vld [vmem:[%s6810 + $0x10] sm:$0xff]
        %v6814 = vld [vmem:[%s6810 + $0x18] sm:$0xff]
        %v6815 = vld [vmem:[%s6810 + $0x20] sm:$0xff]
        %v6816 = vld [vmem:[%s6810 + $0x28] sm:$0xff]
        %v6817 = vld [vmem:[%s6810 + $0x30] sm:$0xff]
        %v6818 = vld [vmem:[%s6810 + $0x38] sm:$0xff]
        %v6819 = vld [vmem:[%s6810 + $0x40] sm:$0xff]
        %v6820 = vld [vmem:[%s6810 + $0x48] sm:$0xff]
        %v6821 = vld [vmem:[%s6810 + $0x50] sm:$0xff]
        %v6822 = vld [vmem:[%s6810 + $0x58] sm:$0xff]
        %v6823 = vld [vmem:[%s6810 + $0x60] sm:$0xff]
        %v6824 = vld [vmem:[%s6810 + $0x68] sm:$0xff]
        %v6825 = vld [vmem:[%s6810 + $0x70] sm:$0xff]
        %v6826 = vld [vmem:[%s6810 + $0x78] sm:$0xff]
        %v6827 = vld [vmem:[#allocation4 + $0x880] sm:$0xff]
        %v6828 = vld [vmem:[#allocation4 + $0x888] sm:$0xff]
        %v6829 = vld [vmem:[#allocation4 + $0x890] sm:$0xff]
        %v6830 = vld [vmem:[#allocation4 + $0x898] sm:$0xff]
        %v6831 = vld [vmem:[#allocation4 + $0x8a0] sm:$0xff]
        %v6832 = vld [vmem:[#allocation4 + $0x8a8] sm:$0xff]
        %v6833 = vld [vmem:[#allocation4 + $0x8b0] sm:$0xff]
        %v6834 = vld [vmem:[#allocation4 + $0x8b8] sm:$0xff]
        %v6835 = vld [vmem:[#allocation4 + $0x8c0] sm:$0xff]
        %v6836 = vld [vmem:[#allocation4 + $0x8c8] sm:$0xff]
        %v6837 = vld [vmem:[#allocation4 + $0x8d0] sm:$0xff]
        %v6838 = vld [vmem:[#allocation4 + $0x8d8] sm:$0xff]
        %v6839 = vld [vmem:[#allocation4 + $0x8e0] sm:$0xff]
        %v6840 = vld [vmem:[#allocation4 + $0x8e8] sm:$0xff]
        %v6841 = vld [vmem:[#allocation4 + $0x8f0] sm:$0xff]
        %v6842 = vld [vmem:[#allocation4 + $0x8f8] sm:$0xff]
        %v6843 = vmul.f32 %v6811, %v6827
        %v6844 = vmul.f32 %v6812, %v6828
        %v6845 = vmul.f32 %v6813, %v6829
        %v6846 = vmul.f32 %v6814, %v6830
        %v6847 = vmul.f32 %v6815, %v6831
        %v6848 = vmul.f32 %v6816, %v6832
        %v6849 = vmul.f32 %v6817, %v6833
        %v6850 = vmul.f32 %v6818, %v6834
        %v6851 = vmul.f32 %v6819, %v6835
        %v6852 = vmul.f32 %v6820, %v6836
        %v6853 = vmul.f32 %v6821, %v6837
        %v6854 = vmul.f32 %v6822, %v6838
        %v6855 = vmul.f32 %v6823, %v6839
        %v6856 = vmul.f32 %v6824, %v6840
        %v6857 = vmul.f32 %v6825, %v6841
        %v6858 = vmul.f32 %v6826, %v6842
        %v6859 = vadd.f32 %v6793, %v6843
        %v6860 = vadd.f32 %v6794, %v6844
        %v6861 = vadd.f32 %v6795, %v6845
        %v6862 = vadd.f32 %v6796, %v6846
        %v6863 = vadd.f32 %v6797, %v6847
        %v6864 = vadd.f32 %v6798, %v6848
        %v6865 = vadd.f32 %v6799, %v6849
        %v6866 = vadd.f32 %v6800, %v6850
        %v6867 = vadd.f32 %v6801, %v6851
        %v6868 = vadd.f32 %v6802, %v6852
        %v6869 = vadd.f32 %v6803, %v6853
        %v6870 = vadd.f32 %v6804, %v6854
        %v6871 = vadd.f32 %v6805, %v6855
        %v6872 = vadd.f32 %v6806, %v6856
        %v6873 = vadd.f32 %v6807, %v6857
        %v6874 = vadd.f32 %v6808, %v6858
        %s6875 = sadd.s32 %s6678, 2048
        %s6876 = scalar_lea.vmem [#allocation3], %s6875
        %v6877 = vld [vmem:[%s6876] sm:$0xff]
        %v6878 = vld [vmem:[%s6876 + $0x8] sm:$0xff]
        %v6879 = vld [vmem:[%s6876 + $0x10] sm:$0xff]
        %v6880 = vld [vmem:[%s6876 + $0x18] sm:$0xff]
        %v6881 = vld [vmem:[%s6876 + $0x20] sm:$0xff]
        %v6882 = vld [vmem:[%s6876 + $0x28] sm:$0xff]
        %v6883 = vld [vmem:[%s6876 + $0x30] sm:$0xff]
        %v6884 = vld [vmem:[%s6876 + $0x38] sm:$0xff]
        %v6885 = vld [vmem:[%s6876 + $0x40] sm:$0xff]
        %v6886 = vld [vmem:[%s6876 + $0x48] sm:$0xff]
        %v6887 = vld [vmem:[%s6876 + $0x50] sm:$0xff]
        %v6888 = vld [vmem:[%s6876 + $0x58] sm:$0xff]
        %v6889 = vld [vmem:[%s6876 + $0x60] sm:$0xff]
        %v6890 = vld [vmem:[%s6876 + $0x68] sm:$0xff]
        %v6891 = vld [vmem:[%s6876 + $0x70] sm:$0xff]
        %v6892 = vld [vmem:[%s6876 + $0x78] sm:$0xff]
        %v6893 = vld [vmem:[#allocation4 + $0x900] sm:$0xff]
        %v6894 = vld [vmem:[#allocation4 + $0x908] sm:$0xff]
        %v6895 = vld [vmem:[#allocation4 + $0x910] sm:$0xff]
        %v6896 = vld [vmem:[#allocation4 + $0x918] sm:$0xff]
        %v6897 = vld [vmem:[#allocation4 + $0x920] sm:$0xff]
        %v6898 = vld [vmem:[#allocation4 + $0x928] sm:$0xff]
        %v6899 = vld [vmem:[#allocation4 + $0x930] sm:$0xff]
        %v6900 = vld [vmem:[#allocation4 + $0x938] sm:$0xff]
        %v6901 = vld [vmem:[#allocation4 + $0x940] sm:$0xff]
        %v6902 = vld [vmem:[#allocation4 + $0x948] sm:$0xff]
        %v6903 = vld [vmem:[#allocation4 + $0x950] sm:$0xff]
        %v6904 = vld [vmem:[#allocation4 + $0x958] sm:$0xff]
        %v6905 = vld [vmem:[#allocation4 + $0x960] sm:$0xff]
        %v6906 = vld [vmem:[#allocation4 + $0x968] sm:$0xff]
        %v6907 = vld [vmem:[#allocation4 + $0x970] sm:$0xff]
        %v6908 = vld [vmem:[#allocation4 + $0x978] sm:$0xff]
        %v6909 = vmul.f32 %v6877, %v6893
        %v6910 = vmul.f32 %v6878, %v6894
        %v6911 = vmul.f32 %v6879, %v6895
        %v6912 = vmul.f32 %v6880, %v6896
        %v6913 = vmul.f32 %v6881, %v6897
        %v6914 = vmul.f32 %v6882, %v6898
        %v6915 = vmul.f32 %v6883, %v6899
        %v6916 = vmul.f32 %v6884, %v6900
        %v6917 = vmul.f32 %v6885, %v6901
        %v6918 = vmul.f32 %v6886, %v6902
        %v6919 = vmul.f32 %v6887, %v6903
        %v6920 = vmul.f32 %v6888, %v6904
        %v6921 = vmul.f32 %v6889, %v6905
        %v6922 = vmul.f32 %v6890, %v6906
        %v6923 = vmul.f32 %v6891, %v6907
        %v6924 = vmul.f32 %v6892, %v6908
        %v6925 = vadd.f32 %v6859, %v6909
        %v6926 = vadd.f32 %v6860, %v6910
        %v6927 = vadd.f32 %v6861, %v6911
        %v6928 = vadd.f32 %v6862, %v6912
        %v6929 = vadd.f32 %v6863, %v6913
        %v6930 = vadd.f32 %v6864, %v6914
        %v6931 = vadd.f32 %v6865, %v6915
        %v6932 = vadd.f32 %v6866, %v6916
        %v6933 = vadd.f32 %v6867, %v6917
        %v6934 = vadd.f32 %v6868, %v6918
        %v6935 = vadd.f32 %v6869, %v6919
        %v6936 = vadd.f32 %v6870, %v6920
        %v6937 = vadd.f32 %v6871, %v6921
        %v6938 = vadd.f32 %v6872, %v6922
        %v6939 = vadd.f32 %v6873, %v6923
        %v6940 = vadd.f32 %v6874, %v6924
        %s6941 = sadd.s32 %s6678, 3072
        %s6942 = scalar_lea.vmem [#allocation3], %s6941
        %v6943 = vld [vmem:[%s6942] sm:$0xff]
        %v6944 = vld [vmem:[%s6942 + $0x8] sm:$0xff]
        %v6945 = vld [vmem:[%s6942 + $0x10] sm:$0xff]
        %v6946 = vld [vmem:[%s6942 + $0x18] sm:$0xff]
        %v6947 = vld [vmem:[%s6942 + $0x20] sm:$0xff]
        %v6948 = vld [vmem:[%s6942 + $0x28] sm:$0xff]
        %v6949 = vld [vmem:[%s6942 + $0x30] sm:$0xff]
        %v6950 = vld [vmem:[%s6942 + $0x38] sm:$0xff]
        %v6951 = vld [vmem:[%s6942 + $0x40] sm:$0xff]
        %v6952 = vld [vmem:[%s6942 + $0x48] sm:$0xff]
        %v6953 = vld [vmem:[%s6942 + $0x50] sm:$0xff]
        %v6954 = vld [vmem:[%s6942 + $0x58] sm:$0xff]
        %v6955 = vld [vmem:[%s6942 + $0x60] sm:$0xff]
        %v6956 = vld [vmem:[%s6942 + $0x68] sm:$0xff]
        %v6957 = vld [vmem:[%s6942 + $0x70] sm:$0xff]
        %v6958 = vld [vmem:[%s6942 + $0x78] sm:$0xff]
        %v6959 = vld [vmem:[#allocation4 + $0x980] sm:$0xff]
        %v6960 = vld [vmem:[#allocation4 + $0x988] sm:$0xff]
        %v6961 = vld [vmem:[#allocation4 + $0x990] sm:$0xff]
        %v6962 = vld [vmem:[#allocation4 + $0x998] sm:$0xff]
        %v6963 = vld [vmem:[#allocation4 + $0x9a0] sm:$0xff]
        %v6964 = vld [vmem:[#allocation4 + $0x9a8] sm:$0xff]
        %v6965 = vld [vmem:[#allocation4 + $0x9b0] sm:$0xff]
        %v6966 = vld [vmem:[#allocation4 + $0x9b8] sm:$0xff]
        %v6967 = vld [vmem:[#allocation4 + $0x9c0] sm:$0xff]
        %v6968 = vld [vmem:[#allocation4 + $0x9c8] sm:$0xff]
        %v6969 = vld [vmem:[#allocation4 + $0x9d0] sm:$0xff]
        %v6970 = vld [vmem:[#allocation4 + $0x9d8] sm:$0xff]
        %v6971 = vld [vmem:[#allocation4 + $0x9e0] sm:$0xff]
        %v6972 = vld [vmem:[#allocation4 + $0x9e8] sm:$0xff]
        %v6973 = vld [vmem:[#allocation4 + $0x9f0] sm:$0xff]
        %v6974 = vld [vmem:[#allocation4 + $0x9f8] sm:$0xff]
        %v6975 = vmul.f32 %v6943, %v6959
        %v6976 = vmul.f32 %v6944, %v6960
        %v6977 = vmul.f32 %v6945, %v6961
        %v6978 = vmul.f32 %v6946, %v6962
        %v6979 = vmul.f32 %v6947, %v6963
        %v6980 = vmul.f32 %v6948, %v6964
        %v6981 = vmul.f32 %v6949, %v6965
        %v6982 = vmul.f32 %v6950, %v6966
        %v6983 = vmul.f32 %v6951, %v6967
        %v6984 = vmul.f32 %v6952, %v6968
        %v6985 = vmul.f32 %v6953, %v6969
        %v6986 = vmul.f32 %v6954, %v6970
        %v6987 = vmul.f32 %v6955, %v6971
        %v6988 = vmul.f32 %v6956, %v6972
        %v6989 = vmul.f32 %v6957, %v6973
        %v6990 = vmul.f32 %v6958, %v6974
        %v6991 = vadd.f32 %v6925, %v6975
        %v6992 = vadd.f32 %v6926, %v6976
        %v6993 = vadd.f32 %v6927, %v6977
        %v6994 = vadd.f32 %v6928, %v6978
        %v6995 = vadd.f32 %v6929, %v6979
        %v6996 = vadd.f32 %v6930, %v6980
        %v6997 = vadd.f32 %v6931, %v6981
        %v6998 = vadd.f32 %v6932, %v6982
        %v6999 = vadd.f32 %v6933, %v6983
        %v7000 = vadd.f32 %v6934, %v6984
        %v7001 = vadd.f32 %v6935, %v6985
        %v7002 = vadd.f32 %v6936, %v6986
        %v7003 = vadd.f32 %v6937, %v6987
        %v7004 = vadd.f32 %v6938, %v6988
        %v7005 = vadd.f32 %v6939, %v6989
        %v7006 = vadd.f32 %v6940, %v6990
        %s7007 = sadd.s32 %s5691, 128
        %s7008 = scalar_lea.vmem [#allocation2], %s7007
        %v7009 = vld [vmem:[%s7008] sm:$0xff]
        %v7010 = vld [vmem:[%s7008 + $0x8] sm:$0xff]
        %v7011 = vld [vmem:[%s7008 + $0x10] sm:$0xff]
        %v7012 = vld [vmem:[%s7008 + $0x18] sm:$0xff]
        %v7013 = vld [vmem:[%s7008 + $0x20] sm:$0xff]
        %v7014 = vld [vmem:[%s7008 + $0x28] sm:$0xff]
        %v7015 = vld [vmem:[%s7008 + $0x30] sm:$0xff]
        %v7016 = vld [vmem:[%s7008 + $0x38] sm:$0xff]
        %v7017 = vld [vmem:[%s7008 + $0x40] sm:$0xff]
        %v7018 = vld [vmem:[%s7008 + $0x48] sm:$0xff]
        %v7019 = vld [vmem:[%s7008 + $0x50] sm:$0xff]
        %v7020 = vld [vmem:[%s7008 + $0x58] sm:$0xff]
        %v7021 = vld [vmem:[%s7008 + $0x60] sm:$0xff]
        %v7022 = vld [vmem:[%s7008 + $0x68] sm:$0xff]
        %v7023 = vld [vmem:[%s7008 + $0x70] sm:$0xff]
        %v7024 = vld [vmem:[%s7008 + $0x78] sm:$0xff]
        %v7025 = vld [vmem:[#allocation4 + $0xa00] sm:$0xff]
        %v7026 = vld [vmem:[#allocation4 + $0xa08] sm:$0xff]
        %v7027 = vld [vmem:[#allocation4 + $0xa10] sm:$0xff]
        %v7028 = vld [vmem:[#allocation4 + $0xa18] sm:$0xff]
        %v7029 = vld [vmem:[#allocation4 + $0xa20] sm:$0xff]
        %v7030 = vld [vmem:[#allocation4 + $0xa28] sm:$0xff]
        %v7031 = vld [vmem:[#allocation4 + $0xa30] sm:$0xff]
        %v7032 = vld [vmem:[#allocation4 + $0xa38] sm:$0xff]
        %v7033 = vld [vmem:[#allocation4 + $0xa40] sm:$0xff]
        %v7034 = vld [vmem:[#allocation4 + $0xa48] sm:$0xff]
        %v7035 = vld [vmem:[#allocation4 + $0xa50] sm:$0xff]
        %v7036 = vld [vmem:[#allocation4 + $0xa58] sm:$0xff]
        %v7037 = vld [vmem:[#allocation4 + $0xa60] sm:$0xff]
        %v7038 = vld [vmem:[#allocation4 + $0xa68] sm:$0xff]
        %v7039 = vld [vmem:[#allocation4 + $0xa70] sm:$0xff]
        %v7040 = vld [vmem:[#allocation4 + $0xa78] sm:$0xff]
        %v7041 = vmul.f32 %v7009, %v7025
        %v7042 = vmul.f32 %v7010, %v7026
        %v7043 = vmul.f32 %v7011, %v7027
        %v7044 = vmul.f32 %v7012, %v7028
        %v7045 = vmul.f32 %v7013, %v7029
        %v7046 = vmul.f32 %v7014, %v7030
        %v7047 = vmul.f32 %v7015, %v7031
        %v7048 = vmul.f32 %v7016, %v7032
        %v7049 = vmul.f32 %v7017, %v7033
        %v7050 = vmul.f32 %v7018, %v7034
        %v7051 = vmul.f32 %v7019, %v7035
        %v7052 = vmul.f32 %v7020, %v7036
        %v7053 = vmul.f32 %v7021, %v7037
        %v7054 = vmul.f32 %v7022, %v7038
        %v7055 = vmul.f32 %v7023, %v7039
        %v7056 = vmul.f32 %v7024, %v7040
        %v7057 = vadd.f32 %v6991, %v7041
        %v7058 = vadd.f32 %v6992, %v7042
        %v7059 = vadd.f32 %v6993, %v7043
        %v7060 = vadd.f32 %v6994, %v7044
        %v7061 = vadd.f32 %v6995, %v7045
        %v7062 = vadd.f32 %v6996, %v7046
        %v7063 = vadd.f32 %v6997, %v7047
        %v7064 = vadd.f32 %v6998, %v7048
        %v7065 = vadd.f32 %v6999, %v7049
        %v7066 = vadd.f32 %v7000, %v7050
        %v7067 = vadd.f32 %v7001, %v7051
        %v7068 = vadd.f32 %v7002, %v7052
        %v7069 = vadd.f32 %v7003, %v7053
        %v7070 = vadd.f32 %v7004, %v7054
        %v7071 = vadd.f32 %v7005, %v7055
        %v7072 = vadd.f32 %v7006, %v7056
        %s7073 = scalar_lea.vmem [#allocation3], %s7007
        %v7074 = vld [vmem:[%s7073] sm:$0xff]
        %v7075 = vld [vmem:[%s7073 + $0x8] sm:$0xff]
        %v7076 = vld [vmem:[%s7073 + $0x10] sm:$0xff]
        %v7077 = vld [vmem:[%s7073 + $0x18] sm:$0xff]
        %v7078 = vld [vmem:[%s7073 + $0x20] sm:$0xff]
        %v7079 = vld [vmem:[%s7073 + $0x28] sm:$0xff]
        %v7080 = vld [vmem:[%s7073 + $0x30] sm:$0xff]
        %v7081 = vld [vmem:[%s7073 + $0x38] sm:$0xff]
        %v7082 = vld [vmem:[%s7073 + $0x40] sm:$0xff]
        %v7083 = vld [vmem:[%s7073 + $0x48] sm:$0xff]
        %v7084 = vld [vmem:[%s7073 + $0x50] sm:$0xff]
        %v7085 = vld [vmem:[%s7073 + $0x58] sm:$0xff]
        %v7086 = vld [vmem:[%s7073 + $0x60] sm:$0xff]
        %v7087 = vld [vmem:[%s7073 + $0x68] sm:$0xff]
        %v7088 = vld [vmem:[%s7073 + $0x70] sm:$0xff]
        %v7089 = vld [vmem:[%s7073 + $0x78] sm:$0xff]
        %v7090 = vld [vmem:[#allocation4 + $0xa80] sm:$0xff]
        %v7091 = vld [vmem:[#allocation4 + $0xa88] sm:$0xff]
        %v7092 = vld [vmem:[#allocation4 + $0xa90] sm:$0xff]
        %v7093 = vld [vmem:[#allocation4 + $0xa98] sm:$0xff]
        %v7094 = vld [vmem:[#allocation4 + $0xaa0] sm:$0xff]
        %v7095 = vld [vmem:[#allocation4 + $0xaa8] sm:$0xff]
        %v7096 = vld [vmem:[#allocation4 + $0xab0] sm:$0xff]
        %v7097 = vld [vmem:[#allocation4 + $0xab8] sm:$0xff]
        %v7098 = vld [vmem:[#allocation4 + $0xac0] sm:$0xff]
        %v7099 = vld [vmem:[#allocation4 + $0xac8] sm:$0xff]
        %v7100 = vld [vmem:[#allocation4 + $0xad0] sm:$0xff]
        %v7101 = vld [vmem:[#allocation4 + $0xad8] sm:$0xff]
        %v7102 = vld [vmem:[#allocation4 + $0xae0] sm:$0xff]
        %v7103 = vld [vmem:[#allocation4 + $0xae8] sm:$0xff]
        %v7104 = vld [vmem:[#allocation4 + $0xaf0] sm:$0xff]
        %v7105 = vld [vmem:[#allocation4 + $0xaf8] sm:$0xff]
        %v7106 = vmul.f32 %v7074, %v7090
        %v7107 = vmul.f32 %v7075, %v7091
        %v7108 = vmul.f32 %v7076, %v7092
        %v7109 = vmul.f32 %v7077, %v7093
        %v7110 = vmul.f32 %v7078, %v7094
        %v7111 = vmul.f32 %v7079, %v7095
        %v7112 = vmul.f32 %v7080, %v7096
        %v7113 = vmul.f32 %v7081, %v7097
        %v7114 = vmul.f32 %v7082, %v7098
        %v7115 = vmul.f32 %v7083, %v7099
        %v7116 = vmul.f32 %v7084, %v7100
        %v7117 = vmul.f32 %v7085, %v7101
        %v7118 = vmul.f32 %v7086, %v7102
        %v7119 = vmul.f32 %v7087, %v7103
        %v7120 = vmul.f32 %v7088, %v7104
        %v7121 = vmul.f32 %v7089, %v7105
        %v7122 = vadd.f32 %v7057, %v7106
        %v7123 = vadd.f32 %v7058, %v7107
        %v7124 = vadd.f32 %v7059, %v7108
        %v7125 = vadd.f32 %v7060, %v7109
        %v7126 = vadd.f32 %v7061, %v7110
        %v7127 = vadd.f32 %v7062, %v7111
        %v7128 = vadd.f32 %v7063, %v7112
        %v7129 = vadd.f32 %v7064, %v7113
        %v7130 = vadd.f32 %v7065, %v7114
        %v7131 = vadd.f32 %v7066, %v7115
        %v7132 = vadd.f32 %v7067, %v7116
        %v7133 = vadd.f32 %v7068, %v7117
        %v7134 = vadd.f32 %v7069, %v7118
        %v7135 = vadd.f32 %v7070, %v7119
        %v7136 = vadd.f32 %v7071, %v7120
        %v7137 = vadd.f32 %v7072, %v7121
        %s7138 = sadd.s32 %s7007, 1024
        %s7139 = scalar_lea.vmem [#allocation3], %s7138
        %v7140 = vld [vmem:[%s7139] sm:$0xff]
        %v7141 = vld [vmem:[%s7139 + $0x8] sm:$0xff]
        %v7142 = vld [vmem:[%s7139 + $0x10] sm:$0xff]
        %v7143 = vld [vmem:[%s7139 + $0x18] sm:$0xff]
        %v7144 = vld [vmem:[%s7139 + $0x20] sm:$0xff]
        %v7145 = vld [vmem:[%s7139 + $0x28] sm:$0xff]
        %v7146 = vld [vmem:[%s7139 + $0x30] sm:$0xff]
        %v7147 = vld [vmem:[%s7139 + $0x38] sm:$0xff]
        %v7148 = vld [vmem:[%s7139 + $0x40] sm:$0xff]
        %v7149 = vld [vmem:[%s7139 + $0x48] sm:$0xff]
        %v7150 = vld [vmem:[%s7139 + $0x50] sm:$0xff]
        %v7151 = vld [vmem:[%s7139 + $0x58] sm:$0xff]
        %v7152 = vld [vmem:[%s7139 + $0x60] sm:$0xff]
        %v7153 = vld [vmem:[%s7139 + $0x68] sm:$0xff]
        %v7154 = vld [vmem:[%s7139 + $0x70] sm:$0xff]
        %v7155 = vld [vmem:[%s7139 + $0x78] sm:$0xff]
        %v7156 = vld [vmem:[#allocation4 + $0xb00] sm:$0xff]
        %v7157 = vld [vmem:[#allocation4 + $0xb08] sm:$0xff]
        %v7158 = vld [vmem:[#allocation4 + $0xb10] sm:$0xff]
        %v7159 = vld [vmem:[#allocation4 + $0xb18] sm:$0xff]
        %v7160 = vld [vmem:[#allocation4 + $0xb20] sm:$0xff]
        %v7161 = vld [vmem:[#allocation4 + $0xb28] sm:$0xff]
        %v7162 = vld [vmem:[#allocation4 + $0xb30] sm:$0xff]
        %v7163 = vld [vmem:[#allocation4 + $0xb38] sm:$0xff]
        %v7164 = vld [vmem:[#allocation4 + $0xb40] sm:$0xff]
        %v7165 = vld [vmem:[#allocation4 + $0xb48] sm:$0xff]
        %v7166 = vld [vmem:[#allocation4 + $0xb50] sm:$0xff]
        %v7167 = vld [vmem:[#allocation4 + $0xb58] sm:$0xff]
        %v7168 = vld [vmem:[#allocation4 + $0xb60] sm:$0xff]
        %v7169 = vld [vmem:[#allocation4 + $0xb68] sm:$0xff]
        %v7170 = vld [vmem:[#allocation4 + $0xb70] sm:$0xff]
        %v7171 = vld [vmem:[#allocation4 + $0xb78] sm:$0xff]
        %v7172 = vmul.f32 %v7140, %v7156
        %v7173 = vmul.f32 %v7141, %v7157
        %v7174 = vmul.f32 %v7142, %v7158
        %v7175 = vmul.f32 %v7143, %v7159
        %v7176 = vmul.f32 %v7144, %v7160
        %v7177 = vmul.f32 %v7145, %v7161
        %v7178 = vmul.f32 %v7146, %v7162
        %v7179 = vmul.f32 %v7147, %v7163
        %v7180 = vmul.f32 %v7148, %v7164
        %v7181 = vmul.f32 %v7149, %v7165
        %v7182 = vmul.f32 %v7150, %v7166
        %v7183 = vmul.f32 %v7151, %v7167
        %v7184 = vmul.f32 %v7152, %v7168
        %v7185 = vmul.f32 %v7153, %v7169
        %v7186 = vmul.f32 %v7154, %v7170
        %v7187 = vmul.f32 %v7155, %v7171
        %v7188 = vadd.f32 %v7122, %v7172
        %v7189 = vadd.f32 %v7123, %v7173
        %v7190 = vadd.f32 %v7124, %v7174
        %v7191 = vadd.f32 %v7125, %v7175
        %v7192 = vadd.f32 %v7126, %v7176
        %v7193 = vadd.f32 %v7127, %v7177
        %v7194 = vadd.f32 %v7128, %v7178
        %v7195 = vadd.f32 %v7129, %v7179
        %v7196 = vadd.f32 %v7130, %v7180
        %v7197 = vadd.f32 %v7131, %v7181
        %v7198 = vadd.f32 %v7132, %v7182
        %v7199 = vadd.f32 %v7133, %v7183
        %v7200 = vadd.f32 %v7134, %v7184
        %v7201 = vadd.f32 %v7135, %v7185
        %v7202 = vadd.f32 %v7136, %v7186
        %v7203 = vadd.f32 %v7137, %v7187
        %s7204 = sadd.s32 %s7007, 2048
        %s7205 = scalar_lea.vmem [#allocation3], %s7204
        %v7206 = vld [vmem:[%s7205] sm:$0xff]
        %v7207 = vld [vmem:[%s7205 + $0x8] sm:$0xff]
        %v7208 = vld [vmem:[%s7205 + $0x10] sm:$0xff]
        %v7209 = vld [vmem:[%s7205 + $0x18] sm:$0xff]
        %v7210 = vld [vmem:[%s7205 + $0x20] sm:$0xff]
        %v7211 = vld [vmem:[%s7205 + $0x28] sm:$0xff]
        %v7212 = vld [vmem:[%s7205 + $0x30] sm:$0xff]
        %v7213 = vld [vmem:[%s7205 + $0x38] sm:$0xff]
        %v7214 = vld [vmem:[%s7205 + $0x40] sm:$0xff]
        %v7215 = vld [vmem:[%s7205 + $0x48] sm:$0xff]
        %v7216 = vld [vmem:[%s7205 + $0x50] sm:$0xff]
        %v7217 = vld [vmem:[%s7205 + $0x58] sm:$0xff]
        %v7218 = vld [vmem:[%s7205 + $0x60] sm:$0xff]
        %v7219 = vld [vmem:[%s7205 + $0x68] sm:$0xff]
        %v7220 = vld [vmem:[%s7205 + $0x70] sm:$0xff]
        %v7221 = vld [vmem:[%s7205 + $0x78] sm:$0xff]
        %v7222 = vld [vmem:[#allocation4 + $0xb80] sm:$0xff]
        %v7223 = vld [vmem:[#allocation4 + $0xb88] sm:$0xff]
        %v7224 = vld [vmem:[#allocation4 + $0xb90] sm:$0xff]
        %v7225 = vld [vmem:[#allocation4 + $0xb98] sm:$0xff]
        %v7226 = vld [vmem:[#allocation4 + $0xba0] sm:$0xff]
        %v7227 = vld [vmem:[#allocation4 + $0xba8] sm:$0xff]
        %v7228 = vld [vmem:[#allocation4 + $0xbb0] sm:$0xff]
        %v7229 = vld [vmem:[#allocation4 + $0xbb8] sm:$0xff]
        %v7230 = vld [vmem:[#allocation4 + $0xbc0] sm:$0xff]
        %v7231 = vld [vmem:[#allocation4 + $0xbc8] sm:$0xff]
        %v7232 = vld [vmem:[#allocation4 + $0xbd0] sm:$0xff]
        %v7233 = vld [vmem:[#allocation4 + $0xbd8] sm:$0xff]
        %v7234 = vld [vmem:[#allocation4 + $0xbe0] sm:$0xff]
        %v7235 = vld [vmem:[#allocation4 + $0xbe8] sm:$0xff]
        %v7236 = vld [vmem:[#allocation4 + $0xbf0] sm:$0xff]
        %v7237 = vld [vmem:[#allocation4 + $0xbf8] sm:$0xff]
        %v7238 = vmul.f32 %v7206, %v7222
        %v7239 = vmul.f32 %v7207, %v7223
        %v7240 = vmul.f32 %v7208, %v7224
        %v7241 = vmul.f32 %v7209, %v7225
        %v7242 = vmul.f32 %v7210, %v7226
        %v7243 = vmul.f32 %v7211, %v7227
        %v7244 = vmul.f32 %v7212, %v7228
        %v7245 = vmul.f32 %v7213, %v7229
        %v7246 = vmul.f32 %v7214, %v7230
        %v7247 = vmul.f32 %v7215, %v7231
        %v7248 = vmul.f32 %v7216, %v7232
        %v7249 = vmul.f32 %v7217, %v7233
        %v7250 = vmul.f32 %v7218, %v7234
        %v7251 = vmul.f32 %v7219, %v7235
        %v7252 = vmul.f32 %v7220, %v7236
        %v7253 = vmul.f32 %v7221, %v7237
        %v7254 = vadd.f32 %v7188, %v7238
        %v7255 = vadd.f32 %v7189, %v7239
        %v7256 = vadd.f32 %v7190, %v7240
        %v7257 = vadd.f32 %v7191, %v7241
        %v7258 = vadd.f32 %v7192, %v7242
        %v7259 = vadd.f32 %v7193, %v7243
        %v7260 = vadd.f32 %v7194, %v7244
        %v7261 = vadd.f32 %v7195, %v7245
        %v7262 = vadd.f32 %v7196, %v7246
        %v7263 = vadd.f32 %v7197, %v7247
        %v7264 = vadd.f32 %v7198, %v7248
        %v7265 = vadd.f32 %v7199, %v7249
        %v7266 = vadd.f32 %v7200, %v7250
        %v7267 = vadd.f32 %v7201, %v7251
        %v7268 = vadd.f32 %v7202, %v7252
        %v7269 = vadd.f32 %v7203, %v7253
        %s7270 = sadd.s32 %s7007, 3072
        %s7271 = scalar_lea.vmem [#allocation3], %s7270
        %v7272 = vld [vmem:[%s7271] sm:$0xff]
        %v7273 = vld [vmem:[%s7271 + $0x8] sm:$0xff]
        %v7274 = vld [vmem:[%s7271 + $0x10] sm:$0xff]
        %v7275 = vld [vmem:[%s7271 + $0x18] sm:$0xff]
        %v7276 = vld [vmem:[%s7271 + $0x20] sm:$0xff]
        %v7277 = vld [vmem:[%s7271 + $0x28] sm:$0xff]
        %v7278 = vld [vmem:[%s7271 + $0x30] sm:$0xff]
        %v7279 = vld [vmem:[%s7271 + $0x38] sm:$0xff]
        %v7280 = vld [vmem:[%s7271 + $0x40] sm:$0xff]
        %v7281 = vld [vmem:[%s7271 + $0x48] sm:$0xff]
        %v7282 = vld [vmem:[%s7271 + $0x50] sm:$0xff]
        %v7283 = vld [vmem:[%s7271 + $0x58] sm:$0xff]
        %v7284 = vld [vmem:[%s7271 + $0x60] sm:$0xff]
        %v7285 = vld [vmem:[%s7271 + $0x68] sm:$0xff]
        %v7286 = vld [vmem:[%s7271 + $0x70] sm:$0xff]
        %v7287 = vld [vmem:[%s7271 + $0x78] sm:$0xff]
        %v7288 = vld [vmem:[#allocation4 + $0xc00] sm:$0xff]
        %v7289 = vld [vmem:[#allocation4 + $0xc08] sm:$0xff]
        %v7290 = vld [vmem:[#allocation4 + $0xc10] sm:$0xff]
        %v7291 = vld [vmem:[#allocation4 + $0xc18] sm:$0xff]
        %v7292 = vld [vmem:[#allocation4 + $0xc20] sm:$0xff]
        %v7293 = vld [vmem:[#allocation4 + $0xc28] sm:$0xff]
        %v7294 = vld [vmem:[#allocation4 + $0xc30] sm:$0xff]
        %v7295 = vld [vmem:[#allocation4 + $0xc38] sm:$0xff]
        %v7296 = vld [vmem:[#allocation4 + $0xc40] sm:$0xff]
        %v7297 = vld [vmem:[#allocation4 + $0xc48] sm:$0xff]
        %v7298 = vld [vmem:[#allocation4 + $0xc50] sm:$0xff]
        %v7299 = vld [vmem:[#allocation4 + $0xc58] sm:$0xff]
        %v7300 = vld [vmem:[#allocation4 + $0xc60] sm:$0xff]
        %v7301 = vld [vmem:[#allocation4 + $0xc68] sm:$0xff]
        %v7302 = vld [vmem:[#allocation4 + $0xc70] sm:$0xff]
        %v7303 = vld [vmem:[#allocation4 + $0xc78] sm:$0xff]
        %v7304 = vmul.f32 %v7272, %v7288
        %v7305 = vmul.f32 %v7273, %v7289
        %v7306 = vmul.f32 %v7274, %v7290
        %v7307 = vmul.f32 %v7275, %v7291
        %v7308 = vmul.f32 %v7276, %v7292
        %v7309 = vmul.f32 %v7277, %v7293
        %v7310 = vmul.f32 %v7278, %v7294
        %v7311 = vmul.f32 %v7279, %v7295
        %v7312 = vmul.f32 %v7280, %v7296
        %v7313 = vmul.f32 %v7281, %v7297
        %v7314 = vmul.f32 %v7282, %v7298
        %v7315 = vmul.f32 %v7283, %v7299
        %v7316 = vmul.f32 %v7284, %v7300
        %v7317 = vmul.f32 %v7285, %v7301
        %v7318 = vmul.f32 %v7286, %v7302
        %v7319 = vmul.f32 %v7287, %v7303
        %v7320 = vadd.f32 %v7254, %v7304
        %v7321 = vadd.f32 %v7255, %v7305
        %v7322 = vadd.f32 %v7256, %v7306
        %v7323 = vadd.f32 %v7257, %v7307
        %v7324 = vadd.f32 %v7258, %v7308
        %v7325 = vadd.f32 %v7259, %v7309
        %v7326 = vadd.f32 %v7260, %v7310
        %v7327 = vadd.f32 %v7261, %v7311
        %v7328 = vadd.f32 %v7262, %v7312
        %v7329 = vadd.f32 %v7263, %v7313
        %v7330 = vadd.f32 %v7264, %v7314
        %v7331 = vadd.f32 %v7265, %v7315
        %v7332 = vadd.f32 %v7266, %v7316
        %v7333 = vadd.f32 %v7267, %v7317
        %v7334 = vadd.f32 %v7268, %v7318
        %v7335 = vadd.f32 %v7269, %v7319
        %7336 = vst [vmem:[%s216] sm:$0xff] %v7320
        %7337 = vst [vmem:[%s216 + $0x8] sm:$0xff] %v7321
        %7338 = vst [vmem:[%s216 + $0x10] sm:$0xff] %v7322
        %7339 = vst [vmem:[%s216 + $0x18] sm:$0xff] %v7323
        %7340 = vst [vmem:[%s216 + $0x20] sm:$0xff] %v7324
        %7341 = vst [vmem:[%s216 + $0x28] sm:$0xff] %v7325
        %7342 = vst [vmem:[%s216 + $0x30] sm:$0xff] %v7326
        %7343 = vst [vmem:[%s216 + $0x38] sm:$0xff] %v7327
        %7344 = vst [vmem:[%s216 + $0x40] sm:$0xff] %v7328
        %7345 = vst [vmem:[%s216 + $0x48] sm:$0xff] %v7329
        %7346 = vst [vmem:[%s216 + $0x50] sm:$0xff] %v7330
        %7347 = vst [vmem:[%s216 + $0x58] sm:$0xff] %v7331
        %7348 = vst [vmem:[%s216 + $0x60] sm:$0xff] %v7332
        %7349 = vst [vmem:[%s216 + $0x68] sm:$0xff] %v7333
        %7350 = vst [vmem:[%s216 + $0x70] sm:$0xff] %v7334
        %7351 = vst [vmem:[%s216 + $0x78] sm:$0xff] %v7335
      $region48: #{fused_forward.1} parent=39 // pred_fallthru
        _
      %s7352 = ssub.s32 %s16, 1
      %p7353 = scmp.gt.s32.totalorder %s7352, 0
      %s7354 = scalar_select %p7353, %s7352, 0
      %s7355 = smul.u32 16, %s7354
      %p7356 = scmp.lt.s32.totalorder %s7355, 111
      %s7357 = scalar_select %p7356, %s7355, 111
      %s7358 = smul.addr %s7357, 8
      %s7359 = scalar_lea.vmem %s5, %s7358
      // Predicated region
      $region49: #{fused_forward.1} parent=39 // pred_check
        %p7360 = pneg %p145
      $region50: #{fused_forward.1} parent=39 // pred_check_branch
        %7362 = sbr.rel (%p7360) target = $region52
      $region51: #{fused_forward.1} parent=39 // pred_region
        %s7363 = ssub.s32 %s16, 1
        %p7364 = scmp.gt.s32.totalorder %s7363, 0
        %s7365 = scalar_select %p7364, %s7363, 0
        %s7366 = smul.u32 16, %s7365
      $region52: #{fused_forward.1} parent=39 // pred_fallthru
        _
    $region40: #{fused_forward.1} parent=5 // pred_fallthru
      _
    %p7367 = scmp.le.s32.totalorder 2, %s11
    // Predicated region
    $region53: #{fused_forward.1} parent=5 // pred_check
      %p7368 = pneg %p7367
    $region54: #{fused_forward.1} parent=5 // pred_check_branch
      %7370 = sbr.rel (%p7368) target = $region56
    $region55: #{fused_forward.1} parent=5 // pred_region
      %s7371 = ssub.s32 %s11, 2
      // Predicated region
      $region57: #{fused_forward.1} parent=55 // pred_check
        %p7372 = pneg %p151
      $region58: #{fused_forward.1} parent=55 // pred_check_branch
        %7374 = sbr.rel (%p7372) target = $region60
      $region59: #{fused_forward.1} parent=55 // pred_region
        %s7375 = ssub.s32 %s17, 1
        %p7376 = scmp.gt.s32.totalorder %s7375, 0
        %s7377 = scalar_select %p7376, %s7375, 0
        %s7378 = smul.u32 16, %s7377
        %p7379 = scmp.lt.s32.totalorder %s7378, 111
        %s7380 = scalar_select %p7379, %s7378, 111
        %s7381 = smul.addr %s7380, 8
        %s7382 = scalar_lea.vmem %s5, %s7381
      $region60: #{fused_forward.1} parent=55 // pred_fallthru
        _
    $region56: #{fused_forward.1} parent=5 // pred_fallthru
      _
  $region6: #{fused_forward.1} parent=0 // loop_footer
    %s15 = sadd.s32 1, %s11
  $region7: #{fused_forward.1} parent=0 // loop_footer_branch
    %10 = sbr.rel target = $region3
  $region8: #{fused_forward.1} parent=0 // loop_exit
    _

</llo_original>
